<compile_context>
chip_gen: v7x
topology: tpu7x:2x2x1
jax: 0.10.0
libtpu: 0.0.40
codegen_flags: <defaults>
</compile_context>

<pallas_src>
import functools

import numpy as np

import jax
import jax.numpy as jnp
from jax.experimental import pallas as pl
from jax.experimental.pallas import tpu as pltpu

SELU_ALPHA = 1.6732632423543772
SELU_SCALE = 1.0507009873554805
BN_EPS = 1e-5


# ---------------------------------------------------------------------------
# Fused Pallas kernel: conv1 -> conv2 -> pool/unpool -> conv1_t -> conv2_t
# ---------------------------------------------------------------------------
def _fused_kernel(x_ref,
                  wb1_ref, p1_ref, g1_ref, gt1_ref,
                  wb2_ref, p2_ref, g2_ref, gt2_ref,
                  wb3_ref, p3_ref, prow3_ref,
                  wb4_ref, bn4_ref, prow4_ref,
                  psr_ref, psc_ref,
                  o_ref):
    N = x_ref.shape[0]
    f32 = jnp.float32

    def conv_band(xs, wb_ref, oh):
        # xs[n]: (H, W*Cin) value; wb_ref: (KH, W*Cin, OW*Cout) band weights.
        kh = wb_ref.shape[0]
        outs = []
        for xv in xs:
            acc = None
            for i in range(kh):
                t = jnp.dot(xv[i:i + oh, :], wb_ref[i], preferred_element_type=f32)
                acc = t if acc is None else acc + t
            outs.append(acc)
        return outs

    def bn_selu(ys, p_ref, g_ref, gt_ref, cnt):
        # ys[n]: (OH, OW*C).  p_ref: (3, C) = [bias; gamma; beta].
        # g_ref: (OW*C, C) sums the OW interleaved copies of each channel;
        # gt_ref = g_ref.T broadcasts per-channel values back to the tiled layout.
        g = g_ref[...]
        gt = gt_ref[...]
        bias_t = jnp.dot(p_ref[0:1, :], gt, preferred_element_type=f32)
        ys = [y + bias_t for y in ys]
        s1 = None
        s2 = None
        for y in ys:                                   # one-pass moments
            a = jnp.sum(y, axis=0, keepdims=True)
            b = jnp.sum(y * y, axis=0, keepdims=True)
            s1 = a if s1 is None else s1 + a
            s2 = b if s2 is None else s2 + b
        inv = 1.0 / float(cnt)
        mean_c = jnp.dot(s1, g, preferred_element_type=f32) * inv
        msq_c = jnp.dot(s2, g, preferred_element_type=f32) * inv
        var_c = jnp.maximum(msq_c - mean_c * mean_c, 0.0)
        scale_c = p_ref[1:2, :] * jax.lax.rsqrt(var_c + BN_EPS)
        shift_c = p_ref[2:3, :] - mean_c * scale_c
        scale_t = jnp.dot(scale_c, gt, preferred_element_type=f32)
        shift_t = jnp.dot(shift_c, gt, preferred_element_type=f32)
        out = []
        for y in ys:
            z = y * scale_t + shift_t
            out.append(SELU_SCALE * jnp.where(z > 0, z, SELU_ALPHA * (jnp.exp(z) - 1.0)))
        return out

    def pool_unpool(ys, psr, psc):
        # MaxUnpool(MaxPool(x)) == keep only the first (row-major) max of every 2x2
        # window, zeros elsewhere.  Window mates come from permutation matmuls.
        r, wc = ys[0].shape                                 # (12, 96), C = 8
        col = jax.lax.broadcasted_iota(jnp.int32, (1, wc), 1)
        row = jax.lax.broadcasted_iota(jnp.int32, (r, 1), 0)
        is_left = (col & 8) == 0        # C == 8 -> low/high half of each 16-lane window
        is_even = (row & 1) == 0
        out = []
        for y in ys:
            h = jnp.dot(y, psc, preferred_element_type=f32)   # horizontal window mate
            v = jnp.dot(psr, y, preferred_element_type=f32)   # vertical window mate
            d = jnp.dot(psr, h, preferred_element_type=f32)   # diagonal window mate
            m = jnp.maximum(jnp.maximum(y, h), jnp.maximum(v, d))
            keep = ((y == m)
                    & (is_left | (h != m))
                    & (is_even | ((v != m) & (d != m))))
            out.append(jnp.where(keep, y, 0.0))
        return out

    # ---- conv1: Conv2d(1, 32, k=4) + BN + SELU       (16,16) -> (13, 13*32) ----
    xs0 = [x_ref[n] for n in range(N)]
    y1 = conv_band(xs0, wb1_ref, oh=13)
    y1 = bn_selu(y1, p1_ref, g1_ref, gt1_ref, cnt=N * 13 * 13)

    # ---- conv2: Conv2d(32, 8, k=2) + BN + SELU       -> (12, 12*8) ----
    y2 = conv_band(y1, wb2_ref, oh=12)
    y2 = bn_selu(y2, p2_ref, g2_ref, gt2_ref, cnt=N * 12 * 12)

    # ---- MaxPool2d(2,2,return_indices) + MaxUnpool2d(2,2) fused ----
    y2 = pool_unpool(y2, psr_ref[...], psc_ref[...])

    # ---- conv1_t: ConvTranspose2d(8, 32, k=2) + BN + SELU  -> (13, 13*32) ----
    xp3 = [jnp.dot(prow3_ref[...], y, preferred_element_type=f32) for y in y2]   # row pad
    y3 = conv_band(xp3, wb3_ref, oh=13)
    y3 = bn_selu(y3, p3_ref, g1_ref, gt1_ref, cnt=N * 13 * 13)   # same (OW=13, C=32) -> reuse G

    # ---- conv2_t: ConvTranspose2d(32, 1, k=4) + LazyBN(1ch) + Sigmoid -> (16,16) ----
    xp4 = [jnp.dot(prow4_ref[...], y, preferred_element_type=f32) for y in y3]   # row pad
    y4 = conv_band(xp4, wb4_ref, oh=16)
    bias4 = bn4_ref[0]
    gamma4 = bn4_ref[1]
    beta4 = bn4_ref[2]
    y4 = [y + bias4 for y in y4]
    s1 = None
    s2 = None
    for y in y4:                                       # global stats (single channel)
        a = jnp.sum(jnp.sum(y, axis=1, keepdims=True), axis=0, keepdims=True)
        b = jnp.sum(jnp.sum(y * y, axis=1, keepdims=True), axis=0, keepdims=True)
        s1 = a if s1 is None else s1 + a
        s2 = b if s2 is None else s2 + b
    inv = 1.0 / float(N * 16 * 16)
    mean = s1 * inv
    var = jnp.maximum(s2 * inv - mean * mean, 0.0)
    scale = gamma4 * jax.lax.rsqrt(var + BN_EPS)
    shift = beta4 - mean * scale
    for n in range(N):
        z = y4[n] * scale + shift
        o_ref[n] = pl.reciprocal(1.0 + jnp.exp(-z), approx=False)   # sigmoid (EUP path)


# ---------------------------------------------------------------------------
# Parameter packing (plain JAX / numpy, off the hot path)
# ---------------------------------------------------------------------------
def pack_params(params):
    f32 = jnp.float32

    def conv_band_weights(w, w_in):
        # PyTorch Conv2d weight (Cout, Cin, KH, KW) -> (KH, w_in*Cin, OW*Cout) band matrices.
        cout, cin, kh, kw = w.shape
        ow = w_in - kw + 1
        eye_ow = jnp.eye(ow, dtype=f32)
        rows = []
        for i in range(kh):
            m = jnp.zeros((w_in * cin, ow * cout), f32)
            for j in range(kw):
                blk = jnp.kron(eye_ow, w[:, :, i, j].T.astype(f32))     # (ow*cin, ow*cout)
                m = m.at[j * cin:j * cin + ow * cin, :].add(blk)
            rows.append(m)
        return jnp.stack(rows, 0)

    def convT_band_weights(w, w_in):
        # PyTorch ConvTranspose2d weight (Cin, Cout, KH, KW), stride 1, padding 0:
        # equivalent to a plain conv over the (K-1)-zero-padded input with the spatially
        # flipped kernel.  The column zero-padding is folded into the band weights.
        cin, cout, kh, kw = w.shape
        pad = kw - 1
        wp = w_in + 2 * pad
        ow = w_in + kw - 1
        eye_ow = jnp.eye(ow, dtype=f32)
        rows = []
        for i in range(kh):
            m = jnp.zeros((wp * cin, ow * cout), f32)
            for j in range(kw):
                blk = jnp.kron(eye_ow, w[:, :, kh - 1 - i, kw - 1 - j].astype(f32))
                m = m.at[j * cin:j * cin + ow * cin, :].add(blk)
            rows.append(m)
        band = jnp.stack(rows, 0)
        return band[:, pad * cin:pad * cin + w_in * cin, :]      # fold column zero-padding

    def group_mats(ow, c):
        g = np.tile(np.eye(c, dtype=np.float32), (ow, 1))        # (ow*c, c)
        return jnp.asarray(g), jnp.asarray(g.T)

    # encoder
    wb1 = conv_band_weights(params["conv1_w"], 16)               # (4, 16, 416)
    prm1 = jnp.stack([params["conv1_b"], params["bn1_g"], params["bn1_b"]], 0)
    g1, gt1 = group_mats(13, 32)
    wb2 = conv_band_weights(params["conv2_w"], 13)               # (2, 416, 96)
    prm2 = jnp.stack([params["conv2_b"], params["bn2_g"], params["bn2_b"]], 0)
    g2, gt2 = group_mats(12, 8)

    # pool/unpool neighbour permutations (2x2 windows, C = 8 channels on the lane axis)
    psr = jnp.asarray(np.eye(12, dtype=np.float32)[np.arange(12) ^ 1])   # swap row pairs
    pc = np.zeros((96, 96), np.float32)
    pc[np.arange(96), np.arange(96) ^ 8] = 1.0                           # swap lane half-windows
    psc = jnp.asarray(pc)

    # decoder
    wb3 = convT_band_weights(params["conv1t_w"], 12)             # (2, 96, 416)
    prm3 = jnp.stack([params["conv1t_b"], params["bn3_g"], params["bn3_b"]], 0)
    prow3 = jnp.asarray(np.eye(14, 12, k=-1, dtype=np.float32))  # row zero-padding (pad=1)
    wb4 = convT_band_weights(params["conv2t_w"], 13)             # (4, 416, 16)
    bn4 = jnp.concatenate([params["conv2t_b"], params["bn4_g"], params["bn4_b"]], 0)
    prow4 = jnp.asarray(np.eye(19, 13, k=-3, dtype=np.float32))  # row zero-padding (pad=3)

    return (wb1, prm1, g1, gt1,
            wb2, prm2, g2, gt2,
            wb3, prm3, prow3,
            wb4, bn4, prow4,
            psr, psc)


# ---------------------------------------------------------------------------
# Public forward: NCHW in / NCHW out, one pallas_call
# ---------------------------------------------------------------------------
_VMEM = pl.BlockSpec(memory_space=pltpu.MemorySpace.VMEM)
_SMEM = pl.BlockSpec(memory_space=pltpu.MemorySpace.SMEM)


@jax.jit
def conv_autoencoder_forward(x_nchw, packed):
    N, _, H, W = x_nchw.shape
    x = x_nchw.reshape(N, H, W)          # Cin == 1, so NHWC-(H, W*C) layout is just (N, H, W)
    out = pl.pallas_call(
        _fused_kernel,
        out_shape=jax.ShapeDtypeStruct((N, H, W), jnp.float32),
        in_specs=[_VMEM] * 13 + [_SMEM] + [_VMEM] * 3,
        out_specs=_VMEM,
        compiler_params=pltpu.CompilerParams(vmem_limit_bytes=32 * 1024 * 1024),
    )(x, *packed)
    return out.reshape(N, 1, H, W)


# ---------------------------------------------------------------------------
# Pure-JAX reference (direct definitions) for a correctness check
# ---------------------------------------------------------------------------
def reference_forward(x, params):
    def conv(x, w, b):
        y = jax.lax.conv_general_dilated(
            x, w, (1, 1), "VALID", dimension_numbers=("NCHW", "OIHW", "NCHW"),
            precision=jax.lax.Precision.HIGHEST)
        return y + b.reshape(1, -1, 1, 1)

    def convT(x, w, b):   # w: (Cin, Cout, KH, KW); stride=1, padding=0
        Nn, Ci, H, W = x.shape
        Cout, KH, KW = w.shape[1], w.shape[2], w.shape[3]
        y = jnp.zeros((Nn, Cout, H + KH - 1, W + KW - 1), jnp.float32)
        for kh in range(KH):
            for kw in range(KW):
                y = y.at[:, :, kh:kh + H, kw:kw + W].add(
                    jnp.einsum("nchw,cd->ndhw", x, w[:, :, kh, kw],
                               precision=jax.lax.Precision.HIGHEST))
        return y + b.reshape(1, -1, 1, 1)

    def bn(x, g, b):
        mean = x.mean(axis=(0, 2, 3), keepdims=True)
        var = ((x - mean) ** 2).mean(axis=(0, 2, 3), keepdims=True)
        return (x - mean) / jnp.sqrt(var + BN_EPS) * g.reshape(1, -1, 1, 1) + b.reshape(1, -1, 1, 1)

    def selu(x):
        return SELU_SCALE * jnp.where(x > 0, x, SELU_ALPHA * (jnp.exp(x) - 1.0))

    x = selu(bn(conv(x, params["conv1_w"], params["conv1_b"]), params["bn1_g"], params["bn1_b"]))
    x = selu(bn(conv(x, params["conv2_w"], params["conv2_b"]), params["bn2_g"], params["bn2_b"]))

    Nn, C, H, W = x.shape
    x6 = x.reshape(Nn, C, H // 2, 2, W // 2, 2)
    m = x6.max(axis=(3, 5), keepdims=True)
    eq = (x6 == m)
    eqf = jnp.transpose(eq, (0, 1, 2, 4, 3, 5)).reshape(Nn, C, H // 2, W // 2, 4)
    first = (jnp.cumsum(eqf.astype(jnp.int32), axis=-1) == 1) & eqf
    firstw = jnp.transpose(first.reshape(Nn, C, H // 2, W // 2, 2, 2), (0, 1, 2, 4, 3, 5))
    x = jnp.where(firstw, x6, 0.0).reshape(Nn, C, H, W)

    x = selu(bn(convT(x, params["conv1t_w"], params["conv1t_b"]), params["bn3_g"], params["bn3_b"]))
    x = bn(convT(x, params["conv2t_w"], params["conv2t_b"]), params["bn4_g"], params["bn4_b"])
    return 1.0 / (1.0 + jnp.exp(-x))


# ---------------------------------------------------------------------------
def init_params(key):
    ks = jax.random.split(key, 16)
    n = functools.partial(jax.random.normal, dtype=jnp.float32)
    return {
        "conv1_w": 0.2 * n(ks[0], (32, 1, 4, 4)),
        "conv1_b": 0.1 * n(ks[1], (32,)),
        "conv2_w": 0.1 * n(ks[2], (8, 32, 2, 2)),
        "conv2_b": 0.1 * n(ks[3], (8,)),
        "conv1t_w": 0.1 * n(ks[4], (8, 32, 2, 2)),    # ConvTranspose2d weight: (Cin, Cout, KH, KW)
        "conv1t_b": 0.1 * n(ks[5], (32,)),
        "conv2t_w": 0.1 * n(ks[6], (32, 1, 4, 4)),
        "conv2t_b": 0.1 * n(ks[7], (1,)),
        "bn1_g": 1.0 + 0.1 * n(ks[8], (32,)), "bn1_b": 0.1 * n(ks[9], (32,)),
        "bn2_g": 1.0 + 0.1 * n(ks[10], (8,)), "bn2_b": 0.1 * n(ks[11], (8,)),
        "bn3_g": 1.0 + 0.1 * n(ks[12], (32,)), "bn3_b": 0.1 * n(ks[13], (32,)),
        "bn4_g": 1.0 + 0.1 * n(ks[14], (1,)), "bn4_b": 0.1 * n(ks[15], (1,)),
    }


if __name__ == "__main__":
    key = jax.random.PRNGKey(0)
    k_in, k_par = jax.random.split(key)
    x = jax.random.normal(k_in, (2, 1, 16, 16), dtype=jnp.float32)   # NCHW, like PyTorch
    params = init_params(k_par)
    packed = pack_params(params)

    out = conv_autoencoder_forward(x, packed)
    out = jax.block_until_ready(out)

    assert out.shape == (2, 1, 16, 16), out.shape
    assert bool(jnp.all(jnp.isfinite(out)))

    ref = jax.block_until_ready(reference_forward(x, params))
    max_err = float(jnp.max(jnp.abs(out - ref)))
    assert max_err < 5e-3, f"max abs error vs reference: {max_err}"

    print("KERNEL_OK")
</pallas_src>

<mosaic_0001>
module attributes {stable_mosaic.version = 11 : i64} {
  func.func @_fused_kernel(%arg0: memref<2x16x16xf32, #tpu.memory_space<vmem>>, %arg1: memref<4x16x416xf32, #tpu.memory_space<vmem>>, %arg2: memref<3x32xf32, #tpu.memory_space<vmem>>, %arg3: memref<416x32xf32, #tpu.memory_space<vmem>>, %arg4: memref<32x416xf32, #tpu.memory_space<vmem>>, %arg5: memref<2x416x96xf32, #tpu.memory_space<vmem>>, %arg6: memref<3x8xf32, #tpu.memory_space<vmem>>, %arg7: memref<96x8xf32, #tpu.memory_space<vmem>>, %arg8: memref<8x96xf32, #tpu.memory_space<vmem>>, %arg9: memref<2x96x416xf32, #tpu.memory_space<vmem>>, %arg10: memref<3x32xf32, #tpu.memory_space<vmem>>, %arg11: memref<14x12xf32, #tpu.memory_space<vmem>>, %arg12: memref<4x416x16xf32, #tpu.memory_space<vmem>>, %arg13: memref<3xf32, #tpu.memory_space<smem>>, %arg14: memref<19x13xf32, #tpu.memory_space<vmem>>, %arg15: memref<12x12xf32, #tpu.memory_space<vmem>>, %arg16: memref<96x96xf32, #tpu.memory_space<vmem>>, %arg17: memref<2x16x16xf32, #tpu.memory_space<vmem>>) attributes {dimension_semantics = [], scalar_prefetch = 0 : i64, scratch_operands = 0 : i64, tpu.core_type = #tpu.core_type<tc>} {
    %c0 = arith.constant 0 : index
    %c0_0 = arith.constant 0 : index
    %c0_1 = arith.constant 0 : index
    %0 = vector.load %arg0[%c0, %c0_0, %c0_1] : memref<2x16x16xf32, #tpu.memory_space<vmem>>, vector<1x16x16xf32>
    %1 = vector.shape_cast %0 : vector<1x16x16xf32> to vector<16x16xf32>
    %c1 = arith.constant 1 : index
    %c0_2 = arith.constant 0 : index
    %c0_3 = arith.constant 0 : index
    %2 = vector.load %arg0[%c1, %c0_2, %c0_3] : memref<2x16x16xf32, #tpu.memory_space<vmem>>, vector<1x16x16xf32>
    %3 = vector.shape_cast %2 : vector<1x16x16xf32> to vector<16x16xf32>
    %4 = vector.extract_strided_slice %1 {offsets = [0, 0], sizes = [13, 16], strides = [1, 1]} : vector<16x16xf32> to vector<13x16xf32>
    %c0_4 = arith.constant 0 : index
    %c0_5 = arith.constant 0 : index
    %c0_6 = arith.constant 0 : index
    %5 = vector.load %arg1[%c0_4, %c0_5, %c0_6] : memref<4x16x416xf32, #tpu.memory_space<vmem>>, vector<1x16x416xf32>
    %6 = vector.shape_cast %5 : vector<1x16x416xf32> to vector<16x416xf32>
    %cst = arith.constant dense<0.000000e+00> : vector<13x416xf32>
    %7 = tpu.matmul %4, %6, %cst {dimension_numbers = #tpu.dot_dimension_numbers<[1], [0], [0], [1], [0, 0, 1, 1], [], []>} : vector<13x16xf32>, vector<16x416xf32>, vector<13x416xf32> -> vector<13x416xf32>
    %8 = vector.extract_strided_slice %1 {offsets = [1, 0], sizes = [13, 16], strides = [1, 1]} : vector<16x16xf32> to vector<13x16xf32>
    %c1_7 = arith.constant 1 : index
    %c0_8 = arith.constant 0 : index
    %c0_9 = arith.constant 0 : index
    %9 = vector.load %arg1[%c1_7, %c0_8, %c0_9] : memref<4x16x416xf32, #tpu.memory_space<vmem>>, vector<1x16x416xf32>
    %10 = vector.shape_cast %9 : vector<1x16x416xf32> to vector<16x416xf32>
    %cst_10 = arith.constant dense<0.000000e+00> : vector<13x416xf32>
    %11 = tpu.matmul %8, %10, %cst_10 {dimension_numbers = #tpu.dot_dimension_numbers<[1], [0], [0], [1], [0, 0, 1, 1], [], []>} : vector<13x16xf32>, vector<16x416xf32>, vector<13x416xf32> -> vector<13x416xf32>
    %12 = arith.addf %7, %11 : vector<13x416xf32>
    %13 = vector.extract_strided_slice %1 {offsets = [2, 0], sizes = [13, 16], strides = [1, 1]} : vector<16x16xf32> to vector<13x16xf32>
    %c2 = arith.constant 2 : index
    %c0_11 = arith.constant 0 : index
    %c0_12 = arith.constant 0 : index
    %14 = vector.load %arg1[%c2, %c0_11, %c0_12] : memref<4x16x416xf32, #tpu.memory_space<vmem>>, vector<1x16x416xf32>
    %15 = vector.shape_cast %14 : vector<1x16x416xf32> to vector<16x416xf32>
    %cst_13 = arith.constant dense<0.000000e+00> : vector<13x416xf32>
    %16 = tpu.matmul %13, %15, %cst_13 {dimension_numbers = #tpu.dot_dimension_numbers<[1], [0], [0], [1], [0, 0, 1, 1], [], []>} : vector<13x16xf32>, vector<16x416xf32>, vector<13x416xf32> -> vector<13x416xf32>
    %17 = arith.addf %12, %16 : vector<13x416xf32>
    %18 = vector.extract_strided_slice %1 {offsets = [3, 0], sizes = [13, 16], strides = [1, 1]} : vector<16x16xf32> to vector<13x16xf32>
    %c3 = arith.constant 3 : index
    %c0_14 = arith.constant 0 : index
    %c0_15 = arith.constant 0 : index
    %19 = vector.load %arg1[%c3, %c0_14, %c0_15] : memref<4x16x416xf32, #tpu.memory_space<vmem>>, vector<1x16x416xf32>
    %20 = vector.shape_cast %19 : vector<1x16x416xf32> to vector<16x416xf32>
    %cst_16 = arith.constant dense<0.000000e+00> : vector<13x416xf32>
    %21 = tpu.matmul %18, %20, %cst_16 {dimension_numbers = #tpu.dot_dimension_numbers<[1], [0], [0], [1], [0, 0, 1, 1], [], []>} : vector<13x16xf32>, vector<16x416xf32>, vector<13x416xf32> -> vector<13x416xf32>
    %22 = arith.addf %17, %21 : vector<13x416xf32>
    %23 = vector.extract_strided_slice %3 {offsets = [0, 0], sizes = [13, 16], strides = [1, 1]} : vector<16x16xf32> to vector<13x16xf32>
    %c0_17 = arith.constant 0 : index
    %c0_18 = arith.constant 0 : index
    %c0_19 = arith.constant 0 : index
    %24 = vector.load %arg1[%c0_17, %c0_18, %c0_19] : memref<4x16x416xf32, #tpu.memory_space<vmem>>, vector<1x16x416xf32>
    %25 = vector.shape_cast %24 : vector<1x16x416xf32> to vector<16x416xf32>
    %cst_20 = arith.constant dense<0.000000e+00> : vector<13x416xf32>
    %26 = tpu.matmul %23, %25, %cst_20 {dimension_numbers = #tpu.dot_dimension_numbers<[1], [0], [0], [1], [0, 0, 1, 1], [], []>} : vector<13x16xf32>, vector<16x416xf32>, vector<13x416xf32> -> vector<13x416xf32>
    %27 = vector.extract_strided_slice %3 {offsets = [1, 0], sizes = [13, 16], strides = [1, 1]} : vector<16x16xf32> to vector<13x16xf32>
    %c1_21 = arith.constant 1 : index
    %c0_22 = arith.constant 0 : index
    %c0_23 = arith.constant 0 : index
    %28 = vector.load %arg1[%c1_21, %c0_22, %c0_23] : memref<4x16x416xf32, #tpu.memory_space<vmem>>, vector<1x16x416xf32>
    %29 = vector.shape_cast %28 : vector<1x16x416xf32> to vector<16x416xf32>
    %cst_24 = arith.constant dense<0.000000e+00> : vector<13x416xf32>
    %30 = tpu.matmul %27, %29, %cst_24 {dimension_numbers = #tpu.dot_dimension_numbers<[1], [0], [0], [1], [0, 0, 1, 1], [], []>} : vector<13x16xf32>, vector<16x416xf32>, vector<13x416xf32> -> vector<13x416xf32>
    %31 = arith.addf %26, %30 : vector<13x416xf32>
    %32 = vector.extract_strided_slice %3 {offsets = [2, 0], sizes = [13, 16], strides = [1, 1]} : vector<16x16xf32> to vector<13x16xf32>
    %c2_25 = arith.constant 2 : index
    %c0_26 = arith.constant 0 : index
    %c0_27 = arith.constant 0 : index
    %33 = vector.load %arg1[%c2_25, %c0_26, %c0_27] : memref<4x16x416xf32, #tpu.memory_space<vmem>>, vector<1x16x416xf32>
    %34 = vector.shape_cast %33 : vector<1x16x416xf32> to vector<16x416xf32>
    %cst_28 = arith.constant dense<0.000000e+00> : vector<13x416xf32>
    %35 = tpu.matmul %32, %34, %cst_28 {dimension_numbers = #tpu.dot_dimension_numbers<[1], [0], [0], [1], [0, 0, 1, 1], [], []>} : vector<13x16xf32>, vector<16x416xf32>, vector<13x416xf32> -> vector<13x416xf32>
    %36 = arith.addf %31, %35 : vector<13x416xf32>
    %37 = vector.extract_strided_slice %3 {offsets = [3, 0], sizes = [13, 16], strides = [1, 1]} : vector<16x16xf32> to vector<13x16xf32>
    %c3_29 = arith.constant 3 : index
    %c0_30 = arith.constant 0 : index
    %c0_31 = arith.constant 0 : index
    %38 = vector.load %arg1[%c3_29, %c0_30, %c0_31] : memref<4x16x416xf32, #tpu.memory_space<vmem>>, vector<1x16x416xf32>
    %39 = vector.shape_cast %38 : vector<1x16x416xf32> to vector<16x416xf32>
    %cst_32 = arith.constant dense<0.000000e+00> : vector<13x416xf32>
    %40 = tpu.matmul %37, %39, %cst_32 {dimension_numbers = #tpu.dot_dimension_numbers<[1], [0], [0], [1], [0, 0, 1, 1], [], []>} : vector<13x16xf32>, vector<16x416xf32>, vector<13x416xf32> -> vector<13x416xf32>
    %41 = arith.addf %36, %40 : vector<13x416xf32>
    %c0_33 = arith.constant 0 : index
    %c0_34 = arith.constant 0 : index
    %42 = vector.load %arg3[%c0_33, %c0_34] : memref<416x32xf32, #tpu.memory_space<vmem>>, vector<416x32xf32>
    %c0_35 = arith.constant 0 : index
    %c0_36 = arith.constant 0 : index
    %43 = vector.load %arg4[%c0_35, %c0_36] : memref<32x416xf32, #tpu.memory_space<vmem>>, vector<32x416xf32>
    %c0_37 = arith.constant 0 : index
    %c0_38 = arith.constant 0 : index
    %44 = vector.load %arg2[%c0_37, %c0_38] : memref<3x32xf32, #tpu.memory_space<vmem>>, vector<1x32xf32>
    %cst_39 = arith.constant dense<0.000000e+00> : vector<1x416xf32>
    %45 = tpu.matmul %44, %43, %cst_39 {dimension_numbers = #tpu.dot_dimension_numbers<[1], [0], [0], [1], [0, 0, 1, 1], [], []>} : vector<1x32xf32>, vector<32x416xf32>, vector<1x416xf32> -> vector<1x416xf32>
    %46 = vector.broadcast %45 : vector<1x416xf32> to vector<13x416xf32>
    %47 = arith.addf %22, %46 : vector<13x416xf32>
    %48 = vector.broadcast %45 : vector<1x416xf32> to vector<13x416xf32>
    %49 = arith.addf %41, %48 : vector<13x416xf32>
    %cst_40 = arith.constant dense<0.000000e+00> : vector<416xf32>
    %50 = vector.multi_reduction <add>, %47, %cst_40 [0] : vector<13x416xf32> to vector<416xf32>
    %51 = vector.shape_cast %50 : vector<416xf32> to vector<1x416xf32>
    %52 = arith.mulf %47, %47 : vector<13x416xf32>
    %cst_41 = arith.constant dense<0.000000e+00> : vector<416xf32>
    %53 = vector.multi_reduction <add>, %52, %cst_41 [0] : vector<13x416xf32> to vector<416xf32>
    %54 = vector.shape_cast %53 : vector<416xf32> to vector<1x416xf32>
    %cst_42 = arith.constant dense<0.000000e+00> : vector<416xf32>
    %55 = vector.multi_reduction <add>, %49, %cst_42 [0] : vector<13x416xf32> to vector<416xf32>
    %56 = vector.shape_cast %55 : vector<416xf32> to vector<1x416xf32>
    %57 = arith.mulf %49, %49 : vector<13x416xf32>
    %cst_43 = arith.constant dense<0.000000e+00> : vector<416xf32>
    %58 = vector.multi_reduction <add>, %57, %cst_43 [0] : vector<13x416xf32> to vector<416xf32>
    %59 = vector.shape_cast %58 : vector<416xf32> to vector<1x416xf32>
    %60 = arith.addf %51, %56 : vector<1x416xf32>
    %61 = arith.addf %54, %59 : vector<1x416xf32>
    %cst_44 = arith.constant dense<0.000000e+00> : vector<1x32xf32>
    %62 = tpu.matmul %60, %42, %cst_44 {dimension_numbers = #tpu.dot_dimension_numbers<[1], [0], [0], [1], [0, 0, 1, 1], [], []>} : vector<1x416xf32>, vector<416x32xf32>, vector<1x32xf32> -> vector<1x32xf32>
    %cst_45 = arith.constant 2.958580e-03 : f32
    %63 = vector.broadcast %cst_45 : f32 to vector<1x32xf32>
    %64 = arith.mulf %62, %63 : vector<1x32xf32>
    %cst_46 = arith.constant dense<0.000000e+00> : vector<1x32xf32>
    %65 = tpu.matmul %61, %42, %cst_46 {dimension_numbers = #tpu.dot_dimension_numbers<[1], [0], [0], [1], [0, 0, 1, 1], [], []>} : vector<1x416xf32>, vector<416x32xf32>, vector<1x32xf32> -> vector<1x32xf32>
    %cst_47 = arith.constant 2.958580e-03 : f32
    %66 = vector.broadcast %cst_47 : f32 to vector<1x32xf32>
    %67 = arith.mulf %65, %66 : vector<1x32xf32>
    %68 = arith.mulf %64, %64 : vector<1x32xf32>
    %69 = arith.subf %67, %68 : vector<1x32xf32>
    %cst_48 = arith.constant 0.000000e+00 : f32
    %70 = vector.broadcast %cst_48 : f32 to vector<1x32xf32>
    %71 = arith.maximumf %69, %70 : vector<1x32xf32>
    %c1_49 = arith.constant 1 : index
    %c0_50 = arith.constant 0 : index
    %72 = vector.load %arg2[%c1_49, %c0_50] : memref<3x32xf32, #tpu.memory_space<vmem>>, vector<1x32xf32>
    %cst_51 = arith.constant 9.99999974E-6 : f32
    %73 = vector.broadcast %cst_51 : f32 to vector<1x32xf32>
    %74 = arith.addf %71, %73 : vector<1x32xf32>
    %75 = math.rsqrt %74 : vector<1x32xf32>
    %76 = arith.mulf %72, %75 : vector<1x32xf32>
    %c2_52 = arith.constant 2 : index
    %c0_53 = arith.constant 0 : index
    %77 = vector.load %arg2[%c2_52, %c0_53] : memref<3x32xf32, #tpu.memory_space<vmem>>, vector<1x32xf32>
    %78 = arith.mulf %64, %76 : vector<1x32xf32>
    %79 = arith.subf %77, %78 : vector<1x32xf32>
    %cst_54 = arith.constant dense<0.000000e+00> : vector<1x416xf32>
    %80 = tpu.matmul %76, %43, %cst_54 {dimension_numbers = #tpu.dot_dimension_numbers<[1], [0], [0], [1], [0, 0, 1, 1], [], []>} : vector<1x32xf32>, vector<32x416xf32>, vector<1x416xf32> -> vector<1x416xf32>
    %cst_55 = arith.constant dense<0.000000e+00> : vector<1x416xf32>
    %81 = tpu.matmul %79, %43, %cst_55 {dimension_numbers = #tpu.dot_dimension_numbers<[1], [0], [0], [1], [0, 0, 1, 1], [], []>} : vector<1x32xf32>, vector<32x416xf32>, vector<1x416xf32> -> vector<1x416xf32>
    %82 = vector.broadcast %80 : vector<1x416xf32> to vector<13x416xf32>
    %83 = arith.mulf %47, %82 : vector<13x416xf32>
    %84 = vector.broadcast %81 : vector<1x416xf32> to vector<13x416xf32>
    %85 = arith.addf %83, %84 : vector<13x416xf32>
    %cst_56 = arith.constant 0.000000e+00 : f32
    %86 = vector.broadcast %cst_56 : f32 to vector<13x416xf32>
    %87 = arith.cmpf ogt, %85, %86 : vector<13x416xf32>
    %88 = math.exp %85 : vector<13x416xf32>
    %cst_57 = arith.constant 1.000000e+00 : f32
    %89 = vector.broadcast %cst_57 : f32 to vector<13x416xf32>
    %90 = arith.subf %88, %89 : vector<13x416xf32>
    %cst_58 = arith.constant 1.67326319 : f32
    %91 = vector.broadcast %cst_58 : f32 to vector<13x416xf32>
    %92 = arith.mulf %91, %90 : vector<13x416xf32>
    %93 = arith.select %87, %85, %92 : vector<13x416xi1>, vector<13x416xf32>
    %cst_59 = arith.constant 1.05070102 : f32
    %94 = vector.broadcast %cst_59 : f32 to vector<13x416xf32>
    %95 = arith.mulf %94, %93 : vector<13x416xf32>
    %96 = vector.broadcast %80 : vector<1x416xf32> to vector<13x416xf32>
    %97 = arith.mulf %49, %96 : vector<13x416xf32>
    %98 = vector.broadcast %81 : vector<1x416xf32> to vector<13x416xf32>
    %99 = arith.addf %97, %98 : vector<13x416xf32>
    %cst_60 = arith.constant 0.000000e+00 : f32
    %100 = vector.broadcast %cst_60 : f32 to vector<13x416xf32>
    %101 = arith.cmpf ogt, %99, %100 : vector<13x416xf32>
    %102 = math.exp %99 : vector<13x416xf32>
    %cst_61 = arith.constant 1.000000e+00 : f32
    %103 = vector.broadcast %cst_61 : f32 to vector<13x416xf32>
    %104 = arith.subf %102, %103 : vector<13x416xf32>
    %cst_62 = arith.constant 1.67326319 : f32
    %105 = vector.broadcast %cst_62 : f32 to vector<13x416xf32>
    %106 = arith.mulf %105, %104 : vector<13x416xf32>
    %107 = arith.select %101, %99, %106 : vector<13x416xi1>, vector<13x416xf32>
    %cst_63 = arith.constant 1.05070102 : f32
    %108 = vector.broadcast %cst_63 : f32 to vector<13x416xf32>
    %109 = arith.mulf %108, %107 : vector<13x416xf32>
    %110 = vector.extract_strided_slice %95 {offsets = [0, 0], sizes = [12, 416], strides = [1, 1]} : vector<13x416xf32> to vector<12x416xf32>
    %c0_64 = arith.constant 0 : index
    %c0_65 = arith.constant 0 : index
    %c0_66 = arith.constant 0 : index
    %111 = vector.load %arg5[%c0_64, %c0_65, %c0_66] : memref<2x416x96xf32, #tpu.memory_space<vmem>>, vector<1x416x96xf32>
    %112 = vector.shape_cast %111 : vector<1x416x96xf32> to vector<416x96xf32>
    %cst_67 = arith.constant dense<0.000000e+00> : vector<12x96xf32>
    %113 = tpu.matmul %110, %112, %cst_67 {dimension_numbers = #tpu.dot_dimension_numbers<[1], [0], [0], [1], [0, 0, 1, 1], [], []>} : vector<12x416xf32>, vector<416x96xf32>, vector<12x96xf32> -> vector<12x96xf32>
    %114 = vector.extract_strided_slice %95 {offsets = [1, 0], sizes = [12, 416], strides = [1, 1]} : vector<13x416xf32> to vector<12x416xf32>
    %c1_68 = arith.constant 1 : index
    %c0_69 = arith.constant 0 : index
    %c0_70 = arith.constant 0 : index
    %115 = vector.load %arg5[%c1_68, %c0_69, %c0_70] : memref<2x416x96xf32, #tpu.memory_space<vmem>>, vector<1x416x96xf32>
    %116 = vector.shape_cast %115 : vector<1x416x96xf32> to vector<416x96xf32>
    %cst_71 = arith.constant dense<0.000000e+00> : vector<12x96xf32>
    %117 = tpu.matmul %114, %116, %cst_71 {dimension_numbers = #tpu.dot_dimension_numbers<[1], [0], [0], [1], [0, 0, 1, 1], [], []>} : vector<12x416xf32>, vector<416x96xf32>, vector<12x96xf32> -> vector<12x96xf32>
    %118 = arith.addf %113, %117 : vector<12x96xf32>
    %119 = vector.extract_strided_slice %109 {offsets = [0, 0], sizes = [12, 416], strides = [1, 1]} : vector<13x416xf32> to vector<12x416xf32>
    %c0_72 = arith.constant 0 : index
    %c0_73 = arith.constant 0 : index
    %c0_74 = arith.constant 0 : index
    %120 = vector.load %arg5[%c0_72, %c0_73, %c0_74] : memref<2x416x96xf32, #tpu.memory_space<vmem>>, vector<1x416x96xf32>
    %121 = vector.shape_cast %120 : vector<1x416x96xf32> to vector<416x96xf32>
    %cst_75 = arith.constant dense<0.000000e+00> : vector<12x96xf32>
    %122 = tpu.matmul %119, %121, %cst_75 {dimension_numbers = #tpu.dot_dimension_numbers<[1], [0], [0], [1], [0, 0, 1, 1], [], []>} : vector<12x416xf32>, vector<416x96xf32>, vector<12x96xf32> -> vector<12x96xf32>
    %123 = vector.extract_strided_slice %109 {offsets = [1, 0], sizes = [12, 416], strides = [1, 1]} : vector<13x416xf32> to vector<12x416xf32>
    %c1_76 = arith.constant 1 : index
    %c0_77 = arith.constant 0 : index
    %c0_78 = arith.constant 0 : index
    %124 = vector.load %arg5[%c1_76, %c0_77, %c0_78] : memref<2x416x96xf32, #tpu.memory_space<vmem>>, vector<1x416x96xf32>
    %125 = vector.shape_cast %124 : vector<1x416x96xf32> to vector<416x96xf32>
    %cst_79 = arith.constant dense<0.000000e+00> : vector<12x96xf32>
    %126 = tpu.matmul %123, %125, %cst_79 {dimension_numbers = #tpu.dot_dimension_numbers<[1], [0], [0], [1], [0, 0, 1, 1], [], []>} : vector<12x416xf32>, vector<416x96xf32>, vector<12x96xf32> -> vector<12x96xf32>
    %127 = arith.addf %122, %126 : vector<12x96xf32>
    %c0_80 = arith.constant 0 : index
    %c0_81 = arith.constant 0 : index
    %128 = vector.load %arg7[%c0_80, %c0_81] : memref<96x8xf32, #tpu.memory_space<vmem>>, vector<96x8xf32>
    %c0_82 = arith.constant 0 : index
    %c0_83 = arith.constant 0 : index
    %129 = vector.load %arg8[%c0_82, %c0_83] : memref<8x96xf32, #tpu.memory_space<vmem>>, vector<8x96xf32>
    %c0_84 = arith.constant 0 : index
    %c0_85 = arith.constant 0 : index
    %130 = vector.load %arg6[%c0_84, %c0_85] : memref<3x8xf32, #tpu.memory_space<vmem>>, vector<1x8xf32>
    %cst_86 = arith.constant dense<0.000000e+00> : vector<1x96xf32>
    %131 = tpu.matmul %130, %129, %cst_86 {dimension_numbers = #tpu.dot_dimension_numbers<[1], [0], [0], [1], [0, 0, 1, 1], [], []>} : vector<1x8xf32>, vector<8x96xf32>, vector<1x96xf32> -> vector<1x96xf32>
    %132 = vector.broadcast %131 : vector<1x96xf32> to vector<12x96xf32>
    %133 = arith.addf %118, %132 : vector<12x96xf32>
    %134 = vector.broadcast %131 : vector<1x96xf32> to vector<12x96xf32>
    %135 = arith.addf %127, %134 : vector<12x96xf32>
    %cst_87 = arith.constant dense<0.000000e+00> : vector<96xf32>
    %136 = vector.multi_reduction <add>, %133, %cst_87 [0] : vector<12x96xf32> to vector<96xf32>
    %137 = vector.shape_cast %136 : vector<96xf32> to vector<1x96xf32>
    %138 = arith.mulf %133, %133 : vector<12x96xf32>
    %cst_88 = arith.constant dense<0.000000e+00> : vector<96xf32>
    %139 = vector.multi_reduction <add>, %138, %cst_88 [0] : vector<12x96xf32> to vector<96xf32>
    %140 = vector.shape_cast %139 : vector<96xf32> to vector<1x96xf32>
    %cst_89 = arith.constant dense<0.000000e+00> : vector<96xf32>
    %141 = vector.multi_reduction <add>, %135, %cst_89 [0] : vector<12x96xf32> to vector<96xf32>
    %142 = vector.shape_cast %141 : vector<96xf32> to vector<1x96xf32>
    %143 = arith.mulf %135, %135 : vector<12x96xf32>
    %cst_90 = arith.constant dense<0.000000e+00> : vector<96xf32>
    %144 = vector.multi_reduction <add>, %143, %cst_90 [0] : vector<12x96xf32> to vector<96xf32>
    %145 = vector.shape_cast %144 : vector<96xf32> to vector<1x96xf32>
    %146 = arith.addf %137, %142 : vector<1x96xf32>
    %147 = arith.addf %140, %145 : vector<1x96xf32>
    %cst_91 = arith.constant dense<0.000000e+00> : vector<1x8xf32>
    %148 = tpu.matmul %146, %128, %cst_91 {dimension_numbers = #tpu.dot_dimension_numbers<[1], [0], [0], [1], [0, 0, 1, 1], [], []>} : vector<1x96xf32>, vector<96x8xf32>, vector<1x8xf32> -> vector<1x8xf32>
    %cst_92 = arith.constant 0.00347222225 : f32
    %149 = vector.broadcast %cst_92 : f32 to vector<1x8xf32>
    %150 = arith.mulf %148, %149 : vector<1x8xf32>
    %cst_93 = arith.constant dense<0.000000e+00> : vector<1x8xf32>
    %151 = tpu.matmul %147, %128, %cst_93 {dimension_numbers = #tpu.dot_dimension_numbers<[1], [0], [0], [1], [0, 0, 1, 1], [], []>} : vector<1x96xf32>, vector<96x8xf32>, vector<1x8xf32> -> vector<1x8xf32>
    %cst_94 = arith.constant 0.00347222225 : f32
    %152 = vector.broadcast %cst_94 : f32 to vector<1x8xf32>
    %153 = arith.mulf %151, %152 : vector<1x8xf32>
    %154 = arith.mulf %150, %150 : vector<1x8xf32>
    %155 = arith.subf %153, %154 : vector<1x8xf32>
    %cst_95 = arith.constant 0.000000e+00 : f32
    %156 = vector.broadcast %cst_95 : f32 to vector<1x8xf32>
    %157 = arith.maximumf %155, %156 : vector<1x8xf32>
    %c1_96 = arith.constant 1 : index
    %c0_97 = arith.constant 0 : index
    %158 = vector.load %arg6[%c1_96, %c0_97] : memref<3x8xf32, #tpu.memory_space<vmem>>, vector<1x8xf32>
    %cst_98 = arith.constant 9.99999974E-6 : f32
    %159 = vector.broadcast %cst_98 : f32 to vector<1x8xf32>
    %160 = arith.addf %157, %159 : vector<1x8xf32>
    %161 = math.rsqrt %160 : vector<1x8xf32>
    %162 = arith.mulf %158, %161 : vector<1x8xf32>
    %c2_99 = arith.constant 2 : index
    %c0_100 = arith.constant 0 : index
    %163 = vector.load %arg6[%c2_99, %c0_100] : memref<3x8xf32, #tpu.memory_space<vmem>>, vector<1x8xf32>
    %164 = arith.mulf %150, %162 : vector<1x8xf32>
    %165 = arith.subf %163, %164 : vector<1x8xf32>
    %cst_101 = arith.constant dense<0.000000e+00> : vector<1x96xf32>
    %166 = tpu.matmul %162, %129, %cst_101 {dimension_numbers = #tpu.dot_dimension_numbers<[1], [0], [0], [1], [0, 0, 1, 1], [], []>} : vector<1x8xf32>, vector<8x96xf32>, vector<1x96xf32> -> vector<1x96xf32>
    %cst_102 = arith.constant dense<0.000000e+00> : vector<1x96xf32>
    %167 = tpu.matmul %165, %129, %cst_102 {dimension_numbers = #tpu.dot_dimension_numbers<[1], [0], [0], [1], [0, 0, 1, 1], [], []>} : vector<1x8xf32>, vector<8x96xf32>, vector<1x96xf32> -> vector<1x96xf32>
    %168 = vector.broadcast %166 : vector<1x96xf32> to vector<12x96xf32>
    %169 = arith.mulf %133, %168 : vector<12x96xf32>
    %170 = vector.broadcast %167 : vector<1x96xf32> to vector<12x96xf32>
    %171 = arith.addf %169, %170 : vector<12x96xf32>
    %cst_103 = arith.constant 0.000000e+00 : f32
    %172 = vector.broadcast %cst_103 : f32 to vector<12x96xf32>
    %173 = arith.cmpf ogt, %171, %172 : vector<12x96xf32>
    %174 = math.exp %171 : vector<12x96xf32>
    %cst_104 = arith.constant 1.000000e+00 : f32
    %175 = vector.broadcast %cst_104 : f32 to vector<12x96xf32>
    %176 = arith.subf %174, %175 : vector<12x96xf32>
    %cst_105 = arith.constant 1.67326319 : f32
    %177 = vector.broadcast %cst_105 : f32 to vector<12x96xf32>
    %178 = arith.mulf %177, %176 : vector<12x96xf32>
    %179 = arith.select %173, %171, %178 : vector<12x96xi1>, vector<12x96xf32>
    %cst_106 = arith.constant 1.05070102 : f32
    %180 = vector.broadcast %cst_106 : f32 to vector<12x96xf32>
    %181 = arith.mulf %180, %179 : vector<12x96xf32>
    %182 = vector.broadcast %166 : vector<1x96xf32> to vector<12x96xf32>
    %183 = arith.mulf %135, %182 : vector<12x96xf32>
    %184 = vector.broadcast %167 : vector<1x96xf32> to vector<12x96xf32>
    %185 = arith.addf %183, %184 : vector<12x96xf32>
    %cst_107 = arith.constant 0.000000e+00 : f32
    %186 = vector.broadcast %cst_107 : f32 to vector<12x96xf32>
    %187 = arith.cmpf ogt, %185, %186 : vector<12x96xf32>
    %188 = math.exp %185 : vector<12x96xf32>
    %cst_108 = arith.constant 1.000000e+00 : f32
    %189 = vector.broadcast %cst_108 : f32 to vector<12x96xf32>
    %190 = arith.subf %188, %189 : vector<12x96xf32>
    %cst_109 = arith.constant 1.67326319 : f32
    %191 = vector.broadcast %cst_109 : f32 to vector<12x96xf32>
    %192 = arith.mulf %191, %190 : vector<12x96xf32>
    %193 = arith.select %187, %185, %192 : vector<12x96xi1>, vector<12x96xf32>
    %cst_110 = arith.constant 1.05070102 : f32
    %194 = vector.broadcast %cst_110 : f32 to vector<12x96xf32>
    %195 = arith.mulf %194, %193 : vector<12x96xf32>
    %c0_111 = arith.constant 0 : index
    %c0_112 = arith.constant 0 : index
    %196 = vector.load %arg15[%c0_111, %c0_112] : memref<12x12xf32, #tpu.memory_space<vmem>>, vector<12x12xf32>
    %c0_113 = arith.constant 0 : index
    %c0_114 = arith.constant 0 : index
    %197 = vector.load %arg16[%c0_113, %c0_114] : memref<96x96xf32, #tpu.memory_space<vmem>>, vector<96x96xf32>
    %198 = tpu.iota {dimensions = array<i32: 1>} : vector<1x96xi32>
    %199 = tpu.iota {dimensions = array<i32: 0>} : vector<12x1xi32>
    %c8_i32 = arith.constant 8 : i32
    %200 = vector.broadcast %c8_i32 : i32 to vector<1x96xi32>
    %201 = arith.andi %198, %200 : vector<1x96xi32>
    %c0_i32 = arith.constant 0 : i32
    %202 = vector.broadcast %c0_i32 : i32 to vector<1x96xi32>
    %203 = arith.cmpi eq, %201, %202 : vector<1x96xi32>
    %c1_i32 = arith.constant 1 : i32
    %204 = vector.broadcast %c1_i32 : i32 to vector<12x1xi32>
    %205 = arith.andi %199, %204 : vector<12x1xi32>
    %c0_i32_115 = arith.constant 0 : i32
    %206 = vector.broadcast %c0_i32_115 : i32 to vector<12x1xi32>
    %207 = arith.cmpi eq, %205, %206 : vector<12x1xi32>
    %cst_116 = arith.constant dense<0.000000e+00> : vector<12x96xf32>
    %208 = tpu.matmul %181, %197, %cst_116 {dimension_numbers = #tpu.dot_dimension_numbers<[1], [0], [0], [1], [0, 0, 1, 1], [], []>} : vector<12x96xf32>, vector<96x96xf32>, vector<12x96xf32> -> vector<12x96xf32>
    %cst_117 = arith.constant dense<0.000000e+00> : vector<12x96xf32>
    %209 = tpu.matmul %196, %181, %cst_117 {dimension_numbers = #tpu.dot_dimension_numbers<[1], [0], [0], [1], [0, 0, 1, 1], [], []>} : vector<12x12xf32>, vector<12x96xf32>, vector<12x96xf32> -> vector<12x96xf32>
    %cst_118 = arith.constant dense<0.000000e+00> : vector<12x96xf32>
    %210 = tpu.matmul %196, %208, %cst_118 {dimension_numbers = #tpu.dot_dimension_numbers<[1], [0], [0], [1], [0, 0, 1, 1], [], []>} : vector<12x12xf32>, vector<12x96xf32>, vector<12x96xf32> -> vector<12x96xf32>
    %211 = arith.maximumf %181, %208 : vector<12x96xf32>
    %212 = arith.maximumf %209, %210 : vector<12x96xf32>
    %213 = arith.maximumf %211, %212 : vector<12x96xf32>
    %214 = arith.cmpf oeq, %181, %213 : vector<12x96xf32>
    %215 = arith.cmpf one, %208, %213 : vector<12x96xf32>
    %216 = vector.broadcast %203 : vector<1x96xi1> to vector<12x96xi1>
    %217 = arith.ori %216, %215 : vector<12x96xi1>
    %218 = arith.andi %214, %217 : vector<12x96xi1>
    %219 = arith.cmpf one, %209, %213 : vector<12x96xf32>
    %220 = arith.cmpf one, %210, %213 : vector<12x96xf32>
    %221 = arith.andi %219, %220 : vector<12x96xi1>
    %222 = vector.broadcast %207 : vector<12x1xi1> to vector<12x96xi1>
    %223 = arith.ori %222, %221 : vector<12x96xi1>
    %224 = arith.andi %218, %223 : vector<12x96xi1>
    %cst_119 = arith.constant 0.000000e+00 : f32
    %225 = vector.broadcast %cst_119 : f32 to vector<12x96xf32>
    %226 = arith.select %224, %181, %225 : vector<12x96xi1>, vector<12x96xf32>
    %cst_120 = arith.constant dense<0.000000e+00> : vector<12x96xf32>
    %227 = tpu.matmul %195, %197, %cst_120 {dimension_numbers = #tpu.dot_dimension_numbers<[1], [0], [0], [1], [0, 0, 1, 1], [], []>} : vector<12x96xf32>, vector<96x96xf32>, vector<12x96xf32> -> vector<12x96xf32>
    %cst_121 = arith.constant dense<0.000000e+00> : vector<12x96xf32>
    %228 = tpu.matmul %196, %195, %cst_121 {dimension_numbers = #tpu.dot_dimension_numbers<[1], [0], [0], [1], [0, 0, 1, 1], [], []>} : vector<12x12xf32>, vector<12x96xf32>, vector<12x96xf32> -> vector<12x96xf32>
    %cst_122 = arith.constant dense<0.000000e+00> : vector<12x96xf32>
    %229 = tpu.matmul %196, %227, %cst_122 {dimension_numbers = #tpu.dot_dimension_numbers<[1], [0], [0], [1], [0, 0, 1, 1], [], []>} : vector<12x12xf32>, vector<12x96xf32>, vector<12x96xf32> -> vector<12x96xf32>
    %230 = arith.maximumf %195, %227 : vector<12x96xf32>
    %231 = arith.maximumf %228, %229 : vector<12x96xf32>
    %232 = arith.maximumf %230, %231 : vector<12x96xf32>
    %233 = arith.cmpf oeq, %195, %232 : vector<12x96xf32>
    %234 = arith.cmpf one, %227, %232 : vector<12x96xf32>
    %235 = vector.broadcast %203 : vector<1x96xi1> to vector<12x96xi1>
    %236 = arith.ori %235, %234 : vector<12x96xi1>
    %237 = arith.andi %233, %236 : vector<12x96xi1>
    %238 = arith.cmpf one, %228, %232 : vector<12x96xf32>
    %239 = arith.cmpf one, %229, %232 : vector<12x96xf32>
    %240 = arith.andi %238, %239 : vector<12x96xi1>
    %241 = vector.broadcast %207 : vector<12x1xi1> to vector<12x96xi1>
    %242 = arith.ori %241, %240 : vector<12x96xi1>
    %243 = arith.andi %237, %242 : vector<12x96xi1>
    %cst_123 = arith.constant 0.000000e+00 : f32
    %244 = vector.broadcast %cst_123 : f32 to vector<12x96xf32>
    %245 = arith.select %243, %195, %244 : vector<12x96xi1>, vector<12x96xf32>
    %c0_124 = arith.constant 0 : index
    %c0_125 = arith.constant 0 : index
    %246 = vector.load %arg11[%c0_124, %c0_125] : memref<14x12xf32, #tpu.memory_space<vmem>>, vector<14x12xf32>
    %cst_126 = arith.constant dense<0.000000e+00> : vector<14x96xf32>
    %247 = tpu.matmul %246, %226, %cst_126 {dimension_numbers = #tpu.dot_dimension_numbers<[1], [0], [0], [1], [0, 0, 1, 1], [], []>} : vector<14x12xf32>, vector<12x96xf32>, vector<14x96xf32> -> vector<14x96xf32>
    %c0_127 = arith.constant 0 : index
    %c0_128 = arith.constant 0 : index
    %248 = vector.load %arg11[%c0_127, %c0_128] : memref<14x12xf32, #tpu.memory_space<vmem>>, vector<14x12xf32>
    %cst_129 = arith.constant dense<0.000000e+00> : vector<14x96xf32>
    %249 = tpu.matmul %248, %245, %cst_129 {dimension_numbers = #tpu.dot_dimension_numbers<[1], [0], [0], [1], [0, 0, 1, 1], [], []>} : vector<14x12xf32>, vector<12x96xf32>, vector<14x96xf32> -> vector<14x96xf32>
    %250 = vector.extract_strided_slice %247 {offsets = [0, 0], sizes = [13, 96], strides = [1, 1]} : vector<14x96xf32> to vector<13x96xf32>
    %c0_130 = arith.constant 0 : index
    %c0_131 = arith.constant 0 : index
    %c0_132 = arith.constant 0 : index
    %251 = vector.load %arg9[%c0_130, %c0_131, %c0_132] : memref<2x96x416xf32, #tpu.memory_space<vmem>>, vector<1x96x416xf32>
    %252 = vector.shape_cast %251 : vector<1x96x416xf32> to vector<96x416xf32>
    %cst_133 = arith.constant dense<0.000000e+00> : vector<13x416xf32>
    %253 = tpu.matmul %250, %252, %cst_133 {dimension_numbers = #tpu.dot_dimension_numbers<[1], [0], [0], [1], [0, 0, 1, 1], [], []>} : vector<13x96xf32>, vector<96x416xf32>, vector<13x416xf32> -> vector<13x416xf32>
    %254 = vector.extract_strided_slice %247 {offsets = [1, 0], sizes = [13, 96], strides = [1, 1]} : vector<14x96xf32> to vector<13x96xf32>
    %c1_134 = arith.constant 1 : index
    %c0_135 = arith.constant 0 : index
    %c0_136 = arith.constant 0 : index
    %255 = vector.load %arg9[%c1_134, %c0_135, %c0_136] : memref<2x96x416xf32, #tpu.memory_space<vmem>>, vector<1x96x416xf32>
    %256 = vector.shape_cast %255 : vector<1x96x416xf32> to vector<96x416xf32>
    %cst_137 = arith.constant dense<0.000000e+00> : vector<13x416xf32>
    %257 = tpu.matmul %254, %256, %cst_137 {dimension_numbers = #tpu.dot_dimension_numbers<[1], [0], [0], [1], [0, 0, 1, 1], [], []>} : vector<13x96xf32>, vector<96x416xf32>, vector<13x416xf32> -> vector<13x416xf32>
    %258 = arith.addf %253, %257 : vector<13x416xf32>
    %259 = vector.extract_strided_slice %249 {offsets = [0, 0], sizes = [13, 96], strides = [1, 1]} : vector<14x96xf32> to vector<13x96xf32>
    %c0_138 = arith.constant 0 : index
    %c0_139 = arith.constant 0 : index
    %c0_140 = arith.constant 0 : index
    %260 = vector.load %arg9[%c0_138, %c0_139, %c0_140] : memref<2x96x416xf32, #tpu.memory_space<vmem>>, vector<1x96x416xf32>
    %261 = vector.shape_cast %260 : vector<1x96x416xf32> to vector<96x416xf32>
    %cst_141 = arith.constant dense<0.000000e+00> : vector<13x416xf32>
    %262 = tpu.matmul %259, %261, %cst_141 {dimension_numbers = #tpu.dot_dimension_numbers<[1], [0], [0], [1], [0, 0, 1, 1], [], []>} : vector<13x96xf32>, vector<96x416xf32>, vector<13x416xf32> -> vector<13x416xf32>
    %263 = vector.extract_strided_slice %249 {offsets = [1, 0], sizes = [13, 96], strides = [1, 1]} : vector<14x96xf32> to vector<13x96xf32>
    %c1_142 = arith.constant 1 : index
    %c0_143 = arith.constant 0 : index
    %c0_144 = arith.constant 0 : index
    %264 = vector.load %arg9[%c1_142, %c0_143, %c0_144] : memref<2x96x416xf32, #tpu.memory_space<vmem>>, vector<1x96x416xf32>
    %265 = vector.shape_cast %264 : vector<1x96x416xf32> to vector<96x416xf32>
    %cst_145 = arith.constant dense<0.000000e+00> : vector<13x416xf32>
    %266 = tpu.matmul %263, %265, %cst_145 {dimension_numbers = #tpu.dot_dimension_numbers<[1], [0], [0], [1], [0, 0, 1, 1], [], []>} : vector<13x96xf32>, vector<96x416xf32>, vector<13x416xf32> -> vector<13x416xf32>
    %267 = arith.addf %262, %266 : vector<13x416xf32>
    %c0_146 = arith.constant 0 : index
    %c0_147 = arith.constant 0 : index
    %268 = vector.load %arg3[%c0_146, %c0_147] : memref<416x32xf32, #tpu.memory_space<vmem>>, vector<416x32xf32>
    %c0_148 = arith.constant 0 : index
    %c0_149 = arith.constant 0 : index
    %269 = vector.load %arg4[%c0_148, %c0_149] : memref<32x416xf32, #tpu.memory_space<vmem>>, vector<32x416xf32>
    %c0_150 = arith.constant 0 : index
    %c0_151 = arith.constant 0 : index
    %270 = vector.load %arg10[%c0_150, %c0_151] : memref<3x32xf32, #tpu.memory_space<vmem>>, vector<1x32xf32>
    %cst_152 = arith.constant dense<0.000000e+00> : vector<1x416xf32>
    %271 = tpu.matmul %270, %269, %cst_152 {dimension_numbers = #tpu.dot_dimension_numbers<[1], [0], [0], [1], [0, 0, 1, 1], [], []>} : vector<1x32xf32>, vector<32x416xf32>, vector<1x416xf32> -> vector<1x416xf32>
    %272 = vector.broadcast %271 : vector<1x416xf32> to vector<13x416xf32>
    %273 = arith.addf %258, %272 : vector<13x416xf32>
    %274 = vector.broadcast %271 : vector<1x416xf32> to vector<13x416xf32>
    %275 = arith.addf %267, %274 : vector<13x416xf32>
    %cst_153 = arith.constant dense<0.000000e+00> : vector<416xf32>
    %276 = vector.multi_reduction <add>, %273, %cst_153 [0] : vector<13x416xf32> to vector<416xf32>
    %277 = vector.shape_cast %276 : vector<416xf32> to vector<1x416xf32>
    %278 = arith.mulf %273, %273 : vector<13x416xf32>
    %cst_154 = arith.constant dense<0.000000e+00> : vector<416xf32>
    %279 = vector.multi_reduction <add>, %278, %cst_154 [0] : vector<13x416xf32> to vector<416xf32>
    %280 = vector.shape_cast %279 : vector<416xf32> to vector<1x416xf32>
    %cst_155 = arith.constant dense<0.000000e+00> : vector<416xf32>
    %281 = vector.multi_reduction <add>, %275, %cst_155 [0] : vector<13x416xf32> to vector<416xf32>
    %282 = vector.shape_cast %281 : vector<416xf32> to vector<1x416xf32>
    %283 = arith.mulf %275, %275 : vector<13x416xf32>
    %cst_156 = arith.constant dense<0.000000e+00> : vector<416xf32>
    %284 = vector.multi_reduction <add>, %283, %cst_156 [0] : vector<13x416xf32> to vector<416xf32>
    %285 = vector.shape_cast %284 : vector<416xf32> to vector<1x416xf32>
    %286 = arith.addf %277, %282 : vector<1x416xf32>
    %287 = arith.addf %280, %285 : vector<1x416xf32>
    %cst_157 = arith.constant dense<0.000000e+00> : vector<1x32xf32>
    %288 = tpu.matmul %286, %268, %cst_157 {dimension_numbers = #tpu.dot_dimension_numbers<[1], [0], [0], [1], [0, 0, 1, 1], [], []>} : vector<1x416xf32>, vector<416x32xf32>, vector<1x32xf32> -> vector<1x32xf32>
    %cst_158 = arith.constant 2.958580e-03 : f32
    %289 = vector.broadcast %cst_158 : f32 to vector<1x32xf32>
    %290 = arith.mulf %288, %289 : vector<1x32xf32>
    %cst_159 = arith.constant dense<0.000000e+00> : vector<1x32xf32>
    %291 = tpu.matmul %287, %268, %cst_159 {dimension_numbers = #tpu.dot_dimension_numbers<[1], [0], [0], [1], [0, 0, 1, 1], [], []>} : vector<1x416xf32>, vector<416x32xf32>, vector<1x32xf32> -> vector<1x32xf32>
    %cst_160 = arith.constant 2.958580e-03 : f32
    %292 = vector.broadcast %cst_160 : f32 to vector<1x32xf32>
    %293 = arith.mulf %291, %292 : vector<1x32xf32>
    %294 = arith.mulf %290, %290 : vector<1x32xf32>
    %295 = arith.subf %293, %294 : vector<1x32xf32>
    %cst_161 = arith.constant 0.000000e+00 : f32
    %296 = vector.broadcast %cst_161 : f32 to vector<1x32xf32>
    %297 = arith.maximumf %295, %296 : vector<1x32xf32>
    %c1_162 = arith.constant 1 : index
    %c0_163 = arith.constant 0 : index
    %298 = vector.load %arg10[%c1_162, %c0_163] : memref<3x32xf32, #tpu.memory_space<vmem>>, vector<1x32xf32>
    %cst_164 = arith.constant 9.99999974E-6 : f32
    %299 = vector.broadcast %cst_164 : f32 to vector<1x32xf32>
    %300 = arith.addf %297, %299 : vector<1x32xf32>
    %301 = math.rsqrt %300 : vector<1x32xf32>
    %302 = arith.mulf %298, %301 : vector<1x32xf32>
    %c2_165 = arith.constant 2 : index
    %c0_166 = arith.constant 0 : index
    %303 = vector.load %arg10[%c2_165, %c0_166] : memref<3x32xf32, #tpu.memory_space<vmem>>, vector<1x32xf32>
    %304 = arith.mulf %290, %302 : vector<1x32xf32>
    %305 = arith.subf %303, %304 : vector<1x32xf32>
    %cst_167 = arith.constant dense<0.000000e+00> : vector<1x416xf32>
    %306 = tpu.matmul %302, %269, %cst_167 {dimension_numbers = #tpu.dot_dimension_numbers<[1], [0], [0], [1], [0, 0, 1, 1], [], []>} : vector<1x32xf32>, vector<32x416xf32>, vector<1x416xf32> -> vector<1x416xf32>
    %cst_168 = arith.constant dense<0.000000e+00> : vector<1x416xf32>
    %307 = tpu.matmul %305, %269, %cst_168 {dimension_numbers = #tpu.dot_dimension_numbers<[1], [0], [0], [1], [0, 0, 1, 1], [], []>} : vector<1x32xf32>, vector<32x416xf32>, vector<1x416xf32> -> vector<1x416xf32>
    %308 = vector.broadcast %306 : vector<1x416xf32> to vector<13x416xf32>
    %309 = arith.mulf %273, %308 : vector<13x416xf32>
    %310 = vector.broadcast %307 : vector<1x416xf32> to vector<13x416xf32>
    %311 = arith.addf %309, %310 : vector<13x416xf32>
    %cst_169 = arith.constant 0.000000e+00 : f32
    %312 = vector.broadcast %cst_169 : f32 to vector<13x416xf32>
    %313 = arith.cmpf ogt, %311, %312 : vector<13x416xf32>
    %314 = math.exp %311 : vector<13x416xf32>
    %cst_170 = arith.constant 1.000000e+00 : f32
    %315 = vector.broadcast %cst_170 : f32 to vector<13x416xf32>
    %316 = arith.subf %314, %315 : vector<13x416xf32>
    %cst_171 = arith.constant 1.67326319 : f32
    %317 = vector.broadcast %cst_171 : f32 to vector<13x416xf32>
    %318 = arith.mulf %317, %316 : vector<13x416xf32>
    %319 = arith.select %313, %311, %318 : vector<13x416xi1>, vector<13x416xf32>
    %cst_172 = arith.constant 1.05070102 : f32
    %320 = vector.broadcast %cst_172 : f32 to vector<13x416xf32>
    %321 = arith.mulf %320, %319 : vector<13x416xf32>
    %322 = vector.broadcast %306 : vector<1x416xf32> to vector<13x416xf32>
    %323 = arith.mulf %275, %322 : vector<13x416xf32>
    %324 = vector.broadcast %307 : vector<1x416xf32> to vector<13x416xf32>
    %325 = arith.addf %323, %324 : vector<13x416xf32>
    %cst_173 = arith.constant 0.000000e+00 : f32
    %326 = vector.broadcast %cst_173 : f32 to vector<13x416xf32>
    %327 = arith.cmpf ogt, %325, %326 : vector<13x416xf32>
    %328 = math.exp %325 : vector<13x416xf32>
    %cst_174 = arith.constant 1.000000e+00 : f32
    %329 = vector.broadcast %cst_174 : f32 to vector<13x416xf32>
    %330 = arith.subf %328, %329 : vector<13x416xf32>
    %cst_175 = arith.constant 1.67326319 : f32
    %331 = vector.broadcast %cst_175 : f32 to vector<13x416xf32>
    %332 = arith.mulf %331, %330 : vector<13x416xf32>
    %333 = arith.select %327, %325, %332 : vector<13x416xi1>, vector<13x416xf32>
    %cst_176 = arith.constant 1.05070102 : f32
    %334 = vector.broadcast %cst_176 : f32 to vector<13x416xf32>
    %335 = arith.mulf %334, %333 : vector<13x416xf32>
    %c0_177 = arith.constant 0 : index
    %c0_178 = arith.constant 0 : index
    %336 = vector.load %arg14[%c0_177, %c0_178] : memref<19x13xf32, #tpu.memory_space<vmem>>, vector<19x13xf32>
    %cst_179 = arith.constant dense<0.000000e+00> : vector<19x416xf32>
    %337 = tpu.matmul %336, %321, %cst_179 {dimension_numbers = #tpu.dot_dimension_numbers<[1], [0], [0], [1], [0, 0, 1, 1], [], []>} : vector<19x13xf32>, vector<13x416xf32>, vector<19x416xf32> -> vector<19x416xf32>
    %c0_180 = arith.constant 0 : index
    %c0_181 = arith.constant 0 : index
    %338 = vector.load %arg14[%c0_180, %c0_181] : memref<19x13xf32, #tpu.memory_space<vmem>>, vector<19x13xf32>
    %cst_182 = arith.constant dense<0.000000e+00> : vector<19x416xf32>
    %339 = tpu.matmul %338, %335, %cst_182 {dimension_numbers = #tpu.dot_dimension_numbers<[1], [0], [0], [1], [0, 0, 1, 1], [], []>} : vector<19x13xf32>, vector<13x416xf32>, vector<19x416xf32> -> vector<19x416xf32>
    %340 = vector.extract_strided_slice %337 {offsets = [0, 0], sizes = [16, 416], strides = [1, 1]} : vector<19x416xf32> to vector<16x416xf32>
    %c0_183 = arith.constant 0 : index
    %c0_184 = arith.constant 0 : index
    %c0_185 = arith.constant 0 : index
    %341 = vector.load %arg12[%c0_183, %c0_184, %c0_185] : memref<4x416x16xf32, #tpu.memory_space<vmem>>, vector<1x416x16xf32>
    %342 = vector.shape_cast %341 : vector<1x416x16xf32> to vector<416x16xf32>
    %cst_186 = arith.constant dense<0.000000e+00> : vector<16x16xf32>
    %343 = tpu.matmul %340, %342, %cst_186 {dimension_numbers = #tpu.dot_dimension_numbers<[1], [0], [0], [1], [0, 0, 1, 1], [], []>} : vector<16x416xf32>, vector<416x16xf32>, vector<16x16xf32> -> vector<16x16xf32>
    %344 = vector.extract_strided_slice %337 {offsets = [1, 0], sizes = [16, 416], strides = [1, 1]} : vector<19x416xf32> to vector<16x416xf32>
    %c1_187 = arith.constant 1 : index
    %c0_188 = arith.constant 0 : index
    %c0_189 = arith.constant 0 : index
    %345 = vector.load %arg12[%c1_187, %c0_188, %c0_189] : memref<4x416x16xf32, #tpu.memory_space<vmem>>, vector<1x416x16xf32>
    %346 = vector.shape_cast %345 : vector<1x416x16xf32> to vector<416x16xf32>
    %cst_190 = arith.constant dense<0.000000e+00> : vector<16x16xf32>
    %347 = tpu.matmul %344, %346, %cst_190 {dimension_numbers = #tpu.dot_dimension_numbers<[1], [0], [0], [1], [0, 0, 1, 1], [], []>} : vector<16x416xf32>, vector<416x16xf32>, vector<16x16xf32> -> vector<16x16xf32>
    %348 = arith.addf %343, %347 : vector<16x16xf32>
    %349 = vector.extract_strided_slice %337 {offsets = [2, 0], sizes = [16, 416], strides = [1, 1]} : vector<19x416xf32> to vector<16x416xf32>
    %c2_191 = arith.constant 2 : index
    %c0_192 = arith.constant 0 : index
    %c0_193 = arith.constant 0 : index
    %350 = vector.load %arg12[%c2_191, %c0_192, %c0_193] : memref<4x416x16xf32, #tpu.memory_space<vmem>>, vector<1x416x16xf32>
    %351 = vector.shape_cast %350 : vector<1x416x16xf32> to vector<416x16xf32>
    %cst_194 = arith.constant dense<0.000000e+00> : vector<16x16xf32>
    %352 = tpu.matmul %349, %351, %cst_194 {dimension_numbers = #tpu.dot_dimension_numbers<[1], [0], [0], [1], [0, 0, 1, 1], [], []>} : vector<16x416xf32>, vector<416x16xf32>, vector<16x16xf32> -> vector<16x16xf32>
    %353 = arith.addf %348, %352 : vector<16x16xf32>
    %354 = vector.extract_strided_slice %337 {offsets = [3, 0], sizes = [16, 416], strides = [1, 1]} : vector<19x416xf32> to vector<16x416xf32>
    %c3_195 = arith.constant 3 : index
    %c0_196 = arith.constant 0 : index
    %c0_197 = arith.constant 0 : index
    %355 = vector.load %arg12[%c3_195, %c0_196, %c0_197] : memref<4x416x16xf32, #tpu.memory_space<vmem>>, vector<1x416x16xf32>
    %356 = vector.shape_cast %355 : vector<1x416x16xf32> to vector<416x16xf32>
    %cst_198 = arith.constant dense<0.000000e+00> : vector<16x16xf32>
    %357 = tpu.matmul %354, %356, %cst_198 {dimension_numbers = #tpu.dot_dimension_numbers<[1], [0], [0], [1], [0, 0, 1, 1], [], []>} : vector<16x416xf32>, vector<416x16xf32>, vector<16x16xf32> -> vector<16x16xf32>
    %358 = arith.addf %353, %357 : vector<16x16xf32>
    %359 = vector.extract_strided_slice %339 {offsets = [0, 0], sizes = [16, 416], strides = [1, 1]} : vector<19x416xf32> to vector<16x416xf32>
    %c0_199 = arith.constant 0 : index
    %c0_200 = arith.constant 0 : index
    %c0_201 = arith.constant 0 : index
    %360 = vector.load %arg12[%c0_199, %c0_200, %c0_201] : memref<4x416x16xf32, #tpu.memory_space<vmem>>, vector<1x416x16xf32>
    %361 = vector.shape_cast %360 : vector<1x416x16xf32> to vector<416x16xf32>
    %cst_202 = arith.constant dense<0.000000e+00> : vector<16x16xf32>
    %362 = tpu.matmul %359, %361, %cst_202 {dimension_numbers = #tpu.dot_dimension_numbers<[1], [0], [0], [1], [0, 0, 1, 1], [], []>} : vector<16x416xf32>, vector<416x16xf32>, vector<16x16xf32> -> vector<16x16xf32>
    %363 = vector.extract_strided_slice %339 {offsets = [1, 0], sizes = [16, 416], strides = [1, 1]} : vector<19x416xf32> to vector<16x416xf32>
    %c1_203 = arith.constant 1 : index
    %c0_204 = arith.constant 0 : index
    %c0_205 = arith.constant 0 : index
    %364 = vector.load %arg12[%c1_203, %c0_204, %c0_205] : memref<4x416x16xf32, #tpu.memory_space<vmem>>, vector<1x416x16xf32>
    %365 = vector.shape_cast %364 : vector<1x416x16xf32> to vector<416x16xf32>
    %cst_206 = arith.constant dense<0.000000e+00> : vector<16x16xf32>
    %366 = tpu.matmul %363, %365, %cst_206 {dimension_numbers = #tpu.dot_dimension_numbers<[1], [0], [0], [1], [0, 0, 1, 1], [], []>} : vector<16x416xf32>, vector<416x16xf32>, vector<16x16xf32> -> vector<16x16xf32>
    %367 = arith.addf %362, %366 : vector<16x16xf32>
    %368 = vector.extract_strided_slice %339 {offsets = [2, 0], sizes = [16, 416], strides = [1, 1]} : vector<19x416xf32> to vector<16x416xf32>
    %c2_207 = arith.constant 2 : index
    %c0_208 = arith.constant 0 : index
    %c0_209 = arith.constant 0 : index
    %369 = vector.load %arg12[%c2_207, %c0_208, %c0_209] : memref<4x416x16xf32, #tpu.memory_space<vmem>>, vector<1x416x16xf32>
    %370 = vector.shape_cast %369 : vector<1x416x16xf32> to vector<416x16xf32>
    %cst_210 = arith.constant dense<0.000000e+00> : vector<16x16xf32>
    %371 = tpu.matmul %368, %370, %cst_210 {dimension_numbers = #tpu.dot_dimension_numbers<[1], [0], [0], [1], [0, 0, 1, 1], [], []>} : vector<16x416xf32>, vector<416x16xf32>, vector<16x16xf32> -> vector<16x16xf32>
    %372 = arith.addf %367, %371 : vector<16x16xf32>
    %373 = vector.extract_strided_slice %339 {offsets = [3, 0], sizes = [16, 416], strides = [1, 1]} : vector<19x416xf32> to vector<16x416xf32>
    %c3_211 = arith.constant 3 : index
    %c0_212 = arith.constant 0 : index
    %c0_213 = arith.constant 0 : index
    %374 = vector.load %arg12[%c3_211, %c0_212, %c0_213] : memref<4x416x16xf32, #tpu.memory_space<vmem>>, vector<1x416x16xf32>
    %375 = vector.shape_cast %374 : vector<1x416x16xf32> to vector<416x16xf32>
    %cst_214 = arith.constant dense<0.000000e+00> : vector<16x16xf32>
    %376 = tpu.matmul %373, %375, %cst_214 {dimension_numbers = #tpu.dot_dimension_numbers<[1], [0], [0], [1], [0, 0, 1, 1], [], []>} : vector<16x416xf32>, vector<416x16xf32>, vector<16x16xf32> -> vector<16x16xf32>
    %377 = arith.addf %372, %376 : vector<16x16xf32>
    %c0_215 = arith.constant 0 : index
    %378 = memref.load %arg13[%c0_215] : memref<3xf32, #tpu.memory_space<smem>>
    %c1_216 = arith.constant 1 : index
    %379 = memref.load %arg13[%c1_216] : memref<3xf32, #tpu.memory_space<smem>>
    %c2_217 = arith.constant 2 : index
    %380 = memref.load %arg13[%c2_217] : memref<3xf32, #tpu.memory_space<smem>>
    %381 = vector.broadcast %378 : f32 to vector<16x16xf32>
    %382 = arith.addf %358, %381 : vector<16x16xf32>
    %383 = vector.broadcast %378 : f32 to vector<16x16xf32>
    %384 = arith.addf %377, %383 : vector<16x16xf32>
    %cst_218 = arith.constant dense<0.000000e+00> : vector<16xf32>
    %385 = vector.multi_reduction <add>, %382, %cst_218 [1] : vector<16x16xf32> to vector<16xf32>
    %386 = vector.shape_cast %385 : vector<16xf32> to vector<16x1xf32>
    %cst_219 = arith.constant dense<0.000000e+00> : vector<1xf32>
    %387 = vector.multi_reduction <add>, %386, %cst_219 [0] : vector<16x1xf32> to vector<1xf32>
    %388 = vector.shape_cast %387 : vector<1xf32> to vector<1x1xf32>
    %389 = arith.mulf %382, %382 : vector<16x16xf32>
    %cst_220 = arith.constant dense<0.000000e+00> : vector<16xf32>
    %390 = vector.multi_reduction <add>, %389, %cst_220 [1] : vector<16x16xf32> to vector<16xf32>
    %391 = vector.shape_cast %390 : vector<16xf32> to vector<16x1xf32>
    %cst_221 = arith.constant dense<0.000000e+00> : vector<1xf32>
    %392 = vector.multi_reduction <add>, %391, %cst_221 [0] : vector<16x1xf32> to vector<1xf32>
    %393 = vector.shape_cast %392 : vector<1xf32> to vector<1x1xf32>
    %cst_222 = arith.constant dense<0.000000e+00> : vector<16xf32>
    %394 = vector.multi_reduction <add>, %384, %cst_222 [1] : vector<16x16xf32> to vector<16xf32>
    %395 = vector.shape_cast %394 : vector<16xf32> to vector<16x1xf32>
    %cst_223 = arith.constant dense<0.000000e+00> : vector<1xf32>
    %396 = vector.multi_reduction <add>, %395, %cst_223 [0] : vector<16x1xf32> to vector<1xf32>
    %397 = vector.shape_cast %396 : vector<1xf32> to vector<1x1xf32>
    %398 = arith.mulf %384, %384 : vector<16x16xf32>
    %cst_224 = arith.constant dense<0.000000e+00> : vector<16xf32>
    %399 = vector.multi_reduction <add>, %398, %cst_224 [1] : vector<16x16xf32> to vector<16xf32>
    %400 = vector.shape_cast %399 : vector<16xf32> to vector<16x1xf32>
    %cst_225 = arith.constant dense<0.000000e+00> : vector<1xf32>
    %401 = vector.multi_reduction <add>, %400, %cst_225 [0] : vector<16x1xf32> to vector<1xf32>
    %402 = vector.shape_cast %401 : vector<1xf32> to vector<1x1xf32>
    %403 = arith.addf %388, %397 : vector<1x1xf32>
    %404 = arith.addf %393, %402 : vector<1x1xf32>
    %cst_226 = arith.constant 0.001953125 : f32
    %405 = vector.broadcast %cst_226 : f32 to vector<1x1xf32>
    %406 = arith.mulf %403, %405 : vector<1x1xf32>
    %cst_227 = arith.constant 0.001953125 : f32
    %407 = vector.broadcast %cst_227 : f32 to vector<1x1xf32>
    %408 = arith.mulf %404, %407 : vector<1x1xf32>
    %409 = arith.mulf %406, %406 : vector<1x1xf32>
    %410 = arith.subf %408, %409 : vector<1x1xf32>
    %cst_228 = arith.constant 0.000000e+00 : f32
    %411 = vector.broadcast %cst_228 : f32 to vector<1x1xf32>
    %412 = arith.maximumf %410, %411 : vector<1x1xf32>
    %cst_229 = arith.constant 9.99999974E-6 : f32
    %413 = vector.broadcast %cst_229 : f32 to vector<1x1xf32>
    %414 = arith.addf %412, %413 : vector<1x1xf32>
    %415 = math.rsqrt %414 : vector<1x1xf32>
    %416 = vector.broadcast %379 : f32 to vector<1x1xf32>
    %417 = arith.mulf %416, %415 : vector<1x1xf32>
    %418 = arith.mulf %406, %417 : vector<1x1xf32>
    %419 = vector.broadcast %380 : f32 to vector<1x1xf32>
    %420 = arith.subf %419, %418 : vector<1x1xf32>
    %421 = vector.broadcast %417 : vector<1x1xf32> to vector<16x16xf32>
    %422 = arith.mulf %382, %421 : vector<16x16xf32>
    %423 = vector.broadcast %420 : vector<1x1xf32> to vector<16x16xf32>
    %424 = arith.addf %422, %423 : vector<16x16xf32>
    %cst_230 = arith.constant 0.000000e+00 : f32
    %425 = vector.broadcast %cst_230 : f32 to vector<16x16xf32>
    %426 = arith.subf %425, %424 : vector<16x16xf32>
    %427 = math.exp %426 : vector<16x16xf32>
    %cst_231 = arith.constant 1.000000e+00 : f32
    %428 = vector.broadcast %cst_231 : f32 to vector<16x16xf32>
    %429 = arith.addf %428, %427 : vector<16x16xf32>
    %430 = tpu.reciprocal %429 : vector<16x16xf32> -> vector<16x16xf32>
    %c0_232 = arith.constant 0 : index
    %c0_233 = arith.constant 0 : index
    %c0_234 = arith.constant 0 : index
    %431 = vector.load %arg17[%c0_232, %c0_233, %c0_234] : memref<2x16x16xf32, #tpu.memory_space<vmem>>, vector<1x16x16xf32>
    %432 = vector.shape_cast %431 : vector<1x16x16xf32> to vector<16x16xf32>
    %433 = vector.shape_cast %430 : vector<16x16xf32> to vector<1x16x16xf32>
    tpu.vector_store %arg17[%c0_232, %c0_233, %c0_234], %433 {strides = array<i32>} : memref<2x16x16xf32, #tpu.memory_space<vmem>>, vector<1x16x16xf32>,
    %434 = vector.broadcast %417 : vector<1x1xf32> to vector<16x16xf32>
    %435 = arith.mulf %384, %434 : vector<16x16xf32>
    %436 = vector.broadcast %420 : vector<1x1xf32> to vector<16x16xf32>
    %437 = arith.addf %435, %436 : vector<16x16xf32>
    %cst_235 = arith.constant 0.000000e+00 : f32
    %438 = vector.broadcast %cst_235 : f32 to vector<16x16xf32>
    %439 = arith.subf %438, %437 : vector<16x16xf32>
    %440 = math.exp %439 : vector<16x16xf32>
    %cst_236 = arith.constant 1.000000e+00 : f32
    %441 = vector.broadcast %cst_236 : f32 to vector<16x16xf32>
    %442 = arith.addf %441, %440 : vector<16x16xf32>
    %443 = tpu.reciprocal %442 : vector<16x16xf32> -> vector<16x16xf32>
    %c1_237 = arith.constant 1 : index
    %c0_238 = arith.constant 0 : index
    %c0_239 = arith.constant 0 : index
    %444 = vector.load %arg17[%c1_237, %c0_238, %c0_239] : memref<2x16x16xf32, #tpu.memory_space<vmem>>, vector<1x16x16xf32>
    %445 = vector.shape_cast %444 : vector<1x16x16xf32> to vector<16x16xf32>
    %446 = vector.shape_cast %443 : vector<16x16xf32> to vector<1x16x16xf32>
    tpu.vector_store %arg17[%c1_237, %c0_238, %c0_239], %446 {strides = array<i32>} : memref<2x16x16xf32, #tpu.memory_space<vmem>>, vector<1x16x16xf32>,
    return
  }
}

</mosaic_0001>

<llo_original>
// kernel: conv_autoencoder_forward.1
$region0: #{conv_autoencoder_forward.1}
  #allocation0 [shape = 'u32[]', space=smem, size = 0x4, offset = 0x4, fixed_abs, tag = 'smem constant byte address 0x4 - core index']
  #allocation1 [shape = 'u32[144,128]{1,0:T(1,128)}', space=vmem, size = 0x12000, scoped, tag = 'internal scratch']
  %s0 = inlined_call_operand.vmem [shape: f32[2,16,16], index: 0, kind: input, shape index: {}]
  %s1 = inlined_call_operand.vmem [shape: f32[4,16,416], index: 1, kind: input, shape index: {}]
  %s2 = inlined_call_operand.vmem [shape: f32[3,32], index: 2, kind: input, shape index: {}]
  %s3 = inlined_call_operand.vmem [shape: f32[416,32], index: 3, kind: input, shape index: {}]
  %s4 = inlined_call_operand.vmem [shape: f32[32,416], index: 4, kind: input, shape index: {}]
  %s5 = inlined_call_operand.vmem [shape: f32[2,416,96], index: 5, kind: input, shape index: {}]
  %s6 = inlined_call_operand.vmem [shape: f32[3,8], index: 6, kind: input, shape index: {}]
  %s7 = inlined_call_operand.vmem [shape: f32[96,8], index: 7, kind: input, shape index: {}]
  %s8 = inlined_call_operand.vmem [shape: f32[8,96], index: 8, kind: input, shape index: {}]
  %s9 = inlined_call_operand.vmem [shape: f32[2,96,416], index: 9, kind: input, shape index: {}]
  %s10 = inlined_call_operand.vmem [shape: f32[3,32], index: 10, kind: input, shape index: {}]
  %s11 = inlined_call_operand.vmem [shape: f32[14,12], index: 11, kind: input, shape index: {}]
  %s12 = inlined_call_operand.vmem [shape: f32[4,416,16], index: 12, kind: input, shape index: {}]
  %s13 = inlined_call_operand.vmem [shape: f32[3], index: 13, kind: input, shape index: {}]
  %s14 = inlined_call_operand.vmem [shape: f32[19,13], index: 14, kind: input, shape index: {}]
  %s15 = inlined_call_operand.vmem [shape: f32[12,12], index: 15, kind: input, shape index: {}]
  %s16 = inlined_call_operand.vmem [shape: f32[96,96], index: 16, kind: input, shape index: {}]
  %s17 = inlined_call_operand.hbm [shape: f32[2,16,16], index: 17, kind: output, shape index: {}]
  %s18 = sld [smem:[#allocation0]]
  $region82: #{conv_autoencoder_forward.1} parent=0
    _
  %s20 = ssub.s32 1, %s18
  %s21 = scalar_select 0, %s20, %s18
  $region1: #{conv_autoencoder_forward.1} parent=0
    #allocation2 [shape = 'u8[512]{0}', space=smem, size = 0x200, scoped, tag = 'input window, operand 13, single buffered']
    #allocation3 [shape = 's32[1]{0}', space=sflag, size = 0x4, scoped, tag = 'scoped memory for conv_autoencoder_forward.1']
    #allocation4 [shape = 's32[1]{0}', space=sflag, size = 0x4, scoped, tag = 'scoped memory for conv_autoencoder_forward.1']
    #allocation5 [shape = 'u8[16384]{0}', space=vmem, size = 0x4000, scoped, tag = 'output window, operand 0, single buffered']
    %22 = vsyncpa [#allocation4], 0
    %23 = vsyncpa [#allocation3], 0
    // Predicated region
    $region2: #{conv_autoencoder_forward.1} parent=1 // pred_check
      _
    $region3: #{conv_autoencoder_forward.1} parent=1 // pred_check_branch
      %25 = sbr.rel (0) target = $region5
    $region4: #{conv_autoencoder_forward.1} parent=1 // pred_region
      _
    $region5: #{conv_autoencoder_forward.1} parent=1 // pred_fallthru
      _
    // Predicated region
    $region6: #{conv_autoencoder_forward.1} parent=1 // pred_check
      _
    $region7: #{conv_autoencoder_forward.1} parent=1 // pred_check_branch
      %27 = sbr.rel (0) target = $region9
    $region8: #{conv_autoencoder_forward.1} parent=1 // pred_region
      _
    $region9: #{conv_autoencoder_forward.1} parent=1 // pred_fallthru
      _
    // Predicated region
    $region10: #{conv_autoencoder_forward.1} parent=1 // pred_check
      _
    $region11: #{conv_autoencoder_forward.1} parent=1 // pred_check_branch
      %29 = sbr.rel (0) target = $region13
    $region12: #{conv_autoencoder_forward.1} parent=1 // pred_region
      _
    $region13: #{conv_autoencoder_forward.1} parent=1 // pred_fallthru
      _
    // Predicated region
    $region14: #{conv_autoencoder_forward.1} parent=1 // pred_check
      _
    $region15: #{conv_autoencoder_forward.1} parent=1 // pred_check_branch
      %31 = sbr.rel (0) target = $region17
    $region16: #{conv_autoencoder_forward.1} parent=1 // pred_region
      _
    $region17: #{conv_autoencoder_forward.1} parent=1 // pred_fallthru
      _
    // Predicated region
    $region18: #{conv_autoencoder_forward.1} parent=1 // pred_check
      _
    $region19: #{conv_autoencoder_forward.1} parent=1 // pred_check_branch
      %33 = sbr.rel (0) target = $region21
    $region20: #{conv_autoencoder_forward.1} parent=1 // pred_region
      _
    $region21: #{conv_autoencoder_forward.1} parent=1 // pred_fallthru
      _
    // Predicated region
    $region22: #{conv_autoencoder_forward.1} parent=1 // pred_check
      _
    $region23: #{conv_autoencoder_forward.1} parent=1 // pred_check_branch
      %35 = sbr.rel (0) target = $region25
    $region24: #{conv_autoencoder_forward.1} parent=1 // pred_region
      _
    $region25: #{conv_autoencoder_forward.1} parent=1 // pred_fallthru
      _
    // Predicated region
    $region26: #{conv_autoencoder_forward.1} parent=1 // pred_check
      _
    $region27: #{conv_autoencoder_forward.1} parent=1 // pred_check_branch
      %37 = sbr.rel (0) target = $region29
    $region28: #{conv_autoencoder_forward.1} parent=1 // pred_region
      _
    $region29: #{conv_autoencoder_forward.1} parent=1 // pred_fallthru
      _
    // Predicated region
    $region30: #{conv_autoencoder_forward.1} parent=1 // pred_check
      _
    $region31: #{conv_autoencoder_forward.1} parent=1 // pred_check_branch
      %39 = sbr.rel (0) target = $region33
    $region32: #{conv_autoencoder_forward.1} parent=1 // pred_region
      _
    $region33: #{conv_autoencoder_forward.1} parent=1 // pred_fallthru
      _
    // Predicated region
    $region34: #{conv_autoencoder_forward.1} parent=1 // pred_check
      _
    $region35: #{conv_autoencoder_forward.1} parent=1 // pred_check_branch
      %41 = sbr.rel (0) target = $region37
    $region36: #{conv_autoencoder_forward.1} parent=1 // pred_region
      _
    $region37: #{conv_autoencoder_forward.1} parent=1 // pred_fallthru
      _
    // Predicated region
    $region38: #{conv_autoencoder_forward.1} parent=1 // pred_check
      _
    $region39: #{conv_autoencoder_forward.1} parent=1 // pred_check_branch
      %43 = sbr.rel (0) target = $region41
    $region40: #{conv_autoencoder_forward.1} parent=1 // pred_region
      _
    $region41: #{conv_autoencoder_forward.1} parent=1 // pred_fallthru
      _
    // Predicated region
    $region42: #{conv_autoencoder_forward.1} parent=1 // pred_check
      _
    $region43: #{conv_autoencoder_forward.1} parent=1 // pred_check_branch
      %45 = sbr.rel (0) target = $region45
    $region44: #{conv_autoencoder_forward.1} parent=1 // pred_region
      _
    $region45: #{conv_autoencoder_forward.1} parent=1 // pred_fallthru
      _
    // Predicated region
    $region46: #{conv_autoencoder_forward.1} parent=1 // pred_check
      _
    $region47: #{conv_autoencoder_forward.1} parent=1 // pred_check_branch
      %47 = sbr.rel (0) target = $region49
    $region48: #{conv_autoencoder_forward.1} parent=1 // pred_region
      _
    $region49: #{conv_autoencoder_forward.1} parent=1 // pred_fallthru
      _
    // Predicated region
    $region50: #{conv_autoencoder_forward.1} parent=1 // pred_check
      _
    $region51: #{conv_autoencoder_forward.1} parent=1 // pred_check_branch
      %49 = sbr.rel (0) target = $region53
    $region52: #{conv_autoencoder_forward.1} parent=1 // pred_region
      _
    $region53: #{conv_autoencoder_forward.1} parent=1 // pred_fallthru
      _
    // Predicated region
    $region54: #{conv_autoencoder_forward.1} parent=1 // pred_check
      _
    $region55: #{conv_autoencoder_forward.1} parent=1 // pred_check_branch
      %51 = sbr.rel (0) target = $region57
    $region56: #{conv_autoencoder_forward.1} parent=1 // pred_region
      %s53 = ssub.s32 16, 16
      %54 = vsyncadd [#allocation4], %s53
      %s56 = sshll.u32 %s13, 4
      %s57 = int_to_ptr.vmem [resolvable:$true] %s56
      %59 = dma.vmem_to_smem %s57, 16, [#allocation2], [#allocation4]
    $region57: #{conv_autoencoder_forward.1} parent=1 // pred_fallthru
      _
    // Predicated region
    $region58: #{conv_autoencoder_forward.1} parent=1 // pred_check
      _
    $region59: #{conv_autoencoder_forward.1} parent=1 // pred_check_branch
      %61 = sbr.rel (0) target = $region61
    $region60: #{conv_autoencoder_forward.1} parent=1 // pred_region
      _
    $region61: #{conv_autoencoder_forward.1} parent=1 // pred_fallthru
      _
    // Predicated region
    $region62: #{conv_autoencoder_forward.1} parent=1 // pred_check
      _
    $region63: #{conv_autoencoder_forward.1} parent=1 // pred_check_branch
      %63 = sbr.rel (0) target = $region65
    $region64: #{conv_autoencoder_forward.1} parent=1 // pred_region
      _
    $region65: #{conv_autoencoder_forward.1} parent=1 // pred_fallthru
      _
    // Predicated region
    $region66: #{conv_autoencoder_forward.1} parent=1 // pred_check
      _
    $region67: #{conv_autoencoder_forward.1} parent=1 // pred_check_branch
      %65 = sbr.rel (0) target = $region69
    $region68: #{conv_autoencoder_forward.1} parent=1 // pred_region
      _
    $region69: #{conv_autoencoder_forward.1} parent=1 // pred_fallthru
      _
    // Predicated region
    $region70: #{conv_autoencoder_forward.1} parent=1 // pred_check
      _
    $region71: #{conv_autoencoder_forward.1} parent=1 // pred_check_branch
      %67 = sbr.rel (0) target = $region73
    $region72: #{conv_autoencoder_forward.1} parent=1 // pred_region
      %68 = dma.done [#allocation4], 16
    $region73: #{conv_autoencoder_forward.1} parent=1 // pred_fallthru
      _
    %69 = sfence
    %v70 = vld [vmem:[%s0] sm:$0xff]
    %v71 = vld [vmem:[%s0 + $0x8] sm:$0xff]
    %s72 = scalar_lea.vmem %s0, 16
    %v73 = vld [vmem:[%s72] sm:$0xff]
    %v74 = vld [vmem:[%s72 + $0x8] sm:$0xff]
    %v75 = vld [vmem:[%s1] sm:$0xff]
    %v76 = vld [vmem:[%s1 + $0x8] sm:$0xff]
    %v77 = vld [vmem:[%s1 + $0x10] sm:$0xff]
    %v78 = vld [vmem:[%s1 + $0x18] sm:$0xff]
    %v79 = vld [vmem:[%s1 + $0x20] sm:$0xff]
    %v80 = vld [vmem:[%s1 + $0x28] sm:$0xff]
    %v81 = vld [vmem:[%s1 + $0x30] sm:$0xff]
    %v82 = vld [vmem:[%s1 + $0x38] sm:$0xff]
    %s83 = scalar_lea.vmem %s1, 64
    %v84 = vld [vmem:[%s83] sm:$0xff]
    %v85 = vld [vmem:[%s83 + $0x8] sm:$0xff]
    %v86 = vld [vmem:[%s83 + $0x10] sm:$0xff]
    %v87 = vld [vmem:[%s83 + $0x18] sm:$0xff]
    %v88 = vld [vmem:[%s83 + $0x20] sm:$0xff]
    %v89 = vld [vmem:[%s83 + $0x28] sm:$0xff]
    %v90 = vld [vmem:[%s83 + $0x30] sm:$0xff]
    %v91 = vld [vmem:[%s83 + $0x38] sm:$0xff]
    %vm94 = vcmask 1046528
    %v95 = vrot.slane %v70, 1
    %v96 = vrot.slane %v71, 1
    %v97 = vsel %vm94, %v95, %v96
    %vm98 = vcmask 130048
    %v99 = vsel %vm98, %v97, 0
    %v101 = vsel %vm98, %v96, 0
    %103 = vmatprep.subr.mxu0 %v85
    %104 = vmatpush1.msra.mxu0 %v84
    %105 = vmatprep.subr.mxu0 %v89
    %106 = vmatpush1.msra.mxu0 %v88
    %107 = vmatprep.subr.mxu0 0.0
    %108 = vmatpush1.msra.mxu0 0.0
    %109 = vmatprep.subr.mxu0 0.0
    %110 = vmatpush1.msra.mxu0 0.0
    %111 = vmatprep.subr.mxu0 0.0
    %112 = vmatpush1.msra.mxu0 0.0
    %113 = vmatprep.subr.mxu0 0.0
    %114 = vmatpush1.msra.mxu0 0.0
    %115 = vmatprep.subr.mxu0 0.0
    %116 = vmatpush1.msra.mxu0 0.0
    %117 = vmatprep.subr.mxu0 0.0
    %118 = vmatpush1.msra.mxu0 0.0
    %119 = vmatprep.subr.mxu0 0.0
    %120 = vmatpush1.msra.mxu0 0.0
    %121 = vmatprep.subr.mxu0 0.0
    %122 = vmatpush1.msra.mxu0 0.0
    %123 = vmatprep.subr.mxu0 0.0
    %124 = vmatpush1.msra.mxu0 0.0
    %125 = vmatprep.subr.mxu0 0.0
    %126 = vmatpush1.msra.mxu0 0.0
    %127 = vmatprep.subr.mxu0 0.0
    %128 = vmatpush1.msra.mxu0 0.0
    %129 = vmatprep.subr.mxu0 0.0
    %130 = vmatpush1.msra.mxu0 0.0
    %131 = vmatprep.subr.mxu0 0.0
    %132 = vmatpush1.msra.mxu0 0.0
    %133 = vmatprep.subr.mxu0 0.0
    %134 = vmatpush1.msra.mxu0 0.0
    %135 = vmatprep.subr.mxu0 0.0
    %136 = vmatpush1.msra.mxu0 0.0
    %137 = vmatprep.subr.mxu0 0.0
    %138 = vmatpush1.msra.mxu0 0.0
    %139 = vmatprep.subr.mxu0 0.0
    %140 = vmatpush1.msra.mxu0 0.0
    %141 = vmatprep.subr.mxu0 0.0
    %142 = vmatpush1.msra.mxu0 0.0
    %143 = vmatprep.subr.mxu0 0.0
    %144 = vmatpush1.msra.mxu0 0.0
    %145 = vmatprep.subr.mxu0 0.0
    %146 = vmatpush1.msra.mxu0 0.0
    %147 = vmatprep.subr.mxu0 0.0
    %148 = vmatpush1.msra.mxu0 0.0
    %149 = vmatprep.subr.mxu0 0.0
    %150 = vmatpush1.msra.mxu0 0.0
    %151 = vmatprep.subr.mxu0 0.0
    %152 = vmatpush1.msra.mxu0 0.0
    %153 = vmatprep.subr.mxu0 0.0
    %154 = vmatpush1.msra.mxu0 0.0
    %155 = vmatprep.subr.mxu0 0.0
    %156 = vmatpush1.msra.mxu0 0.0
    %157 = vmatprep.subr.mxu0 0.0
    %158 = vmatpush1.msra.mxu0 0.0
    %159 = vmatprep.subr.mxu0 0.0
    %160 = vmatpush1.msra.mxu0 0.0
    %161 = vmatprep.subr.mxu0 0.0
    %162 = vmatpush1.msra.mxu0 0.0
    %163 = vmatprep.subr.mxu0 0.0
    %164 = vmatpush1.msra.mxu0 0.0
    %165 = vmatprep.subr.mxu0 0.0
    %166 = vmatpush1.msra.mxu0 0.0
    %167 = vmatprep.mubr.f32.mxu0 0.0
    %168 = vmatmul.mubr.f32.gmra.mrb[0].mxu0 %v99
    %v169 = vpop.f32.mrb[0].mxu0
    %v170 = vadd.f32 0.0, %v169
    %v171 = vpop.f32.mrb[0].mxu0
    %v172 = vadd.f32 0.0, %v171
    %173 = vmatprep.mubr.f32.mxu0 0.0
    %174 = vmatmul.mubr.f32.gmra.mrb[0].mxu0 %v101
    %v175 = vpop.f32.mrb[0].mxu0
    %v176 = vadd.f32 0.0, %v175
    %v177 = vpop.f32.mrb[0].mxu0
    %v178 = vadd.f32 0.0, %v177
    %179 = vdwg.mxu0
    %180 = vmatprep.subr.mxu0 %v87
    %181 = vmatpush1.msra.mxu0 %v86
    %182 = vmatprep.subr.mxu0 %v91
    %183 = vmatpush1.msra.mxu0 %v90
    %184 = vmatprep.subr.mxu0 0.0
    %185 = vmatpush1.msra.mxu0 0.0
    %186 = vmatprep.subr.mxu0 0.0
    %187 = vmatpush1.msra.mxu0 0.0
    %188 = vmatprep.subr.mxu0 0.0
    %189 = vmatpush1.msra.mxu0 0.0
    %190 = vmatprep.subr.mxu0 0.0
    %191 = vmatpush1.msra.mxu0 0.0
    %192 = vmatprep.subr.mxu0 0.0
    %193 = vmatpush1.msra.mxu0 0.0
    %194 = vmatprep.subr.mxu0 0.0
    %195 = vmatpush1.msra.mxu0 0.0
    %196 = vmatprep.subr.mxu0 0.0
    %197 = vmatpush1.msra.mxu0 0.0
    %198 = vmatprep.subr.mxu0 0.0
    %199 = vmatpush1.msra.mxu0 0.0
    %200 = vmatprep.subr.mxu0 0.0
    %201 = vmatpush1.msra.mxu0 0.0
    %202 = vmatprep.subr.mxu0 0.0
    %203 = vmatpush1.msra.mxu0 0.0
    %204 = vmatprep.subr.mxu0 0.0
    %205 = vmatpush1.msra.mxu0 0.0
    %206 = vmatprep.subr.mxu0 0.0
    %207 = vmatpush1.msra.mxu0 0.0
    %208 = vmatprep.subr.mxu0 0.0
    %209 = vmatpush1.msra.mxu0 0.0
    %210 = vmatprep.subr.mxu0 0.0
    %211 = vmatpush1.msra.mxu0 0.0
    %212 = vmatprep.subr.mxu0 0.0
    %213 = vmatpush1.msra.mxu0 0.0
    %214 = vmatprep.subr.mxu0 0.0
    %215 = vmatpush1.msra.mxu0 0.0
    %216 = vmatprep.subr.mxu0 0.0
    %217 = vmatpush1.msra.mxu0 0.0
    %218 = vmatprep.subr.mxu0 0.0
    %219 = vmatpush1.msra.mxu0 0.0
    %220 = vmatprep.subr.mxu0 0.0
    %221 = vmatpush1.msra.mxu0 0.0
    %222 = vmatprep.subr.mxu0 0.0
    %223 = vmatpush1.msra.mxu0 0.0
    %224 = vmatprep.subr.mxu0 0.0
    %225 = vmatpush1.msra.mxu0 0.0
    %226 = vmatprep.subr.mxu0 0.0
    %227 = vmatpush1.msra.mxu0 0.0
    %228 = vmatprep.subr.mxu0 0.0
    %229 = vmatpush1.msra.mxu0 0.0
    %230 = vmatprep.subr.mxu0 0.0
    %231 = vmatpush1.msra.mxu0 0.0
    %232 = vmatprep.subr.mxu0 0.0
    %233 = vmatpush1.msra.mxu0 0.0
    %234 = vmatprep.subr.mxu0 0.0
    %235 = vmatpush1.msra.mxu0 0.0
    %236 = vmatprep.subr.mxu0 0.0
    %237 = vmatpush1.msra.mxu0 0.0
    %238 = vmatprep.subr.mxu0 0.0
    %239 = vmatpush1.msra.mxu0 0.0
    %240 = vmatprep.subr.mxu0 0.0
    %241 = vmatpush1.msra.mxu0 0.0
    %242 = vmatprep.subr.mxu0 0.0
    %243 = vmatpush1.msra.mxu0 0.0
    %244 = vmatprep.mubr.f32.mxu0 0.0
    %245 = vmatmul.mubr.f32.gmra.mrb[0].mxu0 %v99
    %v246 = vpop.f32.mrb[0].mxu0
    %v247 = vadd.f32 0.0, %v246
    %v248 = vpop.f32.mrb[0].mxu0
    %v249 = vadd.f32 0.0, %v248
    %250 = vmatprep.mubr.f32.mxu0 0.0
    %251 = vmatmul.mubr.f32.gmra.mrb[0].mxu0 %v101
    %v252 = vpop.f32.mrb[0].mxu0
    %v253 = vadd.f32 0.0, %v252
    %v254 = vpop.f32.mrb[0].mxu0
    %v255 = vadd.f32 0.0, %v254
    %256 = vdwg.mxu0
    %v257 = vsel %vm98, %v70, 0
    %v259 = vsel %vm98, %v71, 0
    %261 = vmatprep.subr.mxu0 %v76
    %262 = vmatpush1.msra.mxu0 %v75
    %263 = vmatprep.subr.mxu0 %v80
    %264 = vmatpush1.msra.mxu0 %v79
    %265 = vmatprep.subr.mxu0 0.0
    %266 = vmatpush1.msra.mxu0 0.0
    %267 = vmatprep.subr.mxu0 0.0
    %268 = vmatpush1.msra.mxu0 0.0
    %269 = vmatprep.subr.mxu0 0.0
    %270 = vmatpush1.msra.mxu0 0.0
    %271 = vmatprep.subr.mxu0 0.0
    %272 = vmatpush1.msra.mxu0 0.0
    %273 = vmatprep.subr.mxu0 0.0
    %274 = vmatpush1.msra.mxu0 0.0
    %275 = vmatprep.subr.mxu0 0.0
    %276 = vmatpush1.msra.mxu0 0.0
    %277 = vmatprep.subr.mxu0 0.0
    %278 = vmatpush1.msra.mxu0 0.0
    %279 = vmatprep.subr.mxu0 0.0
    %280 = vmatpush1.msra.mxu0 0.0
    %281 = vmatprep.subr.mxu0 0.0
    %282 = vmatpush1.msra.mxu0 0.0
    %283 = vmatprep.subr.mxu0 0.0
    %284 = vmatpush1.msra.mxu0 0.0
    %285 = vmatprep.subr.mxu0 0.0
    %286 = vmatpush1.msra.mxu0 0.0
    %287 = vmatprep.subr.mxu0 0.0
    %288 = vmatpush1.msra.mxu0 0.0
    %289 = vmatprep.subr.mxu0 0.0
    %290 = vmatpush1.msra.mxu0 0.0
    %291 = vmatprep.subr.mxu0 0.0
    %292 = vmatpush1.msra.mxu0 0.0
    %293 = vmatprep.subr.mxu0 0.0
    %294 = vmatpush1.msra.mxu0 0.0
    %295 = vmatprep.subr.mxu0 0.0
    %296 = vmatpush1.msra.mxu0 0.0
    %297 = vmatprep.subr.mxu0 0.0
    %298 = vmatpush1.msra.mxu0 0.0
    %299 = vmatprep.subr.mxu0 0.0
    %300 = vmatpush1.msra.mxu0 0.0
    %301 = vmatprep.subr.mxu0 0.0
    %302 = vmatpush1.msra.mxu0 0.0
    %303 = vmatprep.subr.mxu0 0.0
    %304 = vmatpush1.msra.mxu0 0.0
    %305 = vmatprep.subr.mxu0 0.0
    %306 = vmatpush1.msra.mxu0 0.0
    %307 = vmatprep.subr.mxu0 0.0
    %308 = vmatpush1.msra.mxu0 0.0
    %309 = vmatprep.subr.mxu0 0.0
    %310 = vmatpush1.msra.mxu0 0.0
    %311 = vmatprep.subr.mxu0 0.0
    %312 = vmatpush1.msra.mxu0 0.0
    %313 = vmatprep.subr.mxu0 0.0
    %314 = vmatpush1.msra.mxu0 0.0
    %315 = vmatprep.subr.mxu0 0.0
    %316 = vmatpush1.msra.mxu0 0.0
    %317 = vmatprep.subr.mxu0 0.0
    %318 = vmatpush1.msra.mxu0 0.0
    %319 = vmatprep.subr.mxu0 0.0
    %320 = vmatpush1.msra.mxu0 0.0
    %321 = vmatprep.subr.mxu0 0.0
    %322 = vmatpush1.msra.mxu0 0.0
    %323 = vmatprep.subr.mxu0 0.0
    %324 = vmatpush1.msra.mxu0 0.0
    %325 = vmatprep.mubr.f32.mxu0 0.0
    %326 = vmatmul.mubr.f32.gmra.mrb[0].mxu0 %v257
    %v327 = vpop.f32.mrb[0].mxu0
    %v328 = vadd.f32 %v170, %v327
    %v329 = vpop.f32.mrb[0].mxu0
    %v330 = vadd.f32 %v172, %v329
    %331 = vmatprep.mubr.f32.mxu0 0.0
    %332 = vmatmul.mubr.f32.gmra.mrb[0].mxu0 %v259
    %v333 = vpop.f32.mrb[0].mxu0
    %v334 = vadd.f32 %v176, %v333
    %v335 = vpop.f32.mrb[0].mxu0
    %v336 = vadd.f32 %v178, %v335
    %337 = vdwg.mxu0
    %338 = vmatprep.subr.mxu0 %v78
    %339 = vmatpush1.msra.mxu0 %v77
    %340 = vmatprep.subr.mxu0 %v82
    %341 = vmatpush1.msra.mxu0 %v81
    %342 = vmatprep.subr.mxu0 0.0
    %343 = vmatpush1.msra.mxu0 0.0
    %344 = vmatprep.subr.mxu0 0.0
    %345 = vmatpush1.msra.mxu0 0.0
    %346 = vmatprep.subr.mxu0 0.0
    %347 = vmatpush1.msra.mxu0 0.0
    %348 = vmatprep.subr.mxu0 0.0
    %349 = vmatpush1.msra.mxu0 0.0
    %350 = vmatprep.subr.mxu0 0.0
    %351 = vmatpush1.msra.mxu0 0.0
    %352 = vmatprep.subr.mxu0 0.0
    %353 = vmatpush1.msra.mxu0 0.0
    %354 = vmatprep.subr.mxu0 0.0
    %355 = vmatpush1.msra.mxu0 0.0
    %356 = vmatprep.subr.mxu0 0.0
    %357 = vmatpush1.msra.mxu0 0.0
    %358 = vmatprep.subr.mxu0 0.0
    %359 = vmatpush1.msra.mxu0 0.0
    %360 = vmatprep.subr.mxu0 0.0
    %361 = vmatpush1.msra.mxu0 0.0
    %362 = vmatprep.subr.mxu0 0.0
    %363 = vmatpush1.msra.mxu0 0.0
    %364 = vmatprep.subr.mxu0 0.0
    %365 = vmatpush1.msra.mxu0 0.0
    %366 = vmatprep.subr.mxu0 0.0
    %367 = vmatpush1.msra.mxu0 0.0
    %368 = vmatprep.subr.mxu0 0.0
    %369 = vmatpush1.msra.mxu0 0.0
    %370 = vmatprep.subr.mxu0 0.0
    %371 = vmatpush1.msra.mxu0 0.0
    %372 = vmatprep.subr.mxu0 0.0
    %373 = vmatpush1.msra.mxu0 0.0
    %374 = vmatprep.subr.mxu0 0.0
    %375 = vmatpush1.msra.mxu0 0.0
    %376 = vmatprep.subr.mxu0 0.0
    %377 = vmatpush1.msra.mxu0 0.0
    %378 = vmatprep.subr.mxu0 0.0
    %379 = vmatpush1.msra.mxu0 0.0
    %380 = vmatprep.subr.mxu0 0.0
    %381 = vmatpush1.msra.mxu0 0.0
    %382 = vmatprep.subr.mxu0 0.0
    %383 = vmatpush1.msra.mxu0 0.0
    %384 = vmatprep.subr.mxu0 0.0
    %385 = vmatpush1.msra.mxu0 0.0
    %386 = vmatprep.subr.mxu0 0.0
    %387 = vmatpush1.msra.mxu0 0.0
    %388 = vmatprep.subr.mxu0 0.0
    %389 = vmatpush1.msra.mxu0 0.0
    %390 = vmatprep.subr.mxu0 0.0
    %391 = vmatpush1.msra.mxu0 0.0
    %392 = vmatprep.subr.mxu0 0.0
    %393 = vmatpush1.msra.mxu0 0.0
    %394 = vmatprep.subr.mxu0 0.0
    %395 = vmatpush1.msra.mxu0 0.0
    %396 = vmatprep.subr.mxu0 0.0
    %397 = vmatpush1.msra.mxu0 0.0
    %398 = vmatprep.subr.mxu0 0.0
    %399 = vmatpush1.msra.mxu0 0.0
    %400 = vmatprep.subr.mxu0 0.0
    %401 = vmatpush1.msra.mxu0 0.0
    %402 = vmatprep.mubr.f32.mxu0 0.0
    %403 = vmatmul.mubr.f32.gmra.mrb[0].mxu0 %v257
    %v404 = vpop.f32.mrb[0].mxu0
    %v405 = vadd.f32 %v247, %v404
    %v406 = vpop.f32.mrb[0].mxu0
    %v407 = vadd.f32 %v249, %v406
    %408 = vmatprep.mubr.f32.mxu0 0.0
    %409 = vmatmul.mubr.f32.gmra.mrb[0].mxu0 %v259
    %v410 = vpop.f32.mrb[0].mxu0
    %v411 = vadd.f32 %v253, %v410
    %v412 = vpop.f32.mrb[0].mxu0
    %v413 = vadd.f32 %v255, %v412
    %414 = vdwg.mxu0
    %s415 = scalar_lea.vmem %s1, 128
    %v416 = vld [vmem:[%s415] sm:$0xff]
    %v417 = vld [vmem:[%s415 + $0x8] sm:$0xff]
    %v418 = vld [vmem:[%s415 + $0x10] sm:$0xff]
    %v419 = vld [vmem:[%s415 + $0x18] sm:$0xff]
    %v420 = vld [vmem:[%s415 + $0x20] sm:$0xff]
    %v421 = vld [vmem:[%s415 + $0x28] sm:$0xff]
    %v422 = vld [vmem:[%s415 + $0x30] sm:$0xff]
    %v423 = vld [vmem:[%s415 + $0x38] sm:$0xff]
    %vm424 = vcmask 1045504
    %v425 = vrot.slane %v70, 2
    %v426 = vrot.slane %v71, 2
    %v427 = vsel %vm424, %v425, %v426
    %v428 = vsel %vm98, %v427, 0
    %v430 = vsel %vm98, %v426, 0
    %432 = vmatprep.subr.mxu0 %v417
    %433 = vmatpush1.msra.mxu0 %v416
    %434 = vmatprep.subr.mxu0 %v421
    %435 = vmatpush1.msra.mxu0 %v420
    %436 = vmatprep.subr.mxu0 0.0
    %437 = vmatpush1.msra.mxu0 0.0
    %438 = vmatprep.subr.mxu0 0.0
    %439 = vmatpush1.msra.mxu0 0.0
    %440 = vmatprep.subr.mxu0 0.0
    %441 = vmatpush1.msra.mxu0 0.0
    %442 = vmatprep.subr.mxu0 0.0
    %443 = vmatpush1.msra.mxu0 0.0
    %444 = vmatprep.subr.mxu0 0.0
    %445 = vmatpush1.msra.mxu0 0.0
    %446 = vmatprep.subr.mxu0 0.0
    %447 = vmatpush1.msra.mxu0 0.0
    %448 = vmatprep.subr.mxu0 0.0
    %449 = vmatpush1.msra.mxu0 0.0
    %450 = vmatprep.subr.mxu0 0.0
    %451 = vmatpush1.msra.mxu0 0.0
    %452 = vmatprep.subr.mxu0 0.0
    %453 = vmatpush1.msra.mxu0 0.0
    %454 = vmatprep.subr.mxu0 0.0
    %455 = vmatpush1.msra.mxu0 0.0
    %456 = vmatprep.subr.mxu0 0.0
    %457 = vmatpush1.msra.mxu0 0.0
    %458 = vmatprep.subr.mxu0 0.0
    %459 = vmatpush1.msra.mxu0 0.0
    %460 = vmatprep.subr.mxu0 0.0
    %461 = vmatpush1.msra.mxu0 0.0
    %462 = vmatprep.subr.mxu0 0.0
    %463 = vmatpush1.msra.mxu0 0.0
    %464 = vmatprep.subr.mxu0 0.0
    %465 = vmatpush1.msra.mxu0 0.0
    %466 = vmatprep.subr.mxu0 0.0
    %467 = vmatpush1.msra.mxu0 0.0
    %468 = vmatprep.subr.mxu0 0.0
    %469 = vmatpush1.msra.mxu0 0.0
    %470 = vmatprep.subr.mxu0 0.0
    %471 = vmatpush1.msra.mxu0 0.0
    %472 = vmatprep.subr.mxu0 0.0
    %473 = vmatpush1.msra.mxu0 0.0
    %474 = vmatprep.subr.mxu0 0.0
    %475 = vmatpush1.msra.mxu0 0.0
    %476 = vmatprep.subr.mxu0 0.0
    %477 = vmatpush1.msra.mxu0 0.0
    %478 = vmatprep.subr.mxu0 0.0
    %479 = vmatpush1.msra.mxu0 0.0
    %480 = vmatprep.subr.mxu0 0.0
    %481 = vmatpush1.msra.mxu0 0.0
    %482 = vmatprep.subr.mxu0 0.0
    %483 = vmatpush1.msra.mxu0 0.0
    %484 = vmatprep.subr.mxu0 0.0
    %485 = vmatpush1.msra.mxu0 0.0
    %486 = vmatprep.subr.mxu0 0.0
    %487 = vmatpush1.msra.mxu0 0.0
    %488 = vmatprep.subr.mxu0 0.0
    %489 = vmatpush1.msra.mxu0 0.0
    %490 = vmatprep.subr.mxu0 0.0
    %491 = vmatpush1.msra.mxu0 0.0
    %492 = vmatprep.subr.mxu0 0.0
    %493 = vmatpush1.msra.mxu0 0.0
    %494 = vmatprep.subr.mxu0 0.0
    %495 = vmatpush1.msra.mxu0 0.0
    %496 = vmatprep.mubr.f32.mxu0 0.0
    %497 = vmatmul.mubr.f32.gmra.mrb[0].mxu0 %v428
    %v498 = vpop.f32.mrb[0].mxu0
    %v499 = vadd.f32 0.0, %v498
    %v500 = vpop.f32.mrb[0].mxu0
    %v501 = vadd.f32 0.0, %v500
    %502 = vmatprep.mubr.f32.mxu0 0.0
    %503 = vmatmul.mubr.f32.gmra.mrb[0].mxu0 %v430
    %v504 = vpop.f32.mrb[0].mxu0
    %v505 = vadd.f32 0.0, %v504
    %v506 = vpop.f32.mrb[0].mxu0
    %v507 = vadd.f32 0.0, %v506
    %508 = vdwg.mxu0
    %509 = vmatprep.subr.mxu0 %v419
    %510 = vmatpush1.msra.mxu0 %v418
    %511 = vmatprep.subr.mxu0 %v423
    %512 = vmatpush1.msra.mxu0 %v422
    %513 = vmatprep.subr.mxu0 0.0
    %514 = vmatpush1.msra.mxu0 0.0
    %515 = vmatprep.subr.mxu0 0.0
    %516 = vmatpush1.msra.mxu0 0.0
    %517 = vmatprep.subr.mxu0 0.0
    %518 = vmatpush1.msra.mxu0 0.0
    %519 = vmatprep.subr.mxu0 0.0
    %520 = vmatpush1.msra.mxu0 0.0
    %521 = vmatprep.subr.mxu0 0.0
    %522 = vmatpush1.msra.mxu0 0.0
    %523 = vmatprep.subr.mxu0 0.0
    %524 = vmatpush1.msra.mxu0 0.0
    %525 = vmatprep.subr.mxu0 0.0
    %526 = vmatpush1.msra.mxu0 0.0
    %527 = vmatprep.subr.mxu0 0.0
    %528 = vmatpush1.msra.mxu0 0.0
    %529 = vmatprep.subr.mxu0 0.0
    %530 = vmatpush1.msra.mxu0 0.0
    %531 = vmatprep.subr.mxu0 0.0
    %532 = vmatpush1.msra.mxu0 0.0
    %533 = vmatprep.subr.mxu0 0.0
    %534 = vmatpush1.msra.mxu0 0.0
    %535 = vmatprep.subr.mxu0 0.0
    %536 = vmatpush1.msra.mxu0 0.0
    %537 = vmatprep.subr.mxu0 0.0
    %538 = vmatpush1.msra.mxu0 0.0
    %539 = vmatprep.subr.mxu0 0.0
    %540 = vmatpush1.msra.mxu0 0.0
    %541 = vmatprep.subr.mxu0 0.0
    %542 = vmatpush1.msra.mxu0 0.0
    %543 = vmatprep.subr.mxu0 0.0
    %544 = vmatpush1.msra.mxu0 0.0
    %545 = vmatprep.subr.mxu0 0.0
    %546 = vmatpush1.msra.mxu0 0.0
    %547 = vmatprep.subr.mxu0 0.0
    %548 = vmatpush1.msra.mxu0 0.0
    %549 = vmatprep.subr.mxu0 0.0
    %550 = vmatpush1.msra.mxu0 0.0
    %551 = vmatprep.subr.mxu0 0.0
    %552 = vmatpush1.msra.mxu0 0.0
    %553 = vmatprep.subr.mxu0 0.0
    %554 = vmatpush1.msra.mxu0 0.0
    %555 = vmatprep.subr.mxu0 0.0
    %556 = vmatpush1.msra.mxu0 0.0
    %557 = vmatprep.subr.mxu0 0.0
    %558 = vmatpush1.msra.mxu0 0.0
    %559 = vmatprep.subr.mxu0 0.0
    %560 = vmatpush1.msra.mxu0 0.0
    %561 = vmatprep.subr.mxu0 0.0
    %562 = vmatpush1.msra.mxu0 0.0
    %563 = vmatprep.subr.mxu0 0.0
    %564 = vmatpush1.msra.mxu0 0.0
    %565 = vmatprep.subr.mxu0 0.0
    %566 = vmatpush1.msra.mxu0 0.0
    %567 = vmatprep.subr.mxu0 0.0
    %568 = vmatpush1.msra.mxu0 0.0
    %569 = vmatprep.subr.mxu0 0.0
    %570 = vmatpush1.msra.mxu0 0.0
    %571 = vmatprep.subr.mxu0 0.0
    %572 = vmatpush1.msra.mxu0 0.0
    %573 = vmatprep.mubr.f32.mxu0 0.0
    %574 = vmatmul.mubr.f32.gmra.mrb[0].mxu0 %v428
    %v575 = vpop.f32.mrb[0].mxu0
    %v576 = vadd.f32 0.0, %v575
    %v577 = vpop.f32.mrb[0].mxu0
    %v578 = vadd.f32 0.0, %v577
    %579 = vmatprep.mubr.f32.mxu0 0.0
    %580 = vmatmul.mubr.f32.gmra.mrb[0].mxu0 %v430
    %v581 = vpop.f32.mrb[0].mxu0
    %v582 = vadd.f32 0.0, %v581
    %v583 = vpop.f32.mrb[0].mxu0
    %v584 = vadd.f32 0.0, %v583
    %585 = vdwg.mxu0
    %v586 = vadd.f32 %v328, %v499
    %v587 = vadd.f32 %v330, %v501
    %v588 = vadd.f32 %v405, %v576
    %v589 = vadd.f32 %v407, %v578
    %v590 = vadd.f32 %v334, %v505
    %v591 = vadd.f32 %v336, %v507
    %v592 = vadd.f32 %v411, %v582
    %v593 = vadd.f32 %v413, %v584
    %s594 = scalar_lea.vmem %s1, 192
    %v595 = vld [vmem:[%s594] sm:$0xff]
    %v596 = vld [vmem:[%s594 + $0x8] sm:$0xff]
    %v597 = vld [vmem:[%s594 + $0x10] sm:$0xff]
    %v598 = vld [vmem:[%s594 + $0x18] sm:$0xff]
    %v599 = vld [vmem:[%s594 + $0x20] sm:$0xff]
    %v600 = vld [vmem:[%s594 + $0x28] sm:$0xff]
    %v601 = vld [vmem:[%s594 + $0x30] sm:$0xff]
    %v602 = vld [vmem:[%s594 + $0x38] sm:$0xff]
    %vm603 = vcmask 1044480
    %v604 = vrot.slane %v70, 3
    %v605 = vrot.slane %v71, 3
    %v606 = vsel %vm603, %v604, %v605
    %v607 = vsel %vm98, %v606, 0
    %v609 = vsel %vm98, %v605, 0
    %611 = vmatprep.subr.mxu0 %v596
    %612 = vmatpush1.msra.mxu0 %v595
    %613 = vmatprep.subr.mxu0 %v600
    %614 = vmatpush1.msra.mxu0 %v599
    %615 = vmatprep.subr.mxu0 0.0
    %616 = vmatpush1.msra.mxu0 0.0
    %617 = vmatprep.subr.mxu0 0.0
    %618 = vmatpush1.msra.mxu0 0.0
    %619 = vmatprep.subr.mxu0 0.0
    %620 = vmatpush1.msra.mxu0 0.0
    %621 = vmatprep.subr.mxu0 0.0
    %622 = vmatpush1.msra.mxu0 0.0
    %623 = vmatprep.subr.mxu0 0.0
    %624 = vmatpush1.msra.mxu0 0.0
    %625 = vmatprep.subr.mxu0 0.0
    %626 = vmatpush1.msra.mxu0 0.0
    %627 = vmatprep.subr.mxu0 0.0
    %628 = vmatpush1.msra.mxu0 0.0
    %629 = vmatprep.subr.mxu0 0.0
    %630 = vmatpush1.msra.mxu0 0.0
    %631 = vmatprep.subr.mxu0 0.0
    %632 = vmatpush1.msra.mxu0 0.0
    %633 = vmatprep.subr.mxu0 0.0
    %634 = vmatpush1.msra.mxu0 0.0
    %635 = vmatprep.subr.mxu0 0.0
    %636 = vmatpush1.msra.mxu0 0.0
    %637 = vmatprep.subr.mxu0 0.0
    %638 = vmatpush1.msra.mxu0 0.0
    %639 = vmatprep.subr.mxu0 0.0
    %640 = vmatpush1.msra.mxu0 0.0
    %641 = vmatprep.subr.mxu0 0.0
    %642 = vmatpush1.msra.mxu0 0.0
    %643 = vmatprep.subr.mxu0 0.0
    %644 = vmatpush1.msra.mxu0 0.0
    %645 = vmatprep.subr.mxu0 0.0
    %646 = vmatpush1.msra.mxu0 0.0
    %647 = vmatprep.subr.mxu0 0.0
    %648 = vmatpush1.msra.mxu0 0.0
    %649 = vmatprep.subr.mxu0 0.0
    %650 = vmatpush1.msra.mxu0 0.0
    %651 = vmatprep.subr.mxu0 0.0
    %652 = vmatpush1.msra.mxu0 0.0
    %653 = vmatprep.subr.mxu0 0.0
    %654 = vmatpush1.msra.mxu0 0.0
    %655 = vmatprep.subr.mxu0 0.0
    %656 = vmatpush1.msra.mxu0 0.0
    %657 = vmatprep.subr.mxu0 0.0
    %658 = vmatpush1.msra.mxu0 0.0
    %659 = vmatprep.subr.mxu0 0.0
    %660 = vmatpush1.msra.mxu0 0.0
    %661 = vmatprep.subr.mxu0 0.0
    %662 = vmatpush1.msra.mxu0 0.0
    %663 = vmatprep.subr.mxu0 0.0
    %664 = vmatpush1.msra.mxu0 0.0
    %665 = vmatprep.subr.mxu0 0.0
    %666 = vmatpush1.msra.mxu0 0.0
    %667 = vmatprep.subr.mxu0 0.0
    %668 = vmatpush1.msra.mxu0 0.0
    %669 = vmatprep.subr.mxu0 0.0
    %670 = vmatpush1.msra.mxu0 0.0
    %671 = vmatprep.subr.mxu0 0.0
    %672 = vmatpush1.msra.mxu0 0.0
    %673 = vmatprep.subr.mxu0 0.0
    %674 = vmatpush1.msra.mxu0 0.0
    %675 = vmatprep.mubr.f32.mxu0 0.0
    %676 = vmatmul.mubr.f32.gmra.mrb[0].mxu0 %v607
    %v677 = vpop.f32.mrb[0].mxu0
    %v678 = vadd.f32 0.0, %v677
    %v679 = vpop.f32.mrb[0].mxu0
    %v680 = vadd.f32 0.0, %v679
    %681 = vmatprep.mubr.f32.mxu0 0.0
    %682 = vmatmul.mubr.f32.gmra.mrb[0].mxu0 %v609
    %v683 = vpop.f32.mrb[0].mxu0
    %v684 = vadd.f32 0.0, %v683
    %v685 = vpop.f32.mrb[0].mxu0
    %v686 = vadd.f32 0.0, %v685
    %687 = vdwg.mxu0
    %688 = vmatprep.subr.mxu0 %v598
    %689 = vmatpush1.msra.mxu0 %v597
    %690 = vmatprep.subr.mxu0 %v602
    %691 = vmatpush1.msra.mxu0 %v601
    %692 = vmatprep.subr.mxu0 0.0
    %693 = vmatpush1.msra.mxu0 0.0
    %694 = vmatprep.subr.mxu0 0.0
    %695 = vmatpush1.msra.mxu0 0.0
    %696 = vmatprep.subr.mxu0 0.0
    %697 = vmatpush1.msra.mxu0 0.0
    %698 = vmatprep.subr.mxu0 0.0
    %699 = vmatpush1.msra.mxu0 0.0
    %700 = vmatprep.subr.mxu0 0.0
    %701 = vmatpush1.msra.mxu0 0.0
    %702 = vmatprep.subr.mxu0 0.0
    %703 = vmatpush1.msra.mxu0 0.0
    %704 = vmatprep.subr.mxu0 0.0
    %705 = vmatpush1.msra.mxu0 0.0
    %706 = vmatprep.subr.mxu0 0.0
    %707 = vmatpush1.msra.mxu0 0.0
    %708 = vmatprep.subr.mxu0 0.0
    %709 = vmatpush1.msra.mxu0 0.0
    %710 = vmatprep.subr.mxu0 0.0
    %711 = vmatpush1.msra.mxu0 0.0
    %712 = vmatprep.subr.mxu0 0.0
    %713 = vmatpush1.msra.mxu0 0.0
    %714 = vmatprep.subr.mxu0 0.0
    %715 = vmatpush1.msra.mxu0 0.0
    %716 = vmatprep.subr.mxu0 0.0
    %717 = vmatpush1.msra.mxu0 0.0
    %718 = vmatprep.subr.mxu0 0.0
    %719 = vmatpush1.msra.mxu0 0.0
    %720 = vmatprep.subr.mxu0 0.0
    %721 = vmatpush1.msra.mxu0 0.0
    %722 = vmatprep.subr.mxu0 0.0
    %723 = vmatpush1.msra.mxu0 0.0
    %724 = vmatprep.subr.mxu0 0.0
    %725 = vmatpush1.msra.mxu0 0.0
    %726 = vmatprep.subr.mxu0 0.0
    %727 = vmatpush1.msra.mxu0 0.0
    %728 = vmatprep.subr.mxu0 0.0
    %729 = vmatpush1.msra.mxu0 0.0
    %730 = vmatprep.subr.mxu0 0.0
    %731 = vmatpush1.msra.mxu0 0.0
    %732 = vmatprep.subr.mxu0 0.0
    %733 = vmatpush1.msra.mxu0 0.0
    %734 = vmatprep.subr.mxu0 0.0
    %735 = vmatpush1.msra.mxu0 0.0
    %736 = vmatprep.subr.mxu0 0.0
    %737 = vmatpush1.msra.mxu0 0.0
    %738 = vmatprep.subr.mxu0 0.0
    %739 = vmatpush1.msra.mxu0 0.0
    %740 = vmatprep.subr.mxu0 0.0
    %741 = vmatpush1.msra.mxu0 0.0
    %742 = vmatprep.subr.mxu0 0.0
    %743 = vmatpush1.msra.mxu0 0.0
    %744 = vmatprep.subr.mxu0 0.0
    %745 = vmatpush1.msra.mxu0 0.0
    %746 = vmatprep.subr.mxu0 0.0
    %747 = vmatpush1.msra.mxu0 0.0
    %748 = vmatprep.subr.mxu0 0.0
    %749 = vmatpush1.msra.mxu0 0.0
    %750 = vmatprep.subr.mxu0 0.0
    %751 = vmatpush1.msra.mxu0 0.0
    %752 = vmatprep.mubr.f32.mxu0 0.0
    %753 = vmatmul.mubr.f32.gmra.mrb[0].mxu0 %v607
    %v754 = vpop.f32.mrb[0].mxu0
    %v755 = vadd.f32 0.0, %v754
    %v756 = vpop.f32.mrb[0].mxu0
    %v757 = vadd.f32 0.0, %v756
    %758 = vmatprep.mubr.f32.mxu0 0.0
    %759 = vmatmul.mubr.f32.gmra.mrb[0].mxu0 %v609
    %v760 = vpop.f32.mrb[0].mxu0
    %v761 = vadd.f32 0.0, %v760
    %v762 = vpop.f32.mrb[0].mxu0
    %v763 = vadd.f32 0.0, %v762
    %764 = vdwg.mxu0
    %v765 = vadd.f32 %v586, %v678
    %v766 = vadd.f32 %v587, %v680
    %v767 = vadd.f32 %v588, %v755
    %v768 = vadd.f32 %v589, %v757
    %v769 = vadd.f32 %v590, %v684
    %v770 = vadd.f32 %v591, %v686
    %v771 = vadd.f32 %v592, %v761
    %v772 = vadd.f32 %v593, %v763
    %v775 = vrot.slane %v73, 1
    %v776 = vrot.slane %v74, 1
    %v777 = vsel %vm94, %v775, %v776
    %v778 = vsel %vm98, %v777, 0
    %v780 = vsel %vm98, %v776, 0
    %782 = vmatprep.subr.mxu0 %v85
    %783 = vmatpush1.msra.mxu0 %v84
    %784 = vmatprep.subr.mxu0 %v89
    %785 = vmatpush1.msra.mxu0 %v88
    %786 = vmatprep.subr.mxu0 0.0
    %787 = vmatpush1.msra.mxu0 0.0
    %788 = vmatprep.subr.mxu0 0.0
    %789 = vmatpush1.msra.mxu0 0.0
    %790 = vmatprep.subr.mxu0 0.0
    %791 = vmatpush1.msra.mxu0 0.0
    %792 = vmatprep.subr.mxu0 0.0
    %793 = vmatpush1.msra.mxu0 0.0
    %794 = vmatprep.subr.mxu0 0.0
    %795 = vmatpush1.msra.mxu0 0.0
    %796 = vmatprep.subr.mxu0 0.0
    %797 = vmatpush1.msra.mxu0 0.0
    %798 = vmatprep.subr.mxu0 0.0
    %799 = vmatpush1.msra.mxu0 0.0
    %800 = vmatprep.subr.mxu0 0.0
    %801 = vmatpush1.msra.mxu0 0.0
    %802 = vmatprep.subr.mxu0 0.0
    %803 = vmatpush1.msra.mxu0 0.0
    %804 = vmatprep.subr.mxu0 0.0
    %805 = vmatpush1.msra.mxu0 0.0
    %806 = vmatprep.subr.mxu0 0.0
    %807 = vmatpush1.msra.mxu0 0.0
    %808 = vmatprep.subr.mxu0 0.0
    %809 = vmatpush1.msra.mxu0 0.0
    %810 = vmatprep.subr.mxu0 0.0
    %811 = vmatpush1.msra.mxu0 0.0
    %812 = vmatprep.subr.mxu0 0.0
    %813 = vmatpush1.msra.mxu0 0.0
    %814 = vmatprep.subr.mxu0 0.0
    %815 = vmatpush1.msra.mxu0 0.0
    %816 = vmatprep.subr.mxu0 0.0
    %817 = vmatpush1.msra.mxu0 0.0
    %818 = vmatprep.subr.mxu0 0.0
    %819 = vmatpush1.msra.mxu0 0.0
    %820 = vmatprep.subr.mxu0 0.0
    %821 = vmatpush1.msra.mxu0 0.0
    %822 = vmatprep.subr.mxu0 0.0
    %823 = vmatpush1.msra.mxu0 0.0
    %824 = vmatprep.subr.mxu0 0.0
    %825 = vmatpush1.msra.mxu0 0.0
    %826 = vmatprep.subr.mxu0 0.0
    %827 = vmatpush1.msra.mxu0 0.0
    %828 = vmatprep.subr.mxu0 0.0
    %829 = vmatpush1.msra.mxu0 0.0
    %830 = vmatprep.subr.mxu0 0.0
    %831 = vmatpush1.msra.mxu0 0.0
    %832 = vmatprep.subr.mxu0 0.0
    %833 = vmatpush1.msra.mxu0 0.0
    %834 = vmatprep.subr.mxu0 0.0
    %835 = vmatpush1.msra.mxu0 0.0
    %836 = vmatprep.subr.mxu0 0.0
    %837 = vmatpush1.msra.mxu0 0.0
    %838 = vmatprep.subr.mxu0 0.0
    %839 = vmatpush1.msra.mxu0 0.0
    %840 = vmatprep.subr.mxu0 0.0
    %841 = vmatpush1.msra.mxu0 0.0
    %842 = vmatprep.subr.mxu0 0.0
    %843 = vmatpush1.msra.mxu0 0.0
    %844 = vmatprep.subr.mxu0 0.0
    %845 = vmatpush1.msra.mxu0 0.0
    %846 = vmatprep.mubr.f32.mxu0 0.0
    %847 = vmatmul.mubr.f32.gmra.mrb[0].mxu0 %v778
    %v848 = vpop.f32.mrb[0].mxu0
    %v849 = vadd.f32 0.0, %v848
    %v850 = vpop.f32.mrb[0].mxu0
    %v851 = vadd.f32 0.0, %v850
    %852 = vmatprep.mubr.f32.mxu0 0.0
    %853 = vmatmul.mubr.f32.gmra.mrb[0].mxu0 %v780
    %v854 = vpop.f32.mrb[0].mxu0
    %v855 = vadd.f32 0.0, %v854
    %v856 = vpop.f32.mrb[0].mxu0
    %v857 = vadd.f32 0.0, %v856
    %858 = vdwg.mxu0
    %859 = vmatprep.subr.mxu0 %v87
    %860 = vmatpush1.msra.mxu0 %v86
    %861 = vmatprep.subr.mxu0 %v91
    %862 = vmatpush1.msra.mxu0 %v90
    %863 = vmatprep.subr.mxu0 0.0
    %864 = vmatpush1.msra.mxu0 0.0
    %865 = vmatprep.subr.mxu0 0.0
    %866 = vmatpush1.msra.mxu0 0.0
    %867 = vmatprep.subr.mxu0 0.0
    %868 = vmatpush1.msra.mxu0 0.0
    %869 = vmatprep.subr.mxu0 0.0
    %870 = vmatpush1.msra.mxu0 0.0
    %871 = vmatprep.subr.mxu0 0.0
    %872 = vmatpush1.msra.mxu0 0.0
    %873 = vmatprep.subr.mxu0 0.0
    %874 = vmatpush1.msra.mxu0 0.0
    %875 = vmatprep.subr.mxu0 0.0
    %876 = vmatpush1.msra.mxu0 0.0
    %877 = vmatprep.subr.mxu0 0.0
    %878 = vmatpush1.msra.mxu0 0.0
    %879 = vmatprep.subr.mxu0 0.0
    %880 = vmatpush1.msra.mxu0 0.0
    %881 = vmatprep.subr.mxu0 0.0
    %882 = vmatpush1.msra.mxu0 0.0
    %883 = vmatprep.subr.mxu0 0.0
    %884 = vmatpush1.msra.mxu0 0.0
    %885 = vmatprep.subr.mxu0 0.0
    %886 = vmatpush1.msra.mxu0 0.0
    %887 = vmatprep.subr.mxu0 0.0
    %888 = vmatpush1.msra.mxu0 0.0
    %889 = vmatprep.subr.mxu0 0.0
    %890 = vmatpush1.msra.mxu0 0.0
    %891 = vmatprep.subr.mxu0 0.0
    %892 = vmatpush1.msra.mxu0 0.0
    %893 = vmatprep.subr.mxu0 0.0
    %894 = vmatpush1.msra.mxu0 0.0
    %895 = vmatprep.subr.mxu0 0.0
    %896 = vmatpush1.msra.mxu0 0.0
    %897 = vmatprep.subr.mxu0 0.0
    %898 = vmatpush1.msra.mxu0 0.0
    %899 = vmatprep.subr.mxu0 0.0
    %900 = vmatpush1.msra.mxu0 0.0
    %901 = vmatprep.subr.mxu0 0.0
    %902 = vmatpush1.msra.mxu0 0.0
    %903 = vmatprep.subr.mxu0 0.0
    %904 = vmatpush1.msra.mxu0 0.0
    %905 = vmatprep.subr.mxu0 0.0
    %906 = vmatpush1.msra.mxu0 0.0
    %907 = vmatprep.subr.mxu0 0.0
    %908 = vmatpush1.msra.mxu0 0.0
    %909 = vmatprep.subr.mxu0 0.0
    %910 = vmatpush1.msra.mxu0 0.0
    %911 = vmatprep.subr.mxu0 0.0
    %912 = vmatpush1.msra.mxu0 0.0
    %913 = vmatprep.subr.mxu0 0.0
    %914 = vmatpush1.msra.mxu0 0.0
    %915 = vmatprep.subr.mxu0 0.0
    %916 = vmatpush1.msra.mxu0 0.0
    %917 = vmatprep.subr.mxu0 0.0
    %918 = vmatpush1.msra.mxu0 0.0
    %919 = vmatprep.subr.mxu0 0.0
    %920 = vmatpush1.msra.mxu0 0.0
    %921 = vmatprep.subr.mxu0 0.0
    %922 = vmatpush1.msra.mxu0 0.0
    %923 = vmatprep.mubr.f32.mxu0 0.0
    %924 = vmatmul.mubr.f32.gmra.mrb[0].mxu0 %v778
    %v925 = vpop.f32.mrb[0].mxu0
    %v926 = vadd.f32 0.0, %v925
    %v927 = vpop.f32.mrb[0].mxu0
    %v928 = vadd.f32 0.0, %v927
    %929 = vmatprep.mubr.f32.mxu0 0.0
    %930 = vmatmul.mubr.f32.gmra.mrb[0].mxu0 %v780
    %v931 = vpop.f32.mrb[0].mxu0
    %v932 = vadd.f32 0.0, %v931
    %v933 = vpop.f32.mrb[0].mxu0
    %v934 = vadd.f32 0.0, %v933
    %935 = vdwg.mxu0
    %v936 = vsel %vm98, %v73, 0
    %v938 = vsel %vm98, %v74, 0
    %940 = vmatprep.subr.mxu0 %v76
    %941 = vmatpush1.msra.mxu0 %v75
    %942 = vmatprep.subr.mxu0 %v80
    %943 = vmatpush1.msra.mxu0 %v79
    %944 = vmatprep.subr.mxu0 0.0
    %945 = vmatpush1.msra.mxu0 0.0
    %946 = vmatprep.subr.mxu0 0.0
    %947 = vmatpush1.msra.mxu0 0.0
    %948 = vmatprep.subr.mxu0 0.0
    %949 = vmatpush1.msra.mxu0 0.0
    %950 = vmatprep.subr.mxu0 0.0
    %951 = vmatpush1.msra.mxu0 0.0
    %952 = vmatprep.subr.mxu0 0.0
    %953 = vmatpush1.msra.mxu0 0.0
    %954 = vmatprep.subr.mxu0 0.0
    %955 = vmatpush1.msra.mxu0 0.0
    %956 = vmatprep.subr.mxu0 0.0
    %957 = vmatpush1.msra.mxu0 0.0
    %958 = vmatprep.subr.mxu0 0.0
    %959 = vmatpush1.msra.mxu0 0.0
    %960 = vmatprep.subr.mxu0 0.0
    %961 = vmatpush1.msra.mxu0 0.0
    %962 = vmatprep.subr.mxu0 0.0
    %963 = vmatpush1.msra.mxu0 0.0
    %964 = vmatprep.subr.mxu0 0.0
    %965 = vmatpush1.msra.mxu0 0.0
    %966 = vmatprep.subr.mxu0 0.0
    %967 = vmatpush1.msra.mxu0 0.0
    %968 = vmatprep.subr.mxu0 0.0
    %969 = vmatpush1.msra.mxu0 0.0
    %970 = vmatprep.subr.mxu0 0.0
    %971 = vmatpush1.msra.mxu0 0.0
    %972 = vmatprep.subr.mxu0 0.0
    %973 = vmatpush1.msra.mxu0 0.0
    %974 = vmatprep.subr.mxu0 0.0
    %975 = vmatpush1.msra.mxu0 0.0
    %976 = vmatprep.subr.mxu0 0.0
    %977 = vmatpush1.msra.mxu0 0.0
    %978 = vmatprep.subr.mxu0 0.0
    %979 = vmatpush1.msra.mxu0 0.0
    %980 = vmatprep.subr.mxu0 0.0
    %981 = vmatpush1.msra.mxu0 0.0
    %982 = vmatprep.subr.mxu0 0.0
    %983 = vmatpush1.msra.mxu0 0.0
    %984 = vmatprep.subr.mxu0 0.0
    %985 = vmatpush1.msra.mxu0 0.0
    %986 = vmatprep.subr.mxu0 0.0
    %987 = vmatpush1.msra.mxu0 0.0
    %988 = vmatprep.subr.mxu0 0.0
    %989 = vmatpush1.msra.mxu0 0.0
    %990 = vmatprep.subr.mxu0 0.0
    %991 = vmatpush1.msra.mxu0 0.0
    %992 = vmatprep.subr.mxu0 0.0
    %993 = vmatpush1.msra.mxu0 0.0
    %994 = vmatprep.subr.mxu0 0.0
    %995 = vmatpush1.msra.mxu0 0.0
    %996 = vmatprep.subr.mxu0 0.0
    %997 = vmatpush1.msra.mxu0 0.0
    %998 = vmatprep.subr.mxu0 0.0
    %999 = vmatpush1.msra.mxu0 0.0
    %1000 = vmatprep.subr.mxu0 0.0
    %1001 = vmatpush1.msra.mxu0 0.0
    %1002 = vmatprep.subr.mxu0 0.0
    %1003 = vmatpush1.msra.mxu0 0.0
    %1004 = vmatprep.mubr.f32.mxu0 0.0
    %1005 = vmatmul.mubr.f32.gmra.mrb[0].mxu0 %v936
    %v1006 = vpop.f32.mrb[0].mxu0
    %v1007 = vadd.f32 %v849, %v1006
    %v1008 = vpop.f32.mrb[0].mxu0
    %v1009 = vadd.f32 %v851, %v1008
    %1010 = vmatprep.mubr.f32.mxu0 0.0
    %1011 = vmatmul.mubr.f32.gmra.mrb[0].mxu0 %v938
    %v1012 = vpop.f32.mrb[0].mxu0
    %v1013 = vadd.f32 %v855, %v1012
    %v1014 = vpop.f32.mrb[0].mxu0
    %v1015 = vadd.f32 %v857, %v1014
    %1016 = vdwg.mxu0
    %1017 = vmatprep.subr.mxu0 %v78
    %1018 = vmatpush1.msra.mxu0 %v77
    %1019 = vmatprep.subr.mxu0 %v82
    %1020 = vmatpush1.msra.mxu0 %v81
    %1021 = vmatprep.subr.mxu0 0.0
    %1022 = vmatpush1.msra.mxu0 0.0
    %1023 = vmatprep.subr.mxu0 0.0
    %1024 = vmatpush1.msra.mxu0 0.0
    %1025 = vmatprep.subr.mxu0 0.0
    %1026 = vmatpush1.msra.mxu0 0.0
    %1027 = vmatprep.subr.mxu0 0.0
    %1028 = vmatpush1.msra.mxu0 0.0
    %1029 = vmatprep.subr.mxu0 0.0
    %1030 = vmatpush1.msra.mxu0 0.0
    %1031 = vmatprep.subr.mxu0 0.0
    %1032 = vmatpush1.msra.mxu0 0.0
    %1033 = vmatprep.subr.mxu0 0.0
    %1034 = vmatpush1.msra.mxu0 0.0
    %1035 = vmatprep.subr.mxu0 0.0
    %1036 = vmatpush1.msra.mxu0 0.0
    %1037 = vmatprep.subr.mxu0 0.0
    %1038 = vmatpush1.msra.mxu0 0.0
    %1039 = vmatprep.subr.mxu0 0.0
    %1040 = vmatpush1.msra.mxu0 0.0
    %1041 = vmatprep.subr.mxu0 0.0
    %1042 = vmatpush1.msra.mxu0 0.0
    %1043 = vmatprep.subr.mxu0 0.0
    %1044 = vmatpush1.msra.mxu0 0.0
    %1045 = vmatprep.subr.mxu0 0.0
    %1046 = vmatpush1.msra.mxu0 0.0
    %1047 = vmatprep.subr.mxu0 0.0
    %1048 = vmatpush1.msra.mxu0 0.0
    %1049 = vmatprep.subr.mxu0 0.0
    %1050 = vmatpush1.msra.mxu0 0.0
    %1051 = vmatprep.subr.mxu0 0.0
    %1052 = vmatpush1.msra.mxu0 0.0
    %1053 = vmatprep.subr.mxu0 0.0
    %1054 = vmatpush1.msra.mxu0 0.0
    %1055 = vmatprep.subr.mxu0 0.0
    %1056 = vmatpush1.msra.mxu0 0.0
    %1057 = vmatprep.subr.mxu0 0.0
    %1058 = vmatpush1.msra.mxu0 0.0
    %1059 = vmatprep.subr.mxu0 0.0
    %1060 = vmatpush1.msra.mxu0 0.0
    %1061 = vmatprep.subr.mxu0 0.0
    %1062 = vmatpush1.msra.mxu0 0.0
    %1063 = vmatprep.subr.mxu0 0.0
    %1064 = vmatpush1.msra.mxu0 0.0
    %1065 = vmatprep.subr.mxu0 0.0
    %1066 = vmatpush1.msra.mxu0 0.0
    %1067 = vmatprep.subr.mxu0 0.0
    %1068 = vmatpush1.msra.mxu0 0.0
    %1069 = vmatprep.subr.mxu0 0.0
    %1070 = vmatpush1.msra.mxu0 0.0
    %1071 = vmatprep.subr.mxu0 0.0
    %1072 = vmatpush1.msra.mxu0 0.0
    %1073 = vmatprep.subr.mxu0 0.0
    %1074 = vmatpush1.msra.mxu0 0.0
    %1075 = vmatprep.subr.mxu0 0.0
    %1076 = vmatpush1.msra.mxu0 0.0
    %1077 = vmatprep.subr.mxu0 0.0
    %1078 = vmatpush1.msra.mxu0 0.0
    %1079 = vmatprep.subr.mxu0 0.0
    %1080 = vmatpush1.msra.mxu0 0.0
    %1081 = vmatprep.mubr.f32.mxu0 0.0
    %1082 = vmatmul.mubr.f32.gmra.mrb[0].mxu0 %v936
    %v1083 = vpop.f32.mrb[0].mxu0
    %v1084 = vadd.f32 %v926, %v1083
    %v1085 = vpop.f32.mrb[0].mxu0
    %v1086 = vadd.f32 %v928, %v1085
    %1087 = vmatprep.mubr.f32.mxu0 0.0
    %1088 = vmatmul.mubr.f32.gmra.mrb[0].mxu0 %v938
    %v1089 = vpop.f32.mrb[0].mxu0
    %v1090 = vadd.f32 %v932, %v1089
    %v1091 = vpop.f32.mrb[0].mxu0
    %v1092 = vadd.f32 %v934, %v1091
    %1093 = vdwg.mxu0
    %v1094 = vrot.slane %v73, 2
    %v1095 = vrot.slane %v74, 2
    %v1096 = vsel %vm424, %v1094, %v1095
    %v1097 = vsel %vm98, %v1096, 0
    %v1099 = vsel %vm98, %v1095, 0
    %1101 = vmatprep.subr.mxu0 %v417
    %1102 = vmatpush1.msra.mxu0 %v416
    %1103 = vmatprep.subr.mxu0 %v421
    %1104 = vmatpush1.msra.mxu0 %v420
    %1105 = vmatprep.subr.mxu0 0.0
    %1106 = vmatpush1.msra.mxu0 0.0
    %1107 = vmatprep.subr.mxu0 0.0
    %1108 = vmatpush1.msra.mxu0 0.0
    %1109 = vmatprep.subr.mxu0 0.0
    %1110 = vmatpush1.msra.mxu0 0.0
    %1111 = vmatprep.subr.mxu0 0.0
    %1112 = vmatpush1.msra.mxu0 0.0
    %1113 = vmatprep.subr.mxu0 0.0
    %1114 = vmatpush1.msra.mxu0 0.0
    %1115 = vmatprep.subr.mxu0 0.0
    %1116 = vmatpush1.msra.mxu0 0.0
    %1117 = vmatprep.subr.mxu0 0.0
    %1118 = vmatpush1.msra.mxu0 0.0
    %1119 = vmatprep.subr.mxu0 0.0
    %1120 = vmatpush1.msra.mxu0 0.0
    %1121 = vmatprep.subr.mxu0 0.0
    %1122 = vmatpush1.msra.mxu0 0.0
    %1123 = vmatprep.subr.mxu0 0.0
    %1124 = vmatpush1.msra.mxu0 0.0
    %1125 = vmatprep.subr.mxu0 0.0
    %1126 = vmatpush1.msra.mxu0 0.0
    %1127 = vmatprep.subr.mxu0 0.0
    %1128 = vmatpush1.msra.mxu0 0.0
    %1129 = vmatprep.subr.mxu0 0.0
    %1130 = vmatpush1.msra.mxu0 0.0
    %1131 = vmatprep.subr.mxu0 0.0
    %1132 = vmatpush1.msra.mxu0 0.0
    %1133 = vmatprep.subr.mxu0 0.0
    %1134 = vmatpush1.msra.mxu0 0.0
    %1135 = vmatprep.subr.mxu0 0.0
    %1136 = vmatpush1.msra.mxu0 0.0
    %1137 = vmatprep.subr.mxu0 0.0
    %1138 = vmatpush1.msra.mxu0 0.0
    %1139 = vmatprep.subr.mxu0 0.0
    %1140 = vmatpush1.msra.mxu0 0.0
    %1141 = vmatprep.subr.mxu0 0.0
    %1142 = vmatpush1.msra.mxu0 0.0
    %1143 = vmatprep.subr.mxu0 0.0
    %1144 = vmatpush1.msra.mxu0 0.0
    %1145 = vmatprep.subr.mxu0 0.0
    %1146 = vmatpush1.msra.mxu0 0.0
    %1147 = vmatprep.subr.mxu0 0.0
    %1148 = vmatpush1.msra.mxu0 0.0
    %1149 = vmatprep.subr.mxu0 0.0
    %1150 = vmatpush1.msra.mxu0 0.0
    %1151 = vmatprep.subr.mxu0 0.0
    %1152 = vmatpush1.msra.mxu0 0.0
    %1153 = vmatprep.subr.mxu0 0.0
    %1154 = vmatpush1.msra.mxu0 0.0
    %1155 = vmatprep.subr.mxu0 0.0
    %1156 = vmatpush1.msra.mxu0 0.0
    %1157 = vmatprep.subr.mxu0 0.0
    %1158 = vmatpush1.msra.mxu0 0.0
    %1159 = vmatprep.subr.mxu0 0.0
    %1160 = vmatpush1.msra.mxu0 0.0
    %1161 = vmatprep.subr.mxu0 0.0
    %1162 = vmatpush1.msra.mxu0 0.0
    %1163 = vmatprep.subr.mxu0 0.0
    %1164 = vmatpush1.msra.mxu0 0.0
    %1165 = vmatprep.mubr.f32.mxu0 0.0
    %1166 = vmatmul.mubr.f32.gmra.mrb[0].mxu0 %v1097
    %v1167 = vpop.f32.mrb[0].mxu0
    %v1168 = vadd.f32 0.0, %v1167
    %v1169 = vpop.f32.mrb[0].mxu0
    %v1170 = vadd.f32 0.0, %v1169
    %1171 = vmatprep.mubr.f32.mxu0 0.0
    %1172 = vmatmul.mubr.f32.gmra.mrb[0].mxu0 %v1099
    %v1173 = vpop.f32.mrb[0].mxu0
    %v1174 = vadd.f32 0.0, %v1173
    %v1175 = vpop.f32.mrb[0].mxu0
    %v1176 = vadd.f32 0.0, %v1175
    %1177 = vdwg.mxu0
    %1178 = vmatprep.subr.mxu0 %v419
    %1179 = vmatpush1.msra.mxu0 %v418
    %1180 = vmatprep.subr.mxu0 %v423
    %1181 = vmatpush1.msra.mxu0 %v422
    %1182 = vmatprep.subr.mxu0 0.0
    %1183 = vmatpush1.msra.mxu0 0.0
    %1184 = vmatprep.subr.mxu0 0.0
    %1185 = vmatpush1.msra.mxu0 0.0
    %1186 = vmatprep.subr.mxu0 0.0
    %1187 = vmatpush1.msra.mxu0 0.0
    %1188 = vmatprep.subr.mxu0 0.0
    %1189 = vmatpush1.msra.mxu0 0.0
    %1190 = vmatprep.subr.mxu0 0.0
    %1191 = vmatpush1.msra.mxu0 0.0
    %1192 = vmatprep.subr.mxu0 0.0
    %1193 = vmatpush1.msra.mxu0 0.0
    %1194 = vmatprep.subr.mxu0 0.0
    %1195 = vmatpush1.msra.mxu0 0.0
    %1196 = vmatprep.subr.mxu0 0.0
    %1197 = vmatpush1.msra.mxu0 0.0
    %1198 = vmatprep.subr.mxu0 0.0
    %1199 = vmatpush1.msra.mxu0 0.0
    %1200 = vmatprep.subr.mxu0 0.0
    %1201 = vmatpush1.msra.mxu0 0.0
    %1202 = vmatprep.subr.mxu0 0.0
    %1203 = vmatpush1.msra.mxu0 0.0
    %1204 = vmatprep.subr.mxu0 0.0
    %1205 = vmatpush1.msra.mxu0 0.0
    %1206 = vmatprep.subr.mxu0 0.0
    %1207 = vmatpush1.msra.mxu0 0.0
    %1208 = vmatprep.subr.mxu0 0.0
    %1209 = vmatpush1.msra.mxu0 0.0
    %1210 = vmatprep.subr.mxu0 0.0
    %1211 = vmatpush1.msra.mxu0 0.0
    %1212 = vmatprep.subr.mxu0 0.0
    %1213 = vmatpush1.msra.mxu0 0.0
    %1214 = vmatprep.subr.mxu0 0.0
    %1215 = vmatpush1.msra.mxu0 0.0
    %1216 = vmatprep.subr.mxu0 0.0
    %1217 = vmatpush1.msra.mxu0 0.0
    %1218 = vmatprep.subr.mxu0 0.0
    %1219 = vmatpush1.msra.mxu0 0.0
    %1220 = vmatprep.subr.mxu0 0.0
    %1221 = vmatpush1.msra.mxu0 0.0
    %1222 = vmatprep.subr.mxu0 0.0
    %1223 = vmatpush1.msra.mxu0 0.0
    %1224 = vmatprep.subr.mxu0 0.0
    %1225 = vmatpush1.msra.mxu0 0.0
    %1226 = vmatprep.subr.mxu0 0.0
    %1227 = vmatpush1.msra.mxu0 0.0
    %1228 = vmatprep.subr.mxu0 0.0
    %1229 = vmatpush1.msra.mxu0 0.0
    %1230 = vmatprep.subr.mxu0 0.0
    %1231 = vmatpush1.msra.mxu0 0.0
    %1232 = vmatprep.subr.mxu0 0.0
    %1233 = vmatpush1.msra.mxu0 0.0
    %1234 = vmatprep.subr.mxu0 0.0
    %1235 = vmatpush1.msra.mxu0 0.0
    %1236 = vmatprep.subr.mxu0 0.0
    %1237 = vmatpush1.msra.mxu0 0.0
    %1238 = vmatprep.subr.mxu0 0.0
    %1239 = vmatpush1.msra.mxu0 0.0
    %1240 = vmatprep.subr.mxu0 0.0
    %1241 = vmatpush1.msra.mxu0 0.0
    %1242 = vmatprep.mubr.f32.mxu0 0.0
    %1243 = vmatmul.mubr.f32.gmra.mrb[0].mxu0 %v1097
    %v1244 = vpop.f32.mrb[0].mxu0
    %v1245 = vadd.f32 0.0, %v1244
    %v1246 = vpop.f32.mrb[0].mxu0
    %v1247 = vadd.f32 0.0, %v1246
    %1248 = vmatprep.mubr.f32.mxu0 0.0
    %1249 = vmatmul.mubr.f32.gmra.mrb[0].mxu0 %v1099
    %v1250 = vpop.f32.mrb[0].mxu0
    %v1251 = vadd.f32 0.0, %v1250
    %v1252 = vpop.f32.mrb[0].mxu0
    %v1253 = vadd.f32 0.0, %v1252
    %1254 = vdwg.mxu0
    %v1255 = vadd.f32 %v1007, %v1168
    %v1256 = vadd.f32 %v1009, %v1170
    %v1257 = vadd.f32 %v1084, %v1245
    %v1258 = vadd.f32 %v1086, %v1247
    %v1259 = vadd.f32 %v1013, %v1174
    %v1260 = vadd.f32 %v1015, %v1176
    %v1261 = vadd.f32 %v1090, %v1251
    %v1262 = vadd.f32 %v1092, %v1253
    %v1263 = vrot.slane %v73, 3
    %v1264 = vrot.slane %v74, 3
    %v1265 = vsel %vm603, %v1263, %v1264
    %v1266 = vsel %vm98, %v1265, 0
    %v1268 = vsel %vm98, %v1264, 0
    %1270 = vmatprep.subr.mxu0 %v596
    %1271 = vmatpush1.msra.mxu0 %v595
    %1272 = vmatprep.subr.mxu0 %v600
    %1273 = vmatpush1.msra.mxu0 %v599
    %1274 = vmatprep.subr.mxu0 0.0
    %1275 = vmatpush1.msra.mxu0 0.0
    %1276 = vmatprep.subr.mxu0 0.0
    %1277 = vmatpush1.msra.mxu0 0.0
    %1278 = vmatprep.subr.mxu0 0.0
    %1279 = vmatpush1.msra.mxu0 0.0
    %1280 = vmatprep.subr.mxu0 0.0
    %1281 = vmatpush1.msra.mxu0 0.0
    %1282 = vmatprep.subr.mxu0 0.0
    %1283 = vmatpush1.msra.mxu0 0.0
    %1284 = vmatprep.subr.mxu0 0.0
    %1285 = vmatpush1.msra.mxu0 0.0
    %1286 = vmatprep.subr.mxu0 0.0
    %1287 = vmatpush1.msra.mxu0 0.0
    %1288 = vmatprep.subr.mxu0 0.0
    %1289 = vmatpush1.msra.mxu0 0.0
    %1290 = vmatprep.subr.mxu0 0.0
    %1291 = vmatpush1.msra.mxu0 0.0
    %1292 = vmatprep.subr.mxu0 0.0
    %1293 = vmatpush1.msra.mxu0 0.0
    %1294 = vmatprep.subr.mxu0 0.0
    %1295 = vmatpush1.msra.mxu0 0.0
    %1296 = vmatprep.subr.mxu0 0.0
    %1297 = vmatpush1.msra.mxu0 0.0
    %1298 = vmatprep.subr.mxu0 0.0
    %1299 = vmatpush1.msra.mxu0 0.0
    %1300 = vmatprep.subr.mxu0 0.0
    %1301 = vmatpush1.msra.mxu0 0.0
    %1302 = vmatprep.subr.mxu0 0.0
    %1303 = vmatpush1.msra.mxu0 0.0
    %1304 = vmatprep.subr.mxu0 0.0
    %1305 = vmatpush1.msra.mxu0 0.0
    %1306 = vmatprep.subr.mxu0 0.0
    %1307 = vmatpush1.msra.mxu0 0.0
    %1308 = vmatprep.subr.mxu0 0.0
    %1309 = vmatpush1.msra.mxu0 0.0
    %1310 = vmatprep.subr.mxu0 0.0
    %1311 = vmatpush1.msra.mxu0 0.0
    %1312 = vmatprep.subr.mxu0 0.0
    %1313 = vmatpush1.msra.mxu0 0.0
    %1314 = vmatprep.subr.mxu0 0.0
    %1315 = vmatpush1.msra.mxu0 0.0
    %1316 = vmatprep.subr.mxu0 0.0
    %1317 = vmatpush1.msra.mxu0 0.0
    %1318 = vmatprep.subr.mxu0 0.0
    %1319 = vmatpush1.msra.mxu0 0.0
    %1320 = vmatprep.subr.mxu0 0.0
    %1321 = vmatpush1.msra.mxu0 0.0
    %1322 = vmatprep.subr.mxu0 0.0
    %1323 = vmatpush1.msra.mxu0 0.0
    %1324 = vmatprep.subr.mxu0 0.0
    %1325 = vmatpush1.msra.mxu0 0.0
    %1326 = vmatprep.subr.mxu0 0.0
    %1327 = vmatpush1.msra.mxu0 0.0
    %1328 = vmatprep.subr.mxu0 0.0
    %1329 = vmatpush1.msra.mxu0 0.0
    %1330 = vmatprep.subr.mxu0 0.0
    %1331 = vmatpush1.msra.mxu0 0.0
    %1332 = vmatprep.subr.mxu0 0.0
    %1333 = vmatpush1.msra.mxu0 0.0
    %1334 = vmatprep.mubr.f32.mxu0 0.0
    %1335 = vmatmul.mubr.f32.gmra.mrb[0].mxu0 %v1266
    %v1336 = vpop.f32.mrb[0].mxu0
    %v1337 = vadd.f32 0.0, %v1336
    %v1338 = vpop.f32.mrb[0].mxu0
    %v1339 = vadd.f32 0.0, %v1338
    %1340 = vmatprep.mubr.f32.mxu0 0.0
    %1341 = vmatmul.mubr.f32.gmra.mrb[0].mxu0 %v1268
    %v1342 = vpop.f32.mrb[0].mxu0
    %v1343 = vadd.f32 0.0, %v1342
    %v1344 = vpop.f32.mrb[0].mxu0
    %v1345 = vadd.f32 0.0, %v1344
    %1346 = vdwg.mxu0
    %1347 = vmatprep.subr.mxu0 %v598
    %1348 = vmatpush1.msra.mxu0 %v597
    %1349 = vmatprep.subr.mxu0 %v602
    %1350 = vmatpush1.msra.mxu0 %v601
    %1351 = vmatprep.subr.mxu0 0.0
    %1352 = vmatpush1.msra.mxu0 0.0
    %1353 = vmatprep.subr.mxu0 0.0
    %1354 = vmatpush1.msra.mxu0 0.0
    %1355 = vmatprep.subr.mxu0 0.0
    %1356 = vmatpush1.msra.mxu0 0.0
    %1357 = vmatprep.subr.mxu0 0.0
    %1358 = vmatpush1.msra.mxu0 0.0
    %1359 = vmatprep.subr.mxu0 0.0
    %1360 = vmatpush1.msra.mxu0 0.0
    %1361 = vmatprep.subr.mxu0 0.0
    %1362 = vmatpush1.msra.mxu0 0.0
    %1363 = vmatprep.subr.mxu0 0.0
    %1364 = vmatpush1.msra.mxu0 0.0
    %1365 = vmatprep.subr.mxu0 0.0
    %1366 = vmatpush1.msra.mxu0 0.0
    %1367 = vmatprep.subr.mxu0 0.0
    %1368 = vmatpush1.msra.mxu0 0.0
    %1369 = vmatprep.subr.mxu0 0.0
    %1370 = vmatpush1.msra.mxu0 0.0
    %1371 = vmatprep.subr.mxu0 0.0
    %1372 = vmatpush1.msra.mxu0 0.0
    %1373 = vmatprep.subr.mxu0 0.0
    %1374 = vmatpush1.msra.mxu0 0.0
    %1375 = vmatprep.subr.mxu0 0.0
    %1376 = vmatpush1.msra.mxu0 0.0
    %1377 = vmatprep.subr.mxu0 0.0
    %1378 = vmatpush1.msra.mxu0 0.0
    %1379 = vmatprep.subr.mxu0 0.0
    %1380 = vmatpush1.msra.mxu0 0.0
    %1381 = vmatprep.subr.mxu0 0.0
    %1382 = vmatpush1.msra.mxu0 0.0
    %1383 = vmatprep.subr.mxu0 0.0
    %1384 = vmatpush1.msra.mxu0 0.0
    %1385 = vmatprep.subr.mxu0 0.0
    %1386 = vmatpush1.msra.mxu0 0.0
    %1387 = vmatprep.subr.mxu0 0.0
    %1388 = vmatpush1.msra.mxu0 0.0
    %1389 = vmatprep.subr.mxu0 0.0
    %1390 = vmatpush1.msra.mxu0 0.0
    %1391 = vmatprep.subr.mxu0 0.0
    %1392 = vmatpush1.msra.mxu0 0.0
    %1393 = vmatprep.subr.mxu0 0.0
    %1394 = vmatpush1.msra.mxu0 0.0
    %1395 = vmatprep.subr.mxu0 0.0
    %1396 = vmatpush1.msra.mxu0 0.0
    %1397 = vmatprep.subr.mxu0 0.0
    %1398 = vmatpush1.msra.mxu0 0.0
    %1399 = vmatprep.subr.mxu0 0.0
    %1400 = vmatpush1.msra.mxu0 0.0
    %1401 = vmatprep.subr.mxu0 0.0
    %1402 = vmatpush1.msra.mxu0 0.0
    %1403 = vmatprep.subr.mxu0 0.0
    %1404 = vmatpush1.msra.mxu0 0.0
    %1405 = vmatprep.subr.mxu0 0.0
    %1406 = vmatpush1.msra.mxu0 0.0
    %1407 = vmatprep.subr.mxu0 0.0
    %1408 = vmatpush1.msra.mxu0 0.0
    %1409 = vmatprep.subr.mxu0 0.0
    %1410 = vmatpush1.msra.mxu0 0.0
    %1411 = vmatprep.mubr.f32.mxu0 0.0
    %1412 = vmatmul.mubr.f32.gmra.mrb[0].mxu0 %v1266
    %v1413 = vpop.f32.mrb[0].mxu0
    %v1414 = vadd.f32 0.0, %v1413
    %v1415 = vpop.f32.mrb[0].mxu0
    %v1416 = vadd.f32 0.0, %v1415
    %1417 = vmatprep.mubr.f32.mxu0 0.0
    %1418 = vmatmul.mubr.f32.gmra.mrb[0].mxu0 %v1268
    %v1419 = vpop.f32.mrb[0].mxu0
    %v1420 = vadd.f32 0.0, %v1419
    %v1421 = vpop.f32.mrb[0].mxu0
    %v1422 = vadd.f32 0.0, %v1421
    %1423 = vdwg.mxu0
    %v1424 = vadd.f32 %v1255, %v1337
    %v1425 = vadd.f32 %v1256, %v1339
    %v1426 = vadd.f32 %v1257, %v1414
    %v1427 = vadd.f32 %v1258, %v1416
    %v1428 = vadd.f32 %v1259, %v1343
    %v1429 = vadd.f32 %v1260, %v1345
    %v1430 = vadd.f32 %v1261, %v1420
    %v1431 = vadd.f32 %v1262, %v1422
    %v1432 = vld [vmem:[%s3] sm:$0xff]
    %v1433 = vld [vmem:[%s3 + $0x8] sm:$0xff]
    %v1434 = vld [vmem:[%s3 + $0x10] sm:$0xff]
    %v1435 = vld [vmem:[%s3 + $0x18] sm:$0xff]
    %v1436 = vld [vmem:[%s3 + $0x20] sm:$0xff]
    %v1437 = vld [vmem:[%s3 + $0x28] sm:$0xff]
    %v1438 = vld [vmem:[%s3 + $0x30] sm:$0xff]
    %v1439 = vld [vmem:[%s3 + $0x38] sm:$0xff]
    %v1440 = vld [vmem:[%s3 + $0x40] sm:$0xff]
    %v1441 = vld [vmem:[%s3 + $0x48] sm:$0xff]
    %v1442 = vld [vmem:[%s3 + $0x50] sm:$0xff]
    %v1443 = vld [vmem:[%s3 + $0x58] sm:$0xff]
    %v1444 = vld [vmem:[%s3 + $0x60] sm:$0xff]
    %v1445 = vld [vmem:[%s3 + $0x68] sm:$0xff]
    %v1446 = vld [vmem:[%s3 + $0x70] sm:$0xff]
    %v1447 = vld [vmem:[%s3 + $0x78] sm:$0xff]
    %v1448 = vld [vmem:[%s3 + $0x80] sm:$0xff]
    %v1449 = vld [vmem:[%s3 + $0x88] sm:$0xff]
    %v1450 = vld [vmem:[%s3 + $0x90] sm:$0xff]
    %v1451 = vld [vmem:[%s3 + $0x98] sm:$0xff]
    %v1452 = vld [vmem:[%s3 + $0xa0] sm:$0xff]
    %v1453 = vld [vmem:[%s3 + $0xa8] sm:$0xff]
    %v1454 = vld [vmem:[%s3 + $0xb0] sm:$0xff]
    %v1455 = vld [vmem:[%s3 + $0xb8] sm:$0xff]
    %v1456 = vld [vmem:[%s3 + $0xc0] sm:$0xff]
    %v1457 = vld [vmem:[%s3 + $0xc8] sm:$0xff]
    %v1458 = vld [vmem:[%s3 + $0xd0] sm:$0xff]
    %v1459 = vld [vmem:[%s3 + $0xd8] sm:$0xff]
    %v1460 = vld [vmem:[%s3 + $0xe0] sm:$0xff]
    %v1461 = vld [vmem:[%s3 + $0xe8] sm:$0xff]
    %v1462 = vld [vmem:[%s3 + $0xf0] sm:$0xff]
    %v1463 = vld [vmem:[%s3 + $0xf8] sm:$0xff]
    %v1464 = vld [vmem:[%s3 + $0x100] sm:$0xff]
    %v1465 = vld [vmem:[%s3 + $0x108] sm:$0xff]
    %v1466 = vld [vmem:[%s3 + $0x110] sm:$0xff]
    %v1467 = vld [vmem:[%s3 + $0x118] sm:$0xff]
    %v1468 = vld [vmem:[%s3 + $0x120] sm:$0xff]
    %v1469 = vld [vmem:[%s3 + $0x128] sm:$0xff]
    %v1470 = vld [vmem:[%s3 + $0x130] sm:$0xff]
    %v1471 = vld [vmem:[%s3 + $0x138] sm:$0xff]
    %v1472 = vld [vmem:[%s3 + $0x140] sm:$0xff]
    %v1473 = vld [vmem:[%s3 + $0x148] sm:$0xff]
    %v1474 = vld [vmem:[%s3 + $0x150] sm:$0xff]
    %v1475 = vld [vmem:[%s3 + $0x158] sm:$0xff]
    %v1476 = vld [vmem:[%s3 + $0x160] sm:$0xff]
    %v1477 = vld [vmem:[%s3 + $0x168] sm:$0xff]
    %v1478 = vld [vmem:[%s3 + $0x170] sm:$0xff]
    %v1479 = vld [vmem:[%s3 + $0x178] sm:$0xff]
    %v1480 = vld [vmem:[%s3 + $0x180] sm:$0xff]
    %v1481 = vld [vmem:[%s3 + $0x188] sm:$0xff]
    %v1482 = vld [vmem:[%s3 + $0x190] sm:$0xff]
    %v1483 = vld [vmem:[%s3 + $0x198] sm:$0xff]
    %v1484 = vld [vmem:[%s4] sm:$0xff]
    %v1485 = vld [vmem:[%s4 + $0x8] sm:$0xff]
    %v1486 = vld [vmem:[%s4 + $0x10] sm:$0xff]
    %v1487 = vld [vmem:[%s4 + $0x18] sm:$0xff]
    %v1488 = vld [vmem:[%s4 + $0x20] sm:$0xff]
    %v1489 = vld [vmem:[%s4 + $0x28] sm:$0xff]
    %v1490 = vld [vmem:[%s4 + $0x30] sm:$0xff]
    %v1491 = vld [vmem:[%s4 + $0x38] sm:$0xff]
    %v1492 = vld [vmem:[%s4 + $0x40] sm:$0xff]
    %v1493 = vld [vmem:[%s4 + $0x48] sm:$0xff]
    %v1494 = vld [vmem:[%s4 + $0x50] sm:$0xff]
    %v1495 = vld [vmem:[%s4 + $0x58] sm:$0xff]
    %v1496 = vld [vmem:[%s4 + $0x60] sm:$0xff]
    %v1497 = vld [vmem:[%s4 + $0x68] sm:$0xff]
    %v1498 = vld [vmem:[%s4 + $0x70] sm:$0xff]
    %v1499 = vld [vmem:[%s4 + $0x78] sm:$0xff]
    %v1500 = vld [vmem:[%s2] sm:$0x1]
    %vm1501 = vcmask 261120
    %v1503 = vsel %vm1501, %v1500, 0
    %1505 = vmatprep.subr.mxu0 %v1485
    %1506 = vmatpush1.msra.mxu0 %v1484
    %1507 = vmatprep.subr.mxu0 %v1489
    %1508 = vmatpush1.msra.mxu0 %v1488
    %1509 = vmatprep.subr.mxu0 %v1493
    %1510 = vmatpush1.msra.mxu0 %v1492
    %1511 = vmatprep.subr.mxu0 %v1497
    %1512 = vmatpush1.msra.mxu0 %v1496
    %1513 = vmatprep.subr.mxu0 0.0
    %1514 = vmatpush1.msra.mxu0 0.0
    %1515 = vmatprep.subr.mxu0 0.0
    %1516 = vmatpush1.msra.mxu0 0.0
    %1517 = vmatprep.subr.mxu0 0.0
    %1518 = vmatpush1.msra.mxu0 0.0
    %1519 = vmatprep.subr.mxu0 0.0
    %1520 = vmatpush1.msra.mxu0 0.0
    %1521 = vmatprep.subr.mxu0 0.0
    %1522 = vmatpush1.msra.mxu0 0.0
    %1523 = vmatprep.subr.mxu0 0.0
    %1524 = vmatpush1.msra.mxu0 0.0
    %1525 = vmatprep.subr.mxu0 0.0
    %1526 = vmatpush1.msra.mxu0 0.0
    %1527 = vmatprep.subr.mxu0 0.0
    %1528 = vmatpush1.msra.mxu0 0.0
    %1529 = vmatprep.subr.mxu0 0.0
    %1530 = vmatpush1.msra.mxu0 0.0
    %1531 = vmatprep.subr.mxu0 0.0
    %1532 = vmatpush1.msra.mxu0 0.0
    %1533 = vmatprep.subr.mxu0 0.0
    %1534 = vmatpush1.msra.mxu0 0.0
    %1535 = vmatprep.subr.mxu0 0.0
    %1536 = vmatpush1.msra.mxu0 0.0
    %1537 = vmatprep.subr.mxu0 0.0
    %1538 = vmatpush1.msra.mxu0 0.0
    %1539 = vmatprep.subr.mxu0 0.0
    %1540 = vmatpush1.msra.mxu0 0.0
    %1541 = vmatprep.subr.mxu0 0.0
    %1542 = vmatpush1.msra.mxu0 0.0
    %1543 = vmatprep.subr.mxu0 0.0
    %1544 = vmatpush1.msra.mxu0 0.0
    %1545 = vmatprep.subr.mxu0 0.0
    %1546 = vmatpush1.msra.mxu0 0.0
    %1547 = vmatprep.subr.mxu0 0.0
    %1548 = vmatpush1.msra.mxu0 0.0
    %1549 = vmatprep.subr.mxu0 0.0
    %1550 = vmatpush1.msra.mxu0 0.0
    %1551 = vmatprep.subr.mxu0 0.0
    %1552 = vmatpush1.msra.mxu0 0.0
    %1553 = vmatprep.subr.mxu0 0.0
    %1554 = vmatpush1.msra.mxu0 0.0
    %1555 = vmatprep.subr.mxu0 0.0
    %1556 = vmatpush1.msra.mxu0 0.0
    %1557 = vmatprep.subr.mxu0 0.0
    %1558 = vmatpush1.msra.mxu0 0.0
    %1559 = vmatprep.subr.mxu0 0.0
    %1560 = vmatpush1.msra.mxu0 0.0
    %1561 = vmatprep.subr.mxu0 0.0
    %1562 = vmatpush1.msra.mxu0 0.0
    %1563 = vmatprep.subr.mxu0 0.0
    %1564 = vmatpush1.msra.mxu0 0.0
    %1565 = vmatprep.subr.mxu0 0.0
    %1566 = vmatpush1.msra.mxu0 0.0
    %1567 = vmatprep.subr.mxu0 0.0
    %1568 = vmatpush1.msra.mxu0 0.0
    %1569 = vmatprep.mubr.f32.mxu0 0.0
    %1570 = vmatmul.mubr.f32.gmra.mrb[0].mxu0 %v1503
    %v1571 = vpop.f32.mrb[0].mxu0
    %v1572 = vadd.f32 0.0, %v1571
    %v1573 = vpop.f32.mrb[0].mxu0
    %v1574 = vadd.f32 0.0, %v1573
    %1575 = vdwg.mxu0
    %1576 = vmatprep.subr.mxu0 %v1487
    %1577 = vmatpush1.msra.mxu0 %v1486
    %1578 = vmatprep.subr.mxu0 %v1491
    %1579 = vmatpush1.msra.mxu0 %v1490
    %1580 = vmatprep.subr.mxu0 %v1495
    %1581 = vmatpush1.msra.mxu0 %v1494
    %1582 = vmatprep.subr.mxu0 %v1499
    %1583 = vmatpush1.msra.mxu0 %v1498
    %1584 = vmatprep.subr.mxu0 0.0
    %1585 = vmatpush1.msra.mxu0 0.0
    %1586 = vmatprep.subr.mxu0 0.0
    %1587 = vmatpush1.msra.mxu0 0.0
    %1588 = vmatprep.subr.mxu0 0.0
    %1589 = vmatpush1.msra.mxu0 0.0
    %1590 = vmatprep.subr.mxu0 0.0
    %1591 = vmatpush1.msra.mxu0 0.0
    %1592 = vmatprep.subr.mxu0 0.0
    %1593 = vmatpush1.msra.mxu0 0.0
    %1594 = vmatprep.subr.mxu0 0.0
    %1595 = vmatpush1.msra.mxu0 0.0
    %1596 = vmatprep.subr.mxu0 0.0
    %1597 = vmatpush1.msra.mxu0 0.0
    %1598 = vmatprep.subr.mxu0 0.0
    %1599 = vmatpush1.msra.mxu0 0.0
    %1600 = vmatprep.subr.mxu0 0.0
    %1601 = vmatpush1.msra.mxu0 0.0
    %1602 = vmatprep.subr.mxu0 0.0
    %1603 = vmatpush1.msra.mxu0 0.0
    %1604 = vmatprep.subr.mxu0 0.0
    %1605 = vmatpush1.msra.mxu0 0.0
    %1606 = vmatprep.subr.mxu0 0.0
    %1607 = vmatpush1.msra.mxu0 0.0
    %1608 = vmatprep.subr.mxu0 0.0
    %1609 = vmatpush1.msra.mxu0 0.0
    %1610 = vmatprep.subr.mxu0 0.0
    %1611 = vmatpush1.msra.mxu0 0.0
    %1612 = vmatprep.subr.mxu0 0.0
    %1613 = vmatpush1.msra.mxu0 0.0
    %1614 = vmatprep.subr.mxu0 0.0
    %1615 = vmatpush1.msra.mxu0 0.0
    %1616 = vmatprep.subr.mxu0 0.0
    %1617 = vmatpush1.msra.mxu0 0.0
    %1618 = vmatprep.subr.mxu0 0.0
    %1619 = vmatpush1.msra.mxu0 0.0
    %1620 = vmatprep.subr.mxu0 0.0
    %1621 = vmatpush1.msra.mxu0 0.0
    %1622 = vmatprep.subr.mxu0 0.0
    %1623 = vmatpush1.msra.mxu0 0.0
    %1624 = vmatprep.subr.mxu0 0.0
    %1625 = vmatpush1.msra.mxu0 0.0
    %1626 = vmatprep.subr.mxu0 0.0
    %1627 = vmatpush1.msra.mxu0 0.0
    %1628 = vmatprep.subr.mxu0 0.0
    %1629 = vmatpush1.msra.mxu0 0.0
    %1630 = vmatprep.subr.mxu0 0.0
    %1631 = vmatpush1.msra.mxu0 0.0
    %1632 = vmatprep.subr.mxu0 0.0
    %1633 = vmatpush1.msra.mxu0 0.0
    %1634 = vmatprep.subr.mxu0 0.0
    %1635 = vmatpush1.msra.mxu0 0.0
    %1636 = vmatprep.subr.mxu0 0.0
    %1637 = vmatpush1.msra.mxu0 0.0
    %1638 = vmatprep.subr.mxu0 0.0
    %1639 = vmatpush1.msra.mxu0 0.0
    %1640 = vmatprep.mubr.f32.mxu0 0.0
    %1641 = vmatmul.mubr.f32.gmra.mrb[0].mxu0 %v1503
    %v1642 = vpop.f32.mrb[0].mxu0
    %v1643 = vadd.f32 0.0, %v1642
    %v1644 = vpop.f32.mrb[0].mxu0
    %v1645 = vadd.f32 0.0, %v1644
    %1646 = vdwg.mxu0
    %v1647 = vlaneseq
    %v1648 = vshrl.u32 %v1647, 7
    %v1649 = vsub.s32 0, %v1648
    %v1650 = vrot.slane %v1572, %v1649
    %v1651 = vlaneseq
    %v1652 = vshrl.u32 %v1651, 7
    %v1653 = vsub.s32 0, %v1652
    %v1654 = vrot.slane %v1574, %v1653
    %v1655 = vlaneseq
    %v1656 = vshrl.u32 %v1655, 7
    %v1657 = vsub.s32 0, %v1656
    %v1658 = vrot.slane %v1643, %v1657
    %v1659 = vlaneseq
    %v1660 = vshrl.u32 %v1659, 7
    %v1661 = vsub.s32 0, %v1660
    %v1662 = vrot.slane %v1645, %v1661
    %v1663 = vadd.f32 %v765, %v1650
    %v1664 = vadd.f32 %v766, %v1654
    %v1665 = vadd.f32 %v767, %v1658
    %v1666 = vadd.f32 %v768, %v1662
    %v1667 = vadd.f32 %v769, %v1650
    %v1668 = vadd.f32 %v770, %v1654
    %v1669 = vadd.f32 %v771, %v1658
    %v1670 = vadd.f32 %v772, %v1662
    %v1671 = vadd.f32 %v1424, %v1650
    %v1672 = vadd.f32 %v1425, %v1654
    %v1673 = vadd.f32 %v1426, %v1658
    %v1674 = vadd.f32 %v1427, %v1662
    %v1675 = vadd.f32 %v1428, %v1650
    %v1676 = vadd.f32 %v1429, %v1654
    %v1677 = vadd.f32 %v1430, %v1658
    %v1678 = vadd.f32 %v1431, %v1662
    %v1679 = vsel %vm603, %v1667, 0.0
    %v1680 = vadd.f32 %v1663, %v1679
    %v1681 = vrot.slane %v1680, 4
    %v1682 = vadd.f32 %v1680, %v1681
    %v1683 = vrot.slane %v1682, 2
    %v1684 = vadd.f32 %v1682, %v1683
    %v1685 = vrot.slane %v1684, 1
    %v1686 = vadd.f32 %v1684, %v1685
    %v1687 = vsel %vm603, %v1668, 0.0
    %v1688 = vadd.f32 %v1664, %v1687
    %v1689 = vrot.slane %v1688, 4
    %v1690 = vadd.f32 %v1688, %v1689
    %v1691 = vrot.slane %v1690, 2
    %v1692 = vadd.f32 %v1690, %v1691
    %v1693 = vrot.slane %v1692, 1
    %v1694 = vadd.f32 %v1692, %v1693
    %v1695 = vsel %vm603, %v1669, 0.0
    %v1696 = vadd.f32 %v1665, %v1695
    %v1697 = vrot.slane %v1696, 4
    %v1698 = vadd.f32 %v1696, %v1697
    %v1699 = vrot.slane %v1698, 2
    %v1700 = vadd.f32 %v1698, %v1699
    %v1701 = vrot.slane %v1700, 1
    %v1702 = vadd.f32 %v1700, %v1701
    %v1703 = vsel %vm1501, %v1666, 0.0
    %vm1704 = vcmask 258048
    %v1705 = vsel %vm1704, %v1670, 0.0
    %v1706 = vadd.f32 %v1703, %v1705
    %v1707 = vrot.slane %v1706, 4
    %v1708 = vadd.f32 %v1706, %v1707
    %v1709 = vrot.slane %v1708, 2
    %v1710 = vadd.f32 %v1708, %v1709
    %v1711 = vrot.slane %v1710, 1
    %v1712 = vadd.f32 %v1710, %v1711
    %v1713 = vmul.f32 %v1663, %v1663
    %v1714 = vmul.f32 %v1664, %v1664
    %v1715 = vmul.f32 %v1665, %v1665
    %v1716 = vmul.f32 %v1666, %v1666
    %v1717 = vmul.f32 %v1667, %v1667
    %v1718 = vmul.f32 %v1668, %v1668
    %v1719 = vmul.f32 %v1669, %v1669
    %v1720 = vmul.f32 %v1670, %v1670
    %v1721 = vsel %vm603, %v1717, 0.0
    %v1722 = vadd.f32 %v1713, %v1721
    %v1723 = vrot.slane %v1722, 4
    %v1724 = vadd.f32 %v1722, %v1723
    %v1725 = vrot.slane %v1724, 2
    %v1726 = vadd.f32 %v1724, %v1725
    %v1727 = vrot.slane %v1726, 1
    %v1728 = vadd.f32 %v1726, %v1727
    %v1729 = vsel %vm603, %v1718, 0.0
    %v1730 = vadd.f32 %v1714, %v1729
    %v1731 = vrot.slane %v1730, 4
    %v1732 = vadd.f32 %v1730, %v1731
    %v1733 = vrot.slane %v1732, 2
    %v1734 = vadd.f32 %v1732, %v1733
    %v1735 = vrot.slane %v1734, 1
    %v1736 = vadd.f32 %v1734, %v1735
    %v1737 = vsel %vm603, %v1719, 0.0
    %v1738 = vadd.f32 %v1715, %v1737
    %v1739 = vrot.slane %v1738, 4
    %v1740 = vadd.f32 %v1738, %v1739
    %v1741 = vrot.slane %v1740, 2
    %v1742 = vadd.f32 %v1740, %v1741
    %v1743 = vrot.slane %v1742, 1
    %v1744 = vadd.f32 %v1742, %v1743
    %v1745 = vsel %vm1501, %v1716, 0.0
    %v1746 = vsel %vm1704, %v1720, 0.0
    %v1747 = vadd.f32 %v1745, %v1746
    %v1748 = vrot.slane %v1747, 4
    %v1749 = vadd.f32 %v1747, %v1748
    %v1750 = vrot.slane %v1749, 2
    %v1751 = vadd.f32 %v1749, %v1750
    %v1752 = vrot.slane %v1751, 1
    %v1753 = vadd.f32 %v1751, %v1752
    %v1754 = vsel %vm603, %v1675, 0.0
    %v1755 = vadd.f32 %v1671, %v1754
    %v1756 = vrot.slane %v1755, 4
    %v1757 = vadd.f32 %v1755, %v1756
    %v1758 = vrot.slane %v1757, 2
    %v1759 = vadd.f32 %v1757, %v1758
    %v1760 = vrot.slane %v1759, 1
    %v1761 = vadd.f32 %v1759, %v1760
    %v1762 = vsel %vm603, %v1676, 0.0
    %v1763 = vadd.f32 %v1672, %v1762
    %v1764 = vrot.slane %v1763, 4
    %v1765 = vadd.f32 %v1763, %v1764
    %v1766 = vrot.slane %v1765, 2
    %v1767 = vadd.f32 %v1765, %v1766
    %v1768 = vrot.slane %v1767, 1
    %v1769 = vadd.f32 %v1767, %v1768
    %v1770 = vsel %vm603, %v1677, 0.0
    %v1771 = vadd.f32 %v1673, %v1770
    %v1772 = vrot.slane %v1771, 4
    %v1773 = vadd.f32 %v1771, %v1772
    %v1774 = vrot.slane %v1773, 2
    %v1775 = vadd.f32 %v1773, %v1774
    %v1776 = vrot.slane %v1775, 1
    %v1777 = vadd.f32 %v1775, %v1776
    %v1778 = vsel %vm1501, %v1674, 0.0
    %v1779 = vsel %vm1704, %v1678, 0.0
    %v1780 = vadd.f32 %v1778, %v1779
    %v1781 = vrot.slane %v1780, 4
    %v1782 = vadd.f32 %v1780, %v1781
    %v1783 = vrot.slane %v1782, 2
    %v1784 = vadd.f32 %v1782, %v1783
    %v1785 = vrot.slane %v1784, 1
    %v1786 = vadd.f32 %v1784, %v1785
    %v1787 = vmul.f32 %v1671, %v1671
    %v1788 = vmul.f32 %v1672, %v1672
    %v1789 = vmul.f32 %v1673, %v1673
    %v1790 = vmul.f32 %v1674, %v1674
    %v1791 = vmul.f32 %v1675, %v1675
    %v1792 = vmul.f32 %v1676, %v1676
    %v1793 = vmul.f32 %v1677, %v1677
    %v1794 = vmul.f32 %v1678, %v1678
    %v1795 = vsel %vm603, %v1791, 0.0
    %v1796 = vadd.f32 %v1787, %v1795
    %v1797 = vrot.slane %v1796, 4
    %v1798 = vadd.f32 %v1796, %v1797
    %v1799 = vrot.slane %v1798, 2
    %v1800 = vadd.f32 %v1798, %v1799
    %v1801 = vrot.slane %v1800, 1
    %v1802 = vadd.f32 %v1800, %v1801
    %v1803 = vsel %vm603, %v1792, 0.0
    %v1804 = vadd.f32 %v1788, %v1803
    %v1805 = vrot.slane %v1804, 4
    %v1806 = vadd.f32 %v1804, %v1805
    %v1807 = vrot.slane %v1806, 2
    %v1808 = vadd.f32 %v1806, %v1807
    %v1809 = vrot.slane %v1808, 1
    %v1810 = vadd.f32 %v1808, %v1809
    %v1811 = vsel %vm603, %v1793, 0.0
    %v1812 = vadd.f32 %v1789, %v1811
    %v1813 = vrot.slane %v1812, 4
    %v1814 = vadd.f32 %v1812, %v1813
    %v1815 = vrot.slane %v1814, 2
    %v1816 = vadd.f32 %v1814, %v1815
    %v1817 = vrot.slane %v1816, 1
    %v1818 = vadd.f32 %v1816, %v1817
    %v1819 = vsel %vm1501, %v1790, 0.0
    %v1820 = vsel %vm1704, %v1794, 0.0
    %v1821 = vadd.f32 %v1819, %v1820
    %v1822 = vrot.slane %v1821, 4
    %v1823 = vadd.f32 %v1821, %v1822
    %v1824 = vrot.slane %v1823, 2
    %v1825 = vadd.f32 %v1823, %v1824
    %v1826 = vrot.slane %v1825, 1
    %v1827 = vadd.f32 %v1825, %v1826
    %v1828 = vadd.f32 %v1686, %v1761
    %v1829 = vadd.f32 %v1694, %v1769
    %v1830 = vadd.f32 %v1702, %v1777
    %v1831 = vadd.f32 %v1712, %v1786
    %v1832 = vadd.f32 %v1728, %v1802
    %v1833 = vadd.f32 %v1736, %v1810
    %v1834 = vadd.f32 %v1744, %v1818
    %v1835 = vadd.f32 %v1753, %v1827
    %v1837 = vsel %vm1501, %v1831, 0
    %1839 = vmatprep.subr.mxu0 0.0
    %1840 = vmatpush1.msra.mxu0 %v1432
    %1841 = vmatprep.subr.mxu0 0.0
    %1842 = vmatpush1.msra.mxu0 %v1433
    %1843 = vmatprep.subr.mxu0 0.0
    %1844 = vmatpush1.msra.mxu0 %v1434
    %1845 = vmatprep.subr.mxu0 0.0
    %1846 = vmatpush1.msra.mxu0 %v1435
    %1847 = vmatprep.subr.mxu0 0.0
    %1848 = vmatpush1.msra.mxu0 %v1436
    %1849 = vmatprep.subr.mxu0 0.0
    %1850 = vmatpush1.msra.mxu0 %v1437
    %1851 = vmatprep.subr.mxu0 0.0
    %1852 = vmatpush1.msra.mxu0 %v1438
    %1853 = vmatprep.subr.mxu0 0.0
    %1854 = vmatpush1.msra.mxu0 %v1439
    %1855 = vmatprep.subr.mxu0 0.0
    %1856 = vmatpush1.msra.mxu0 %v1440
    %1857 = vmatprep.subr.mxu0 0.0
    %1858 = vmatpush1.msra.mxu0 %v1441
    %1859 = vmatprep.subr.mxu0 0.0
    %1860 = vmatpush1.msra.mxu0 %v1442
    %1861 = vmatprep.subr.mxu0 0.0
    %1862 = vmatpush1.msra.mxu0 %v1443
    %1863 = vmatprep.subr.mxu0 0.0
    %1864 = vmatpush1.msra.mxu0 %v1444
    %1865 = vmatprep.subr.mxu0 0.0
    %1866 = vmatpush1.msra.mxu0 %v1445
    %1867 = vmatprep.subr.mxu0 0.0
    %1868 = vmatpush1.msra.mxu0 %v1446
    %1869 = vmatprep.subr.mxu0 0.0
    %1870 = vmatpush1.msra.mxu0 %v1447
    %1871 = vmatprep.subr.mxu0 0.0
    %1872 = vmatpush1.msra.mxu0 %v1448
    %1873 = vmatprep.subr.mxu0 0.0
    %1874 = vmatpush1.msra.mxu0 %v1449
    %1875 = vmatprep.subr.mxu0 0.0
    %1876 = vmatpush1.msra.mxu0 %v1450
    %1877 = vmatprep.subr.mxu0 0.0
    %1878 = vmatpush1.msra.mxu0 %v1451
    %1879 = vmatprep.subr.mxu0 0.0
    %1880 = vmatpush1.msra.mxu0 %v1452
    %1881 = vmatprep.subr.mxu0 0.0
    %1882 = vmatpush1.msra.mxu0 %v1453
    %1883 = vmatprep.subr.mxu0 0.0
    %1884 = vmatpush1.msra.mxu0 %v1454
    %1885 = vmatprep.subr.mxu0 0.0
    %1886 = vmatpush1.msra.mxu0 %v1455
    %1887 = vmatprep.subr.mxu0 0.0
    %1888 = vmatpush1.msra.mxu0 %v1456
    %1889 = vmatprep.subr.mxu0 0.0
    %1890 = vmatpush1.msra.mxu0 %v1457
    %1891 = vmatprep.subr.mxu0 0.0
    %1892 = vmatpush1.msra.mxu0 %v1458
    %1893 = vmatprep.subr.mxu0 0.0
    %1894 = vmatpush1.msra.mxu0 %v1459
    %1895 = vmatprep.subr.mxu0 0.0
    %1896 = vmatpush1.msra.mxu0 %v1460
    %1897 = vmatprep.subr.mxu0 0.0
    %1898 = vmatpush1.msra.mxu0 %v1461
    %1899 = vmatprep.subr.mxu0 0.0
    %1900 = vmatpush1.msra.mxu0 %v1462
    %1901 = vmatprep.subr.mxu0 0.0
    %1902 = vmatpush1.msra.mxu0 %v1463
    %1903 = vmatprep.mubr.f32.mxu0 %v1829
    %1904 = vmatmul.mubr.f32.gmra.mrb[0].mxu0 %v1828
    %v1905 = vpop.f32.mrb[0].mxu0
    %v1906 = vadd.f32 0.0, %v1905
    %v1907 = vpop.f32.mrb[0].mxu0
    %1908 = vdwg.mxu0
    %1909 = vmatprep.subr.mxu0 0.0
    %1910 = vmatpush1.msra.mxu0 %v1464
    %1911 = vmatprep.subr.mxu0 0.0
    %1912 = vmatpush1.msra.mxu0 %v1465
    %1913 = vmatprep.subr.mxu0 0.0
    %1914 = vmatpush1.msra.mxu0 %v1466
    %1915 = vmatprep.subr.mxu0 0.0
    %1916 = vmatpush1.msra.mxu0 %v1467
    %1917 = vmatprep.subr.mxu0 0.0
    %1918 = vmatpush1.msra.mxu0 %v1468
    %1919 = vmatprep.subr.mxu0 0.0
    %1920 = vmatpush1.msra.mxu0 %v1469
    %1921 = vmatprep.subr.mxu0 0.0
    %1922 = vmatpush1.msra.mxu0 %v1470
    %1923 = vmatprep.subr.mxu0 0.0
    %1924 = vmatpush1.msra.mxu0 %v1471
    %1925 = vmatprep.subr.mxu0 0.0
    %1926 = vmatpush1.msra.mxu0 %v1472
    %1927 = vmatprep.subr.mxu0 0.0
    %1928 = vmatpush1.msra.mxu0 %v1473
    %1929 = vmatprep.subr.mxu0 0.0
    %1930 = vmatpush1.msra.mxu0 %v1474
    %1931 = vmatprep.subr.mxu0 0.0
    %1932 = vmatpush1.msra.mxu0 %v1475
    %1933 = vmatprep.subr.mxu0 0.0
    %1934 = vmatpush1.msra.mxu0 %v1476
    %1935 = vmatprep.subr.mxu0 0.0
    %1936 = vmatpush1.msra.mxu0 %v1477
    %1937 = vmatprep.subr.mxu0 0.0
    %1938 = vmatpush1.msra.mxu0 %v1478
    %1939 = vmatprep.subr.mxu0 0.0
    %1940 = vmatpush1.msra.mxu0 %v1479
    %1941 = vmatprep.subr.mxu0 0.0
    %1942 = vmatpush1.msra.mxu0 %v1480
    %1943 = vmatprep.subr.mxu0 0.0
    %1944 = vmatpush1.msra.mxu0 %v1481
    %1945 = vmatprep.subr.mxu0 0.0
    %1946 = vmatpush1.msra.mxu0 %v1482
    %1947 = vmatprep.subr.mxu0 0.0
    %1948 = vmatpush1.msra.mxu0 %v1483
    %1949 = vmatprep.subr.mxu0 0.0
    %1950 = vmatpush1.msra.mxu0 0.0
    %1951 = vmatprep.subr.mxu0 0.0
    %1952 = vmatpush1.msra.mxu0 0.0
    %1953 = vmatprep.subr.mxu0 0.0
    %1954 = vmatpush1.msra.mxu0 0.0
    %1955 = vmatprep.subr.mxu0 0.0
    %1956 = vmatpush1.msra.mxu0 0.0
    %1957 = vmatprep.subr.mxu0 0.0
    %1958 = vmatpush1.msra.mxu0 0.0
    %1959 = vmatprep.subr.mxu0 0.0
    %1960 = vmatpush1.msra.mxu0 0.0
    %1961 = vmatprep.subr.mxu0 0.0
    %1962 = vmatpush1.msra.mxu0 0.0
    %1963 = vmatprep.subr.mxu0 0.0
    %1964 = vmatpush1.msra.mxu0 0.0
    %1965 = vmatprep.subr.mxu0 0.0
    %1966 = vmatpush1.msra.mxu0 0.0
    %1967 = vmatprep.subr.mxu0 0.0
    %1968 = vmatpush1.msra.mxu0 0.0
    %1969 = vmatprep.subr.mxu0 0.0
    %1970 = vmatpush1.msra.mxu0 0.0
    %1971 = vmatprep.subr.mxu0 0.0
    %1972 = vmatpush1.msra.mxu0 0.0
    %1973 = vmatprep.mubr.f32.mxu0 %v1837
    %1974 = vmatmul.mubr.f32.gmra.mrb[0].mxu0 %v1830
    %v1975 = vpop.f32.mrb[0].mxu0
    %v1976 = vadd.f32 %v1906, %v1975
    %v1977 = vpop.f32.mrb[0].mxu0
    %1978 = vdwg.mxu0
    %v1979 = vmul.f32 %v1976, 0.00295858
    %v1981 = vsel %vm1501, %v1835, 0
    %1983 = vmatprep.subr.mxu0 0.0
    %1984 = vmatpush1.msra.mxu0 %v1432
    %1985 = vmatprep.subr.mxu0 0.0
    %1986 = vmatpush1.msra.mxu0 %v1433
    %1987 = vmatprep.subr.mxu0 0.0
    %1988 = vmatpush1.msra.mxu0 %v1434
    %1989 = vmatprep.subr.mxu0 0.0
    %1990 = vmatpush1.msra.mxu0 %v1435
    %1991 = vmatprep.subr.mxu0 0.0
    %1992 = vmatpush1.msra.mxu0 %v1436
    %1993 = vmatprep.subr.mxu0 0.0
    %1994 = vmatpush1.msra.mxu0 %v1437
    %1995 = vmatprep.subr.mxu0 0.0
    %1996 = vmatpush1.msra.mxu0 %v1438
    %1997 = vmatprep.subr.mxu0 0.0
    %1998 = vmatpush1.msra.mxu0 %v1439
    %1999 = vmatprep.subr.mxu0 0.0
    %2000 = vmatpush1.msra.mxu0 %v1440
    %2001 = vmatprep.subr.mxu0 0.0
    %2002 = vmatpush1.msra.mxu0 %v1441
    %2003 = vmatprep.subr.mxu0 0.0
    %2004 = vmatpush1.msra.mxu0 %v1442
    %2005 = vmatprep.subr.mxu0 0.0
    %2006 = vmatpush1.msra.mxu0 %v1443
    %2007 = vmatprep.subr.mxu0 0.0
    %2008 = vmatpush1.msra.mxu0 %v1444
    %2009 = vmatprep.subr.mxu0 0.0
    %2010 = vmatpush1.msra.mxu0 %v1445
    %2011 = vmatprep.subr.mxu0 0.0
    %2012 = vmatpush1.msra.mxu0 %v1446
    %2013 = vmatprep.subr.mxu0 0.0
    %2014 = vmatpush1.msra.mxu0 %v1447
    %2015 = vmatprep.subr.mxu0 0.0
    %2016 = vmatpush1.msra.mxu0 %v1448
    %2017 = vmatprep.subr.mxu0 0.0
    %2018 = vmatpush1.msra.mxu0 %v1449
    %2019 = vmatprep.subr.mxu0 0.0
    %2020 = vmatpush1.msra.mxu0 %v1450
    %2021 = vmatprep.subr.mxu0 0.0
    %2022 = vmatpush1.msra.mxu0 %v1451
    %2023 = vmatprep.subr.mxu0 0.0
    %2024 = vmatpush1.msra.mxu0 %v1452
    %2025 = vmatprep.subr.mxu0 0.0
    %2026 = vmatpush1.msra.mxu0 %v1453
    %2027 = vmatprep.subr.mxu0 0.0
    %2028 = vmatpush1.msra.mxu0 %v1454
    %2029 = vmatprep.subr.mxu0 0.0
    %2030 = vmatpush1.msra.mxu0 %v1455
    %2031 = vmatprep.subr.mxu0 0.0
    %2032 = vmatpush1.msra.mxu0 %v1456
    %2033 = vmatprep.subr.mxu0 0.0
    %2034 = vmatpush1.msra.mxu0 %v1457
    %2035 = vmatprep.subr.mxu0 0.0
    %2036 = vmatpush1.msra.mxu0 %v1458
    %2037 = vmatprep.subr.mxu0 0.0
    %2038 = vmatpush1.msra.mxu0 %v1459
    %2039 = vmatprep.subr.mxu0 0.0
    %2040 = vmatpush1.msra.mxu0 %v1460
    %2041 = vmatprep.subr.mxu0 0.0
    %2042 = vmatpush1.msra.mxu0 %v1461
    %2043 = vmatprep.subr.mxu0 0.0
    %2044 = vmatpush1.msra.mxu0 %v1462
    %2045 = vmatprep.subr.mxu0 0.0
    %2046 = vmatpush1.msra.mxu0 %v1463
    %2047 = vmatprep.mubr.f32.mxu0 %v1833
    %2048 = vmatmul.mubr.f32.gmra.mrb[0].mxu0 %v1832
    %v2049 = vpop.f32.mrb[0].mxu0
    %v2050 = vadd.f32 0.0, %v2049
    %v2051 = vpop.f32.mrb[0].mxu0
    %2052 = vdwg.mxu0
    %2053 = vmatprep.subr.mxu0 0.0
    %2054 = vmatpush1.msra.mxu0 %v1464
    %2055 = vmatprep.subr.mxu0 0.0
    %2056 = vmatpush1.msra.mxu0 %v1465
    %2057 = vmatprep.subr.mxu0 0.0
    %2058 = vmatpush1.msra.mxu0 %v1466
    %2059 = vmatprep.subr.mxu0 0.0
    %2060 = vmatpush1.msra.mxu0 %v1467
    %2061 = vmatprep.subr.mxu0 0.0
    %2062 = vmatpush1.msra.mxu0 %v1468
    %2063 = vmatprep.subr.mxu0 0.0
    %2064 = vmatpush1.msra.mxu0 %v1469
    %2065 = vmatprep.subr.mxu0 0.0
    %2066 = vmatpush1.msra.mxu0 %v1470
    %2067 = vmatprep.subr.mxu0 0.0
    %2068 = vmatpush1.msra.mxu0 %v1471
    %2069 = vmatprep.subr.mxu0 0.0
    %2070 = vmatpush1.msra.mxu0 %v1472
    %2071 = vmatprep.subr.mxu0 0.0
    %2072 = vmatpush1.msra.mxu0 %v1473
    %2073 = vmatprep.subr.mxu0 0.0
    %2074 = vmatpush1.msra.mxu0 %v1474
    %2075 = vmatprep.subr.mxu0 0.0
    %2076 = vmatpush1.msra.mxu0 %v1475
    %2077 = vmatprep.subr.mxu0 0.0
    %2078 = vmatpush1.msra.mxu0 %v1476
    %2079 = vmatprep.subr.mxu0 0.0
    %2080 = vmatpush1.msra.mxu0 %v1477
    %2081 = vmatprep.subr.mxu0 0.0
    %2082 = vmatpush1.msra.mxu0 %v1478
    %2083 = vmatprep.subr.mxu0 0.0
    %2084 = vmatpush1.msra.mxu0 %v1479
    %2085 = vmatprep.subr.mxu0 0.0
    %2086 = vmatpush1.msra.mxu0 %v1480
    %2087 = vmatprep.subr.mxu0 0.0
    %2088 = vmatpush1.msra.mxu0 %v1481
    %2089 = vmatprep.subr.mxu0 0.0
    %2090 = vmatpush1.msra.mxu0 %v1482
    %2091 = vmatprep.subr.mxu0 0.0
    %2092 = vmatpush1.msra.mxu0 %v1483
    %2093 = vmatprep.subr.mxu0 0.0
    %2094 = vmatpush1.msra.mxu0 0.0
    %2095 = vmatprep.subr.mxu0 0.0
    %2096 = vmatpush1.msra.mxu0 0.0
    %2097 = vmatprep.subr.mxu0 0.0
    %2098 = vmatpush1.msra.mxu0 0.0
    %2099 = vmatprep.subr.mxu0 0.0
    %2100 = vmatpush1.msra.mxu0 0.0
    %2101 = vmatprep.subr.mxu0 0.0
    %2102 = vmatpush1.msra.mxu0 0.0
    %2103 = vmatprep.subr.mxu0 0.0
    %2104 = vmatpush1.msra.mxu0 0.0
    %2105 = vmatprep.subr.mxu0 0.0
    %2106 = vmatpush1.msra.mxu0 0.0
    %2107 = vmatprep.subr.mxu0 0.0
    %2108 = vmatpush1.msra.mxu0 0.0
    %2109 = vmatprep.subr.mxu0 0.0
    %2110 = vmatpush1.msra.mxu0 0.0
    %2111 = vmatprep.subr.mxu0 0.0
    %2112 = vmatpush1.msra.mxu0 0.0
    %2113 = vmatprep.subr.mxu0 0.0
    %2114 = vmatpush1.msra.mxu0 0.0
    %2115 = vmatprep.subr.mxu0 0.0
    %2116 = vmatpush1.msra.mxu0 0.0
    %2117 = vmatprep.mubr.f32.mxu0 %v1981
    %2118 = vmatmul.mubr.f32.gmra.mrb[0].mxu0 %v1834
    %v2119 = vpop.f32.mrb[0].mxu0
    %v2120 = vadd.f32 %v2050, %v2119
    %v2121 = vpop.f32.mrb[0].mxu0
    %2122 = vdwg.mxu0
    %v2123 = vmul.f32 %v2120, 0.00295858
    %v2124 = vmul.f32 %v1979, %v1979
    %v2125 = vsub.f32 %v2123, %v2124
    %v2126 = vmax.f32 %v2125, 0.0
    %v2127 = vld [vmem:[%s2 + $0x1] sm:$0x1]
    %v2128 = vadd.f32 %v2126, 1e-05
    %v2129 = vrsqrt.pop %v2128
    %v2130 = vmul.f32 %v2127, %v2129
    %v2131 = vld [vmem:[%s2 + $0x2] sm:$0x1]
    %v2132 = vmul.f32 %v1979, %v2130
    %v2133 = vsub.f32 %v2131, %v2132
    %v2135 = vsel %vm1501, %v2130, 0
    %2137 = vmatprep.subr.mxu0 %v1485
    %2138 = vmatpush1.msra.mxu0 %v1484
    %2139 = vmatprep.subr.mxu0 %v1489
    %2140 = vmatpush1.msra.mxu0 %v1488
    %2141 = vmatprep.subr.mxu0 %v1493
    %2142 = vmatpush1.msra.mxu0 %v1492
    %2143 = vmatprep.subr.mxu0 %v1497
    %2144 = vmatpush1.msra.mxu0 %v1496
    %2145 = vmatprep.subr.mxu0 0.0
    %2146 = vmatpush1.msra.mxu0 0.0
    %2147 = vmatprep.subr.mxu0 0.0
    %2148 = vmatpush1.msra.mxu0 0.0
    %2149 = vmatprep.subr.mxu0 0.0
    %2150 = vmatpush1.msra.mxu0 0.0
    %2151 = vmatprep.subr.mxu0 0.0
    %2152 = vmatpush1.msra.mxu0 0.0
    %2153 = vmatprep.subr.mxu0 0.0
    %2154 = vmatpush1.msra.mxu0 0.0
    %2155 = vmatprep.subr.mxu0 0.0
    %2156 = vmatpush1.msra.mxu0 0.0
    %2157 = vmatprep.subr.mxu0 0.0
    %2158 = vmatpush1.msra.mxu0 0.0
    %2159 = vmatprep.subr.mxu0 0.0
    %2160 = vmatpush1.msra.mxu0 0.0
    %2161 = vmatprep.subr.mxu0 0.0
    %2162 = vmatpush1.msra.mxu0 0.0
    %2163 = vmatprep.subr.mxu0 0.0
    %2164 = vmatpush1.msra.mxu0 0.0
    %2165 = vmatprep.subr.mxu0 0.0
    %2166 = vmatpush1.msra.mxu0 0.0
    %2167 = vmatprep.subr.mxu0 0.0
    %2168 = vmatpush1.msra.mxu0 0.0
    %2169 = vmatprep.subr.mxu0 0.0
    %2170 = vmatpush1.msra.mxu0 0.0
    %2171 = vmatprep.subr.mxu0 0.0
    %2172 = vmatpush1.msra.mxu0 0.0
    %2173 = vmatprep.subr.mxu0 0.0
    %2174 = vmatpush1.msra.mxu0 0.0
    %2175 = vmatprep.subr.mxu0 0.0
    %2176 = vmatpush1.msra.mxu0 0.0
    %2177 = vmatprep.subr.mxu0 0.0
    %2178 = vmatpush1.msra.mxu0 0.0
    %2179 = vmatprep.subr.mxu0 0.0
    %2180 = vmatpush1.msra.mxu0 0.0
    %2181 = vmatprep.subr.mxu0 0.0
    %2182 = vmatpush1.msra.mxu0 0.0
    %2183 = vmatprep.subr.mxu0 0.0
    %2184 = vmatpush1.msra.mxu0 0.0
    %2185 = vmatprep.subr.mxu0 0.0
    %2186 = vmatpush1.msra.mxu0 0.0
    %2187 = vmatprep.subr.mxu0 0.0
    %2188 = vmatpush1.msra.mxu0 0.0
    %2189 = vmatprep.subr.mxu0 0.0
    %2190 = vmatpush1.msra.mxu0 0.0
    %2191 = vmatprep.subr.mxu0 0.0
    %2192 = vmatpush1.msra.mxu0 0.0
    %2193 = vmatprep.subr.mxu0 0.0
    %2194 = vmatpush1.msra.mxu0 0.0
    %2195 = vmatprep.subr.mxu0 0.0
    %2196 = vmatpush1.msra.mxu0 0.0
    %2197 = vmatprep.subr.mxu0 0.0
    %2198 = vmatpush1.msra.mxu0 0.0
    %2199 = vmatprep.subr.mxu0 0.0
    %2200 = vmatpush1.msra.mxu0 0.0
    %2201 = vmatprep.mubr.f32.mxu0 0.0
    %2202 = vmatmul.mubr.f32.gmra.mrb[0].mxu0 %v2135
    %v2203 = vpop.f32.mrb[0].mxu0
    %v2204 = vadd.f32 0.0, %v2203
    %v2205 = vpop.f32.mrb[0].mxu0
    %v2206 = vadd.f32 0.0, %v2205
    %2207 = vdwg.mxu0
    %2208 = vmatprep.subr.mxu0 %v1487
    %2209 = vmatpush1.msra.mxu0 %v1486
    %2210 = vmatprep.subr.mxu0 %v1491
    %2211 = vmatpush1.msra.mxu0 %v1490
    %2212 = vmatprep.subr.mxu0 %v1495
    %2213 = vmatpush1.msra.mxu0 %v1494
    %2214 = vmatprep.subr.mxu0 %v1499
    %2215 = vmatpush1.msra.mxu0 %v1498
    %2216 = vmatprep.subr.mxu0 0.0
    %2217 = vmatpush1.msra.mxu0 0.0
    %2218 = vmatprep.subr.mxu0 0.0
    %2219 = vmatpush1.msra.mxu0 0.0
    %2220 = vmatprep.subr.mxu0 0.0
    %2221 = vmatpush1.msra.mxu0 0.0
    %2222 = vmatprep.subr.mxu0 0.0
    %2223 = vmatpush1.msra.mxu0 0.0
    %2224 = vmatprep.subr.mxu0 0.0
    %2225 = vmatpush1.msra.mxu0 0.0
    %2226 = vmatprep.subr.mxu0 0.0
    %2227 = vmatpush1.msra.mxu0 0.0
    %2228 = vmatprep.subr.mxu0 0.0
    %2229 = vmatpush1.msra.mxu0 0.0
    %2230 = vmatprep.subr.mxu0 0.0
    %2231 = vmatpush1.msra.mxu0 0.0
    %2232 = vmatprep.subr.mxu0 0.0
    %2233 = vmatpush1.msra.mxu0 0.0
    %2234 = vmatprep.subr.mxu0 0.0
    %2235 = vmatpush1.msra.mxu0 0.0
    %2236 = vmatprep.subr.mxu0 0.0
    %2237 = vmatpush1.msra.mxu0 0.0
    %2238 = vmatprep.subr.mxu0 0.0
    %2239 = vmatpush1.msra.mxu0 0.0
    %2240 = vmatprep.subr.mxu0 0.0
    %2241 = vmatpush1.msra.mxu0 0.0
    %2242 = vmatprep.subr.mxu0 0.0
    %2243 = vmatpush1.msra.mxu0 0.0
    %2244 = vmatprep.subr.mxu0 0.0
    %2245 = vmatpush1.msra.mxu0 0.0
    %2246 = vmatprep.subr.mxu0 0.0
    %2247 = vmatpush1.msra.mxu0 0.0
    %2248 = vmatprep.subr.mxu0 0.0
    %2249 = vmatpush1.msra.mxu0 0.0
    %2250 = vmatprep.subr.mxu0 0.0
    %2251 = vmatpush1.msra.mxu0 0.0
    %2252 = vmatprep.subr.mxu0 0.0
    %2253 = vmatpush1.msra.mxu0 0.0
    %2254 = vmatprep.subr.mxu0 0.0
    %2255 = vmatpush1.msra.mxu0 0.0
    %2256 = vmatprep.subr.mxu0 0.0
    %2257 = vmatpush1.msra.mxu0 0.0
    %2258 = vmatprep.subr.mxu0 0.0
    %2259 = vmatpush1.msra.mxu0 0.0
    %2260 = vmatprep.subr.mxu0 0.0
    %2261 = vmatpush1.msra.mxu0 0.0
    %2262 = vmatprep.subr.mxu0 0.0
    %2263 = vmatpush1.msra.mxu0 0.0
    %2264 = vmatprep.subr.mxu0 0.0
    %2265 = vmatpush1.msra.mxu0 0.0
    %2266 = vmatprep.subr.mxu0 0.0
    %2267 = vmatpush1.msra.mxu0 0.0
    %2268 = vmatprep.subr.mxu0 0.0
    %2269 = vmatpush1.msra.mxu0 0.0
    %2270 = vmatprep.subr.mxu0 0.0
    %2271 = vmatpush1.msra.mxu0 0.0
    %2272 = vmatprep.mubr.f32.mxu0 0.0
    %2273 = vmatmul.mubr.f32.gmra.mrb[0].mxu0 %v2135
    %v2274 = vpop.f32.mrb[0].mxu0
    %v2275 = vadd.f32 0.0, %v2274
    %v2276 = vpop.f32.mrb[0].mxu0
    %v2277 = vadd.f32 0.0, %v2276
    %2278 = vdwg.mxu0
    %v2280 = vsel %vm1501, %v2133, 0
    %2282 = vmatprep.subr.mxu0 %v1485
    %2283 = vmatpush1.msra.mxu0 %v1484
    %2284 = vmatprep.subr.mxu0 %v1489
    %2285 = vmatpush1.msra.mxu0 %v1488
    %2286 = vmatprep.subr.mxu0 %v1493
    %2287 = vmatpush1.msra.mxu0 %v1492
    %2288 = vmatprep.subr.mxu0 %v1497
    %2289 = vmatpush1.msra.mxu0 %v1496
    %2290 = vmatprep.subr.mxu0 0.0
    %2291 = vmatpush1.msra.mxu0 0.0
    %2292 = vmatprep.subr.mxu0 0.0
    %2293 = vmatpush1.msra.mxu0 0.0
    %2294 = vmatprep.subr.mxu0 0.0
    %2295 = vmatpush1.msra.mxu0 0.0
    %2296 = vmatprep.subr.mxu0 0.0
    %2297 = vmatpush1.msra.mxu0 0.0
    %2298 = vmatprep.subr.mxu0 0.0
    %2299 = vmatpush1.msra.mxu0 0.0
    %2300 = vmatprep.subr.mxu0 0.0
    %2301 = vmatpush1.msra.mxu0 0.0
    %2302 = vmatprep.subr.mxu0 0.0
    %2303 = vmatpush1.msra.mxu0 0.0
    %2304 = vmatprep.subr.mxu0 0.0
    %2305 = vmatpush1.msra.mxu0 0.0
    %2306 = vmatprep.subr.mxu0 0.0
    %2307 = vmatpush1.msra.mxu0 0.0
    %2308 = vmatprep.subr.mxu0 0.0
    %2309 = vmatpush1.msra.mxu0 0.0
    %2310 = vmatprep.subr.mxu0 0.0
    %2311 = vmatpush1.msra.mxu0 0.0
    %2312 = vmatprep.subr.mxu0 0.0
    %2313 = vmatpush1.msra.mxu0 0.0
    %2314 = vmatprep.subr.mxu0 0.0
    %2315 = vmatpush1.msra.mxu0 0.0
    %2316 = vmatprep.subr.mxu0 0.0
    %2317 = vmatpush1.msra.mxu0 0.0
    %2318 = vmatprep.subr.mxu0 0.0
    %2319 = vmatpush1.msra.mxu0 0.0
    %2320 = vmatprep.subr.mxu0 0.0
    %2321 = vmatpush1.msra.mxu0 0.0
    %2322 = vmatprep.subr.mxu0 0.0
    %2323 = vmatpush1.msra.mxu0 0.0
    %2324 = vmatprep.subr.mxu0 0.0
    %2325 = vmatpush1.msra.mxu0 0.0
    %2326 = vmatprep.subr.mxu0 0.0
    %2327 = vmatpush1.msra.mxu0 0.0
    %2328 = vmatprep.subr.mxu0 0.0
    %2329 = vmatpush1.msra.mxu0 0.0
    %2330 = vmatprep.subr.mxu0 0.0
    %2331 = vmatpush1.msra.mxu0 0.0
    %2332 = vmatprep.subr.mxu0 0.0
    %2333 = vmatpush1.msra.mxu0 0.0
    %2334 = vmatprep.subr.mxu0 0.0
    %2335 = vmatpush1.msra.mxu0 0.0
    %2336 = vmatprep.subr.mxu0 0.0
    %2337 = vmatpush1.msra.mxu0 0.0
    %2338 = vmatprep.subr.mxu0 0.0
    %2339 = vmatpush1.msra.mxu0 0.0
    %2340 = vmatprep.subr.mxu0 0.0
    %2341 = vmatpush1.msra.mxu0 0.0
    %2342 = vmatprep.subr.mxu0 0.0
    %2343 = vmatpush1.msra.mxu0 0.0
    %2344 = vmatprep.subr.mxu0 0.0
    %2345 = vmatpush1.msra.mxu0 0.0
    %2346 = vmatprep.mubr.f32.mxu0 0.0
    %2347 = vmatmul.mubr.f32.gmra.mrb[0].mxu0 %v2280
    %v2348 = vpop.f32.mrb[0].mxu0
    %v2349 = vadd.f32 0.0, %v2348
    %v2350 = vpop.f32.mrb[0].mxu0
    %v2351 = vadd.f32 0.0, %v2350
    %2352 = vdwg.mxu0
    %2353 = vmatprep.subr.mxu0 %v1487
    %2354 = vmatpush1.msra.mxu0 %v1486
    %2355 = vmatprep.subr.mxu0 %v1491
    %2356 = vmatpush1.msra.mxu0 %v1490
    %2357 = vmatprep.subr.mxu0 %v1495
    %2358 = vmatpush1.msra.mxu0 %v1494
    %2359 = vmatprep.subr.mxu0 %v1499
    %2360 = vmatpush1.msra.mxu0 %v1498
    %2361 = vmatprep.subr.mxu0 0.0
    %2362 = vmatpush1.msra.mxu0 0.0
    %2363 = vmatprep.subr.mxu0 0.0
    %2364 = vmatpush1.msra.mxu0 0.0
    %2365 = vmatprep.subr.mxu0 0.0
    %2366 = vmatpush1.msra.mxu0 0.0
    %2367 = vmatprep.subr.mxu0 0.0
    %2368 = vmatpush1.msra.mxu0 0.0
    %2369 = vmatprep.subr.mxu0 0.0
    %2370 = vmatpush1.msra.mxu0 0.0
    %2371 = vmatprep.subr.mxu0 0.0
    %2372 = vmatpush1.msra.mxu0 0.0
    %2373 = vmatprep.subr.mxu0 0.0
    %2374 = vmatpush1.msra.mxu0 0.0
    %2375 = vmatprep.subr.mxu0 0.0
    %2376 = vmatpush1.msra.mxu0 0.0
    %2377 = vmatprep.subr.mxu0 0.0
    %2378 = vmatpush1.msra.mxu0 0.0
    %2379 = vmatprep.subr.mxu0 0.0
    %2380 = vmatpush1.msra.mxu0 0.0
    %2381 = vmatprep.subr.mxu0 0.0
    %2382 = vmatpush1.msra.mxu0 0.0
    %2383 = vmatprep.subr.mxu0 0.0
    %2384 = vmatpush1.msra.mxu0 0.0
    %2385 = vmatprep.subr.mxu0 0.0
    %2386 = vmatpush1.msra.mxu0 0.0
    %2387 = vmatprep.subr.mxu0 0.0
    %2388 = vmatpush1.msra.mxu0 0.0
    %2389 = vmatprep.subr.mxu0 0.0
    %2390 = vmatpush1.msra.mxu0 0.0
    %2391 = vmatprep.subr.mxu0 0.0
    %2392 = vmatpush1.msra.mxu0 0.0
    %2393 = vmatprep.subr.mxu0 0.0
    %2394 = vmatpush1.msra.mxu0 0.0
    %2395 = vmatprep.subr.mxu0 0.0
    %2396 = vmatpush1.msra.mxu0 0.0
    %2397 = vmatprep.subr.mxu0 0.0
    %2398 = vmatpush1.msra.mxu0 0.0
    %2399 = vmatprep.subr.mxu0 0.0
    %2400 = vmatpush1.msra.mxu0 0.0
    %2401 = vmatprep.subr.mxu0 0.0
    %2402 = vmatpush1.msra.mxu0 0.0
    %2403 = vmatprep.subr.mxu0 0.0
    %2404 = vmatpush1.msra.mxu0 0.0
    %2405 = vmatprep.subr.mxu0 0.0
    %2406 = vmatpush1.msra.mxu0 0.0
    %2407 = vmatprep.subr.mxu0 0.0
    %2408 = vmatpush1.msra.mxu0 0.0
    %2409 = vmatprep.subr.mxu0 0.0
    %2410 = vmatpush1.msra.mxu0 0.0
    %2411 = vmatprep.subr.mxu0 0.0
    %2412 = vmatpush1.msra.mxu0 0.0
    %2413 = vmatprep.subr.mxu0 0.0
    %2414 = vmatpush1.msra.mxu0 0.0
    %2415 = vmatprep.subr.mxu0 0.0
    %2416 = vmatpush1.msra.mxu0 0.0
    %2417 = vmatprep.mubr.f32.mxu0 0.0
    %2418 = vmatmul.mubr.f32.gmra.mrb[0].mxu0 %v2280
    %v2419 = vpop.f32.mrb[0].mxu0
    %v2420 = vadd.f32 0.0, %v2419
    %v2421 = vpop.f32.mrb[0].mxu0
    %v2422 = vadd.f32 0.0, %v2421
    %2423 = vdwg.mxu0
    %v2424 = vlaneseq
    %v2425 = vshrl.u32 %v2424, 7
    %v2426 = vsub.s32 0, %v2425
    %v2427 = vrot.slane %v2204, %v2426
    %v2428 = vlaneseq
    %v2429 = vshrl.u32 %v2428, 7
    %v2430 = vsub.s32 0, %v2429
    %v2431 = vrot.slane %v2206, %v2430
    %v2432 = vlaneseq
    %v2433 = vshrl.u32 %v2432, 7
    %v2434 = vsub.s32 0, %v2433
    %v2435 = vrot.slane %v2275, %v2434
    %v2436 = vlaneseq
    %v2437 = vshrl.u32 %v2436, 7
    %v2438 = vsub.s32 0, %v2437
    %v2439 = vrot.slane %v2277, %v2438
    %v2440 = vmul.f32 %v1663, %v2427
    %v2441 = vmul.f32 %v1664, %v2431
    %v2442 = vmul.f32 %v1665, %v2435
    %v2443 = vmul.f32 %v1666, %v2439
    %v2444 = vmul.f32 %v1667, %v2427
    %v2445 = vmul.f32 %v1668, %v2431
    %v2446 = vmul.f32 %v1669, %v2435
    %v2447 = vmul.f32 %v1670, %v2439
    %v2448 = vlaneseq
    %v2449 = vshrl.u32 %v2448, 7
    %v2450 = vsub.s32 0, %v2449
    %v2451 = vrot.slane %v2349, %v2450
    %v2452 = vlaneseq
    %v2453 = vshrl.u32 %v2452, 7
    %v2454 = vsub.s32 0, %v2453
    %v2455 = vrot.slane %v2351, %v2454
    %v2456 = vlaneseq
    %v2457 = vshrl.u32 %v2456, 7
    %v2458 = vsub.s32 0, %v2457
    %v2459 = vrot.slane %v2420, %v2458
    %v2460 = vlaneseq
    %v2461 = vshrl.u32 %v2460, 7
    %v2462 = vsub.s32 0, %v2461
    %v2463 = vrot.slane %v2422, %v2462
    %v2464 = vadd.f32 %v2440, %v2451
    %v2465 = vadd.f32 %v2441, %v2455
    %v2466 = vadd.f32 %v2442, %v2459
    %v2467 = vadd.f32 %v2443, %v2463
    %v2468 = vadd.f32 %v2444, %v2451
    %v2469 = vadd.f32 %v2445, %v2455
    %v2470 = vadd.f32 %v2446, %v2459
    %v2471 = vadd.f32 %v2447, %v2463
    %vm2472 = vcmp.gt.f32.partialorder %v2464, 0.0
    %vm2473 = vcmp.gt.f32.partialorder %v2465, 0.0
    %vm2474 = vcmp.gt.f32.partialorder %v2466, 0.0
    %vm2475 = vcmp.gt.f32.partialorder %v2467, 0.0
    %vm2476 = vcmp.gt.f32.partialorder %v2468, 0.0
    %vm2477 = vcmp.gt.f32.partialorder %v2469, 0.0
    %vm2478 = vcmp.gt.f32.partialorder %v2470, 0.0
    %vm2479 = vcmp.gt.f32.partialorder %v2471, 0.0
    %v2480 = vmul.f32 %v2464, 1.442695
    %v2481 = vpow.pop %v2480
    %v2482 = vmul.f32 %v2465, 1.442695
    %v2483 = vpow.pop %v2482
    %v2484 = vmul.f32 %v2466, 1.442695
    %v2485 = vpow.pop %v2484
    %v2486 = vmul.f32 %v2467, 1.442695
    %v2487 = vpow.pop %v2486
    %v2488 = vmul.f32 %v2468, 1.442695
    %v2489 = vpow.pop %v2488
    %v2490 = vmul.f32 %v2469, 1.442695
    %v2491 = vpow.pop %v2490
    %v2492 = vmul.f32 %v2470, 1.442695
    %v2493 = vpow.pop %v2492
    %v2494 = vmul.f32 %v2471, 1.442695
    %v2495 = vpow.pop %v2494
    %v2496 = vsub.f32 %v2481, 1.0
    %v2497 = vsub.f32 %v2483, 1.0
    %v2498 = vsub.f32 %v2485, 1.0
    %v2499 = vsub.f32 %v2487, 1.0
    %v2500 = vsub.f32 %v2489, 1.0
    %v2501 = vsub.f32 %v2491, 1.0
    %v2502 = vsub.f32 %v2493, 1.0
    %v2503 = vsub.f32 %v2495, 1.0
    %v2504 = vmul.f32 %v2496, 1.6732632
    %v2505 = vmul.f32 %v2497, 1.6732632
    %v2506 = vmul.f32 %v2498, 1.6732632
    %v2507 = vmul.f32 %v2499, 1.6732632
    %v2508 = vmul.f32 %v2500, 1.6732632
    %v2509 = vmul.f32 %v2501, 1.6732632
    %v2510 = vmul.f32 %v2502, 1.6732632
    %v2511 = vmul.f32 %v2503, 1.6732632
    %v2512 = vsel %vm2472, %v2464, %v2504
    %v2513 = vsel %vm2473, %v2465, %v2505
    %v2514 = vsel %vm2474, %v2466, %v2506
    %v2515 = vsel %vm2475, %v2467, %v2507
    %v2516 = vsel %vm2476, %v2468, %v2508
    %v2517 = vsel %vm2477, %v2469, %v2509
    %v2518 = vsel %vm2478, %v2470, %v2510
    %v2519 = vsel %vm2479, %v2471, %v2511
    %v2520 = vmul.f32 %v2512, 1.050701
    %v2521 = vmul.f32 %v2513, 1.050701
    %v2522 = vmul.f32 %v2514, 1.050701
    %v2523 = vmul.f32 %v2515, 1.050701
    %v2524 = vmul.f32 %v2516, 1.050701
    %v2525 = vmul.f32 %v2517, 1.050701
    %v2526 = vmul.f32 %v2518, 1.050701
    %v2527 = vmul.f32 %v2519, 1.050701
    %v2528 = vmul.f32 %v1671, %v2427
    %v2529 = vmul.f32 %v1672, %v2431
    %v2530 = vmul.f32 %v1673, %v2435
    %v2531 = vmul.f32 %v1674, %v2439
    %v2532 = vmul.f32 %v1675, %v2427
    %v2533 = vmul.f32 %v1676, %v2431
    %v2534 = vmul.f32 %v1677, %v2435
    %v2535 = vmul.f32 %v1678, %v2439
    %v2536 = vadd.f32 %v2528, %v2451
    %v2537 = vadd.f32 %v2529, %v2455
    %v2538 = vadd.f32 %v2530, %v2459
    %v2539 = vadd.f32 %v2531, %v2463
    %v2540 = vadd.f32 %v2532, %v2451
    %v2541 = vadd.f32 %v2533, %v2455
    %v2542 = vadd.f32 %v2534, %v2459
    %v2543 = vadd.f32 %v2535, %v2463
    %vm2544 = vcmp.gt.f32.partialorder %v2536, 0.0
    %vm2545 = vcmp.gt.f32.partialorder %v2537, 0.0
    %vm2546 = vcmp.gt.f32.partialorder %v2538, 0.0
    %vm2547 = vcmp.gt.f32.partialorder %v2539, 0.0
    %vm2548 = vcmp.gt.f32.partialorder %v2540, 0.0
    %vm2549 = vcmp.gt.f32.partialorder %v2541, 0.0
    %vm2550 = vcmp.gt.f32.partialorder %v2542, 0.0
    %vm2551 = vcmp.gt.f32.partialorder %v2543, 0.0
    %v2552 = vmul.f32 %v2536, 1.442695
    %v2553 = vpow.pop %v2552
    %v2554 = vmul.f32 %v2537, 1.442695
    %v2555 = vpow.pop %v2554
    %v2556 = vmul.f32 %v2538, 1.442695
    %v2557 = vpow.pop %v2556
    %v2558 = vmul.f32 %v2539, 1.442695
    %v2559 = vpow.pop %v2558
    %v2560 = vmul.f32 %v2540, 1.442695
    %v2561 = vpow.pop %v2560
    %v2562 = vmul.f32 %v2541, 1.442695
    %v2563 = vpow.pop %v2562
    %v2564 = vmul.f32 %v2542, 1.442695
    %v2565 = vpow.pop %v2564
    %v2566 = vmul.f32 %v2543, 1.442695
    %v2567 = vpow.pop %v2566
    %v2568 = vsub.f32 %v2553, 1.0
    %v2569 = vsub.f32 %v2555, 1.0
    %v2570 = vsub.f32 %v2557, 1.0
    %v2571 = vsub.f32 %v2559, 1.0
    %v2572 = vsub.f32 %v2561, 1.0
    %v2573 = vsub.f32 %v2563, 1.0
    %v2574 = vsub.f32 %v2565, 1.0
    %v2575 = vsub.f32 %v2567, 1.0
    %v2576 = vmul.f32 %v2568, 1.6732632
    %v2577 = vmul.f32 %v2569, 1.6732632
    %v2578 = vmul.f32 %v2570, 1.6732632
    %v2579 = vmul.f32 %v2571, 1.6732632
    %v2580 = vmul.f32 %v2572, 1.6732632
    %v2581 = vmul.f32 %v2573, 1.6732632
    %v2582 = vmul.f32 %v2574, 1.6732632
    %v2583 = vmul.f32 %v2575, 1.6732632
    %v2584 = vsel %vm2544, %v2536, %v2576
    %v2585 = vsel %vm2545, %v2537, %v2577
    %v2586 = vsel %vm2546, %v2538, %v2578
    %v2587 = vsel %vm2547, %v2539, %v2579
    %v2588 = vsel %vm2548, %v2540, %v2580
    %v2589 = vsel %vm2549, %v2541, %v2581
    %v2590 = vsel %vm2550, %v2542, %v2582
    %v2591 = vsel %vm2551, %v2543, %v2583
    %v2592 = vmul.f32 %v2584, 1.050701
    %v2593 = vmul.f32 %v2585, 1.050701
    %v2594 = vmul.f32 %v2586, 1.050701
    %v2595 = vmul.f32 %v2587, 1.050701
    %v2596 = vmul.f32 %v2588, 1.050701
    %v2597 = vmul.f32 %v2589, 1.050701
    %v2598 = vmul.f32 %v2590, 1.050701
    %v2599 = vmul.f32 %v2591, 1.050701
    %v2600 = vld [vmem:[%s5] sm:$0xff]
    %v2601 = vld [vmem:[%s5 + $0x8] sm:$0xff]
    %v2602 = vld [vmem:[%s5 + $0x10] sm:$0xff]
    %v2603 = vld [vmem:[%s5 + $0x18] sm:$0xff]
    %v2604 = vld [vmem:[%s5 + $0x20] sm:$0xff]
    %v2605 = vld [vmem:[%s5 + $0x28] sm:$0xff]
    %v2606 = vld [vmem:[%s5 + $0x30] sm:$0xff]
    %v2607 = vld [vmem:[%s5 + $0x38] sm:$0xff]
    %v2608 = vld [vmem:[%s5 + $0x40] sm:$0xff]
    %v2609 = vld [vmem:[%s5 + $0x48] sm:$0xff]
    %v2610 = vld [vmem:[%s5 + $0x50] sm:$0xff]
    %v2611 = vld [vmem:[%s5 + $0x58] sm:$0xff]
    %v2612 = vld [vmem:[%s5 + $0x60] sm:$0xff]
    %v2613 = vld [vmem:[%s5 + $0x68] sm:$0xff]
    %v2614 = vld [vmem:[%s5 + $0x70] sm:$0xff]
    %v2615 = vld [vmem:[%s5 + $0x78] sm:$0xff]
    %v2616 = vld [vmem:[%s5 + $0x80] sm:$0xff]
    %v2617 = vld [vmem:[%s5 + $0x88] sm:$0xff]
    %v2618 = vld [vmem:[%s5 + $0x90] sm:$0xff]
    %v2619 = vld [vmem:[%s5 + $0x98] sm:$0xff]
    %v2620 = vld [vmem:[%s5 + $0xa0] sm:$0xff]
    %v2621 = vld [vmem:[%s5 + $0xa8] sm:$0xff]
    %v2622 = vld [vmem:[%s5 + $0xb0] sm:$0xff]
    %v2623 = vld [vmem:[%s5 + $0xb8] sm:$0xff]
    %v2624 = vld [vmem:[%s5 + $0xc0] sm:$0xff]
    %v2625 = vld [vmem:[%s5 + $0xc8] sm:$0xff]
    %v2626 = vld [vmem:[%s5 + $0xd0] sm:$0xff]
    %v2627 = vld [vmem:[%s5 + $0xd8] sm:$0xff]
    %v2628 = vld [vmem:[%s5 + $0xe0] sm:$0xff]
    %v2629 = vld [vmem:[%s5 + $0xe8] sm:$0xff]
    %v2630 = vld [vmem:[%s5 + $0xf0] sm:$0xff]
    %v2631 = vld [vmem:[%s5 + $0xf8] sm:$0xff]
    %v2632 = vld [vmem:[%s5 + $0x100] sm:$0xff]
    %v2633 = vld [vmem:[%s5 + $0x108] sm:$0xff]
    %v2634 = vld [vmem:[%s5 + $0x110] sm:$0xff]
    %v2635 = vld [vmem:[%s5 + $0x118] sm:$0xff]
    %v2636 = vld [vmem:[%s5 + $0x120] sm:$0xff]
    %v2637 = vld [vmem:[%s5 + $0x128] sm:$0xff]
    %v2638 = vld [vmem:[%s5 + $0x130] sm:$0xff]
    %v2639 = vld [vmem:[%s5 + $0x138] sm:$0xff]
    %v2640 = vld [vmem:[%s5 + $0x140] sm:$0xff]
    %v2641 = vld [vmem:[%s5 + $0x148] sm:$0xff]
    %v2642 = vld [vmem:[%s5 + $0x150] sm:$0xff]
    %v2643 = vld [vmem:[%s5 + $0x158] sm:$0xff]
    %v2644 = vld [vmem:[%s5 + $0x160] sm:$0xff]
    %v2645 = vld [vmem:[%s5 + $0x168] sm:$0xff]
    %v2646 = vld [vmem:[%s5 + $0x170] sm:$0xff]
    %v2647 = vld [vmem:[%s5 + $0x178] sm:$0xff]
    %v2648 = vld [vmem:[%s5 + $0x180] sm:$0xff]
    %v2649 = vld [vmem:[%s5 + $0x188] sm:$0xff]
    %v2650 = vld [vmem:[%s5 + $0x190] sm:$0xff]
    %v2651 = vld [vmem:[%s5 + $0x198] sm:$0xff]
    %s2652 = scalar_lea.vmem %s5, 416
    %v2653 = vld [vmem:[%s2652] sm:$0xff]
    %v2654 = vld [vmem:[%s2652 + $0x8] sm:$0xff]
    %v2655 = vld [vmem:[%s2652 + $0x10] sm:$0xff]
    %v2656 = vld [vmem:[%s2652 + $0x18] sm:$0xff]
    %v2657 = vld [vmem:[%s2652 + $0x20] sm:$0xff]
    %v2658 = vld [vmem:[%s2652 + $0x28] sm:$0xff]
    %v2659 = vld [vmem:[%s2652 + $0x30] sm:$0xff]
    %v2660 = vld [vmem:[%s2652 + $0x38] sm:$0xff]
    %v2661 = vld [vmem:[%s2652 + $0x40] sm:$0xff]
    %v2662 = vld [vmem:[%s2652 + $0x48] sm:$0xff]
    %v2663 = vld [vmem:[%s2652 + $0x50] sm:$0xff]
    %v2664 = vld [vmem:[%s2652 + $0x58] sm:$0xff]
    %v2665 = vld [vmem:[%s2652 + $0x60] sm:$0xff]
    %v2666 = vld [vmem:[%s2652 + $0x68] sm:$0xff]
    %v2667 = vld [vmem:[%s2652 + $0x70] sm:$0xff]
    %v2668 = vld [vmem:[%s2652 + $0x78] sm:$0xff]
    %v2669 = vld [vmem:[%s2652 + $0x80] sm:$0xff]
    %v2670 = vld [vmem:[%s2652 + $0x88] sm:$0xff]
    %v2671 = vld [vmem:[%s2652 + $0x90] sm:$0xff]
    %v2672 = vld [vmem:[%s2652 + $0x98] sm:$0xff]
    %v2673 = vld [vmem:[%s2652 + $0xa0] sm:$0xff]
    %v2674 = vld [vmem:[%s2652 + $0xa8] sm:$0xff]
    %v2675 = vld [vmem:[%s2652 + $0xb0] sm:$0xff]
    %v2676 = vld [vmem:[%s2652 + $0xb8] sm:$0xff]
    %v2677 = vld [vmem:[%s2652 + $0xc0] sm:$0xff]
    %v2678 = vld [vmem:[%s2652 + $0xc8] sm:$0xff]
    %v2679 = vld [vmem:[%s2652 + $0xd0] sm:$0xff]
    %v2680 = vld [vmem:[%s2652 + $0xd8] sm:$0xff]
    %v2681 = vld [vmem:[%s2652 + $0xe0] sm:$0xff]
    %v2682 = vld [vmem:[%s2652 + $0xe8] sm:$0xff]
    %v2683 = vld [vmem:[%s2652 + $0xf0] sm:$0xff]
    %v2684 = vld [vmem:[%s2652 + $0xf8] sm:$0xff]
    %v2685 = vld [vmem:[%s2652 + $0x100] sm:$0xff]
    %v2686 = vld [vmem:[%s2652 + $0x108] sm:$0xff]
    %v2687 = vld [vmem:[%s2652 + $0x110] sm:$0xff]
    %v2688 = vld [vmem:[%s2652 + $0x118] sm:$0xff]
    %v2689 = vld [vmem:[%s2652 + $0x120] sm:$0xff]
    %v2690 = vld [vmem:[%s2652 + $0x128] sm:$0xff]
    %v2691 = vld [vmem:[%s2652 + $0x130] sm:$0xff]
    %v2692 = vld [vmem:[%s2652 + $0x138] sm:$0xff]
    %v2693 = vld [vmem:[%s2652 + $0x140] sm:$0xff]
    %v2694 = vld [vmem:[%s2652 + $0x148] sm:$0xff]
    %v2695 = vld [vmem:[%s2652 + $0x150] sm:$0xff]
    %v2696 = vld [vmem:[%s2652 + $0x158] sm:$0xff]
    %v2697 = vld [vmem:[%s2652 + $0x160] sm:$0xff]
    %v2698 = vld [vmem:[%s2652 + $0x168] sm:$0xff]
    %v2699 = vld [vmem:[%s2652 + $0x170] sm:$0xff]
    %v2700 = vld [vmem:[%s2652 + $0x178] sm:$0xff]
    %v2701 = vld [vmem:[%s2652 + $0x180] sm:$0xff]
    %v2702 = vld [vmem:[%s2652 + $0x188] sm:$0xff]
    %v2703 = vld [vmem:[%s2652 + $0x190] sm:$0xff]
    %v2704 = vld [vmem:[%s2652 + $0x198] sm:$0xff]
    %v2713 = vrot.slane %v2520, 1
    %v2714 = vrot.slane %v2524, 1
    %v2715 = vsel %vm94, %v2713, %v2714
    %v2716 = vrot.slane %v2521, 1
    %v2717 = vrot.slane %v2525, 1
    %v2718 = vsel %vm94, %v2716, %v2717
    %v2719 = vrot.slane %v2522, 1
    %v2720 = vrot.slane %v2526, 1
    %v2721 = vsel %vm94, %v2719, %v2720
    %v2722 = vrot.slane %v2523, 1
    %v2723 = vrot.slane %v2527, 1
    %v2724 = vsel %vm94, %v2722, %v2723
    %v2731 = vsel %vm1501, %v2724, 0
    %v2733 = vsel %vm1501, %v2723, 0
    %2735 = vmatprep.subr.mxu0 0.0
    %2736 = vmatpush1.msra.mxu0 %v2653
    %2737 = vmatprep.subr.mxu0 0.0
    %2738 = vmatpush1.msra.mxu0 %v2654
    %2739 = vmatprep.subr.mxu0 0.0
    %2740 = vmatpush1.msra.mxu0 %v2655
    %2741 = vmatprep.subr.mxu0 0.0
    %2742 = vmatpush1.msra.mxu0 %v2656
    %2743 = vmatprep.subr.mxu0 0.0
    %2744 = vmatpush1.msra.mxu0 %v2657
    %2745 = vmatprep.subr.mxu0 0.0
    %2746 = vmatpush1.msra.mxu0 %v2658
    %2747 = vmatprep.subr.mxu0 0.0
    %2748 = vmatpush1.msra.mxu0 %v2659
    %2749 = vmatprep.subr.mxu0 0.0
    %2750 = vmatpush1.msra.mxu0 %v2660
    %2751 = vmatprep.subr.mxu0 0.0
    %2752 = vmatpush1.msra.mxu0 %v2661
    %2753 = vmatprep.subr.mxu0 0.0
    %2754 = vmatpush1.msra.mxu0 %v2662
    %2755 = vmatprep.subr.mxu0 0.0
    %2756 = vmatpush1.msra.mxu0 %v2663
    %2757 = vmatprep.subr.mxu0 0.0
    %2758 = vmatpush1.msra.mxu0 %v2664
    %2759 = vmatprep.subr.mxu0 0.0
    %2760 = vmatpush1.msra.mxu0 %v2665
    %2761 = vmatprep.subr.mxu0 0.0
    %2762 = vmatpush1.msra.mxu0 %v2666
    %2763 = vmatprep.subr.mxu0 0.0
    %2764 = vmatpush1.msra.mxu0 %v2667
    %2765 = vmatprep.subr.mxu0 0.0
    %2766 = vmatpush1.msra.mxu0 %v2668
    %2767 = vmatprep.subr.mxu0 0.0
    %2768 = vmatpush1.msra.mxu0 %v2669
    %2769 = vmatprep.subr.mxu0 0.0
    %2770 = vmatpush1.msra.mxu0 %v2670
    %2771 = vmatprep.subr.mxu0 0.0
    %2772 = vmatpush1.msra.mxu0 %v2671
    %2773 = vmatprep.subr.mxu0 0.0
    %2774 = vmatpush1.msra.mxu0 %v2672
    %2775 = vmatprep.subr.mxu0 0.0
    %2776 = vmatpush1.msra.mxu0 %v2673
    %2777 = vmatprep.subr.mxu0 0.0
    %2778 = vmatpush1.msra.mxu0 %v2674
    %2779 = vmatprep.subr.mxu0 0.0
    %2780 = vmatpush1.msra.mxu0 %v2675
    %2781 = vmatprep.subr.mxu0 0.0
    %2782 = vmatpush1.msra.mxu0 %v2676
    %2783 = vmatprep.subr.mxu0 0.0
    %2784 = vmatpush1.msra.mxu0 %v2677
    %2785 = vmatprep.subr.mxu0 0.0
    %2786 = vmatpush1.msra.mxu0 %v2678
    %2787 = vmatprep.subr.mxu0 0.0
    %2788 = vmatpush1.msra.mxu0 %v2679
    %2789 = vmatprep.subr.mxu0 0.0
    %2790 = vmatpush1.msra.mxu0 %v2680
    %2791 = vmatprep.subr.mxu0 0.0
    %2792 = vmatpush1.msra.mxu0 %v2681
    %2793 = vmatprep.subr.mxu0 0.0
    %2794 = vmatpush1.msra.mxu0 %v2682
    %2795 = vmatprep.subr.mxu0 0.0
    %2796 = vmatpush1.msra.mxu0 %v2683
    %2797 = vmatprep.subr.mxu0 0.0
    %2798 = vmatpush1.msra.mxu0 %v2684
    %2799 = vmatprep.mubr.f32.mxu0 %v2718
    %2800 = vmatmul.mubr.f32.gmra.mrb[0].mxu0 %v2715
    %v2801 = vpop.f32.mrb[0].mxu0
    %v2802 = vadd.f32 0.0, %v2801
    %v2803 = vpop.f32.mrb[0].mxu0
    %2804 = vmatprep.mubr.f32.mxu0 %v2717
    %2805 = vmatmul.mubr.f32.gmra.mrb[0].mxu0 %v2714
    %v2806 = vpop.f32.mrb[0].mxu0
    %v2807 = vadd.f32 0.0, %v2806
    %v2808 = vpop.f32.mrb[0].mxu0
    %2809 = vdwg.mxu0
    %2810 = vmatprep.subr.mxu0 0.0
    %2811 = vmatpush1.msra.mxu0 %v2685
    %2812 = vmatprep.subr.mxu0 0.0
    %2813 = vmatpush1.msra.mxu0 %v2686
    %2814 = vmatprep.subr.mxu0 0.0
    %2815 = vmatpush1.msra.mxu0 %v2687
    %2816 = vmatprep.subr.mxu0 0.0
    %2817 = vmatpush1.msra.mxu0 %v2688
    %2818 = vmatprep.subr.mxu0 0.0
    %2819 = vmatpush1.msra.mxu0 %v2689
    %2820 = vmatprep.subr.mxu0 0.0
    %2821 = vmatpush1.msra.mxu0 %v2690
    %2822 = vmatprep.subr.mxu0 0.0
    %2823 = vmatpush1.msra.mxu0 %v2691
    %2824 = vmatprep.subr.mxu0 0.0
    %2825 = vmatpush1.msra.mxu0 %v2692
    %2826 = vmatprep.subr.mxu0 0.0
    %2827 = vmatpush1.msra.mxu0 %v2693
    %2828 = vmatprep.subr.mxu0 0.0
    %2829 = vmatpush1.msra.mxu0 %v2694
    %2830 = vmatprep.subr.mxu0 0.0
    %2831 = vmatpush1.msra.mxu0 %v2695
    %2832 = vmatprep.subr.mxu0 0.0
    %2833 = vmatpush1.msra.mxu0 %v2696
    %2834 = vmatprep.subr.mxu0 0.0
    %2835 = vmatpush1.msra.mxu0 %v2697
    %2836 = vmatprep.subr.mxu0 0.0
    %2837 = vmatpush1.msra.mxu0 %v2698
    %2838 = vmatprep.subr.mxu0 0.0
    %2839 = vmatpush1.msra.mxu0 %v2699
    %2840 = vmatprep.subr.mxu0 0.0
    %2841 = vmatpush1.msra.mxu0 %v2700
    %2842 = vmatprep.subr.mxu0 0.0
    %2843 = vmatpush1.msra.mxu0 %v2701
    %2844 = vmatprep.subr.mxu0 0.0
    %2845 = vmatpush1.msra.mxu0 %v2702
    %2846 = vmatprep.subr.mxu0 0.0
    %2847 = vmatpush1.msra.mxu0 %v2703
    %2848 = vmatprep.subr.mxu0 0.0
    %2849 = vmatpush1.msra.mxu0 %v2704
    %2850 = vmatprep.subr.mxu0 0.0
    %2851 = vmatpush1.msra.mxu0 0.0
    %2852 = vmatprep.subr.mxu0 0.0
    %2853 = vmatpush1.msra.mxu0 0.0
    %2854 = vmatprep.subr.mxu0 0.0
    %2855 = vmatpush1.msra.mxu0 0.0
    %2856 = vmatprep.subr.mxu0 0.0
    %2857 = vmatpush1.msra.mxu0 0.0
    %2858 = vmatprep.subr.mxu0 0.0
    %2859 = vmatpush1.msra.mxu0 0.0
    %2860 = vmatprep.subr.mxu0 0.0
    %2861 = vmatpush1.msra.mxu0 0.0
    %2862 = vmatprep.subr.mxu0 0.0
    %2863 = vmatpush1.msra.mxu0 0.0
    %2864 = vmatprep.subr.mxu0 0.0
    %2865 = vmatpush1.msra.mxu0 0.0
    %2866 = vmatprep.subr.mxu0 0.0
    %2867 = vmatpush1.msra.mxu0 0.0
    %2868 = vmatprep.subr.mxu0 0.0
    %2869 = vmatpush1.msra.mxu0 0.0
    %2870 = vmatprep.subr.mxu0 0.0
    %2871 = vmatpush1.msra.mxu0 0.0
    %2872 = vmatprep.subr.mxu0 0.0
    %2873 = vmatpush1.msra.mxu0 0.0
    %2874 = vmatprep.mubr.f32.mxu0 %v2731
    %2875 = vmatmul.mubr.f32.gmra.mrb[0].mxu0 %v2721
    %v2876 = vpop.f32.mrb[0].mxu0
    %v2877 = vadd.f32 %v2802, %v2876
    %v2878 = vpop.f32.mrb[0].mxu0
    %2879 = vmatprep.mubr.f32.mxu0 %v2733
    %2880 = vmatmul.mubr.f32.gmra.mrb[0].mxu0 %v2720
    %v2881 = vpop.f32.mrb[0].mxu0
    %v2882 = vadd.f32 %v2807, %v2881
    %v2883 = vpop.f32.mrb[0].mxu0
    %2884 = vdwg.mxu0
    %v2885 = vsel %vm1501, %v2523, 0
    %v2887 = vsel %vm1501, %v2527, 0
    %2889 = vmatprep.subr.mxu0 0.0
    %2890 = vmatpush1.msra.mxu0 %v2600
    %2891 = vmatprep.subr.mxu0 0.0
    %2892 = vmatpush1.msra.mxu0 %v2601
    %2893 = vmatprep.subr.mxu0 0.0
    %2894 = vmatpush1.msra.mxu0 %v2602
    %2895 = vmatprep.subr.mxu0 0.0
    %2896 = vmatpush1.msra.mxu0 %v2603
    %2897 = vmatprep.subr.mxu0 0.0
    %2898 = vmatpush1.msra.mxu0 %v2604
    %2899 = vmatprep.subr.mxu0 0.0
    %2900 = vmatpush1.msra.mxu0 %v2605
    %2901 = vmatprep.subr.mxu0 0.0
    %2902 = vmatpush1.msra.mxu0 %v2606
    %2903 = vmatprep.subr.mxu0 0.0
    %2904 = vmatpush1.msra.mxu0 %v2607
    %2905 = vmatprep.subr.mxu0 0.0
    %2906 = vmatpush1.msra.mxu0 %v2608
    %2907 = vmatprep.subr.mxu0 0.0
    %2908 = vmatpush1.msra.mxu0 %v2609
    %2909 = vmatprep.subr.mxu0 0.0
    %2910 = vmatpush1.msra.mxu0 %v2610
    %2911 = vmatprep.subr.mxu0 0.0
    %2912 = vmatpush1.msra.mxu0 %v2611
    %2913 = vmatprep.subr.mxu0 0.0
    %2914 = vmatpush1.msra.mxu0 %v2612
    %2915 = vmatprep.subr.mxu0 0.0
    %2916 = vmatpush1.msra.mxu0 %v2613
    %2917 = vmatprep.subr.mxu0 0.0
    %2918 = vmatpush1.msra.mxu0 %v2614
    %2919 = vmatprep.subr.mxu0 0.0
    %2920 = vmatpush1.msra.mxu0 %v2615
    %2921 = vmatprep.subr.mxu0 0.0
    %2922 = vmatpush1.msra.mxu0 %v2616
    %2923 = vmatprep.subr.mxu0 0.0
    %2924 = vmatpush1.msra.mxu0 %v2617
    %2925 = vmatprep.subr.mxu0 0.0
    %2926 = vmatpush1.msra.mxu0 %v2618
    %2927 = vmatprep.subr.mxu0 0.0
    %2928 = vmatpush1.msra.mxu0 %v2619
    %2929 = vmatprep.subr.mxu0 0.0
    %2930 = vmatpush1.msra.mxu0 %v2620
    %2931 = vmatprep.subr.mxu0 0.0
    %2932 = vmatpush1.msra.mxu0 %v2621
    %2933 = vmatprep.subr.mxu0 0.0
    %2934 = vmatpush1.msra.mxu0 %v2622
    %2935 = vmatprep.subr.mxu0 0.0
    %2936 = vmatpush1.msra.mxu0 %v2623
    %2937 = vmatprep.subr.mxu0 0.0
    %2938 = vmatpush1.msra.mxu0 %v2624
    %2939 = vmatprep.subr.mxu0 0.0
    %2940 = vmatpush1.msra.mxu0 %v2625
    %2941 = vmatprep.subr.mxu0 0.0
    %2942 = vmatpush1.msra.mxu0 %v2626
    %2943 = vmatprep.subr.mxu0 0.0
    %2944 = vmatpush1.msra.mxu0 %v2627
    %2945 = vmatprep.subr.mxu0 0.0
    %2946 = vmatpush1.msra.mxu0 %v2628
    %2947 = vmatprep.subr.mxu0 0.0
    %2948 = vmatpush1.msra.mxu0 %v2629
    %2949 = vmatprep.subr.mxu0 0.0
    %2950 = vmatpush1.msra.mxu0 %v2630
    %2951 = vmatprep.subr.mxu0 0.0
    %2952 = vmatpush1.msra.mxu0 %v2631
    %2953 = vmatprep.mubr.f32.mxu0 %v2521
    %2954 = vmatmul.mubr.f32.gmra.mrb[0].mxu0 %v2520
    %v2955 = vpop.f32.mrb[0].mxu0
    %v2956 = vadd.f32 %v2877, %v2955
    %v2957 = vpop.f32.mrb[0].mxu0
    %2958 = vmatprep.mubr.f32.mxu0 %v2525
    %2959 = vmatmul.mubr.f32.gmra.mrb[0].mxu0 %v2524
    %v2960 = vpop.f32.mrb[0].mxu0
    %v2961 = vadd.f32 %v2882, %v2960
    %v2962 = vpop.f32.mrb[0].mxu0
    %2963 = vdwg.mxu0
    %2964 = vmatprep.subr.mxu0 0.0
    %2965 = vmatpush1.msra.mxu0 %v2632
    %2966 = vmatprep.subr.mxu0 0.0
    %2967 = vmatpush1.msra.mxu0 %v2633
    %2968 = vmatprep.subr.mxu0 0.0
    %2969 = vmatpush1.msra.mxu0 %v2634
    %2970 = vmatprep.subr.mxu0 0.0
    %2971 = vmatpush1.msra.mxu0 %v2635
    %2972 = vmatprep.subr.mxu0 0.0
    %2973 = vmatpush1.msra.mxu0 %v2636
    %2974 = vmatprep.subr.mxu0 0.0
    %2975 = vmatpush1.msra.mxu0 %v2637
    %2976 = vmatprep.subr.mxu0 0.0
    %2977 = vmatpush1.msra.mxu0 %v2638
    %2978 = vmatprep.subr.mxu0 0.0
    %2979 = vmatpush1.msra.mxu0 %v2639
    %2980 = vmatprep.subr.mxu0 0.0
    %2981 = vmatpush1.msra.mxu0 %v2640
    %2982 = vmatprep.subr.mxu0 0.0
    %2983 = vmatpush1.msra.mxu0 %v2641
    %2984 = vmatprep.subr.mxu0 0.0
    %2985 = vmatpush1.msra.mxu0 %v2642
    %2986 = vmatprep.subr.mxu0 0.0
    %2987 = vmatpush1.msra.mxu0 %v2643
    %2988 = vmatprep.subr.mxu0 0.0
    %2989 = vmatpush1.msra.mxu0 %v2644
    %2990 = vmatprep.subr.mxu0 0.0
    %2991 = vmatpush1.msra.mxu0 %v2645
    %2992 = vmatprep.subr.mxu0 0.0
    %2993 = vmatpush1.msra.mxu0 %v2646
    %2994 = vmatprep.subr.mxu0 0.0
    %2995 = vmatpush1.msra.mxu0 %v2647
    %2996 = vmatprep.subr.mxu0 0.0
    %2997 = vmatpush1.msra.mxu0 %v2648
    %2998 = vmatprep.subr.mxu0 0.0
    %2999 = vmatpush1.msra.mxu0 %v2649
    %3000 = vmatprep.subr.mxu0 0.0
    %3001 = vmatpush1.msra.mxu0 %v2650
    %3002 = vmatprep.subr.mxu0 0.0
    %3003 = vmatpush1.msra.mxu0 %v2651
    %3004 = vmatprep.subr.mxu0 0.0
    %3005 = vmatpush1.msra.mxu0 0.0
    %3006 = vmatprep.subr.mxu0 0.0
    %3007 = vmatpush1.msra.mxu0 0.0
    %3008 = vmatprep.subr.mxu0 0.0
    %3009 = vmatpush1.msra.mxu0 0.0
    %3010 = vmatprep.subr.mxu0 0.0
    %3011 = vmatpush1.msra.mxu0 0.0
    %3012 = vmatprep.subr.mxu0 0.0
    %3013 = vmatpush1.msra.mxu0 0.0
    %3014 = vmatprep.subr.mxu0 0.0
    %3015 = vmatpush1.msra.mxu0 0.0
    %3016 = vmatprep.subr.mxu0 0.0
    %3017 = vmatpush1.msra.mxu0 0.0
    %3018 = vmatprep.subr.mxu0 0.0
    %3019 = vmatpush1.msra.mxu0 0.0
    %3020 = vmatprep.subr.mxu0 0.0
    %3021 = vmatpush1.msra.mxu0 0.0
    %3022 = vmatprep.subr.mxu0 0.0
    %3023 = vmatpush1.msra.mxu0 0.0
    %3024 = vmatprep.subr.mxu0 0.0
    %3025 = vmatpush1.msra.mxu0 0.0
    %3026 = vmatprep.subr.mxu0 0.0
    %3027 = vmatpush1.msra.mxu0 0.0
    %3028 = vmatprep.mubr.f32.mxu0 %v2885
    %3029 = vmatmul.mubr.f32.gmra.mrb[0].mxu0 %v2522
    %v3030 = vpop.f32.mrb[0].mxu0
    %v3031 = vadd.f32 %v2956, %v3030
    %v3032 = vpop.f32.mrb[0].mxu0
    %3033 = vmatprep.mubr.f32.mxu0 %v2887
    %3034 = vmatmul.mubr.f32.gmra.mrb[0].mxu0 %v2526
    %v3035 = vpop.f32.mrb[0].mxu0
    %v3036 = vadd.f32 %v2961, %v3035
    %v3037 = vpop.f32.mrb[0].mxu0
    %3038 = vdwg.mxu0
    %v3047 = vrot.slane %v2592, 1
    %v3048 = vrot.slane %v2596, 1
    %v3049 = vsel %vm94, %v3047, %v3048
    %v3050 = vrot.slane %v2593, 1
    %v3051 = vrot.slane %v2597, 1
    %v3052 = vsel %vm94, %v3050, %v3051
    %v3053 = vrot.slane %v2594, 1
    %v3054 = vrot.slane %v2598, 1
    %v3055 = vsel %vm94, %v3053, %v3054
    %v3056 = vrot.slane %v2595, 1
    %v3057 = vrot.slane %v2599, 1
    %v3058 = vsel %vm94, %v3056, %v3057
    %v3065 = vsel %vm1501, %v3058, 0
    %v3067 = vsel %vm1501, %v3057, 0
    %3069 = vmatprep.subr.mxu0 0.0
    %3070 = vmatpush1.msra.mxu0 %v2653
    %3071 = vmatprep.subr.mxu0 0.0
    %3072 = vmatpush1.msra.mxu0 %v2654
    %3073 = vmatprep.subr.mxu0 0.0
    %3074 = vmatpush1.msra.mxu0 %v2655
    %3075 = vmatprep.subr.mxu0 0.0
    %3076 = vmatpush1.msra.mxu0 %v2656
    %3077 = vmatprep.subr.mxu0 0.0
    %3078 = vmatpush1.msra.mxu0 %v2657
    %3079 = vmatprep.subr.mxu0 0.0
    %3080 = vmatpush1.msra.mxu0 %v2658
    %3081 = vmatprep.subr.mxu0 0.0
    %3082 = vmatpush1.msra.mxu0 %v2659
    %3083 = vmatprep.subr.mxu0 0.0
    %3084 = vmatpush1.msra.mxu0 %v2660
    %3085 = vmatprep.subr.mxu0 0.0
    %3086 = vmatpush1.msra.mxu0 %v2661
    %3087 = vmatprep.subr.mxu0 0.0
    %3088 = vmatpush1.msra.mxu0 %v2662
    %3089 = vmatprep.subr.mxu0 0.0
    %3090 = vmatpush1.msra.mxu0 %v2663
    %3091 = vmatprep.subr.mxu0 0.0
    %3092 = vmatpush1.msra.mxu0 %v2664
    %3093 = vmatprep.subr.mxu0 0.0
    %3094 = vmatpush1.msra.mxu0 %v2665
    %3095 = vmatprep.subr.mxu0 0.0
    %3096 = vmatpush1.msra.mxu0 %v2666
    %3097 = vmatprep.subr.mxu0 0.0
    %3098 = vmatpush1.msra.mxu0 %v2667
    %3099 = vmatprep.subr.mxu0 0.0
    %3100 = vmatpush1.msra.mxu0 %v2668
    %3101 = vmatprep.subr.mxu0 0.0
    %3102 = vmatpush1.msra.mxu0 %v2669
    %3103 = vmatprep.subr.mxu0 0.0
    %3104 = vmatpush1.msra.mxu0 %v2670
    %3105 = vmatprep.subr.mxu0 0.0
    %3106 = vmatpush1.msra.mxu0 %v2671
    %3107 = vmatprep.subr.mxu0 0.0
    %3108 = vmatpush1.msra.mxu0 %v2672
    %3109 = vmatprep.subr.mxu0 0.0
    %3110 = vmatpush1.msra.mxu0 %v2673
    %3111 = vmatprep.subr.mxu0 0.0
    %3112 = vmatpush1.msra.mxu0 %v2674
    %3113 = vmatprep.subr.mxu0 0.0
    %3114 = vmatpush1.msra.mxu0 %v2675
    %3115 = vmatprep.subr.mxu0 0.0
    %3116 = vmatpush1.msra.mxu0 %v2676
    %3117 = vmatprep.subr.mxu0 0.0
    %3118 = vmatpush1.msra.mxu0 %v2677
    %3119 = vmatprep.subr.mxu0 0.0
    %3120 = vmatpush1.msra.mxu0 %v2678
    %3121 = vmatprep.subr.mxu0 0.0
    %3122 = vmatpush1.msra.mxu0 %v2679
    %3123 = vmatprep.subr.mxu0 0.0
    %3124 = vmatpush1.msra.mxu0 %v2680
    %3125 = vmatprep.subr.mxu0 0.0
    %3126 = vmatpush1.msra.mxu0 %v2681
    %3127 = vmatprep.subr.mxu0 0.0
    %3128 = vmatpush1.msra.mxu0 %v2682
    %3129 = vmatprep.subr.mxu0 0.0
    %3130 = vmatpush1.msra.mxu0 %v2683
    %3131 = vmatprep.subr.mxu0 0.0
    %3132 = vmatpush1.msra.mxu0 %v2684
    %3133 = vmatprep.mubr.f32.mxu0 %v3052
    %3134 = vmatmul.mubr.f32.gmra.mrb[0].mxu0 %v3049
    %v3135 = vpop.f32.mrb[0].mxu0
    %v3136 = vadd.f32 0.0, %v3135
    %v3137 = vpop.f32.mrb[0].mxu0
    %3138 = vmatprep.mubr.f32.mxu0 %v3051
    %3139 = vmatmul.mubr.f32.gmra.mrb[0].mxu0 %v3048
    %v3140 = vpop.f32.mrb[0].mxu0
    %v3141 = vadd.f32 0.0, %v3140
    %v3142 = vpop.f32.mrb[0].mxu0
    %3143 = vdwg.mxu0
    %3144 = vmatprep.subr.mxu0 0.0
    %3145 = vmatpush1.msra.mxu0 %v2685
    %3146 = vmatprep.subr.mxu0 0.0
    %3147 = vmatpush1.msra.mxu0 %v2686
    %3148 = vmatprep.subr.mxu0 0.0
    %3149 = vmatpush1.msra.mxu0 %v2687
    %3150 = vmatprep.subr.mxu0 0.0
    %3151 = vmatpush1.msra.mxu0 %v2688
    %3152 = vmatprep.subr.mxu0 0.0
    %3153 = vmatpush1.msra.mxu0 %v2689
    %3154 = vmatprep.subr.mxu0 0.0
    %3155 = vmatpush1.msra.mxu0 %v2690
    %3156 = vmatprep.subr.mxu0 0.0
    %3157 = vmatpush1.msra.mxu0 %v2691
    %3158 = vmatprep.subr.mxu0 0.0
    %3159 = vmatpush1.msra.mxu0 %v2692
    %3160 = vmatprep.subr.mxu0 0.0
    %3161 = vmatpush1.msra.mxu0 %v2693
    %3162 = vmatprep.subr.mxu0 0.0
    %3163 = vmatpush1.msra.mxu0 %v2694
    %3164 = vmatprep.subr.mxu0 0.0
    %3165 = vmatpush1.msra.mxu0 %v2695
    %3166 = vmatprep.subr.mxu0 0.0
    %3167 = vmatpush1.msra.mxu0 %v2696
    %3168 = vmatprep.subr.mxu0 0.0
    %3169 = vmatpush1.msra.mxu0 %v2697
    %3170 = vmatprep.subr.mxu0 0.0
    %3171 = vmatpush1.msra.mxu0 %v2698
    %3172 = vmatprep.subr.mxu0 0.0
    %3173 = vmatpush1.msra.mxu0 %v2699
    %3174 = vmatprep.subr.mxu0 0.0
    %3175 = vmatpush1.msra.mxu0 %v2700
    %3176 = vmatprep.subr.mxu0 0.0
    %3177 = vmatpush1.msra.mxu0 %v2701
    %3178 = vmatprep.subr.mxu0 0.0
    %3179 = vmatpush1.msra.mxu0 %v2702
    %3180 = vmatprep.subr.mxu0 0.0
    %3181 = vmatpush1.msra.mxu0 %v2703
    %3182 = vmatprep.subr.mxu0 0.0
    %3183 = vmatpush1.msra.mxu0 %v2704
    %3184 = vmatprep.subr.mxu0 0.0
    %3185 = vmatpush1.msra.mxu0 0.0
    %3186 = vmatprep.subr.mxu0 0.0
    %3187 = vmatpush1.msra.mxu0 0.0
    %3188 = vmatprep.subr.mxu0 0.0
    %3189 = vmatpush1.msra.mxu0 0.0
    %3190 = vmatprep.subr.mxu0 0.0
    %3191 = vmatpush1.msra.mxu0 0.0
    %3192 = vmatprep.subr.mxu0 0.0
    %3193 = vmatpush1.msra.mxu0 0.0
    %3194 = vmatprep.subr.mxu0 0.0
    %3195 = vmatpush1.msra.mxu0 0.0
    %3196 = vmatprep.subr.mxu0 0.0
    %3197 = vmatpush1.msra.mxu0 0.0
    %3198 = vmatprep.subr.mxu0 0.0
    %3199 = vmatpush1.msra.mxu0 0.0
    %3200 = vmatprep.subr.mxu0 0.0
    %3201 = vmatpush1.msra.mxu0 0.0
    %3202 = vmatprep.subr.mxu0 0.0
    %3203 = vmatpush1.msra.mxu0 0.0
    %3204 = vmatprep.subr.mxu0 0.0
    %3205 = vmatpush1.msra.mxu0 0.0
    %3206 = vmatprep.subr.mxu0 0.0
    %3207 = vmatpush1.msra.mxu0 0.0
    %3208 = vmatprep.mubr.f32.mxu0 %v3065
    %3209 = vmatmul.mubr.f32.gmra.mrb[0].mxu0 %v3055
    %v3210 = vpop.f32.mrb[0].mxu0
    %v3211 = vadd.f32 %v3136, %v3210
    %v3212 = vpop.f32.mrb[0].mxu0
    %3213 = vmatprep.mubr.f32.mxu0 %v3067
    %3214 = vmatmul.mubr.f32.gmra.mrb[0].mxu0 %v3054
    %v3215 = vpop.f32.mrb[0].mxu0
    %v3216 = vadd.f32 %v3141, %v3215
    %v3217 = vpop.f32.mrb[0].mxu0
    %3218 = vdwg.mxu0
    %v3219 = vsel %vm1501, %v2595, 0
    %v3221 = vsel %vm1501, %v2599, 0
    %3223 = vmatprep.subr.mxu0 0.0
    %3224 = vmatpush1.msra.mxu0 %v2600
    %3225 = vmatprep.subr.mxu0 0.0
    %3226 = vmatpush1.msra.mxu0 %v2601
    %3227 = vmatprep.subr.mxu0 0.0
    %3228 = vmatpush1.msra.mxu0 %v2602
    %3229 = vmatprep.subr.mxu0 0.0
    %3230 = vmatpush1.msra.mxu0 %v2603
    %3231 = vmatprep.subr.mxu0 0.0
    %3232 = vmatpush1.msra.mxu0 %v2604
    %3233 = vmatprep.subr.mxu0 0.0
    %3234 = vmatpush1.msra.mxu0 %v2605
    %3235 = vmatprep.subr.mxu0 0.0
    %3236 = vmatpush1.msra.mxu0 %v2606
    %3237 = vmatprep.subr.mxu0 0.0
    %3238 = vmatpush1.msra.mxu0 %v2607
    %3239 = vmatprep.subr.mxu0 0.0
    %3240 = vmatpush1.msra.mxu0 %v2608
    %3241 = vmatprep.subr.mxu0 0.0
    %3242 = vmatpush1.msra.mxu0 %v2609
    %3243 = vmatprep.subr.mxu0 0.0
    %3244 = vmatpush1.msra.mxu0 %v2610
    %3245 = vmatprep.subr.mxu0 0.0
    %3246 = vmatpush1.msra.mxu0 %v2611
    %3247 = vmatprep.subr.mxu0 0.0
    %3248 = vmatpush1.msra.mxu0 %v2612
    %3249 = vmatprep.subr.mxu0 0.0
    %3250 = vmatpush1.msra.mxu0 %v2613
    %3251 = vmatprep.subr.mxu0 0.0
    %3252 = vmatpush1.msra.mxu0 %v2614
    %3253 = vmatprep.subr.mxu0 0.0
    %3254 = vmatpush1.msra.mxu0 %v2615
    %3255 = vmatprep.subr.mxu0 0.0
    %3256 = vmatpush1.msra.mxu0 %v2616
    %3257 = vmatprep.subr.mxu0 0.0
    %3258 = vmatpush1.msra.mxu0 %v2617
    %3259 = vmatprep.subr.mxu0 0.0
    %3260 = vmatpush1.msra.mxu0 %v2618
    %3261 = vmatprep.subr.mxu0 0.0
    %3262 = vmatpush1.msra.mxu0 %v2619
    %3263 = vmatprep.subr.mxu0 0.0
    %3264 = vmatpush1.msra.mxu0 %v2620
    %3265 = vmatprep.subr.mxu0 0.0
    %3266 = vmatpush1.msra.mxu0 %v2621
    %3267 = vmatprep.subr.mxu0 0.0
    %3268 = vmatpush1.msra.mxu0 %v2622
    %3269 = vmatprep.subr.mxu0 0.0
    %3270 = vmatpush1.msra.mxu0 %v2623
    %3271 = vmatprep.subr.mxu0 0.0
    %3272 = vmatpush1.msra.mxu0 %v2624
    %3273 = vmatprep.subr.mxu0 0.0
    %3274 = vmatpush1.msra.mxu0 %v2625
    %3275 = vmatprep.subr.mxu0 0.0
    %3276 = vmatpush1.msra.mxu0 %v2626
    %3277 = vmatprep.subr.mxu0 0.0
    %3278 = vmatpush1.msra.mxu0 %v2627
    %3279 = vmatprep.subr.mxu0 0.0
    %3280 = vmatpush1.msra.mxu0 %v2628
    %3281 = vmatprep.subr.mxu0 0.0
    %3282 = vmatpush1.msra.mxu0 %v2629
    %3283 = vmatprep.subr.mxu0 0.0
    %3284 = vmatpush1.msra.mxu0 %v2630
    %3285 = vmatprep.subr.mxu0 0.0
    %3286 = vmatpush1.msra.mxu0 %v2631
    %3287 = vmatprep.mubr.f32.mxu0 %v2593
    %3288 = vmatmul.mubr.f32.gmra.mrb[0].mxu0 %v2592
    %v3289 = vpop.f32.mrb[0].mxu0
    %v3290 = vadd.f32 %v3211, %v3289
    %v3291 = vpop.f32.mrb[0].mxu0
    %3292 = vmatprep.mubr.f32.mxu0 %v2597
    %3293 = vmatmul.mubr.f32.gmra.mrb[0].mxu0 %v2596
    %v3294 = vpop.f32.mrb[0].mxu0
    %v3295 = vadd.f32 %v3216, %v3294
    %v3296 = vpop.f32.mrb[0].mxu0
    %3297 = vdwg.mxu0
    %3298 = vmatprep.subr.mxu0 0.0
    %3299 = vmatpush1.msra.mxu0 %v2632
    %3300 = vmatprep.subr.mxu0 0.0
    %3301 = vmatpush1.msra.mxu0 %v2633
    %3302 = vmatprep.subr.mxu0 0.0
    %3303 = vmatpush1.msra.mxu0 %v2634
    %3304 = vmatprep.subr.mxu0 0.0
    %3305 = vmatpush1.msra.mxu0 %v2635
    %3306 = vmatprep.subr.mxu0 0.0
    %3307 = vmatpush1.msra.mxu0 %v2636
    %3308 = vmatprep.subr.mxu0 0.0
    %3309 = vmatpush1.msra.mxu0 %v2637
    %3310 = vmatprep.subr.mxu0 0.0
    %3311 = vmatpush1.msra.mxu0 %v2638
    %3312 = vmatprep.subr.mxu0 0.0
    %3313 = vmatpush1.msra.mxu0 %v2639
    %3314 = vmatprep.subr.mxu0 0.0
    %3315 = vmatpush1.msra.mxu0 %v2640
    %3316 = vmatprep.subr.mxu0 0.0
    %3317 = vmatpush1.msra.mxu0 %v2641
    %3318 = vmatprep.subr.mxu0 0.0
    %3319 = vmatpush1.msra.mxu0 %v2642
    %3320 = vmatprep.subr.mxu0 0.0
    %3321 = vmatpush1.msra.mxu0 %v2643
    %3322 = vmatprep.subr.mxu0 0.0
    %3323 = vmatpush1.msra.mxu0 %v2644
    %3324 = vmatprep.subr.mxu0 0.0
    %3325 = vmatpush1.msra.mxu0 %v2645
    %3326 = vmatprep.subr.mxu0 0.0
    %3327 = vmatpush1.msra.mxu0 %v2646
    %3328 = vmatprep.subr.mxu0 0.0
    %3329 = vmatpush1.msra.mxu0 %v2647
    %3330 = vmatprep.subr.mxu0 0.0
    %3331 = vmatpush1.msra.mxu0 %v2648
    %3332 = vmatprep.subr.mxu0 0.0
    %3333 = vmatpush1.msra.mxu0 %v2649
    %3334 = vmatprep.subr.mxu0 0.0
    %3335 = vmatpush1.msra.mxu0 %v2650
    %3336 = vmatprep.subr.mxu0 0.0
    %3337 = vmatpush1.msra.mxu0 %v2651
    %3338 = vmatprep.subr.mxu0 0.0
    %3339 = vmatpush1.msra.mxu0 0.0
    %3340 = vmatprep.subr.mxu0 0.0
    %3341 = vmatpush1.msra.mxu0 0.0
    %3342 = vmatprep.subr.mxu0 0.0
    %3343 = vmatpush1.msra.mxu0 0.0
    %3344 = vmatprep.subr.mxu0 0.0
    %3345 = vmatpush1.msra.mxu0 0.0
    %3346 = vmatprep.subr.mxu0 0.0
    %3347 = vmatpush1.msra.mxu0 0.0
    %3348 = vmatprep.subr.mxu0 0.0
    %3349 = vmatpush1.msra.mxu0 0.0
    %3350 = vmatprep.subr.mxu0 0.0
    %3351 = vmatpush1.msra.mxu0 0.0
    %3352 = vmatprep.subr.mxu0 0.0
    %3353 = vmatpush1.msra.mxu0 0.0
    %3354 = vmatprep.subr.mxu0 0.0
    %3355 = vmatpush1.msra.mxu0 0.0
    %3356 = vmatprep.subr.mxu0 0.0
    %3357 = vmatpush1.msra.mxu0 0.0
    %3358 = vmatprep.subr.mxu0 0.0
    %3359 = vmatpush1.msra.mxu0 0.0
    %3360 = vmatprep.subr.mxu0 0.0
    %3361 = vmatpush1.msra.mxu0 0.0
    %3362 = vmatprep.mubr.f32.mxu0 %v3219
    %3363 = vmatmul.mubr.f32.gmra.mrb[0].mxu0 %v2594
    %v3364 = vpop.f32.mrb[0].mxu0
    %v3365 = vadd.f32 %v3290, %v3364
    %v3366 = vpop.f32.mrb[0].mxu0
    %3367 = vmatprep.mubr.f32.mxu0 %v3221
    %3368 = vmatmul.mubr.f32.gmra.mrb[0].mxu0 %v2598
    %v3369 = vpop.f32.mrb[0].mxu0
    %v3370 = vadd.f32 %v3295, %v3369
    %v3371 = vpop.f32.mrb[0].mxu0
    %3372 = vdwg.mxu0
    %v3373 = vld [vmem:[%s7] sm:$0xff]
    %v3374 = vld [vmem:[%s7 + $0x8] sm:$0xff]
    %v3375 = vld [vmem:[%s7 + $0x10] sm:$0xff]
    %v3376 = vld [vmem:[%s7 + $0x18] sm:$0xff]
    %v3377 = vld [vmem:[%s7 + $0x20] sm:$0xff]
    %v3378 = vld [vmem:[%s7 + $0x28] sm:$0xff]
    %v3379 = vld [vmem:[%s7 + $0x30] sm:$0xff]
    %v3380 = vld [vmem:[%s7 + $0x38] sm:$0xff]
    %v3381 = vld [vmem:[%s7 + $0x40] sm:$0xff]
    %v3382 = vld [vmem:[%s7 + $0x48] sm:$0xff]
    %v3383 = vld [vmem:[%s7 + $0x50] sm:$0xff]
    %v3384 = vld [vmem:[%s7 + $0x58] sm:$0xff]
    %v3385 = vld [vmem:[%s8] sm:$0xff]
    %v3386 = vld [vmem:[%s6] sm:$0x1]
    %vm3387 = vcmask 64512
    %v3389 = vsel %vm3387, %v3386, 0
    %3391 = vmatprep.subr.mxu0 0.0
    %3392 = vmatpush1.msra.mxu0 %v3385
    %3393 = vmatprep.subr.mxu0 0.0
    %3394 = vmatpush1.msra.mxu0 0.0
    %3395 = vmatprep.subr.mxu0 0.0
    %3396 = vmatpush1.msra.mxu0 0.0
    %3397 = vmatprep.subr.mxu0 0.0
    %3398 = vmatpush1.msra.mxu0 0.0
    %3399 = vmatprep.subr.mxu0 0.0
    %3400 = vmatpush1.msra.mxu0 0.0
    %3401 = vmatprep.subr.mxu0 0.0
    %3402 = vmatpush1.msra.mxu0 0.0
    %3403 = vmatprep.subr.mxu0 0.0
    %3404 = vmatpush1.msra.mxu0 0.0
    %3405 = vmatprep.subr.mxu0 0.0
    %3406 = vmatpush1.msra.mxu0 0.0
    %3407 = vmatprep.subr.mxu0 0.0
    %3408 = vmatpush1.msra.mxu0 0.0
    %3409 = vmatprep.subr.mxu0 0.0
    %3410 = vmatpush1.msra.mxu0 0.0
    %3411 = vmatprep.subr.mxu0 0.0
    %3412 = vmatpush1.msra.mxu0 0.0
    %3413 = vmatprep.subr.mxu0 0.0
    %3414 = vmatpush1.msra.mxu0 0.0
    %3415 = vmatprep.subr.mxu0 0.0
    %3416 = vmatpush1.msra.mxu0 0.0
    %3417 = vmatprep.subr.mxu0 0.0
    %3418 = vmatpush1.msra.mxu0 0.0
    %3419 = vmatprep.subr.mxu0 0.0
    %3420 = vmatpush1.msra.mxu0 0.0
    %3421 = vmatprep.subr.mxu0 0.0
    %3422 = vmatpush1.msra.mxu0 0.0
    %3423 = vmatprep.subr.mxu0 0.0
    %3424 = vmatpush1.msra.mxu0 0.0
    %3425 = vmatprep.subr.mxu0 0.0
    %3426 = vmatpush1.msra.mxu0 0.0
    %3427 = vmatprep.subr.mxu0 0.0
    %3428 = vmatpush1.msra.mxu0 0.0
    %3429 = vmatprep.subr.mxu0 0.0
    %3430 = vmatpush1.msra.mxu0 0.0
    %3431 = vmatprep.subr.mxu0 0.0
    %3432 = vmatpush1.msra.mxu0 0.0
    %3433 = vmatprep.subr.mxu0 0.0
    %3434 = vmatpush1.msra.mxu0 0.0
    %3435 = vmatprep.subr.mxu0 0.0
    %3436 = vmatpush1.msra.mxu0 0.0
    %3437 = vmatprep.subr.mxu0 0.0
    %3438 = vmatpush1.msra.mxu0 0.0
    %3439 = vmatprep.subr.mxu0 0.0
    %3440 = vmatpush1.msra.mxu0 0.0
    %3441 = vmatprep.subr.mxu0 0.0
    %3442 = vmatpush1.msra.mxu0 0.0
    %3443 = vmatprep.subr.mxu0 0.0
    %3444 = vmatpush1.msra.mxu0 0.0
    %3445 = vmatprep.subr.mxu0 0.0
    %3446 = vmatpush1.msra.mxu0 0.0
    %3447 = vmatprep.subr.mxu0 0.0
    %3448 = vmatpush1.msra.mxu0 0.0
    %3449 = vmatprep.subr.mxu0 0.0
    %3450 = vmatpush1.msra.mxu0 0.0
    %3451 = vmatprep.subr.mxu0 0.0
    %3452 = vmatpush1.msra.mxu0 0.0
    %3453 = vmatprep.subr.mxu0 0.0
    %3454 = vmatpush1.msra.mxu0 0.0
    %3455 = vmatprep.mubr.f32.mxu0 0.0
    %3456 = vmatmul.mubr.f32.gmra.mrb[0].mxu0 %v3389
    %v3457 = vpop.f32.mrb[0].mxu0
    %v3458 = vadd.f32 0.0, %v3457
    %v3459 = vpop.f32.mrb[0].mxu0
    %3460 = vdwg.mxu0
    %v3461 = vlaneseq
    %v3462 = vshrl.u32 %v3461, 7
    %v3463 = vsub.s32 0, %v3462
    %v3464 = vrot.slane %v3458, %v3463
    %v3465 = vadd.f32 %v3031, %v3464
    %v3466 = vadd.f32 %v3036, %v3464
    %v3467 = vadd.f32 %v3365, %v3464
    %v3468 = vadd.f32 %v3370, %v3464
    %vm3469 = vcmask 785408
    %v3470 = vsel %vm3469, %v3465, 0.0
    %vm3471 = vcmask 781312
    %v3472 = vsel %vm3471, %v3466, 0.0
    %v3473 = vadd.f32 %v3470, %v3472
    %v3474 = vrot.slane %v3473, 4
    %v3475 = vadd.f32 %v3473, %v3474
    %v3476 = vrot.slane %v3475, 2
    %v3477 = vadd.f32 %v3475, %v3476
    %v3478 = vrot.slane %v3477, 1
    %v3479 = vadd.f32 %v3477, %v3478
    %v3480 = vmul.f32 %v3465, %v3465
    %v3481 = vmul.f32 %v3466, %v3466
    %v3482 = vsel %vm3469, %v3480, 0.0
    %v3483 = vsel %vm3471, %v3481, 0.0
    %v3484 = vadd.f32 %v3482, %v3483
    %v3485 = vrot.slane %v3484, 4
    %v3486 = vadd.f32 %v3484, %v3485
    %v3487 = vrot.slane %v3486, 2
    %v3488 = vadd.f32 %v3486, %v3487
    %v3489 = vrot.slane %v3488, 1
    %v3490 = vadd.f32 %v3488, %v3489
    %v3491 = vsel %vm3469, %v3467, 0.0
    %v3492 = vsel %vm3471, %v3468, 0.0
    %v3493 = vadd.f32 %v3491, %v3492
    %v3494 = vrot.slane %v3493, 4
    %v3495 = vadd.f32 %v3493, %v3494
    %v3496 = vrot.slane %v3495, 2
    %v3497 = vadd.f32 %v3495, %v3496
    %v3498 = vrot.slane %v3497, 1
    %v3499 = vadd.f32 %v3497, %v3498
    %v3500 = vmul.f32 %v3467, %v3467
    %v3501 = vmul.f32 %v3468, %v3468
    %v3502 = vsel %vm3469, %v3500, 0.0
    %v3503 = vsel %vm3471, %v3501, 0.0
    %v3504 = vadd.f32 %v3502, %v3503
    %v3505 = vrot.slane %v3504, 4
    %v3506 = vadd.f32 %v3504, %v3505
    %v3507 = vrot.slane %v3506, 2
    %v3508 = vadd.f32 %v3506, %v3507
    %v3509 = vrot.slane %v3508, 1
    %v3510 = vadd.f32 %v3508, %v3509
    %v3511 = vadd.f32 %v3479, %v3499
    %v3512 = vadd.f32 %v3490, %v3510
    %v3514 = vsel %vm3469, %v3511, 0
    %3516 = vmatprep.subr.mxu0 0.0
    %3517 = vmatpush1.msra.mxu0 %v3373
    %3518 = vmatprep.subr.mxu0 0.0
    %3519 = vmatpush1.msra.mxu0 %v3374
    %3520 = vmatprep.subr.mxu0 0.0
    %3521 = vmatpush1.msra.mxu0 %v3375
    %3522 = vmatprep.subr.mxu0 0.0
    %3523 = vmatpush1.msra.mxu0 %v3376
    %3524 = vmatprep.subr.mxu0 0.0
    %3525 = vmatpush1.msra.mxu0 %v3377
    %3526 = vmatprep.subr.mxu0 0.0
    %3527 = vmatpush1.msra.mxu0 %v3378
    %3528 = vmatprep.subr.mxu0 0.0
    %3529 = vmatpush1.msra.mxu0 %v3379
    %3530 = vmatprep.subr.mxu0 0.0
    %3531 = vmatpush1.msra.mxu0 %v3380
    %3532 = vmatprep.subr.mxu0 0.0
    %3533 = vmatpush1.msra.mxu0 %v3381
    %3534 = vmatprep.subr.mxu0 0.0
    %3535 = vmatpush1.msra.mxu0 %v3382
    %3536 = vmatprep.subr.mxu0 0.0
    %3537 = vmatpush1.msra.mxu0 %v3383
    %3538 = vmatprep.subr.mxu0 0.0
    %3539 = vmatpush1.msra.mxu0 %v3384
    %3540 = vmatprep.subr.mxu0 0.0
    %3541 = vmatpush1.msra.mxu0 0.0
    %3542 = vmatprep.subr.mxu0 0.0
    %3543 = vmatpush1.msra.mxu0 0.0
    %3544 = vmatprep.subr.mxu0 0.0
    %3545 = vmatpush1.msra.mxu0 0.0
    %3546 = vmatprep.subr.mxu0 0.0
    %3547 = vmatpush1.msra.mxu0 0.0
    %3548 = vmatprep.subr.mxu0 0.0
    %3549 = vmatpush1.msra.mxu0 0.0
    %3550 = vmatprep.subr.mxu0 0.0
    %3551 = vmatpush1.msra.mxu0 0.0
    %3552 = vmatprep.subr.mxu0 0.0
    %3553 = vmatpush1.msra.mxu0 0.0
    %3554 = vmatprep.subr.mxu0 0.0
    %3555 = vmatpush1.msra.mxu0 0.0
    %3556 = vmatprep.subr.mxu0 0.0
    %3557 = vmatpush1.msra.mxu0 0.0
    %3558 = vmatprep.subr.mxu0 0.0
    %3559 = vmatpush1.msra.mxu0 0.0
    %3560 = vmatprep.subr.mxu0 0.0
    %3561 = vmatpush1.msra.mxu0 0.0
    %3562 = vmatprep.subr.mxu0 0.0
    %3563 = vmatpush1.msra.mxu0 0.0
    %3564 = vmatprep.subr.mxu0 0.0
    %3565 = vmatpush1.msra.mxu0 0.0
    %3566 = vmatprep.subr.mxu0 0.0
    %3567 = vmatpush1.msra.mxu0 0.0
    %3568 = vmatprep.subr.mxu0 0.0
    %3569 = vmatpush1.msra.mxu0 0.0
    %3570 = vmatprep.subr.mxu0 0.0
    %3571 = vmatpush1.msra.mxu0 0.0
    %3572 = vmatprep.subr.mxu0 0.0
    %3573 = vmatpush1.msra.mxu0 0.0
    %3574 = vmatprep.subr.mxu0 0.0
    %3575 = vmatpush1.msra.mxu0 0.0
    %3576 = vmatprep.subr.mxu0 0.0
    %3577 = vmatpush1.msra.mxu0 0.0
    %3578 = vmatprep.subr.mxu0 0.0
    %3579 = vmatpush1.msra.mxu0 0.0
    %3580 = vmatprep.mubr.f32.mxu0 0.0
    %3581 = vmatmul.mubr.f32.gmra.mrb[0].mxu0 %v3514
    %v3582 = vpop.f32.mrb[0].mxu0
    %v3583 = vadd.f32 0.0, %v3582
    %v3584 = vpop.f32.mrb[0].mxu0
    %3585 = vdwg.mxu0
    %v3586 = vmul.f32 %v3583, 0.0034722222
    %v3588 = vsel %vm3469, %v3512, 0
    %3590 = vmatprep.subr.mxu0 0.0
    %3591 = vmatpush1.msra.mxu0 %v3373
    %3592 = vmatprep.subr.mxu0 0.0
    %3593 = vmatpush1.msra.mxu0 %v3374
    %3594 = vmatprep.subr.mxu0 0.0
    %3595 = vmatpush1.msra.mxu0 %v3375
    %3596 = vmatprep.subr.mxu0 0.0
    %3597 = vmatpush1.msra.mxu0 %v3376
    %3598 = vmatprep.subr.mxu0 0.0
    %3599 = vmatpush1.msra.mxu0 %v3377
    %3600 = vmatprep.subr.mxu0 0.0
    %3601 = vmatpush1.msra.mxu0 %v3378
    %3602 = vmatprep.subr.mxu0 0.0
    %3603 = vmatpush1.msra.mxu0 %v3379
    %3604 = vmatprep.subr.mxu0 0.0
    %3605 = vmatpush1.msra.mxu0 %v3380
    %3606 = vmatprep.subr.mxu0 0.0
    %3607 = vmatpush1.msra.mxu0 %v3381
    %3608 = vmatprep.subr.mxu0 0.0
    %3609 = vmatpush1.msra.mxu0 %v3382
    %3610 = vmatprep.subr.mxu0 0.0
    %3611 = vmatpush1.msra.mxu0 %v3383
    %3612 = vmatprep.subr.mxu0 0.0
    %3613 = vmatpush1.msra.mxu0 %v3384
    %3614 = vmatprep.subr.mxu0 0.0
    %3615 = vmatpush1.msra.mxu0 0.0
    %3616 = vmatprep.subr.mxu0 0.0
    %3617 = vmatpush1.msra.mxu0 0.0
    %3618 = vmatprep.subr.mxu0 0.0
    %3619 = vmatpush1.msra.mxu0 0.0
    %3620 = vmatprep.subr.mxu0 0.0
    %3621 = vmatpush1.msra.mxu0 0.0
    %3622 = vmatprep.subr.mxu0 0.0
    %3623 = vmatpush1.msra.mxu0 0.0
    %3624 = vmatprep.subr.mxu0 0.0
    %3625 = vmatpush1.msra.mxu0 0.0
    %3626 = vmatprep.subr.mxu0 0.0
    %3627 = vmatpush1.msra.mxu0 0.0
    %3628 = vmatprep.subr.mxu0 0.0
    %3629 = vmatpush1.msra.mxu0 0.0
    %3630 = vmatprep.subr.mxu0 0.0
    %3631 = vmatpush1.msra.mxu0 0.0
    %3632 = vmatprep.subr.mxu0 0.0
    %3633 = vmatpush1.msra.mxu0 0.0
    %3634 = vmatprep.subr.mxu0 0.0
    %3635 = vmatpush1.msra.mxu0 0.0
    %3636 = vmatprep.subr.mxu0 0.0
    %3637 = vmatpush1.msra.mxu0 0.0
    %3638 = vmatprep.subr.mxu0 0.0
    %3639 = vmatpush1.msra.mxu0 0.0
    %3640 = vmatprep.subr.mxu0 0.0
    %3641 = vmatpush1.msra.mxu0 0.0
    %3642 = vmatprep.subr.mxu0 0.0
    %3643 = vmatpush1.msra.mxu0 0.0
    %3644 = vmatprep.subr.mxu0 0.0
    %3645 = vmatpush1.msra.mxu0 0.0
    %3646 = vmatprep.subr.mxu0 0.0
    %3647 = vmatpush1.msra.mxu0 0.0
    %3648 = vmatprep.subr.mxu0 0.0
    %3649 = vmatpush1.msra.mxu0 0.0
    %3650 = vmatprep.subr.mxu0 0.0
    %3651 = vmatpush1.msra.mxu0 0.0
    %3652 = vmatprep.subr.mxu0 0.0
    %3653 = vmatpush1.msra.mxu0 0.0
    %3654 = vmatprep.mubr.f32.mxu0 0.0
    %3655 = vmatmul.mubr.f32.gmra.mrb[0].mxu0 %v3588
    %v3656 = vpop.f32.mrb[0].mxu0
    %v3657 = vadd.f32 0.0, %v3656
    %v3658 = vpop.f32.mrb[0].mxu0
    %3659 = vdwg.mxu0
    %v3660 = vmul.f32 %v3657, 0.0034722222
    %v3661 = vmul.f32 %v3586, %v3586
    %v3662 = vsub.f32 %v3660, %v3661
    %v3663 = vmax.f32 %v3662, 0.0
    %v3664 = vld [vmem:[%s6 + $0x1] sm:$0x1]
    %v3665 = vadd.f32 %v3663, 1e-05
    %v3666 = vrsqrt.pop %v3665
    %v3667 = vmul.f32 %v3664, %v3666
    %v3668 = vld [vmem:[%s6 + $0x2] sm:$0x1]
    %v3669 = vmul.f32 %v3586, %v3667
    %v3670 = vsub.f32 %v3668, %v3669
    %v3672 = vsel %vm3387, %v3667, 0
    %3674 = vmatprep.subr.mxu0 0.0
    %3675 = vmatpush1.msra.mxu0 %v3385
    %3676 = vmatprep.subr.mxu0 0.0
    %3677 = vmatpush1.msra.mxu0 0.0
    %3678 = vmatprep.subr.mxu0 0.0
    %3679 = vmatpush1.msra.mxu0 0.0
    %3680 = vmatprep.subr.mxu0 0.0
    %3681 = vmatpush1.msra.mxu0 0.0
    %3682 = vmatprep.subr.mxu0 0.0
    %3683 = vmatpush1.msra.mxu0 0.0
    %3684 = vmatprep.subr.mxu0 0.0
    %3685 = vmatpush1.msra.mxu0 0.0
    %3686 = vmatprep.subr.mxu0 0.0
    %3687 = vmatpush1.msra.mxu0 0.0
    %3688 = vmatprep.subr.mxu0 0.0
    %3689 = vmatpush1.msra.mxu0 0.0
    %3690 = vmatprep.subr.mxu0 0.0
    %3691 = vmatpush1.msra.mxu0 0.0
    %3692 = vmatprep.subr.mxu0 0.0
    %3693 = vmatpush1.msra.mxu0 0.0
    %3694 = vmatprep.subr.mxu0 0.0
    %3695 = vmatpush1.msra.mxu0 0.0
    %3696 = vmatprep.subr.mxu0 0.0
    %3697 = vmatpush1.msra.mxu0 0.0
    %3698 = vmatprep.subr.mxu0 0.0
    %3699 = vmatpush1.msra.mxu0 0.0
    %3700 = vmatprep.subr.mxu0 0.0
    %3701 = vmatpush1.msra.mxu0 0.0
    %3702 = vmatprep.subr.mxu0 0.0
    %3703 = vmatpush1.msra.mxu0 0.0
    %3704 = vmatprep.subr.mxu0 0.0
    %3705 = vmatpush1.msra.mxu0 0.0
    %3706 = vmatprep.subr.mxu0 0.0
    %3707 = vmatpush1.msra.mxu0 0.0
    %3708 = vmatprep.subr.mxu0 0.0
    %3709 = vmatpush1.msra.mxu0 0.0
    %3710 = vmatprep.subr.mxu0 0.0
    %3711 = vmatpush1.msra.mxu0 0.0
    %3712 = vmatprep.subr.mxu0 0.0
    %3713 = vmatpush1.msra.mxu0 0.0
    %3714 = vmatprep.subr.mxu0 0.0
    %3715 = vmatpush1.msra.mxu0 0.0
    %3716 = vmatprep.subr.mxu0 0.0
    %3717 = vmatpush1.msra.mxu0 0.0
    %3718 = vmatprep.subr.mxu0 0.0
    %3719 = vmatpush1.msra.mxu0 0.0
    %3720 = vmatprep.subr.mxu0 0.0
    %3721 = vmatpush1.msra.mxu0 0.0
    %3722 = vmatprep.subr.mxu0 0.0
    %3723 = vmatpush1.msra.mxu0 0.0
    %3724 = vmatprep.subr.mxu0 0.0
    %3725 = vmatpush1.msra.mxu0 0.0
    %3726 = vmatprep.subr.mxu0 0.0
    %3727 = vmatpush1.msra.mxu0 0.0
    %3728 = vmatprep.subr.mxu0 0.0
    %3729 = vmatpush1.msra.mxu0 0.0
    %3730 = vmatprep.subr.mxu0 0.0
    %3731 = vmatpush1.msra.mxu0 0.0
    %3732 = vmatprep.subr.mxu0 0.0
    %3733 = vmatpush1.msra.mxu0 0.0
    %3734 = vmatprep.subr.mxu0 0.0
    %3735 = vmatpush1.msra.mxu0 0.0
    %3736 = vmatprep.subr.mxu0 0.0
    %3737 = vmatpush1.msra.mxu0 0.0
    %3738 = vmatprep.mubr.f32.mxu0 0.0
    %3739 = vmatmul.mubr.f32.gmra.mrb[0].mxu0 %v3672
    %v3740 = vpop.f32.mrb[0].mxu0
    %v3741 = vadd.f32 0.0, %v3740
    %v3742 = vpop.f32.mrb[0].mxu0
    %3743 = vdwg.mxu0
    %v3745 = vsel %vm3387, %v3670, 0
    %3747 = vmatprep.subr.mxu0 0.0
    %3748 = vmatpush1.msra.mxu0 %v3385
    %3749 = vmatprep.subr.mxu0 0.0
    %3750 = vmatpush1.msra.mxu0 0.0
    %3751 = vmatprep.subr.mxu0 0.0
    %3752 = vmatpush1.msra.mxu0 0.0
    %3753 = vmatprep.subr.mxu0 0.0
    %3754 = vmatpush1.msra.mxu0 0.0
    %3755 = vmatprep.subr.mxu0 0.0
    %3756 = vmatpush1.msra.mxu0 0.0
    %3757 = vmatprep.subr.mxu0 0.0
    %3758 = vmatpush1.msra.mxu0 0.0
    %3759 = vmatprep.subr.mxu0 0.0
    %3760 = vmatpush1.msra.mxu0 0.0
    %3761 = vmatprep.subr.mxu0 0.0
    %3762 = vmatpush1.msra.mxu0 0.0
    %3763 = vmatprep.subr.mxu0 0.0
    %3764 = vmatpush1.msra.mxu0 0.0
    %3765 = vmatprep.subr.mxu0 0.0
    %3766 = vmatpush1.msra.mxu0 0.0
    %3767 = vmatprep.subr.mxu0 0.0
    %3768 = vmatpush1.msra.mxu0 0.0
    %3769 = vmatprep.subr.mxu0 0.0
    %3770 = vmatpush1.msra.mxu0 0.0
    %3771 = vmatprep.subr.mxu0 0.0
    %3772 = vmatpush1.msra.mxu0 0.0
    %3773 = vmatprep.subr.mxu0 0.0
    %3774 = vmatpush1.msra.mxu0 0.0
    %3775 = vmatprep.subr.mxu0 0.0
    %3776 = vmatpush1.msra.mxu0 0.0
    %3777 = vmatprep.subr.mxu0 0.0
    %3778 = vmatpush1.msra.mxu0 0.0
    %3779 = vmatprep.subr.mxu0 0.0
    %3780 = vmatpush1.msra.mxu0 0.0
    %3781 = vmatprep.subr.mxu0 0.0
    %3782 = vmatpush1.msra.mxu0 0.0
    %3783 = vmatprep.subr.mxu0 0.0
    %3784 = vmatpush1.msra.mxu0 0.0
    %3785 = vmatprep.subr.mxu0 0.0
    %3786 = vmatpush1.msra.mxu0 0.0
    %3787 = vmatprep.subr.mxu0 0.0
    %3788 = vmatpush1.msra.mxu0 0.0
    %3789 = vmatprep.subr.mxu0 0.0
    %3790 = vmatpush1.msra.mxu0 0.0
    %3791 = vmatprep.subr.mxu0 0.0
    %3792 = vmatpush1.msra.mxu0 0.0
    %3793 = vmatprep.subr.mxu0 0.0
    %3794 = vmatpush1.msra.mxu0 0.0
    %3795 = vmatprep.subr.mxu0 0.0
    %3796 = vmatpush1.msra.mxu0 0.0
    %3797 = vmatprep.subr.mxu0 0.0
    %3798 = vmatpush1.msra.mxu0 0.0
    %3799 = vmatprep.subr.mxu0 0.0
    %3800 = vmatpush1.msra.mxu0 0.0
    %3801 = vmatprep.subr.mxu0 0.0
    %3802 = vmatpush1.msra.mxu0 0.0
    %3803 = vmatprep.subr.mxu0 0.0
    %3804 = vmatpush1.msra.mxu0 0.0
    %3805 = vmatprep.subr.mxu0 0.0
    %3806 = vmatpush1.msra.mxu0 0.0
    %3807 = vmatprep.subr.mxu0 0.0
    %3808 = vmatpush1.msra.mxu0 0.0
    %3809 = vmatprep.subr.mxu0 0.0
    %3810 = vmatpush1.msra.mxu0 0.0
    %3811 = vmatprep.mubr.f32.mxu0 0.0
    %3812 = vmatmul.mubr.f32.gmra.mrb[0].mxu0 %v3745
    %v3813 = vpop.f32.mrb[0].mxu0
    %v3814 = vadd.f32 0.0, %v3813
    %v3815 = vpop.f32.mrb[0].mxu0
    %3816 = vdwg.mxu0
    %v3817 = vlaneseq
    %v3818 = vshrl.u32 %v3817, 7
    %v3819 = vsub.s32 0, %v3818
    %v3820 = vrot.slane %v3741, %v3819
    %v3821 = vmul.f32 %v3465, %v3820
    %v3822 = vmul.f32 %v3466, %v3820
    %v3823 = vlaneseq
    %v3824 = vshrl.u32 %v3823, 7
    %v3825 = vsub.s32 0, %v3824
    %v3826 = vrot.slane %v3814, %v3825
    %v3827 = vadd.f32 %v3821, %v3826
    %v3828 = vadd.f32 %v3822, %v3826
    %vm3829 = vcmp.gt.f32.partialorder %v3827, 0.0
    %vm3830 = vcmp.gt.f32.partialorder %v3828, 0.0
    %v3831 = vmul.f32 %v3827, 1.442695
    %v3832 = vpow.pop %v3831
    %v3833 = vmul.f32 %v3828, 1.442695
    %v3834 = vpow.pop %v3833
    %v3835 = vsub.f32 %v3832, 1.0
    %v3836 = vsub.f32 %v3834, 1.0
    %v3837 = vmul.f32 %v3835, 1.6732632
    %v3838 = vmul.f32 %v3836, 1.6732632
    %v3839 = vsel %vm3829, %v3827, %v3837
    %v3840 = vsel %vm3830, %v3828, %v3838
    %v3841 = vmul.f32 %v3839, 1.050701
    %v3842 = vmul.f32 %v3840, 1.050701
    %v3843 = vmul.f32 %v3467, %v3820
    %v3844 = vmul.f32 %v3468, %v3820
    %v3845 = vadd.f32 %v3843, %v3826
    %v3846 = vadd.f32 %v3844, %v3826
    %vm3847 = vcmp.gt.f32.partialorder %v3845, 0.0
    %vm3848 = vcmp.gt.f32.partialorder %v3846, 0.0
    %v3849 = vmul.f32 %v3845, 1.442695
    %v3850 = vpow.pop %v3849
    %v3851 = vmul.f32 %v3846, 1.442695
    %v3852 = vpow.pop %v3851
    %v3853 = vsub.f32 %v3850, 1.0
    %v3854 = vsub.f32 %v3852, 1.0
    %v3855 = vmul.f32 %v3853, 1.6732632
    %v3856 = vmul.f32 %v3854, 1.6732632
    %v3857 = vsel %vm3847, %v3845, %v3855
    %v3858 = vsel %vm3848, %v3846, %v3856
    %v3859 = vmul.f32 %v3857, 1.050701
    %v3860 = vmul.f32 %v3858, 1.050701
    %v3861 = vld [vmem:[%s15] sm:$0xff]
    %v3862 = vld [vmem:[%s15 + $0x8] sm:$0xf]
    %v3863 = vld [vmem:[%s16] sm:$0xff]
    %v3864 = vld [vmem:[%s16 + $0x8] sm:$0xff]
    %v3865 = vld [vmem:[%s16 + $0x10] sm:$0xff]
    %v3866 = vld [vmem:[%s16 + $0x18] sm:$0xff]
    %v3867 = vld [vmem:[%s16 + $0x20] sm:$0xff]
    %v3868 = vld [vmem:[%s16 + $0x28] sm:$0xff]
    %v3869 = vld [vmem:[%s16 + $0x30] sm:$0xff]
    %v3870 = vld [vmem:[%s16 + $0x38] sm:$0xff]
    %v3871 = vld [vmem:[%s16 + $0x40] sm:$0xff]
    %v3872 = vld [vmem:[%s16 + $0x48] sm:$0xff]
    %v3873 = vld [vmem:[%s16 + $0x50] sm:$0xff]
    %v3874 = vld [vmem:[%s16 + $0x58] sm:$0xff]
    %v3875 = vlaneseq
    %v3876 = vand.u32 %v3875, 127
    %v3877 = vlaneseq
    %v3878 = vshrl.u32 %v3877, 7
    %v3879 = vadd.s32 %v3878, 8
    %v3880 = vand.u32 %v3876, 8
    %vm3881 = vcmp.eq.s32.totalorder %v3880, 0
    %v3882 = vand.u32 %v3878, 1
    %v3883 = vand.u32 %v3879, 1
    %vm3884 = vcmp.eq.s32.totalorder %v3882, 0
    %vm3885 = vcmp.eq.s32.totalorder %v3883, 0
    %v3887 = vsel %vm3469, %v3841, 0
    %v3890 = vsel %vm3469, %v3842, 0
    %3892 = vmatprep.subr.mxu0 0.0
    %3893 = vmatpush1.msra.mxu0 %v3863
    %3894 = vmatprep.subr.mxu0 0.0
    %3895 = vmatpush1.msra.mxu0 %v3864
    %3896 = vmatprep.subr.mxu0 0.0
    %3897 = vmatpush1.msra.mxu0 %v3865
    %3898 = vmatprep.subr.mxu0 0.0
    %3899 = vmatpush1.msra.mxu0 %v3866
    %3900 = vmatprep.subr.mxu0 0.0
    %3901 = vmatpush1.msra.mxu0 %v3867
    %3902 = vmatprep.subr.mxu0 0.0
    %3903 = vmatpush1.msra.mxu0 %v3868
    %3904 = vmatprep.subr.mxu0 0.0
    %3905 = vmatpush1.msra.mxu0 %v3869
    %3906 = vmatprep.subr.mxu0 0.0
    %3907 = vmatpush1.msra.mxu0 %v3870
    %3908 = vmatprep.subr.mxu0 0.0
    %3909 = vmatpush1.msra.mxu0 %v3871
    %3910 = vmatprep.subr.mxu0 0.0
    %3911 = vmatpush1.msra.mxu0 %v3872
    %3912 = vmatprep.subr.mxu0 0.0
    %3913 = vmatpush1.msra.mxu0 %v3873
    %3914 = vmatprep.subr.mxu0 0.0
    %3915 = vmatpush1.msra.mxu0 %v3874
    %3916 = vmatprep.subr.mxu0 0.0
    %3917 = vmatpush1.msra.mxu0 0.0
    %3918 = vmatprep.subr.mxu0 0.0
    %3919 = vmatpush1.msra.mxu0 0.0
    %3920 = vmatprep.subr.mxu0 0.0
    %3921 = vmatpush1.msra.mxu0 0.0
    %3922 = vmatprep.subr.mxu0 0.0
    %3923 = vmatpush1.msra.mxu0 0.0
    %3924 = vmatprep.subr.mxu0 0.0
    %3925 = vmatpush1.msra.mxu0 0.0
    %3926 = vmatprep.subr.mxu0 0.0
    %3927 = vmatpush1.msra.mxu0 0.0
    %3928 = vmatprep.subr.mxu0 0.0
    %3929 = vmatpush1.msra.mxu0 0.0
    %3930 = vmatprep.subr.mxu0 0.0
    %3931 = vmatpush1.msra.mxu0 0.0
    %3932 = vmatprep.subr.mxu0 0.0
    %3933 = vmatpush1.msra.mxu0 0.0
    %3934 = vmatprep.subr.mxu0 0.0
    %3935 = vmatpush1.msra.mxu0 0.0
    %3936 = vmatprep.subr.mxu0 0.0
    %3937 = vmatpush1.msra.mxu0 0.0
    %3938 = vmatprep.subr.mxu0 0.0
    %3939 = vmatpush1.msra.mxu0 0.0
    %3940 = vmatprep.subr.mxu0 0.0
    %3941 = vmatpush1.msra.mxu0 0.0
    %3942 = vmatprep.subr.mxu0 0.0
    %3943 = vmatpush1.msra.mxu0 0.0
    %3944 = vmatprep.subr.mxu0 0.0
    %3945 = vmatpush1.msra.mxu0 0.0
    %3946 = vmatprep.subr.mxu0 0.0
    %3947 = vmatpush1.msra.mxu0 0.0
    %3948 = vmatprep.subr.mxu0 0.0
    %3949 = vmatpush1.msra.mxu0 0.0
    %3950 = vmatprep.subr.mxu0 0.0
    %3951 = vmatpush1.msra.mxu0 0.0
    %3952 = vmatprep.subr.mxu0 0.0
    %3953 = vmatpush1.msra.mxu0 0.0
    %3954 = vmatprep.subr.mxu0 0.0
    %3955 = vmatpush1.msra.mxu0 0.0
    %3956 = vmatprep.mubr.f32.mxu0 0.0
    %3957 = vmatmul.mubr.f32.gmra.mrb[0].mxu0 %v3887
    %v3958 = vpop.f32.mrb[0].mxu0
    %v3959 = vadd.f32 0.0, %v3958
    %v3960 = vpop.f32.mrb[0].mxu0
    %3961 = vmatprep.mubr.f32.mxu0 0.0
    %3962 = vmatmul.mubr.f32.gmra.mrb[0].mxu0 %v3890
    %v3963 = vpop.f32.mrb[0].mxu0
    %v3964 = vadd.f32 0.0, %v3963
    %v3965 = vpop.f32.mrb[0].mxu0
    %3966 = vdwg.mxu0
    %vm3967 = vcmask 97280
    %v3969 = vsel %vm3967, %v3861, 0
    %v3972 = vsel %vm3967, %v3862, 0
    %vm3974 = vcmask 1043456
    %v3975 = vsel %vm3974, %v3842, 0
    %3977 = vmatprep.subr.mxu0 0.0
    %3978 = vmatpush1.msra.mxu0 %v3841
    %3979 = vmatprep.subr.mxu0 0.0
    %3980 = vmatpush1.msra.mxu0 %v3975
    %3981 = vmatprep.subr.mxu0 0.0
    %3982 = vmatpush1.msra.mxu0 0.0
    %3983 = vmatprep.subr.mxu0 0.0
    %3984 = vmatpush1.msra.mxu0 0.0
    %3985 = vmatprep.subr.mxu0 0.0
    %3986 = vmatpush1.msra.mxu0 0.0
    %3987 = vmatprep.subr.mxu0 0.0
    %3988 = vmatpush1.msra.mxu0 0.0
    %3989 = vmatprep.subr.mxu0 0.0
    %3990 = vmatpush1.msra.mxu0 0.0
    %3991 = vmatprep.subr.mxu0 0.0
    %3992 = vmatpush1.msra.mxu0 0.0
    %3993 = vmatprep.subr.mxu0 0.0
    %3994 = vmatpush1.msra.mxu0 0.0
    %3995 = vmatprep.subr.mxu0 0.0
    %3996 = vmatpush1.msra.mxu0 0.0
    %3997 = vmatprep.subr.mxu0 0.0
    %3998 = vmatpush1.msra.mxu0 0.0
    %3999 = vmatprep.subr.mxu0 0.0
    %4000 = vmatpush1.msra.mxu0 0.0
    %4001 = vmatprep.subr.mxu0 0.0
    %4002 = vmatpush1.msra.mxu0 0.0
    %4003 = vmatprep.subr.mxu0 0.0
    %4004 = vmatpush1.msra.mxu0 0.0
    %4005 = vmatprep.subr.mxu0 0.0
    %4006 = vmatpush1.msra.mxu0 0.0
    %4007 = vmatprep.subr.mxu0 0.0
    %4008 = vmatpush1.msra.mxu0 0.0
    %4009 = vmatprep.subr.mxu0 0.0
    %4010 = vmatpush1.msra.mxu0 0.0
    %4011 = vmatprep.subr.mxu0 0.0
    %4012 = vmatpush1.msra.mxu0 0.0
    %4013 = vmatprep.subr.mxu0 0.0
    %4014 = vmatpush1.msra.mxu0 0.0
    %4015 = vmatprep.subr.mxu0 0.0
    %4016 = vmatpush1.msra.mxu0 0.0
    %4017 = vmatprep.subr.mxu0 0.0
    %4018 = vmatpush1.msra.mxu0 0.0
    %4019 = vmatprep.subr.mxu0 0.0
    %4020 = vmatpush1.msra.mxu0 0.0
    %4021 = vmatprep.subr.mxu0 0.0
    %4022 = vmatpush1.msra.mxu0 0.0
    %4023 = vmatprep.subr.mxu0 0.0
    %4024 = vmatpush1.msra.mxu0 0.0
    %4025 = vmatprep.subr.mxu0 0.0
    %4026 = vmatpush1.msra.mxu0 0.0
    %4027 = vmatprep.subr.mxu0 0.0
    %4028 = vmatpush1.msra.mxu0 0.0
    %4029 = vmatprep.subr.mxu0 0.0
    %4030 = vmatpush1.msra.mxu0 0.0
    %4031 = vmatprep.subr.mxu0 0.0
    %4032 = vmatpush1.msra.mxu0 0.0
    %4033 = vmatprep.subr.mxu0 0.0
    %4034 = vmatpush1.msra.mxu0 0.0
    %4035 = vmatprep.subr.mxu0 0.0
    %4036 = vmatpush1.msra.mxu0 0.0
    %4037 = vmatprep.subr.mxu0 0.0
    %4038 = vmatpush1.msra.mxu0 0.0
    %4039 = vmatprep.subr.mxu0 0.0
    %4040 = vmatpush1.msra.mxu0 0.0
    %4041 = vmatprep.mubr.f32.mxu0 0.0
    %4042 = vmatmul.mubr.f32.gmra.mrb[0].mxu0 %v3969
    %v4043 = vpop.f32.mrb[0].mxu0
    %v4044 = vadd.f32 0.0, %v4043
    %v4045 = vpop.f32.mrb[0].mxu0
    %4046 = vmatprep.mubr.f32.mxu0 0.0
    %4047 = vmatmul.mubr.f32.gmra.mrb[0].mxu0 %v3972
    %v4048 = vpop.f32.mrb[0].mxu0
    %v4049 = vadd.f32 0.0, %v4048
    %v4050 = vpop.f32.mrb[0].mxu0
    %4051 = vdwg.mxu0
    %v4053 = vsel %vm3974, %v3964, 0
    %4055 = vmatprep.subr.mxu0 0.0
    %4056 = vmatpush1.msra.mxu0 %v3959
    %4057 = vmatprep.subr.mxu0 0.0
    %4058 = vmatpush1.msra.mxu0 %v4053
    %4059 = vmatprep.subr.mxu0 0.0
    %4060 = vmatpush1.msra.mxu0 0.0
    %4061 = vmatprep.subr.mxu0 0.0
    %4062 = vmatpush1.msra.mxu0 0.0
    %4063 = vmatprep.subr.mxu0 0.0
    %4064 = vmatpush1.msra.mxu0 0.0
    %4065 = vmatprep.subr.mxu0 0.0
    %4066 = vmatpush1.msra.mxu0 0.0
    %4067 = vmatprep.subr.mxu0 0.0
    %4068 = vmatpush1.msra.mxu0 0.0
    %4069 = vmatprep.subr.mxu0 0.0
    %4070 = vmatpush1.msra.mxu0 0.0
    %4071 = vmatprep.subr.mxu0 0.0
    %4072 = vmatpush1.msra.mxu0 0.0
    %4073 = vmatprep.subr.mxu0 0.0
    %4074 = vmatpush1.msra.mxu0 0.0
    %4075 = vmatprep.subr.mxu0 0.0
    %4076 = vmatpush1.msra.mxu0 0.0
    %4077 = vmatprep.subr.mxu0 0.0
    %4078 = vmatpush1.msra.mxu0 0.0
    %4079 = vmatprep.subr.mxu0 0.0
    %4080 = vmatpush1.msra.mxu0 0.0
    %4081 = vmatprep.subr.mxu0 0.0
    %4082 = vmatpush1.msra.mxu0 0.0
    %4083 = vmatprep.subr.mxu0 0.0
    %4084 = vmatpush1.msra.mxu0 0.0
    %4085 = vmatprep.subr.mxu0 0.0
    %4086 = vmatpush1.msra.mxu0 0.0
    %4087 = vmatprep.subr.mxu0 0.0
    %4088 = vmatpush1.msra.mxu0 0.0
    %4089 = vmatprep.subr.mxu0 0.0
    %4090 = vmatpush1.msra.mxu0 0.0
    %4091 = vmatprep.subr.mxu0 0.0
    %4092 = vmatpush1.msra.mxu0 0.0
    %4093 = vmatprep.subr.mxu0 0.0
    %4094 = vmatpush1.msra.mxu0 0.0
    %4095 = vmatprep.subr.mxu0 0.0
    %4096 = vmatpush1.msra.mxu0 0.0
    %4097 = vmatprep.subr.mxu0 0.0
    %4098 = vmatpush1.msra.mxu0 0.0
    %4099 = vmatprep.subr.mxu0 0.0
    %4100 = vmatpush1.msra.mxu0 0.0
    %4101 = vmatprep.subr.mxu0 0.0
    %4102 = vmatpush1.msra.mxu0 0.0
    %4103 = vmatprep.subr.mxu0 0.0
    %4104 = vmatpush1.msra.mxu0 0.0
    %4105 = vmatprep.subr.mxu0 0.0
    %4106 = vmatpush1.msra.mxu0 0.0
    %4107 = vmatprep.subr.mxu0 0.0
    %4108 = vmatpush1.msra.mxu0 0.0
    %4109 = vmatprep.subr.mxu0 0.0
    %4110 = vmatpush1.msra.mxu0 0.0
    %4111 = vmatprep.subr.mxu0 0.0
    %4112 = vmatpush1.msra.mxu0 0.0
    %4113 = vmatprep.subr.mxu0 0.0
    %4114 = vmatpush1.msra.mxu0 0.0
    %4115 = vmatprep.subr.mxu0 0.0
    %4116 = vmatpush1.msra.mxu0 0.0
    %4117 = vmatprep.subr.mxu0 0.0
    %4118 = vmatpush1.msra.mxu0 0.0
    %4119 = vmatprep.mubr.f32.mxu0 0.0
    %4120 = vmatmul.mubr.f32.gmra.mrb[0].mxu0 %v3969
    %v4121 = vpop.f32.mrb[0].mxu0
    %v4122 = vadd.f32 0.0, %v4121
    %v4123 = vpop.f32.mrb[0].mxu0
    %4124 = vmatprep.mubr.f32.mxu0 0.0
    %4125 = vmatmul.mubr.f32.gmra.mrb[0].mxu0 %v3972
    %v4126 = vpop.f32.mrb[0].mxu0
    %v4127 = vadd.f32 0.0, %v4126
    %v4128 = vpop.f32.mrb[0].mxu0
    %4129 = vdwg.mxu0
    %v4130 = vmax.f32 %v3841, %v3959
    %v4131 = vmax.f32 %v3842, %v3964
    %v4132 = vmax.f32 %v4044, %v4122
    %v4133 = vmax.f32 %v4049, %v4127
    %v4134 = vmax.f32 %v4130, %v4132
    %v4135 = vmax.f32 %v4131, %v4133
    %vm4136 = vcmp.eq.f32.partialorder %v3841, %v4134
    %vm4137 = vcmp.eq.f32.partialorder %v3842, %v4135
    %vm4138 = vcmp.ne.f32.partialorder %v3959, %v4134
    %vm4139 = vcmp.ne.f32.partialorder %v3964, %v4135
    %v4140 = vsel %vm3881, 1, 0
    %vm4141 = vcmp.eq.s32.totalorder %v4140, 1
    %vm4142 = vmor %vm4141, %vm4138
    %vm4143 = vmor %vm4141, %vm4139
    %vm4144 = vmand %vm4136, %vm4142
    %vm4145 = vmand %vm4137, %vm4143
    %vm4146 = vcmp.ne.f32.partialorder %v4044, %v4134
    %vm4147 = vcmp.ne.f32.partialorder %v4049, %v4135
    %vm4148 = vcmp.ne.f32.partialorder %v4122, %v4134
    %vm4149 = vcmp.ne.f32.partialorder %v4127, %v4135
    %vm4150 = vmand %vm4146, %vm4148
    %vm4151 = vmand %vm4147, %vm4149
    %v4152 = vsel %vm3884, 1, 0
    %v4153 = vsel %vm3885, 1, 0
    %vm4154 = vcmp.eq.s32.totalorder %v4152, 1
    %vm4155 = vcmp.eq.s32.totalorder %v4153, 1
    %vm4156 = vmor %vm4154, %vm4150
    %vm4157 = vmor %vm4155, %vm4151
    %vm4158 = vmand %vm4144, %vm4156
    %vm4159 = vmand %vm4145, %vm4157
    %v4160 = vsel %vm4158, %v3841, 0.0
    %v4161 = vsel %vm4159, %v3842, 0.0
    %v4163 = vsel %vm3469, %v3859, 0
    %v4166 = vsel %vm3469, %v3860, 0
    %4168 = vmatprep.subr.mxu0 0.0
    %4169 = vmatpush1.msra.mxu0 %v3863
    %4170 = vmatprep.subr.mxu0 0.0
    %4171 = vmatpush1.msra.mxu0 %v3864
    %4172 = vmatprep.subr.mxu0 0.0
    %4173 = vmatpush1.msra.mxu0 %v3865
    %4174 = vmatprep.subr.mxu0 0.0
    %4175 = vmatpush1.msra.mxu0 %v3866
    %4176 = vmatprep.subr.mxu0 0.0
    %4177 = vmatpush1.msra.mxu0 %v3867
    %4178 = vmatprep.subr.mxu0 0.0
    %4179 = vmatpush1.msra.mxu0 %v3868
    %4180 = vmatprep.subr.mxu0 0.0
    %4181 = vmatpush1.msra.mxu0 %v3869
    %4182 = vmatprep.subr.mxu0 0.0
    %4183 = vmatpush1.msra.mxu0 %v3870
    %4184 = vmatprep.subr.mxu0 0.0
    %4185 = vmatpush1.msra.mxu0 %v3871
    %4186 = vmatprep.subr.mxu0 0.0
    %4187 = vmatpush1.msra.mxu0 %v3872
    %4188 = vmatprep.subr.mxu0 0.0
    %4189 = vmatpush1.msra.mxu0 %v3873
    %4190 = vmatprep.subr.mxu0 0.0
    %4191 = vmatpush1.msra.mxu0 %v3874
    %4192 = vmatprep.subr.mxu0 0.0
    %4193 = vmatpush1.msra.mxu0 0.0
    %4194 = vmatprep.subr.mxu0 0.0
    %4195 = vmatpush1.msra.mxu0 0.0
    %4196 = vmatprep.subr.mxu0 0.0
    %4197 = vmatpush1.msra.mxu0 0.0
    %4198 = vmatprep.subr.mxu0 0.0
    %4199 = vmatpush1.msra.mxu0 0.0
    %4200 = vmatprep.subr.mxu0 0.0
    %4201 = vmatpush1.msra.mxu0 0.0
    %4202 = vmatprep.subr.mxu0 0.0
    %4203 = vmatpush1.msra.mxu0 0.0
    %4204 = vmatprep.subr.mxu0 0.0
    %4205 = vmatpush1.msra.mxu0 0.0
    %4206 = vmatprep.subr.mxu0 0.0
    %4207 = vmatpush1.msra.mxu0 0.0
    %4208 = vmatprep.subr.mxu0 0.0
    %4209 = vmatpush1.msra.mxu0 0.0
    %4210 = vmatprep.subr.mxu0 0.0
    %4211 = vmatpush1.msra.mxu0 0.0
    %4212 = vmatprep.subr.mxu0 0.0
    %4213 = vmatpush1.msra.mxu0 0.0
    %4214 = vmatprep.subr.mxu0 0.0
    %4215 = vmatpush1.msra.mxu0 0.0
    %4216 = vmatprep.subr.mxu0 0.0
    %4217 = vmatpush1.msra.mxu0 0.0
    %4218 = vmatprep.subr.mxu0 0.0
    %4219 = vmatpush1.msra.mxu0 0.0
    %4220 = vmatprep.subr.mxu0 0.0
    %4221 = vmatpush1.msra.mxu0 0.0
    %4222 = vmatprep.subr.mxu0 0.0
    %4223 = vmatpush1.msra.mxu0 0.0
    %4224 = vmatprep.subr.mxu0 0.0
    %4225 = vmatpush1.msra.mxu0 0.0
    %4226 = vmatprep.subr.mxu0 0.0
    %4227 = vmatpush1.msra.mxu0 0.0
    %4228 = vmatprep.subr.mxu0 0.0
    %4229 = vmatpush1.msra.mxu0 0.0
    %4230 = vmatprep.subr.mxu0 0.0
    %4231 = vmatpush1.msra.mxu0 0.0
    %4232 = vmatprep.mubr.f32.mxu0 0.0
    %4233 = vmatmul.mubr.f32.gmra.mrb[0].mxu0 %v4163
    %v4234 = vpop.f32.mrb[0].mxu0
    %v4235 = vadd.f32 0.0, %v4234
    %v4236 = vpop.f32.mrb[0].mxu0
    %4237 = vmatprep.mubr.f32.mxu0 0.0
    %4238 = vmatmul.mubr.f32.gmra.mrb[0].mxu0 %v4166
    %v4239 = vpop.f32.mrb[0].mxu0
    %v4240 = vadd.f32 0.0, %v4239
    %v4241 = vpop.f32.mrb[0].mxu0
    %4242 = vdwg.mxu0
    %v4243 = vsel %vm3974, %v3860, 0
    %4245 = vmatprep.subr.mxu0 0.0
    %4246 = vmatpush1.msra.mxu0 %v3859
    %4247 = vmatprep.subr.mxu0 0.0
    %4248 = vmatpush1.msra.mxu0 %v4243
    %4249 = vmatprep.subr.mxu0 0.0
    %4250 = vmatpush1.msra.mxu0 0.0
    %4251 = vmatprep.subr.mxu0 0.0
    %4252 = vmatpush1.msra.mxu0 0.0
    %4253 = vmatprep.subr.mxu0 0.0
    %4254 = vmatpush1.msra.mxu0 0.0
    %4255 = vmatprep.subr.mxu0 0.0
    %4256 = vmatpush1.msra.mxu0 0.0
    %4257 = vmatprep.subr.mxu0 0.0
    %4258 = vmatpush1.msra.mxu0 0.0
    %4259 = vmatprep.subr.mxu0 0.0
    %4260 = vmatpush1.msra.mxu0 0.0
    %4261 = vmatprep.subr.mxu0 0.0
    %4262 = vmatpush1.msra.mxu0 0.0
    %4263 = vmatprep.subr.mxu0 0.0
    %4264 = vmatpush1.msra.mxu0 0.0
    %4265 = vmatprep.subr.mxu0 0.0
    %4266 = vmatpush1.msra.mxu0 0.0
    %4267 = vmatprep.subr.mxu0 0.0
    %4268 = vmatpush1.msra.mxu0 0.0
    %4269 = vmatprep.subr.mxu0 0.0
    %4270 = vmatpush1.msra.mxu0 0.0
    %4271 = vmatprep.subr.mxu0 0.0
    %4272 = vmatpush1.msra.mxu0 0.0
    %4273 = vmatprep.subr.mxu0 0.0
    %4274 = vmatpush1.msra.mxu0 0.0
    %4275 = vmatprep.subr.mxu0 0.0
    %4276 = vmatpush1.msra.mxu0 0.0
    %4277 = vmatprep.subr.mxu0 0.0
    %4278 = vmatpush1.msra.mxu0 0.0
    %4279 = vmatprep.subr.mxu0 0.0
    %4280 = vmatpush1.msra.mxu0 0.0
    %4281 = vmatprep.subr.mxu0 0.0
    %4282 = vmatpush1.msra.mxu0 0.0
    %4283 = vmatprep.subr.mxu0 0.0
    %4284 = vmatpush1.msra.mxu0 0.0
    %4285 = vmatprep.subr.mxu0 0.0
    %4286 = vmatpush1.msra.mxu0 0.0
    %4287 = vmatprep.subr.mxu0 0.0
    %4288 = vmatpush1.msra.mxu0 0.0
    %4289 = vmatprep.subr.mxu0 0.0
    %4290 = vmatpush1.msra.mxu0 0.0
    %4291 = vmatprep.subr.mxu0 0.0
    %4292 = vmatpush1.msra.mxu0 0.0
    %4293 = vmatprep.subr.mxu0 0.0
    %4294 = vmatpush1.msra.mxu0 0.0
    %4295 = vmatprep.subr.mxu0 0.0
    %4296 = vmatpush1.msra.mxu0 0.0
    %4297 = vmatprep.subr.mxu0 0.0
    %4298 = vmatpush1.msra.mxu0 0.0
    %4299 = vmatprep.subr.mxu0 0.0
    %4300 = vmatpush1.msra.mxu0 0.0
    %4301 = vmatprep.subr.mxu0 0.0
    %4302 = vmatpush1.msra.mxu0 0.0
    %4303 = vmatprep.subr.mxu0 0.0
    %4304 = vmatpush1.msra.mxu0 0.0
    %4305 = vmatprep.subr.mxu0 0.0
    %4306 = vmatpush1.msra.mxu0 0.0
    %4307 = vmatprep.subr.mxu0 0.0
    %4308 = vmatpush1.msra.mxu0 0.0
    %4309 = vmatprep.mubr.f32.mxu0 0.0
    %4310 = vmatmul.mubr.f32.gmra.mrb[0].mxu0 %v3969
    %v4311 = vpop.f32.mrb[0].mxu0
    %v4312 = vadd.f32 0.0, %v4311
    %v4313 = vpop.f32.mrb[0].mxu0
    %4314 = vmatprep.mubr.f32.mxu0 0.0
    %4315 = vmatmul.mubr.f32.gmra.mrb[0].mxu0 %v3972
    %v4316 = vpop.f32.mrb[0].mxu0
    %v4317 = vadd.f32 0.0, %v4316
    %v4318 = vpop.f32.mrb[0].mxu0
    %4319 = vdwg.mxu0
    %v4321 = vsel %vm3974, %v4240, 0
    %4323 = vmatprep.subr.mxu0 0.0
    %4324 = vmatpush1.msra.mxu0 %v4235
    %4325 = vmatprep.subr.mxu0 0.0
    %4326 = vmatpush1.msra.mxu0 %v4321
    %4327 = vmatprep.subr.mxu0 0.0
    %4328 = vmatpush1.msra.mxu0 0.0
    %4329 = vmatprep.subr.mxu0 0.0
    %4330 = vmatpush1.msra.mxu0 0.0
    %4331 = vmatprep.subr.mxu0 0.0
    %4332 = vmatpush1.msra.mxu0 0.0
    %4333 = vmatprep.subr.mxu0 0.0
    %4334 = vmatpush1.msra.mxu0 0.0
    %4335 = vmatprep.subr.mxu0 0.0
    %4336 = vmatpush1.msra.mxu0 0.0
    %4337 = vmatprep.subr.mxu0 0.0
    %4338 = vmatpush1.msra.mxu0 0.0
    %4339 = vmatprep.subr.mxu0 0.0
    %4340 = vmatpush1.msra.mxu0 0.0
    %4341 = vmatprep.subr.mxu0 0.0
    %4342 = vmatpush1.msra.mxu0 0.0
    %4343 = vmatprep.subr.mxu0 0.0
    %4344 = vmatpush1.msra.mxu0 0.0
    %4345 = vmatprep.subr.mxu0 0.0
    %4346 = vmatpush1.msra.mxu0 0.0
    %4347 = vmatprep.subr.mxu0 0.0
    %4348 = vmatpush1.msra.mxu0 0.0
    %4349 = vmatprep.subr.mxu0 0.0
    %4350 = vmatpush1.msra.mxu0 0.0
    %4351 = vmatprep.subr.mxu0 0.0
    %4352 = vmatpush1.msra.mxu0 0.0
    %4353 = vmatprep.subr.mxu0 0.0
    %4354 = vmatpush1.msra.mxu0 0.0
    %4355 = vmatprep.subr.mxu0 0.0
    %4356 = vmatpush1.msra.mxu0 0.0
    %4357 = vmatprep.subr.mxu0 0.0
    %4358 = vmatpush1.msra.mxu0 0.0
    %4359 = vmatprep.subr.mxu0 0.0
    %4360 = vmatpush1.msra.mxu0 0.0
    %4361 = vmatprep.subr.mxu0 0.0
    %4362 = vmatpush1.msra.mxu0 0.0
    %4363 = vmatprep.subr.mxu0 0.0
    %4364 = vmatpush1.msra.mxu0 0.0
    %4365 = vmatprep.subr.mxu0 0.0
    %4366 = vmatpush1.msra.mxu0 0.0
    %4367 = vmatprep.subr.mxu0 0.0
    %4368 = vmatpush1.msra.mxu0 0.0
    %4369 = vmatprep.subr.mxu0 0.0
    %4370 = vmatpush1.msra.mxu0 0.0
    %4371 = vmatprep.subr.mxu0 0.0
    %4372 = vmatpush1.msra.mxu0 0.0
    %4373 = vmatprep.subr.mxu0 0.0
    %4374 = vmatpush1.msra.mxu0 0.0
    %4375 = vmatprep.subr.mxu0 0.0
    %4376 = vmatpush1.msra.mxu0 0.0
    %4377 = vmatprep.subr.mxu0 0.0
    %4378 = vmatpush1.msra.mxu0 0.0
    %4379 = vmatprep.subr.mxu0 0.0
    %4380 = vmatpush1.msra.mxu0 0.0
    %4381 = vmatprep.subr.mxu0 0.0
    %4382 = vmatpush1.msra.mxu0 0.0
    %4383 = vmatprep.subr.mxu0 0.0
    %4384 = vmatpush1.msra.mxu0 0.0
    %4385 = vmatprep.subr.mxu0 0.0
    %4386 = vmatpush1.msra.mxu0 0.0
    %4387 = vmatprep.mubr.f32.mxu0 0.0
    %4388 = vmatmul.mubr.f32.gmra.mrb[0].mxu0 %v3969
    %v4389 = vpop.f32.mrb[0].mxu0
    %v4390 = vadd.f32 0.0, %v4389
    %v4391 = vpop.f32.mrb[0].mxu0
    %4392 = vmatprep.mubr.f32.mxu0 0.0
    %4393 = vmatmul.mubr.f32.gmra.mrb[0].mxu0 %v3972
    %v4394 = vpop.f32.mrb[0].mxu0
    %v4395 = vadd.f32 0.0, %v4394
    %v4396 = vpop.f32.mrb[0].mxu0
    %4397 = vdwg.mxu0
    %v4398 = vmax.f32 %v3859, %v4235
    %v4399 = vmax.f32 %v3860, %v4240
    %v4400 = vmax.f32 %v4312, %v4390
    %v4401 = vmax.f32 %v4317, %v4395
    %v4402 = vmax.f32 %v4398, %v4400
    %v4403 = vmax.f32 %v4399, %v4401
    %vm4404 = vcmp.eq.f32.partialorder %v3859, %v4402
    %vm4405 = vcmp.eq.f32.partialorder %v3860, %v4403
    %vm4406 = vcmp.ne.f32.partialorder %v4235, %v4402
    %vm4407 = vcmp.ne.f32.partialorder %v4240, %v4403
    %vm4408 = vmor %vm4141, %vm4406
    %vm4409 = vmor %vm4141, %vm4407
    %vm4410 = vmand %vm4404, %vm4408
    %vm4411 = vmand %vm4405, %vm4409
    %vm4412 = vcmp.ne.f32.partialorder %v4312, %v4402
    %vm4413 = vcmp.ne.f32.partialorder %v4317, %v4403
    %vm4414 = vcmp.ne.f32.partialorder %v4390, %v4402
    %vm4415 = vcmp.ne.f32.partialorder %v4395, %v4403
    %vm4416 = vmand %vm4412, %vm4414
    %vm4417 = vmand %vm4413, %vm4415
    %vm4418 = vmor %vm4154, %vm4416
    %vm4419 = vmor %vm4155, %vm4417
    %vm4420 = vmand %vm4410, %vm4418
    %vm4421 = vmand %vm4411, %vm4419
    %v4422 = vsel %vm4420, %v3859, 0.0
    %v4423 = vsel %vm4421, %v3860, 0.0
    %v4424 = vld [vmem:[%s11] sm:$0xff]
    %v4425 = vld [vmem:[%s11 + $0x8] sm:$0x3f]
    %v4427 = vsel %vm3967, %v4424, 0
    %v4430 = vsel %vm3967, %v4425, 0
    %v4433 = vsel %vm3974, %v4161, 0
    %4435 = vmatprep.subr.mxu0 0.0
    %4436 = vmatpush1.msra.mxu0 %v4160
    %4437 = vmatprep.subr.mxu0 0.0
    %4438 = vmatpush1.msra.mxu0 %v4433
    %4439 = vmatprep.subr.mxu0 0.0
    %4440 = vmatpush1.msra.mxu0 0.0
    %4441 = vmatprep.subr.mxu0 0.0
    %4442 = vmatpush1.msra.mxu0 0.0
    %4443 = vmatprep.subr.mxu0 0.0
    %4444 = vmatpush1.msra.mxu0 0.0
    %4445 = vmatprep.subr.mxu0 0.0
    %4446 = vmatpush1.msra.mxu0 0.0
    %4447 = vmatprep.subr.mxu0 0.0
    %4448 = vmatpush1.msra.mxu0 0.0
    %4449 = vmatprep.subr.mxu0 0.0
    %4450 = vmatpush1.msra.mxu0 0.0
    %4451 = vmatprep.subr.mxu0 0.0
    %4452 = vmatpush1.msra.mxu0 0.0
    %4453 = vmatprep.subr.mxu0 0.0
    %4454 = vmatpush1.msra.mxu0 0.0
    %4455 = vmatprep.subr.mxu0 0.0
    %4456 = vmatpush1.msra.mxu0 0.0
    %4457 = vmatprep.subr.mxu0 0.0
    %4458 = vmatpush1.msra.mxu0 0.0
    %4459 = vmatprep.subr.mxu0 0.0
    %4460 = vmatpush1.msra.mxu0 0.0
    %4461 = vmatprep.subr.mxu0 0.0
    %4462 = vmatpush1.msra.mxu0 0.0
    %4463 = vmatprep.subr.mxu0 0.0
    %4464 = vmatpush1.msra.mxu0 0.0
    %4465 = vmatprep.subr.mxu0 0.0
    %4466 = vmatpush1.msra.mxu0 0.0
    %4467 = vmatprep.subr.mxu0 0.0
    %4468 = vmatpush1.msra.mxu0 0.0
    %4469 = vmatprep.subr.mxu0 0.0
    %4470 = vmatpush1.msra.mxu0 0.0
    %4471 = vmatprep.subr.mxu0 0.0
    %4472 = vmatpush1.msra.mxu0 0.0
    %4473 = vmatprep.subr.mxu0 0.0
    %4474 = vmatpush1.msra.mxu0 0.0
    %4475 = vmatprep.subr.mxu0 0.0
    %4476 = vmatpush1.msra.mxu0 0.0
    %4477 = vmatprep.subr.mxu0 0.0
    %4478 = vmatpush1.msra.mxu0 0.0
    %4479 = vmatprep.subr.mxu0 0.0
    %4480 = vmatpush1.msra.mxu0 0.0
    %4481 = vmatprep.subr.mxu0 0.0
    %4482 = vmatpush1.msra.mxu0 0.0
    %4483 = vmatprep.subr.mxu0 0.0
    %4484 = vmatpush1.msra.mxu0 0.0
    %4485 = vmatprep.subr.mxu0 0.0
    %4486 = vmatpush1.msra.mxu0 0.0
    %4487 = vmatprep.subr.mxu0 0.0
    %4488 = vmatpush1.msra.mxu0 0.0
    %4489 = vmatprep.subr.mxu0 0.0
    %4490 = vmatpush1.msra.mxu0 0.0
    %4491 = vmatprep.subr.mxu0 0.0
    %4492 = vmatpush1.msra.mxu0 0.0
    %4493 = vmatprep.subr.mxu0 0.0
    %4494 = vmatpush1.msra.mxu0 0.0
    %4495 = vmatprep.subr.mxu0 0.0
    %4496 = vmatpush1.msra.mxu0 0.0
    %4497 = vmatprep.subr.mxu0 0.0
    %4498 = vmatpush1.msra.mxu0 0.0
    %4499 = vmatprep.mubr.f32.mxu0 0.0
    %4500 = vmatmul.mubr.f32.gmra.mrb[0].mxu0 %v4427
    %v4501 = vpop.f32.mrb[0].mxu0
    %v4502 = vadd.f32 0.0, %v4501
    %v4503 = vpop.f32.mrb[0].mxu0
    %4504 = vmatprep.mubr.f32.mxu0 0.0
    %4505 = vmatmul.mubr.f32.gmra.mrb[0].mxu0 %v4430
    %v4506 = vpop.f32.mrb[0].mxu0
    %v4507 = vadd.f32 0.0, %v4506
    %v4508 = vpop.f32.mrb[0].mxu0
    %4509 = vdwg.mxu0
    %v4511 = vsel %vm3974, %v4423, 0
    %4513 = vmatprep.subr.mxu0 0.0
    %4514 = vmatpush1.msra.mxu0 %v4422
    %4515 = vmatprep.subr.mxu0 0.0
    %4516 = vmatpush1.msra.mxu0 %v4511
    %4517 = vmatprep.subr.mxu0 0.0
    %4518 = vmatpush1.msra.mxu0 0.0
    %4519 = vmatprep.subr.mxu0 0.0
    %4520 = vmatpush1.msra.mxu0 0.0
    %4521 = vmatprep.subr.mxu0 0.0
    %4522 = vmatpush1.msra.mxu0 0.0
    %4523 = vmatprep.subr.mxu0 0.0
    %4524 = vmatpush1.msra.mxu0 0.0
    %4525 = vmatprep.subr.mxu0 0.0
    %4526 = vmatpush1.msra.mxu0 0.0
    %4527 = vmatprep.subr.mxu0 0.0
    %4528 = vmatpush1.msra.mxu0 0.0
    %4529 = vmatprep.subr.mxu0 0.0
    %4530 = vmatpush1.msra.mxu0 0.0
    %4531 = vmatprep.subr.mxu0 0.0
    %4532 = vmatpush1.msra.mxu0 0.0
    %4533 = vmatprep.subr.mxu0 0.0
    %4534 = vmatpush1.msra.mxu0 0.0
    %4535 = vmatprep.subr.mxu0 0.0
    %4536 = vmatpush1.msra.mxu0 0.0
    %4537 = vmatprep.subr.mxu0 0.0
    %4538 = vmatpush1.msra.mxu0 0.0
    %4539 = vmatprep.subr.mxu0 0.0
    %4540 = vmatpush1.msra.mxu0 0.0
    %4541 = vmatprep.subr.mxu0 0.0
    %4542 = vmatpush1.msra.mxu0 0.0
    %4543 = vmatprep.subr.mxu0 0.0
    %4544 = vmatpush1.msra.mxu0 0.0
    %4545 = vmatprep.subr.mxu0 0.0
    %4546 = vmatpush1.msra.mxu0 0.0
    %4547 = vmatprep.subr.mxu0 0.0
    %4548 = vmatpush1.msra.mxu0 0.0
    %4549 = vmatprep.subr.mxu0 0.0
    %4550 = vmatpush1.msra.mxu0 0.0
    %4551 = vmatprep.subr.mxu0 0.0
    %4552 = vmatpush1.msra.mxu0 0.0
    %4553 = vmatprep.subr.mxu0 0.0
    %4554 = vmatpush1.msra.mxu0 0.0
    %4555 = vmatprep.subr.mxu0 0.0
    %4556 = vmatpush1.msra.mxu0 0.0
    %4557 = vmatprep.subr.mxu0 0.0
    %4558 = vmatpush1.msra.mxu0 0.0
    %4559 = vmatprep.subr.mxu0 0.0
    %4560 = vmatpush1.msra.mxu0 0.0
    %4561 = vmatprep.subr.mxu0 0.0
    %4562 = vmatpush1.msra.mxu0 0.0
    %4563 = vmatprep.subr.mxu0 0.0
    %4564 = vmatpush1.msra.mxu0 0.0
    %4565 = vmatprep.subr.mxu0 0.0
    %4566 = vmatpush1.msra.mxu0 0.0
    %4567 = vmatprep.subr.mxu0 0.0
    %4568 = vmatpush1.msra.mxu0 0.0
    %4569 = vmatprep.subr.mxu0 0.0
    %4570 = vmatpush1.msra.mxu0 0.0
    %4571 = vmatprep.subr.mxu0 0.0
    %4572 = vmatpush1.msra.mxu0 0.0
    %4573 = vmatprep.subr.mxu0 0.0
    %4574 = vmatpush1.msra.mxu0 0.0
    %4575 = vmatprep.subr.mxu0 0.0
    %4576 = vmatpush1.msra.mxu0 0.0
    %4577 = vmatprep.mubr.f32.mxu0 0.0
    %4578 = vmatmul.mubr.f32.gmra.mrb[0].mxu0 %v4427
    %v4579 = vpop.f32.mrb[0].mxu0
    %v4580 = vadd.f32 0.0, %v4579
    %v4581 = vpop.f32.mrb[0].mxu0
    %4582 = vmatprep.mubr.f32.mxu0 0.0
    %4583 = vmatmul.mubr.f32.gmra.mrb[0].mxu0 %v4430
    %v4584 = vpop.f32.mrb[0].mxu0
    %v4585 = vadd.f32 0.0, %v4584
    %v4586 = vpop.f32.mrb[0].mxu0
    %4587 = vdwg.mxu0
    %v4588 = vld [vmem:[%s9] sm:$0xff]
    %v4589 = vld [vmem:[%s9 + $0x8] sm:$0xff]
    %v4590 = vld [vmem:[%s9 + $0x10] sm:$0xff]
    %v4591 = vld [vmem:[%s9 + $0x18] sm:$0xff]
    %v4592 = vld [vmem:[%s9 + $0x20] sm:$0xff]
    %v4593 = vld [vmem:[%s9 + $0x28] sm:$0xff]
    %v4594 = vld [vmem:[%s9 + $0x30] sm:$0xff]
    %v4595 = vld [vmem:[%s9 + $0x38] sm:$0xff]
    %v4596 = vld [vmem:[%s9 + $0x40] sm:$0xff]
    %v4597 = vld [vmem:[%s9 + $0x48] sm:$0xff]
    %v4598 = vld [vmem:[%s9 + $0x50] sm:$0xff]
    %v4599 = vld [vmem:[%s9 + $0x58] sm:$0xff]
    %v4600 = vld [vmem:[%s9 + $0x60] sm:$0xff]
    %v4601 = vld [vmem:[%s9 + $0x68] sm:$0xff]
    %v4602 = vld [vmem:[%s9 + $0x70] sm:$0xff]
    %v4603 = vld [vmem:[%s9 + $0x78] sm:$0xff]
    %v4604 = vld [vmem:[%s9 + $0x80] sm:$0xff]
    %v4605 = vld [vmem:[%s9 + $0x88] sm:$0xff]
    %v4606 = vld [vmem:[%s9 + $0x90] sm:$0xff]
    %v4607 = vld [vmem:[%s9 + $0x98] sm:$0xff]
    %v4608 = vld [vmem:[%s9 + $0xa0] sm:$0xff]
    %v4609 = vld [vmem:[%s9 + $0xa8] sm:$0xff]
    %v4610 = vld [vmem:[%s9 + $0xb0] sm:$0xff]
    %v4611 = vld [vmem:[%s9 + $0xb8] sm:$0xff]
    %v4612 = vld [vmem:[%s9 + $0xc0] sm:$0xff]
    %v4613 = vld [vmem:[%s9 + $0xc8] sm:$0xff]
    %v4614 = vld [vmem:[%s9 + $0xd0] sm:$0xff]
    %v4615 = vld [vmem:[%s9 + $0xd8] sm:$0xff]
    %v4616 = vld [vmem:[%s9 + $0xe0] sm:$0xff]
    %v4617 = vld [vmem:[%s9 + $0xe8] sm:$0xff]
    %v4618 = vld [vmem:[%s9 + $0xf0] sm:$0xff]
    %v4619 = vld [vmem:[%s9 + $0xf8] sm:$0xff]
    %v4620 = vld [vmem:[%s9 + $0x100] sm:$0xff]
    %v4621 = vld [vmem:[%s9 + $0x108] sm:$0xff]
    %v4622 = vld [vmem:[%s9 + $0x110] sm:$0xff]
    %v4623 = vld [vmem:[%s9 + $0x118] sm:$0xff]
    %v4624 = vld [vmem:[%s9 + $0x120] sm:$0xff]
    %v4625 = vld [vmem:[%s9 + $0x128] sm:$0xff]
    %v4626 = vld [vmem:[%s9 + $0x130] sm:$0xff]
    %v4627 = vld [vmem:[%s9 + $0x138] sm:$0xff]
    %v4628 = vld [vmem:[%s9 + $0x140] sm:$0xff]
    %v4629 = vld [vmem:[%s9 + $0x148] sm:$0xff]
    %v4630 = vld [vmem:[%s9 + $0x150] sm:$0xff]
    %v4631 = vld [vmem:[%s9 + $0x158] sm:$0xff]
    %v4632 = vld [vmem:[%s9 + $0x160] sm:$0xff]
    %v4633 = vld [vmem:[%s9 + $0x168] sm:$0xff]
    %v4634 = vld [vmem:[%s9 + $0x170] sm:$0xff]
    %v4635 = vld [vmem:[%s9 + $0x178] sm:$0xff]
    %s4636 = scalar_lea.vmem %s9, 384
    %v4637 = vld [vmem:[%s4636] sm:$0xff]
    %v4638 = vld [vmem:[%s4636 + $0x8] sm:$0xff]
    %v4639 = vld [vmem:[%s4636 + $0x10] sm:$0xff]
    %v4640 = vld [vmem:[%s4636 + $0x18] sm:$0xff]
    %v4641 = vld [vmem:[%s4636 + $0x20] sm:$0xff]
    %v4642 = vld [vmem:[%s4636 + $0x28] sm:$0xff]
    %v4643 = vld [vmem:[%s4636 + $0x30] sm:$0xff]
    %v4644 = vld [vmem:[%s4636 + $0x38] sm:$0xff]
    %v4645 = vld [vmem:[%s4636 + $0x40] sm:$0xff]
    %v4646 = vld [vmem:[%s4636 + $0x48] sm:$0xff]
    %v4647 = vld [vmem:[%s4636 + $0x50] sm:$0xff]
    %v4648 = vld [vmem:[%s4636 + $0x58] sm:$0xff]
    %v4649 = vld [vmem:[%s4636 + $0x60] sm:$0xff]
    %v4650 = vld [vmem:[%s4636 + $0x68] sm:$0xff]
    %v4651 = vld [vmem:[%s4636 + $0x70] sm:$0xff]
    %v4652 = vld [vmem:[%s4636 + $0x78] sm:$0xff]
    %v4653 = vld [vmem:[%s4636 + $0x80] sm:$0xff]
    %v4654 = vld [vmem:[%s4636 + $0x88] sm:$0xff]
    %v4655 = vld [vmem:[%s4636 + $0x90] sm:$0xff]
    %v4656 = vld [vmem:[%s4636 + $0x98] sm:$0xff]
    %v4657 = vld [vmem:[%s4636 + $0xa0] sm:$0xff]
    %v4658 = vld [vmem:[%s4636 + $0xa8] sm:$0xff]
    %v4659 = vld [vmem:[%s4636 + $0xb0] sm:$0xff]
    %v4660 = vld [vmem:[%s4636 + $0xb8] sm:$0xff]
    %v4661 = vld [vmem:[%s4636 + $0xc0] sm:$0xff]
    %v4662 = vld [vmem:[%s4636 + $0xc8] sm:$0xff]
    %v4663 = vld [vmem:[%s4636 + $0xd0] sm:$0xff]
    %v4664 = vld [vmem:[%s4636 + $0xd8] sm:$0xff]
    %v4665 = vld [vmem:[%s4636 + $0xe0] sm:$0xff]
    %v4666 = vld [vmem:[%s4636 + $0xe8] sm:$0xff]
    %v4667 = vld [vmem:[%s4636 + $0xf0] sm:$0xff]
    %v4668 = vld [vmem:[%s4636 + $0xf8] sm:$0xff]
    %v4669 = vld [vmem:[%s4636 + $0x100] sm:$0xff]
    %v4670 = vld [vmem:[%s4636 + $0x108] sm:$0xff]
    %v4671 = vld [vmem:[%s4636 + $0x110] sm:$0xff]
    %v4672 = vld [vmem:[%s4636 + $0x118] sm:$0xff]
    %v4673 = vld [vmem:[%s4636 + $0x120] sm:$0xff]
    %v4674 = vld [vmem:[%s4636 + $0x128] sm:$0xff]
    %v4675 = vld [vmem:[%s4636 + $0x130] sm:$0xff]
    %v4676 = vld [vmem:[%s4636 + $0x138] sm:$0xff]
    %v4677 = vld [vmem:[%s4636 + $0x140] sm:$0xff]
    %v4678 = vld [vmem:[%s4636 + $0x148] sm:$0xff]
    %v4679 = vld [vmem:[%s4636 + $0x150] sm:$0xff]
    %v4680 = vld [vmem:[%s4636 + $0x158] sm:$0xff]
    %v4681 = vld [vmem:[%s4636 + $0x160] sm:$0xff]
    %v4682 = vld [vmem:[%s4636 + $0x168] sm:$0xff]
    %v4683 = vld [vmem:[%s4636 + $0x170] sm:$0xff]
    %v4684 = vld [vmem:[%s4636 + $0x178] sm:$0xff]
    %v4687 = vrot.slane %v4502, 1
    %v4688 = vrot.slane %v4507, 1
    %v4689 = vsel %vm94, %v4687, %v4688
    %v4690 = vsel %vm3469, %v4689, 0
    %v4692 = vsel %vm3469, %v4688, 0
    %4694 = vmatprep.subr.mxu0 %v4638
    %4695 = vmatpush1.msra.mxu0 %v4637
    %4696 = vmatprep.subr.mxu0 %v4642
    %4697 = vmatpush1.msra.mxu0 %v4641
    %4698 = vmatprep.subr.mxu0 %v4646
    %4699 = vmatpush1.msra.mxu0 %v4645
    %4700 = vmatprep.subr.mxu0 %v4650
    %4701 = vmatpush1.msra.mxu0 %v4649
    %4702 = vmatprep.subr.mxu0 %v4654
    %4703 = vmatpush1.msra.mxu0 %v4653
    %4704 = vmatprep.subr.mxu0 %v4658
    %4705 = vmatpush1.msra.mxu0 %v4657
    %4706 = vmatprep.subr.mxu0 %v4662
    %4707 = vmatpush1.msra.mxu0 %v4661
    %4708 = vmatprep.subr.mxu0 %v4666
    %4709 = vmatpush1.msra.mxu0 %v4665
    %4710 = vmatprep.subr.mxu0 %v4670
    %4711 = vmatpush1.msra.mxu0 %v4669
    %4712 = vmatprep.subr.mxu0 %v4674
    %4713 = vmatpush1.msra.mxu0 %v4673
    %4714 = vmatprep.subr.mxu0 %v4678
    %4715 = vmatpush1.msra.mxu0 %v4677
    %4716 = vmatprep.subr.mxu0 %v4682
    %4717 = vmatpush1.msra.mxu0 %v4681
    %4718 = vmatprep.subr.mxu0 0.0
    %4719 = vmatpush1.msra.mxu0 0.0
    %4720 = vmatprep.subr.mxu0 0.0
    %4721 = vmatpush1.msra.mxu0 0.0
    %4722 = vmatprep.subr.mxu0 0.0
    %4723 = vmatpush1.msra.mxu0 0.0
    %4724 = vmatprep.subr.mxu0 0.0
    %4725 = vmatpush1.msra.mxu0 0.0
    %4726 = vmatprep.subr.mxu0 0.0
    %4727 = vmatpush1.msra.mxu0 0.0
    %4728 = vmatprep.subr.mxu0 0.0
    %4729 = vmatpush1.msra.mxu0 0.0
    %4730 = vmatprep.subr.mxu0 0.0
    %4731 = vmatpush1.msra.mxu0 0.0
    %4732 = vmatprep.subr.mxu0 0.0
    %4733 = vmatpush1.msra.mxu0 0.0
    %4734 = vmatprep.subr.mxu0 0.0
    %4735 = vmatpush1.msra.mxu0 0.0
    %4736 = vmatprep.subr.mxu0 0.0
    %4737 = vmatpush1.msra.mxu0 0.0
    %4738 = vmatprep.subr.mxu0 0.0
    %4739 = vmatpush1.msra.mxu0 0.0
    %4740 = vmatprep.subr.mxu0 0.0
    %4741 = vmatpush1.msra.mxu0 0.0
    %4742 = vmatprep.subr.mxu0 0.0
    %4743 = vmatpush1.msra.mxu0 0.0
    %4744 = vmatprep.subr.mxu0 0.0
    %4745 = vmatpush1.msra.mxu0 0.0
    %4746 = vmatprep.subr.mxu0 0.0
    %4747 = vmatpush1.msra.mxu0 0.0
    %4748 = vmatprep.subr.mxu0 0.0
    %4749 = vmatpush1.msra.mxu0 0.0
    %4750 = vmatprep.subr.mxu0 0.0
    %4751 = vmatpush1.msra.mxu0 0.0
    %4752 = vmatprep.subr.mxu0 0.0
    %4753 = vmatpush1.msra.mxu0 0.0
    %4754 = vmatprep.subr.mxu0 0.0
    %4755 = vmatpush1.msra.mxu0 0.0
    %4756 = vmatprep.subr.mxu0 0.0
    %4757 = vmatpush1.msra.mxu0 0.0
    %4758 = vmatprep.mubr.f32.mxu0 0.0
    %4759 = vmatmul.mubr.f32.gmra.mrb[0].mxu0 %v4690
    %v4760 = vpop.f32.mrb[0].mxu0
    %v4761 = vadd.f32 0.0, %v4760
    %v4762 = vpop.f32.mrb[0].mxu0
    %v4763 = vadd.f32 0.0, %v4762
    %4764 = vmatprep.mubr.f32.mxu0 0.0
    %4765 = vmatmul.mubr.f32.gmra.mrb[0].mxu0 %v4692
    %v4766 = vpop.f32.mrb[0].mxu0
    %v4767 = vadd.f32 0.0, %v4766
    %v4768 = vpop.f32.mrb[0].mxu0
    %v4769 = vadd.f32 0.0, %v4768
    %4770 = vdwg.mxu0
    %4771 = vmatprep.subr.mxu0 %v4640
    %4772 = vmatpush1.msra.mxu0 %v4639
    %4773 = vmatprep.subr.mxu0 %v4644
    %4774 = vmatpush1.msra.mxu0 %v4643
    %4775 = vmatprep.subr.mxu0 %v4648
    %4776 = vmatpush1.msra.mxu0 %v4647
    %4777 = vmatprep.subr.mxu0 %v4652
    %4778 = vmatpush1.msra.mxu0 %v4651
    %4779 = vmatprep.subr.mxu0 %v4656
    %4780 = vmatpush1.msra.mxu0 %v4655
    %4781 = vmatprep.subr.mxu0 %v4660
    %4782 = vmatpush1.msra.mxu0 %v4659
    %4783 = vmatprep.subr.mxu0 %v4664
    %4784 = vmatpush1.msra.mxu0 %v4663
    %4785 = vmatprep.subr.mxu0 %v4668
    %4786 = vmatpush1.msra.mxu0 %v4667
    %4787 = vmatprep.subr.mxu0 %v4672
    %4788 = vmatpush1.msra.mxu0 %v4671
    %4789 = vmatprep.subr.mxu0 %v4676
    %4790 = vmatpush1.msra.mxu0 %v4675
    %4791 = vmatprep.subr.mxu0 %v4680
    %4792 = vmatpush1.msra.mxu0 %v4679
    %4793 = vmatprep.subr.mxu0 %v4684
    %4794 = vmatpush1.msra.mxu0 %v4683
    %4795 = vmatprep.subr.mxu0 0.0
    %4796 = vmatpush1.msra.mxu0 0.0
    %4797 = vmatprep.subr.mxu0 0.0
    %4798 = vmatpush1.msra.mxu0 0.0
    %4799 = vmatprep.subr.mxu0 0.0
    %4800 = vmatpush1.msra.mxu0 0.0
    %4801 = vmatprep.subr.mxu0 0.0
    %4802 = vmatpush1.msra.mxu0 0.0
    %4803 = vmatprep.subr.mxu0 0.0
    %4804 = vmatpush1.msra.mxu0 0.0
    %4805 = vmatprep.subr.mxu0 0.0
    %4806 = vmatpush1.msra.mxu0 0.0
    %4807 = vmatprep.subr.mxu0 0.0
    %4808 = vmatpush1.msra.mxu0 0.0
    %4809 = vmatprep.subr.mxu0 0.0
    %4810 = vmatpush1.msra.mxu0 0.0
    %4811 = vmatprep.subr.mxu0 0.0
    %4812 = vmatpush1.msra.mxu0 0.0
    %4813 = vmatprep.subr.mxu0 0.0
    %4814 = vmatpush1.msra.mxu0 0.0
    %4815 = vmatprep.subr.mxu0 0.0
    %4816 = vmatpush1.msra.mxu0 0.0
    %4817 = vmatprep.subr.mxu0 0.0
    %4818 = vmatpush1.msra.mxu0 0.0
    %4819 = vmatprep.subr.mxu0 0.0
    %4820 = vmatpush1.msra.mxu0 0.0
    %4821 = vmatprep.subr.mxu0 0.0
    %4822 = vmatpush1.msra.mxu0 0.0
    %4823 = vmatprep.subr.mxu0 0.0
    %4824 = vmatpush1.msra.mxu0 0.0
    %4825 = vmatprep.subr.mxu0 0.0
    %4826 = vmatpush1.msra.mxu0 0.0
    %4827 = vmatprep.subr.mxu0 0.0
    %4828 = vmatpush1.msra.mxu0 0.0
    %4829 = vmatprep.subr.mxu0 0.0
    %4830 = vmatpush1.msra.mxu0 0.0
    %4831 = vmatprep.subr.mxu0 0.0
    %4832 = vmatpush1.msra.mxu0 0.0
    %4833 = vmatprep.subr.mxu0 0.0
    %4834 = vmatpush1.msra.mxu0 0.0
    %4835 = vmatprep.mubr.f32.mxu0 0.0
    %4836 = vmatmul.mubr.f32.gmra.mrb[0].mxu0 %v4690
    %v4837 = vpop.f32.mrb[0].mxu0
    %v4838 = vadd.f32 0.0, %v4837
    %v4839 = vpop.f32.mrb[0].mxu0
    %v4840 = vadd.f32 0.0, %v4839
    %4841 = vmatprep.mubr.f32.mxu0 0.0
    %4842 = vmatmul.mubr.f32.gmra.mrb[0].mxu0 %v4692
    %v4843 = vpop.f32.mrb[0].mxu0
    %v4844 = vadd.f32 0.0, %v4843
    %v4845 = vpop.f32.mrb[0].mxu0
    %v4846 = vadd.f32 0.0, %v4845
    %4847 = vdwg.mxu0
    %v4848 = vsel %vm3469, %v4502, 0
    %v4850 = vsel %vm3469, %v4507, 0
    %4852 = vmatprep.subr.mxu0 %v4589
    %4853 = vmatpush1.msra.mxu0 %v4588
    %4854 = vmatprep.subr.mxu0 %v4593
    %4855 = vmatpush1.msra.mxu0 %v4592
    %4856 = vmatprep.subr.mxu0 %v4597
    %4857 = vmatpush1.msra.mxu0 %v4596
    %4858 = vmatprep.subr.mxu0 %v4601
    %4859 = vmatpush1.msra.mxu0 %v4600
    %4860 = vmatprep.subr.mxu0 %v4605
    %4861 = vmatpush1.msra.mxu0 %v4604
    %4862 = vmatprep.subr.mxu0 %v4609
    %4863 = vmatpush1.msra.mxu0 %v4608
    %4864 = vmatprep.subr.mxu0 %v4613
    %4865 = vmatpush1.msra.mxu0 %v4612
    %4866 = vmatprep.subr.mxu0 %v4617
    %4867 = vmatpush1.msra.mxu0 %v4616
    %4868 = vmatprep.subr.mxu0 %v4621
    %4869 = vmatpush1.msra.mxu0 %v4620
    %4870 = vmatprep.subr.mxu0 %v4625
    %4871 = vmatpush1.msra.mxu0 %v4624
    %4872 = vmatprep.subr.mxu0 %v4629
    %4873 = vmatpush1.msra.mxu0 %v4628
    %4874 = vmatprep.subr.mxu0 %v4633
    %4875 = vmatpush1.msra.mxu0 %v4632
    %4876 = vmatprep.subr.mxu0 0.0
    %4877 = vmatpush1.msra.mxu0 0.0
    %4878 = vmatprep.subr.mxu0 0.0
    %4879 = vmatpush1.msra.mxu0 0.0
    %4880 = vmatprep.subr.mxu0 0.0
    %4881 = vmatpush1.msra.mxu0 0.0
    %4882 = vmatprep.subr.mxu0 0.0
    %4883 = vmatpush1.msra.mxu0 0.0
    %4884 = vmatprep.subr.mxu0 0.0
    %4885 = vmatpush1.msra.mxu0 0.0
    %4886 = vmatprep.subr.mxu0 0.0
    %4887 = vmatpush1.msra.mxu0 0.0
    %4888 = vmatprep.subr.mxu0 0.0
    %4889 = vmatpush1.msra.mxu0 0.0
    %4890 = vmatprep.subr.mxu0 0.0
    %4891 = vmatpush1.msra.mxu0 0.0
    %4892 = vmatprep.subr.mxu0 0.0
    %4893 = vmatpush1.msra.mxu0 0.0
    %4894 = vmatprep.subr.mxu0 0.0
    %4895 = vmatpush1.msra.mxu0 0.0
    %4896 = vmatprep.subr.mxu0 0.0
    %4897 = vmatpush1.msra.mxu0 0.0
    %4898 = vmatprep.subr.mxu0 0.0
    %4899 = vmatpush1.msra.mxu0 0.0
    %4900 = vmatprep.subr.mxu0 0.0
    %4901 = vmatpush1.msra.mxu0 0.0
    %4902 = vmatprep.subr.mxu0 0.0
    %4903 = vmatpush1.msra.mxu0 0.0
    %4904 = vmatprep.subr.mxu0 0.0
    %4905 = vmatpush1.msra.mxu0 0.0
    %4906 = vmatprep.subr.mxu0 0.0
    %4907 = vmatpush1.msra.mxu0 0.0
    %4908 = vmatprep.subr.mxu0 0.0
    %4909 = vmatpush1.msra.mxu0 0.0
    %4910 = vmatprep.subr.mxu0 0.0
    %4911 = vmatpush1.msra.mxu0 0.0
    %4912 = vmatprep.subr.mxu0 0.0
    %4913 = vmatpush1.msra.mxu0 0.0
    %4914 = vmatprep.subr.mxu0 0.0
    %4915 = vmatpush1.msra.mxu0 0.0
    %4916 = vmatprep.mubr.f32.mxu0 0.0
    %4917 = vmatmul.mubr.f32.gmra.mrb[0].mxu0 %v4848
    %v4918 = vpop.f32.mrb[0].mxu0
    %v4919 = vadd.f32 %v4761, %v4918
    %v4920 = vpop.f32.mrb[0].mxu0
    %v4921 = vadd.f32 %v4763, %v4920
    %4922 = vmatprep.mubr.f32.mxu0 0.0
    %4923 = vmatmul.mubr.f32.gmra.mrb[0].mxu0 %v4850
    %v4924 = vpop.f32.mrb[0].mxu0
    %v4925 = vadd.f32 %v4767, %v4924
    %v4926 = vpop.f32.mrb[0].mxu0
    %v4927 = vadd.f32 %v4769, %v4926
    %4928 = vdwg.mxu0
    %4929 = vmatprep.subr.mxu0 %v4591
    %4930 = vmatpush1.msra.mxu0 %v4590
    %4931 = vmatprep.subr.mxu0 %v4595
    %4932 = vmatpush1.msra.mxu0 %v4594
    %4933 = vmatprep.subr.mxu0 %v4599
    %4934 = vmatpush1.msra.mxu0 %v4598
    %4935 = vmatprep.subr.mxu0 %v4603
    %4936 = vmatpush1.msra.mxu0 %v4602
    %4937 = vmatprep.subr.mxu0 %v4607
    %4938 = vmatpush1.msra.mxu0 %v4606
    %4939 = vmatprep.subr.mxu0 %v4611
    %4940 = vmatpush1.msra.mxu0 %v4610
    %4941 = vmatprep.subr.mxu0 %v4615
    %4942 = vmatpush1.msra.mxu0 %v4614
    %4943 = vmatprep.subr.mxu0 %v4619
    %4944 = vmatpush1.msra.mxu0 %v4618
    %4945 = vmatprep.subr.mxu0 %v4623
    %4946 = vmatpush1.msra.mxu0 %v4622
    %4947 = vmatprep.subr.mxu0 %v4627
    %4948 = vmatpush1.msra.mxu0 %v4626
    %4949 = vmatprep.subr.mxu0 %v4631
    %4950 = vmatpush1.msra.mxu0 %v4630
    %4951 = vmatprep.subr.mxu0 %v4635
    %4952 = vmatpush1.msra.mxu0 %v4634
    %4953 = vmatprep.subr.mxu0 0.0
    %4954 = vmatpush1.msra.mxu0 0.0
    %4955 = vmatprep.subr.mxu0 0.0
    %4956 = vmatpush1.msra.mxu0 0.0
    %4957 = vmatprep.subr.mxu0 0.0
    %4958 = vmatpush1.msra.mxu0 0.0
    %4959 = vmatprep.subr.mxu0 0.0
    %4960 = vmatpush1.msra.mxu0 0.0
    %4961 = vmatprep.subr.mxu0 0.0
    %4962 = vmatpush1.msra.mxu0 0.0
    %4963 = vmatprep.subr.mxu0 0.0
    %4964 = vmatpush1.msra.mxu0 0.0
    %4965 = vmatprep.subr.mxu0 0.0
    %4966 = vmatpush1.msra.mxu0 0.0
    %4967 = vmatprep.subr.mxu0 0.0
    %4968 = vmatpush1.msra.mxu0 0.0
    %4969 = vmatprep.subr.mxu0 0.0
    %4970 = vmatpush1.msra.mxu0 0.0
    %4971 = vmatprep.subr.mxu0 0.0
    %4972 = vmatpush1.msra.mxu0 0.0
    %4973 = vmatprep.subr.mxu0 0.0
    %4974 = vmatpush1.msra.mxu0 0.0
    %4975 = vmatprep.subr.mxu0 0.0
    %4976 = vmatpush1.msra.mxu0 0.0
    %4977 = vmatprep.subr.mxu0 0.0
    %4978 = vmatpush1.msra.mxu0 0.0
    %4979 = vmatprep.subr.mxu0 0.0
    %4980 = vmatpush1.msra.mxu0 0.0
    %4981 = vmatprep.subr.mxu0 0.0
    %4982 = vmatpush1.msra.mxu0 0.0
    %4983 = vmatprep.subr.mxu0 0.0
    %4984 = vmatpush1.msra.mxu0 0.0
    %4985 = vmatprep.subr.mxu0 0.0
    %4986 = vmatpush1.msra.mxu0 0.0
    %4987 = vmatprep.subr.mxu0 0.0
    %4988 = vmatpush1.msra.mxu0 0.0
    %4989 = vmatprep.subr.mxu0 0.0
    %4990 = vmatpush1.msra.mxu0 0.0
    %4991 = vmatprep.subr.mxu0 0.0
    %4992 = vmatpush1.msra.mxu0 0.0
    %4993 = vmatprep.mubr.f32.mxu0 0.0
    %4994 = vmatmul.mubr.f32.gmra.mrb[0].mxu0 %v4848
    %v4995 = vpop.f32.mrb[0].mxu0
    %v4996 = vadd.f32 %v4838, %v4995
    %v4997 = vpop.f32.mrb[0].mxu0
    %v4998 = vadd.f32 %v4840, %v4997
    %4999 = vmatprep.mubr.f32.mxu0 0.0
    %5000 = vmatmul.mubr.f32.gmra.mrb[0].mxu0 %v4850
    %v5001 = vpop.f32.mrb[0].mxu0
    %v5002 = vadd.f32 %v4844, %v5001
    %v5003 = vpop.f32.mrb[0].mxu0
    %v5004 = vadd.f32 %v4846, %v5003
    %5005 = vdwg.mxu0
    %v5008 = vrot.slane %v4580, 1
    %v5009 = vrot.slane %v4585, 1
    %v5010 = vsel %vm94, %v5008, %v5009
    %v5011 = vsel %vm3469, %v5010, 0
    %v5013 = vsel %vm3469, %v5009, 0
    %5015 = vmatprep.subr.mxu0 %v4638
    %5016 = vmatpush1.msra.mxu0 %v4637
    %5017 = vmatprep.subr.mxu0 %v4642
    %5018 = vmatpush1.msra.mxu0 %v4641
    %5019 = vmatprep.subr.mxu0 %v4646
    %5020 = vmatpush1.msra.mxu0 %v4645
    %5021 = vmatprep.subr.mxu0 %v4650
    %5022 = vmatpush1.msra.mxu0 %v4649
    %5023 = vmatprep.subr.mxu0 %v4654
    %5024 = vmatpush1.msra.mxu0 %v4653
    %5025 = vmatprep.subr.mxu0 %v4658
    %5026 = vmatpush1.msra.mxu0 %v4657
    %5027 = vmatprep.subr.mxu0 %v4662
    %5028 = vmatpush1.msra.mxu0 %v4661
    %5029 = vmatprep.subr.mxu0 %v4666
    %5030 = vmatpush1.msra.mxu0 %v4665
    %5031 = vmatprep.subr.mxu0 %v4670
    %5032 = vmatpush1.msra.mxu0 %v4669
    %5033 = vmatprep.subr.mxu0 %v4674
    %5034 = vmatpush1.msra.mxu0 %v4673
    %5035 = vmatprep.subr.mxu0 %v4678
    %5036 = vmatpush1.msra.mxu0 %v4677
    %5037 = vmatprep.subr.mxu0 %v4682
    %5038 = vmatpush1.msra.mxu0 %v4681
    %5039 = vmatprep.subr.mxu0 0.0
    %5040 = vmatpush1.msra.mxu0 0.0
    %5041 = vmatprep.subr.mxu0 0.0
    %5042 = vmatpush1.msra.mxu0 0.0
    %5043 = vmatprep.subr.mxu0 0.0
    %5044 = vmatpush1.msra.mxu0 0.0
    %5045 = vmatprep.subr.mxu0 0.0
    %5046 = vmatpush1.msra.mxu0 0.0
    %5047 = vmatprep.subr.mxu0 0.0
    %5048 = vmatpush1.msra.mxu0 0.0
    %5049 = vmatprep.subr.mxu0 0.0
    %5050 = vmatpush1.msra.mxu0 0.0
    %5051 = vmatprep.subr.mxu0 0.0
    %5052 = vmatpush1.msra.mxu0 0.0
    %5053 = vmatprep.subr.mxu0 0.0
    %5054 = vmatpush1.msra.mxu0 0.0
    %5055 = vmatprep.subr.mxu0 0.0
    %5056 = vmatpush1.msra.mxu0 0.0
    %5057 = vmatprep.subr.mxu0 0.0
    %5058 = vmatpush1.msra.mxu0 0.0
    %5059 = vmatprep.subr.mxu0 0.0
    %5060 = vmatpush1.msra.mxu0 0.0
    %5061 = vmatprep.subr.mxu0 0.0
    %5062 = vmatpush1.msra.mxu0 0.0
    %5063 = vmatprep.subr.mxu0 0.0
    %5064 = vmatpush1.msra.mxu0 0.0
    %5065 = vmatprep.subr.mxu0 0.0
    %5066 = vmatpush1.msra.mxu0 0.0
    %5067 = vmatprep.subr.mxu0 0.0
    %5068 = vmatpush1.msra.mxu0 0.0
    %5069 = vmatprep.subr.mxu0 0.0
    %5070 = vmatpush1.msra.mxu0 0.0
    %5071 = vmatprep.subr.mxu0 0.0
    %5072 = vmatpush1.msra.mxu0 0.0
    %5073 = vmatprep.subr.mxu0 0.0
    %5074 = vmatpush1.msra.mxu0 0.0
    %5075 = vmatprep.subr.mxu0 0.0
    %5076 = vmatpush1.msra.mxu0 0.0
    %5077 = vmatprep.subr.mxu0 0.0
    %5078 = vmatpush1.msra.mxu0 0.0
    %5079 = vmatprep.mubr.f32.mxu0 0.0
    %5080 = vmatmul.mubr.f32.gmra.mrb[0].mxu0 %v5011
    %v5081 = vpop.f32.mrb[0].mxu0
    %v5082 = vadd.f32 0.0, %v5081
    %v5083 = vpop.f32.mrb[0].mxu0
    %v5084 = vadd.f32 0.0, %v5083
    %5085 = vmatprep.mubr.f32.mxu0 0.0
    %5086 = vmatmul.mubr.f32.gmra.mrb[0].mxu0 %v5013
    %v5087 = vpop.f32.mrb[0].mxu0
    %v5088 = vadd.f32 0.0, %v5087
    %v5089 = vpop.f32.mrb[0].mxu0
    %v5090 = vadd.f32 0.0, %v5089
    %5091 = vdwg.mxu0
    %5092 = vmatprep.subr.mxu0 %v4640
    %5093 = vmatpush1.msra.mxu0 %v4639
    %5094 = vmatprep.subr.mxu0 %v4644
    %5095 = vmatpush1.msra.mxu0 %v4643
    %5096 = vmatprep.subr.mxu0 %v4648
    %5097 = vmatpush1.msra.mxu0 %v4647
    %5098 = vmatprep.subr.mxu0 %v4652
    %5099 = vmatpush1.msra.mxu0 %v4651
    %5100 = vmatprep.subr.mxu0 %v4656
    %5101 = vmatpush1.msra.mxu0 %v4655
    %5102 = vmatprep.subr.mxu0 %v4660
    %5103 = vmatpush1.msra.mxu0 %v4659
    %5104 = vmatprep.subr.mxu0 %v4664
    %5105 = vmatpush1.msra.mxu0 %v4663
    %5106 = vmatprep.subr.mxu0 %v4668
    %5107 = vmatpush1.msra.mxu0 %v4667
    %5108 = vmatprep.subr.mxu0 %v4672
    %5109 = vmatpush1.msra.mxu0 %v4671
    %5110 = vmatprep.subr.mxu0 %v4676
    %5111 = vmatpush1.msra.mxu0 %v4675
    %5112 = vmatprep.subr.mxu0 %v4680
    %5113 = vmatpush1.msra.mxu0 %v4679
    %5114 = vmatprep.subr.mxu0 %v4684
    %5115 = vmatpush1.msra.mxu0 %v4683
    %5116 = vmatprep.subr.mxu0 0.0
    %5117 = vmatpush1.msra.mxu0 0.0
    %5118 = vmatprep.subr.mxu0 0.0
    %5119 = vmatpush1.msra.mxu0 0.0
    %5120 = vmatprep.subr.mxu0 0.0
    %5121 = vmatpush1.msra.mxu0 0.0
    %5122 = vmatprep.subr.mxu0 0.0
    %5123 = vmatpush1.msra.mxu0 0.0
    %5124 = vmatprep.subr.mxu0 0.0
    %5125 = vmatpush1.msra.mxu0 0.0
    %5126 = vmatprep.subr.mxu0 0.0
    %5127 = vmatpush1.msra.mxu0 0.0
    %5128 = vmatprep.subr.mxu0 0.0
    %5129 = vmatpush1.msra.mxu0 0.0
    %5130 = vmatprep.subr.mxu0 0.0
    %5131 = vmatpush1.msra.mxu0 0.0
    %5132 = vmatprep.subr.mxu0 0.0
    %5133 = vmatpush1.msra.mxu0 0.0
    %5134 = vmatprep.subr.mxu0 0.0
    %5135 = vmatpush1.msra.mxu0 0.0
    %5136 = vmatprep.subr.mxu0 0.0
    %5137 = vmatpush1.msra.mxu0 0.0
    %5138 = vmatprep.subr.mxu0 0.0
    %5139 = vmatpush1.msra.mxu0 0.0
    %5140 = vmatprep.subr.mxu0 0.0
    %5141 = vmatpush1.msra.mxu0 0.0
    %5142 = vmatprep.subr.mxu0 0.0
    %5143 = vmatpush1.msra.mxu0 0.0
    %5144 = vmatprep.subr.mxu0 0.0
    %5145 = vmatpush1.msra.mxu0 0.0
    %5146 = vmatprep.subr.mxu0 0.0
    %5147 = vmatpush1.msra.mxu0 0.0
    %5148 = vmatprep.subr.mxu0 0.0
    %5149 = vmatpush1.msra.mxu0 0.0
    %5150 = vmatprep.subr.mxu0 0.0
    %5151 = vmatpush1.msra.mxu0 0.0
    %5152 = vmatprep.subr.mxu0 0.0
    %5153 = vmatpush1.msra.mxu0 0.0
    %5154 = vmatprep.subr.mxu0 0.0
    %5155 = vmatpush1.msra.mxu0 0.0
    %5156 = vmatprep.mubr.f32.mxu0 0.0
    %5157 = vmatmul.mubr.f32.gmra.mrb[0].mxu0 %v5011
    %v5158 = vpop.f32.mrb[0].mxu0
    %v5159 = vadd.f32 0.0, %v5158
    %v5160 = vpop.f32.mrb[0].mxu0
    %v5161 = vadd.f32 0.0, %v5160
    %5162 = vmatprep.mubr.f32.mxu0 0.0
    %5163 = vmatmul.mubr.f32.gmra.mrb[0].mxu0 %v5013
    %v5164 = vpop.f32.mrb[0].mxu0
    %v5165 = vadd.f32 0.0, %v5164
    %v5166 = vpop.f32.mrb[0].mxu0
    %v5167 = vadd.f32 0.0, %v5166
    %5168 = vdwg.mxu0
    %v5169 = vsel %vm3469, %v4580, 0
    %v5171 = vsel %vm3469, %v4585, 0
    %5173 = vmatprep.subr.mxu0 %v4589
    %5174 = vmatpush1.msra.mxu0 %v4588
    %5175 = vmatprep.subr.mxu0 %v4593
    %5176 = vmatpush1.msra.mxu0 %v4592
    %5177 = vmatprep.subr.mxu0 %v4597
    %5178 = vmatpush1.msra.mxu0 %v4596
    %5179 = vmatprep.subr.mxu0 %v4601
    %5180 = vmatpush1.msra.mxu0 %v4600
    %5181 = vmatprep.subr.mxu0 %v4605
    %5182 = vmatpush1.msra.mxu0 %v4604
    %5183 = vmatprep.subr.mxu0 %v4609
    %5184 = vmatpush1.msra.mxu0 %v4608
    %5185 = vmatprep.subr.mxu0 %v4613
    %5186 = vmatpush1.msra.mxu0 %v4612
    %5187 = vmatprep.subr.mxu0 %v4617
    %5188 = vmatpush1.msra.mxu0 %v4616
    %5189 = vmatprep.subr.mxu0 %v4621
    %5190 = vmatpush1.msra.mxu0 %v4620
    %5191 = vmatprep.subr.mxu0 %v4625
    %5192 = vmatpush1.msra.mxu0 %v4624
    %5193 = vmatprep.subr.mxu0 %v4629
    %5194 = vmatpush1.msra.mxu0 %v4628
    %5195 = vmatprep.subr.mxu0 %v4633
    %5196 = vmatpush1.msra.mxu0 %v4632
    %5197 = vmatprep.subr.mxu0 0.0
    %5198 = vmatpush1.msra.mxu0 0.0
    %5199 = vmatprep.subr.mxu0 0.0
    %5200 = vmatpush1.msra.mxu0 0.0
    %5201 = vmatprep.subr.mxu0 0.0
    %5202 = vmatpush1.msra.mxu0 0.0
    %5203 = vmatprep.subr.mxu0 0.0
    %5204 = vmatpush1.msra.mxu0 0.0
    %5205 = vmatprep.subr.mxu0 0.0
    %5206 = vmatpush1.msra.mxu0 0.0
    %5207 = vmatprep.subr.mxu0 0.0
    %5208 = vmatpush1.msra.mxu0 0.0
    %5209 = vmatprep.subr.mxu0 0.0
    %5210 = vmatpush1.msra.mxu0 0.0
    %5211 = vmatprep.subr.mxu0 0.0
    %5212 = vmatpush1.msra.mxu0 0.0
    %5213 = vmatprep.subr.mxu0 0.0
    %5214 = vmatpush1.msra.mxu0 0.0
    %5215 = vmatprep.subr.mxu0 0.0
    %5216 = vmatpush1.msra.mxu0 0.0
    %5217 = vmatprep.subr.mxu0 0.0
    %5218 = vmatpush1.msra.mxu0 0.0
    %5219 = vmatprep.subr.mxu0 0.0
    %5220 = vmatpush1.msra.mxu0 0.0
    %5221 = vmatprep.subr.mxu0 0.0
    %5222 = vmatpush1.msra.mxu0 0.0
    %5223 = vmatprep.subr.mxu0 0.0
    %5224 = vmatpush1.msra.mxu0 0.0
    %5225 = vmatprep.subr.mxu0 0.0
    %5226 = vmatpush1.msra.mxu0 0.0
    %5227 = vmatprep.subr.mxu0 0.0
    %5228 = vmatpush1.msra.mxu0 0.0
    %5229 = vmatprep.subr.mxu0 0.0
    %5230 = vmatpush1.msra.mxu0 0.0
    %5231 = vmatprep.subr.mxu0 0.0
    %5232 = vmatpush1.msra.mxu0 0.0
    %5233 = vmatprep.subr.mxu0 0.0
    %5234 = vmatpush1.msra.mxu0 0.0
    %5235 = vmatprep.subr.mxu0 0.0
    %5236 = vmatpush1.msra.mxu0 0.0
    %5237 = vmatprep.mubr.f32.mxu0 0.0
    %5238 = vmatmul.mubr.f32.gmra.mrb[0].mxu0 %v5169
    %v5239 = vpop.f32.mrb[0].mxu0
    %v5240 = vadd.f32 %v5082, %v5239
    %v5241 = vpop.f32.mrb[0].mxu0
    %v5242 = vadd.f32 %v5084, %v5241
    %5243 = vmatprep.mubr.f32.mxu0 0.0
    %5244 = vmatmul.mubr.f32.gmra.mrb[0].mxu0 %v5171
    %v5245 = vpop.f32.mrb[0].mxu0
    %v5246 = vadd.f32 %v5088, %v5245
    %v5247 = vpop.f32.mrb[0].mxu0
    %v5248 = vadd.f32 %v5090, %v5247
    %5249 = vdwg.mxu0
    %5250 = vmatprep.subr.mxu0 %v4591
    %5251 = vmatpush1.msra.mxu0 %v4590
    %5252 = vmatprep.subr.mxu0 %v4595
    %5253 = vmatpush1.msra.mxu0 %v4594
    %5254 = vmatprep.subr.mxu0 %v4599
    %5255 = vmatpush1.msra.mxu0 %v4598
    %5256 = vmatprep.subr.mxu0 %v4603
    %5257 = vmatpush1.msra.mxu0 %v4602
    %5258 = vmatprep.subr.mxu0 %v4607
    %5259 = vmatpush1.msra.mxu0 %v4606
    %5260 = vmatprep.subr.mxu0 %v4611
    %5261 = vmatpush1.msra.mxu0 %v4610
    %5262 = vmatprep.subr.mxu0 %v4615
    %5263 = vmatpush1.msra.mxu0 %v4614
    %5264 = vmatprep.subr.mxu0 %v4619
    %5265 = vmatpush1.msra.mxu0 %v4618
    %5266 = vmatprep.subr.mxu0 %v4623
    %5267 = vmatpush1.msra.mxu0 %v4622
    %5268 = vmatprep.subr.mxu0 %v4627
    %5269 = vmatpush1.msra.mxu0 %v4626
    %5270 = vmatprep.subr.mxu0 %v4631
    %5271 = vmatpush1.msra.mxu0 %v4630
    %5272 = vmatprep.subr.mxu0 %v4635
    %5273 = vmatpush1.msra.mxu0 %v4634
    %5274 = vmatprep.subr.mxu0 0.0
    %5275 = vmatpush1.msra.mxu0 0.0
    %5276 = vmatprep.subr.mxu0 0.0
    %5277 = vmatpush1.msra.mxu0 0.0
    %5278 = vmatprep.subr.mxu0 0.0
    %5279 = vmatpush1.msra.mxu0 0.0
    %5280 = vmatprep.subr.mxu0 0.0
    %5281 = vmatpush1.msra.mxu0 0.0
    %5282 = vmatprep.subr.mxu0 0.0
    %5283 = vmatpush1.msra.mxu0 0.0
    %5284 = vmatprep.subr.mxu0 0.0
    %5285 = vmatpush1.msra.mxu0 0.0
    %5286 = vmatprep.subr.mxu0 0.0
    %5287 = vmatpush1.msra.mxu0 0.0
    %5288 = vmatprep.subr.mxu0 0.0
    %5289 = vmatpush1.msra.mxu0 0.0
    %5290 = vmatprep.subr.mxu0 0.0
    %5291 = vmatpush1.msra.mxu0 0.0
    %5292 = vmatprep.subr.mxu0 0.0
    %5293 = vmatpush1.msra.mxu0 0.0
    %5294 = vmatprep.subr.mxu0 0.0
    %5295 = vmatpush1.msra.mxu0 0.0
    %5296 = vmatprep.subr.mxu0 0.0
    %5297 = vmatpush1.msra.mxu0 0.0
    %5298 = vmatprep.subr.mxu0 0.0
    %5299 = vmatpush1.msra.mxu0 0.0
    %5300 = vmatprep.subr.mxu0 0.0
    %5301 = vmatpush1.msra.mxu0 0.0
    %5302 = vmatprep.subr.mxu0 0.0
    %5303 = vmatpush1.msra.mxu0 0.0
    %5304 = vmatprep.subr.mxu0 0.0
    %5305 = vmatpush1.msra.mxu0 0.0
    %5306 = vmatprep.subr.mxu0 0.0
    %5307 = vmatpush1.msra.mxu0 0.0
    %5308 = vmatprep.subr.mxu0 0.0
    %5309 = vmatpush1.msra.mxu0 0.0
    %5310 = vmatprep.subr.mxu0 0.0
    %5311 = vmatpush1.msra.mxu0 0.0
    %5312 = vmatprep.subr.mxu0 0.0
    %5313 = vmatpush1.msra.mxu0 0.0
    %5314 = vmatprep.mubr.f32.mxu0 0.0
    %5315 = vmatmul.mubr.f32.gmra.mrb[0].mxu0 %v5169
    %v5316 = vpop.f32.mrb[0].mxu0
    %v5317 = vadd.f32 %v5159, %v5316
    %v5318 = vpop.f32.mrb[0].mxu0
    %v5319 = vadd.f32 %v5161, %v5318
    %5320 = vmatprep.mubr.f32.mxu0 0.0
    %5321 = vmatmul.mubr.f32.gmra.mrb[0].mxu0 %v5171
    %v5322 = vpop.f32.mrb[0].mxu0
    %v5323 = vadd.f32 %v5165, %v5322
    %v5324 = vpop.f32.mrb[0].mxu0
    %v5325 = vadd.f32 %v5167, %v5324
    %5326 = vdwg.mxu0
    %v5327 = vld [vmem:[%s10] sm:$0x1]
    %v5329 = vsel %vm1501, %v5327, 0
    %5331 = vmatprep.subr.mxu0 %v1485
    %5332 = vmatpush1.msra.mxu0 %v1484
    %5333 = vmatprep.subr.mxu0 %v1489
    %5334 = vmatpush1.msra.mxu0 %v1488
    %5335 = vmatprep.subr.mxu0 %v1493
    %5336 = vmatpush1.msra.mxu0 %v1492
    %5337 = vmatprep.subr.mxu0 %v1497
    %5338 = vmatpush1.msra.mxu0 %v1496
    %5339 = vmatprep.subr.mxu0 0.0
    %5340 = vmatpush1.msra.mxu0 0.0
    %5341 = vmatprep.subr.mxu0 0.0
    %5342 = vmatpush1.msra.mxu0 0.0
    %5343 = vmatprep.subr.mxu0 0.0
    %5344 = vmatpush1.msra.mxu0 0.0
    %5345 = vmatprep.subr.mxu0 0.0
    %5346 = vmatpush1.msra.mxu0 0.0
    %5347 = vmatprep.subr.mxu0 0.0
    %5348 = vmatpush1.msra.mxu0 0.0
    %5349 = vmatprep.subr.mxu0 0.0
    %5350 = vmatpush1.msra.mxu0 0.0
    %5351 = vmatprep.subr.mxu0 0.0
    %5352 = vmatpush1.msra.mxu0 0.0
    %5353 = vmatprep.subr.mxu0 0.0
    %5354 = vmatpush1.msra.mxu0 0.0
    %5355 = vmatprep.subr.mxu0 0.0
    %5356 = vmatpush1.msra.mxu0 0.0
    %5357 = vmatprep.subr.mxu0 0.0
    %5358 = vmatpush1.msra.mxu0 0.0
    %5359 = vmatprep.subr.mxu0 0.0
    %5360 = vmatpush1.msra.mxu0 0.0
    %5361 = vmatprep.subr.mxu0 0.0
    %5362 = vmatpush1.msra.mxu0 0.0
    %5363 = vmatprep.subr.mxu0 0.0
    %5364 = vmatpush1.msra.mxu0 0.0
    %5365 = vmatprep.subr.mxu0 0.0
    %5366 = vmatpush1.msra.mxu0 0.0
    %5367 = vmatprep.subr.mxu0 0.0
    %5368 = vmatpush1.msra.mxu0 0.0
    %5369 = vmatprep.subr.mxu0 0.0
    %5370 = vmatpush1.msra.mxu0 0.0
    %5371 = vmatprep.subr.mxu0 0.0
    %5372 = vmatpush1.msra.mxu0 0.0
    %5373 = vmatprep.subr.mxu0 0.0
    %5374 = vmatpush1.msra.mxu0 0.0
    %5375 = vmatprep.subr.mxu0 0.0
    %5376 = vmatpush1.msra.mxu0 0.0
    %5377 = vmatprep.subr.mxu0 0.0
    %5378 = vmatpush1.msra.mxu0 0.0
    %5379 = vmatprep.subr.mxu0 0.0
    %5380 = vmatpush1.msra.mxu0 0.0
    %5381 = vmatprep.subr.mxu0 0.0
    %5382 = vmatpush1.msra.mxu0 0.0
    %5383 = vmatprep.subr.mxu0 0.0
    %5384 = vmatpush1.msra.mxu0 0.0
    %5385 = vmatprep.subr.mxu0 0.0
    %5386 = vmatpush1.msra.mxu0 0.0
    %5387 = vmatprep.subr.mxu0 0.0
    %5388 = vmatpush1.msra.mxu0 0.0
    %5389 = vmatprep.subr.mxu0 0.0
    %5390 = vmatpush1.msra.mxu0 0.0
    %5391 = vmatprep.subr.mxu0 0.0
    %5392 = vmatpush1.msra.mxu0 0.0
    %5393 = vmatprep.subr.mxu0 0.0
    %5394 = vmatpush1.msra.mxu0 0.0
    %5395 = vmatprep.mubr.f32.mxu0 0.0
    %5396 = vmatmul.mubr.f32.gmra.mrb[0].mxu0 %v5329
    %v5397 = vpop.f32.mrb[0].mxu0
    %v5398 = vadd.f32 0.0, %v5397
    %v5399 = vpop.f32.mrb[0].mxu0
    %v5400 = vadd.f32 0.0, %v5399
    %5401 = vdwg.mxu0
    %5402 = vmatprep.subr.mxu0 %v1487
    %5403 = vmatpush1.msra.mxu0 %v1486
    %5404 = vmatprep.subr.mxu0 %v1491
    %5405 = vmatpush1.msra.mxu0 %v1490
    %5406 = vmatprep.subr.mxu0 %v1495
    %5407 = vmatpush1.msra.mxu0 %v1494
    %5408 = vmatprep.subr.mxu0 %v1499
    %5409 = vmatpush1.msra.mxu0 %v1498
    %5410 = vmatprep.subr.mxu0 0.0
    %5411 = vmatpush1.msra.mxu0 0.0
    %5412 = vmatprep.subr.mxu0 0.0
    %5413 = vmatpush1.msra.mxu0 0.0
    %5414 = vmatprep.subr.mxu0 0.0
    %5415 = vmatpush1.msra.mxu0 0.0
    %5416 = vmatprep.subr.mxu0 0.0
    %5417 = vmatpush1.msra.mxu0 0.0
    %5418 = vmatprep.subr.mxu0 0.0
    %5419 = vmatpush1.msra.mxu0 0.0
    %5420 = vmatprep.subr.mxu0 0.0
    %5421 = vmatpush1.msra.mxu0 0.0
    %5422 = vmatprep.subr.mxu0 0.0
    %5423 = vmatpush1.msra.mxu0 0.0
    %5424 = vmatprep.subr.mxu0 0.0
    %5425 = vmatpush1.msra.mxu0 0.0
    %5426 = vmatprep.subr.mxu0 0.0
    %5427 = vmatpush1.msra.mxu0 0.0
    %5428 = vmatprep.subr.mxu0 0.0
    %5429 = vmatpush1.msra.mxu0 0.0
    %5430 = vmatprep.subr.mxu0 0.0
    %5431 = vmatpush1.msra.mxu0 0.0
    %5432 = vmatprep.subr.mxu0 0.0
    %5433 = vmatpush1.msra.mxu0 0.0
    %5434 = vmatprep.subr.mxu0 0.0
    %5435 = vmatpush1.msra.mxu0 0.0
    %5436 = vmatprep.subr.mxu0 0.0
    %5437 = vmatpush1.msra.mxu0 0.0
    %5438 = vmatprep.subr.mxu0 0.0
    %5439 = vmatpush1.msra.mxu0 0.0
    %5440 = vmatprep.subr.mxu0 0.0
    %5441 = vmatpush1.msra.mxu0 0.0
    %5442 = vmatprep.subr.mxu0 0.0
    %5443 = vmatpush1.msra.mxu0 0.0
    %5444 = vmatprep.subr.mxu0 0.0
    %5445 = vmatpush1.msra.mxu0 0.0
    %5446 = vmatprep.subr.mxu0 0.0
    %5447 = vmatpush1.msra.mxu0 0.0
    %5448 = vmatprep.subr.mxu0 0.0
    %5449 = vmatpush1.msra.mxu0 0.0
    %5450 = vmatprep.subr.mxu0 0.0
    %5451 = vmatpush1.msra.mxu0 0.0
    %5452 = vmatprep.subr.mxu0 0.0
    %5453 = vmatpush1.msra.mxu0 0.0
    %5454 = vmatprep.subr.mxu0 0.0
    %5455 = vmatpush1.msra.mxu0 0.0
    %5456 = vmatprep.subr.mxu0 0.0
    %5457 = vmatpush1.msra.mxu0 0.0
    %5458 = vmatprep.subr.mxu0 0.0
    %5459 = vmatpush1.msra.mxu0 0.0
    %5460 = vmatprep.subr.mxu0 0.0
    %5461 = vmatpush1.msra.mxu0 0.0
    %5462 = vmatprep.subr.mxu0 0.0
    %5463 = vmatpush1.msra.mxu0 0.0
    %5464 = vmatprep.subr.mxu0 0.0
    %5465 = vmatpush1.msra.mxu0 0.0
    %5466 = vmatprep.mubr.f32.mxu0 0.0
    %5467 = vmatmul.mubr.f32.gmra.mrb[0].mxu0 %v5329
    %v5468 = vpop.f32.mrb[0].mxu0
    %v5469 = vadd.f32 0.0, %v5468
    %v5470 = vpop.f32.mrb[0].mxu0
    %v5471 = vadd.f32 0.0, %v5470
    %5472 = vdwg.mxu0
    %v5473 = vlaneseq
    %v5474 = vshrl.u32 %v5473, 7
    %v5475 = vsub.s32 0, %v5474
    %v5476 = vrot.slane %v5398, %v5475
    %v5477 = vlaneseq
    %v5478 = vshrl.u32 %v5477, 7
    %v5479 = vsub.s32 0, %v5478
    %v5480 = vrot.slane %v5400, %v5479
    %v5481 = vlaneseq
    %v5482 = vshrl.u32 %v5481, 7
    %v5483 = vsub.s32 0, %v5482
    %v5484 = vrot.slane %v5469, %v5483
    %v5485 = vlaneseq
    %v5486 = vshrl.u32 %v5485, 7
    %v5487 = vsub.s32 0, %v5486
    %v5488 = vrot.slane %v5471, %v5487
    %v5489 = vadd.f32 %v4919, %v5476
    %v5490 = vadd.f32 %v4921, %v5480
    %v5491 = vadd.f32 %v4996, %v5484
    %v5492 = vadd.f32 %v4998, %v5488
    %v5493 = vadd.f32 %v4925, %v5476
    %v5494 = vadd.f32 %v4927, %v5480
    %v5495 = vadd.f32 %v5002, %v5484
    %v5496 = vadd.f32 %v5004, %v5488
    %v5497 = vadd.f32 %v5240, %v5476
    %v5498 = vadd.f32 %v5242, %v5480
    %v5499 = vadd.f32 %v5317, %v5484
    %v5500 = vadd.f32 %v5319, %v5488
    %v5501 = vadd.f32 %v5246, %v5476
    %v5502 = vadd.f32 %v5248, %v5480
    %v5503 = vadd.f32 %v5323, %v5484
    %v5504 = vadd.f32 %v5325, %v5488
    %v5505 = vsel %vm603, %v5493, 0.0
    %v5506 = vadd.f32 %v5489, %v5505
    %v5507 = vrot.slane %v5506, 4
    %v5508 = vadd.f32 %v5506, %v5507
    %v5509 = vrot.slane %v5508, 2
    %v5510 = vadd.f32 %v5508, %v5509
    %v5511 = vrot.slane %v5510, 1
    %v5512 = vadd.f32 %v5510, %v5511
    %v5513 = vsel %vm603, %v5494, 0.0
    %v5514 = vadd.f32 %v5490, %v5513
    %v5515 = vrot.slane %v5514, 4
    %v5516 = vadd.f32 %v5514, %v5515
    %v5517 = vrot.slane %v5516, 2
    %v5518 = vadd.f32 %v5516, %v5517
    %v5519 = vrot.slane %v5518, 1
    %v5520 = vadd.f32 %v5518, %v5519
    %v5521 = vsel %vm603, %v5495, 0.0
    %v5522 = vadd.f32 %v5491, %v5521
    %v5523 = vrot.slane %v5522, 4
    %v5524 = vadd.f32 %v5522, %v5523
    %v5525 = vrot.slane %v5524, 2
    %v5526 = vadd.f32 %v5524, %v5525
    %v5527 = vrot.slane %v5526, 1
    %v5528 = vadd.f32 %v5526, %v5527
    %v5529 = vsel %vm1501, %v5492, 0.0
    %v5530 = vsel %vm1704, %v5496, 0.0
    %v5531 = vadd.f32 %v5529, %v5530
    %v5532 = vrot.slane %v5531, 4
    %v5533 = vadd.f32 %v5531, %v5532
    %v5534 = vrot.slane %v5533, 2
    %v5535 = vadd.f32 %v5533, %v5534
    %v5536 = vrot.slane %v5535, 1
    %v5537 = vadd.f32 %v5535, %v5536
    %v5538 = vmul.f32 %v5489, %v5489
    %v5539 = vmul.f32 %v5490, %v5490
    %v5540 = vmul.f32 %v5491, %v5491
    %v5541 = vmul.f32 %v5492, %v5492
    %v5542 = vmul.f32 %v5493, %v5493
    %v5543 = vmul.f32 %v5494, %v5494
    %v5544 = vmul.f32 %v5495, %v5495
    %v5545 = vmul.f32 %v5496, %v5496
    %v5546 = vsel %vm603, %v5542, 0.0
    %v5547 = vadd.f32 %v5538, %v5546
    %v5548 = vrot.slane %v5547, 4
    %v5549 = vadd.f32 %v5547, %v5548
    %v5550 = vrot.slane %v5549, 2
    %v5551 = vadd.f32 %v5549, %v5550
    %v5552 = vrot.slane %v5551, 1
    %v5553 = vadd.f32 %v5551, %v5552
    %v5554 = vsel %vm603, %v5543, 0.0
    %v5555 = vadd.f32 %v5539, %v5554
    %v5556 = vrot.slane %v5555, 4
    %v5557 = vadd.f32 %v5555, %v5556
    %v5558 = vrot.slane %v5557, 2
    %v5559 = vadd.f32 %v5557, %v5558
    %v5560 = vrot.slane %v5559, 1
    %v5561 = vadd.f32 %v5559, %v5560
    %v5562 = vsel %vm603, %v5544, 0.0
    %v5563 = vadd.f32 %v5540, %v5562
    %v5564 = vrot.slane %v5563, 4
    %v5565 = vadd.f32 %v5563, %v5564
    %v5566 = vrot.slane %v5565, 2
    %v5567 = vadd.f32 %v5565, %v5566
    %v5568 = vrot.slane %v5567, 1
    %v5569 = vadd.f32 %v5567, %v5568
    %v5570 = vsel %vm1501, %v5541, 0.0
    %v5571 = vsel %vm1704, %v5545, 0.0
    %v5572 = vadd.f32 %v5570, %v5571
    %v5573 = vrot.slane %v5572, 4
    %v5574 = vadd.f32 %v5572, %v5573
    %v5575 = vrot.slane %v5574, 2
    %v5576 = vadd.f32 %v5574, %v5575
    %v5577 = vrot.slane %v5576, 1
    %v5578 = vadd.f32 %v5576, %v5577
    %v5579 = vsel %vm603, %v5501, 0.0
    %v5580 = vadd.f32 %v5497, %v5579
    %v5581 = vrot.slane %v5580, 4
    %v5582 = vadd.f32 %v5580, %v5581
    %v5583 = vrot.slane %v5582, 2
    %v5584 = vadd.f32 %v5582, %v5583
    %v5585 = vrot.slane %v5584, 1
    %v5586 = vadd.f32 %v5584, %v5585
    %v5587 = vsel %vm603, %v5502, 0.0
    %v5588 = vadd.f32 %v5498, %v5587
    %v5589 = vrot.slane %v5588, 4
    %v5590 = vadd.f32 %v5588, %v5589
    %v5591 = vrot.slane %v5590, 2
    %v5592 = vadd.f32 %v5590, %v5591
    %v5593 = vrot.slane %v5592, 1
    %v5594 = vadd.f32 %v5592, %v5593
    %v5595 = vsel %vm603, %v5503, 0.0
    %v5596 = vadd.f32 %v5499, %v5595
    %v5597 = vrot.slane %v5596, 4
    %v5598 = vadd.f32 %v5596, %v5597
    %v5599 = vrot.slane %v5598, 2
    %v5600 = vadd.f32 %v5598, %v5599
    %v5601 = vrot.slane %v5600, 1
    %v5602 = vadd.f32 %v5600, %v5601
    %v5603 = vsel %vm1501, %v5500, 0.0
    %v5604 = vsel %vm1704, %v5504, 0.0
    %v5605 = vadd.f32 %v5603, %v5604
    %v5606 = vrot.slane %v5605, 4
    %v5607 = vadd.f32 %v5605, %v5606
    %v5608 = vrot.slane %v5607, 2
    %v5609 = vadd.f32 %v5607, %v5608
    %v5610 = vrot.slane %v5609, 1
    %v5611 = vadd.f32 %v5609, %v5610
    %v5612 = vmul.f32 %v5497, %v5497
    %v5613 = vmul.f32 %v5498, %v5498
    %v5614 = vmul.f32 %v5499, %v5499
    %v5615 = vmul.f32 %v5500, %v5500
    %v5616 = vmul.f32 %v5501, %v5501
    %v5617 = vmul.f32 %v5502, %v5502
    %v5618 = vmul.f32 %v5503, %v5503
    %v5619 = vmul.f32 %v5504, %v5504
    %v5620 = vsel %vm603, %v5616, 0.0
    %v5621 = vadd.f32 %v5612, %v5620
    %v5622 = vrot.slane %v5621, 4
    %v5623 = vadd.f32 %v5621, %v5622
    %v5624 = vrot.slane %v5623, 2
    %v5625 = vadd.f32 %v5623, %v5624
    %v5626 = vrot.slane %v5625, 1
    %v5627 = vadd.f32 %v5625, %v5626
    %v5628 = vsel %vm603, %v5617, 0.0
    %v5629 = vadd.f32 %v5613, %v5628
    %v5630 = vrot.slane %v5629, 4
    %v5631 = vadd.f32 %v5629, %v5630
    %v5632 = vrot.slane %v5631, 2
    %v5633 = vadd.f32 %v5631, %v5632
    %v5634 = vrot.slane %v5633, 1
    %v5635 = vadd.f32 %v5633, %v5634
    %v5636 = vsel %vm603, %v5618, 0.0
    %v5637 = vadd.f32 %v5614, %v5636
    %v5638 = vrot.slane %v5637, 4
    %v5639 = vadd.f32 %v5637, %v5638
    %v5640 = vrot.slane %v5639, 2
    %v5641 = vadd.f32 %v5639, %v5640
    %v5642 = vrot.slane %v5641, 1
    %v5643 = vadd.f32 %v5641, %v5642
    %v5644 = vsel %vm1501, %v5615, 0.0
    %v5645 = vsel %vm1704, %v5619, 0.0
    %v5646 = vadd.f32 %v5644, %v5645
    %v5647 = vrot.slane %v5646, 4
    %v5648 = vadd.f32 %v5646, %v5647
    %v5649 = vrot.slane %v5648, 2
    %v5650 = vadd.f32 %v5648, %v5649
    %v5651 = vrot.slane %v5650, 1
    %v5652 = vadd.f32 %v5650, %v5651
    %v5653 = vadd.f32 %v5512, %v5586
    %v5654 = vadd.f32 %v5520, %v5594
    %v5655 = vadd.f32 %v5528, %v5602
    %v5656 = vadd.f32 %v5537, %v5611
    %v5657 = vadd.f32 %v5553, %v5627
    %v5658 = vadd.f32 %v5561, %v5635
    %v5659 = vadd.f32 %v5569, %v5643
    %v5660 = vadd.f32 %v5578, %v5652
    %v5662 = vsel %vm1501, %v5656, 0
    %5664 = vmatprep.subr.mxu0 0.0
    %5665 = vmatpush1.msra.mxu0 %v1432
    %5666 = vmatprep.subr.mxu0 0.0
    %5667 = vmatpush1.msra.mxu0 %v1433
    %5668 = vmatprep.subr.mxu0 0.0
    %5669 = vmatpush1.msra.mxu0 %v1434
    %5670 = vmatprep.subr.mxu0 0.0
    %5671 = vmatpush1.msra.mxu0 %v1435
    %5672 = vmatprep.subr.mxu0 0.0
    %5673 = vmatpush1.msra.mxu0 %v1436
    %5674 = vmatprep.subr.mxu0 0.0
    %5675 = vmatpush1.msra.mxu0 %v1437
    %5676 = vmatprep.subr.mxu0 0.0
    %5677 = vmatpush1.msra.mxu0 %v1438
    %5678 = vmatprep.subr.mxu0 0.0
    %5679 = vmatpush1.msra.mxu0 %v1439
    %5680 = vmatprep.subr.mxu0 0.0
    %5681 = vmatpush1.msra.mxu0 %v1440
    %5682 = vmatprep.subr.mxu0 0.0
    %5683 = vmatpush1.msra.mxu0 %v1441
    %5684 = vmatprep.subr.mxu0 0.0
    %5685 = vmatpush1.msra.mxu0 %v1442
    %5686 = vmatprep.subr.mxu0 0.0
    %5687 = vmatpush1.msra.mxu0 %v1443
    %5688 = vmatprep.subr.mxu0 0.0
    %5689 = vmatpush1.msra.mxu0 %v1444
    %5690 = vmatprep.subr.mxu0 0.0
    %5691 = vmatpush1.msra.mxu0 %v1445
    %5692 = vmatprep.subr.mxu0 0.0
    %5693 = vmatpush1.msra.mxu0 %v1446
    %5694 = vmatprep.subr.mxu0 0.0
    %5695 = vmatpush1.msra.mxu0 %v1447
    %5696 = vmatprep.subr.mxu0 0.0
    %5697 = vmatpush1.msra.mxu0 %v1448
    %5698 = vmatprep.subr.mxu0 0.0
    %5699 = vmatpush1.msra.mxu0 %v1449
    %5700 = vmatprep.subr.mxu0 0.0
    %5701 = vmatpush1.msra.mxu0 %v1450
    %5702 = vmatprep.subr.mxu0 0.0
    %5703 = vmatpush1.msra.mxu0 %v1451
    %5704 = vmatprep.subr.mxu0 0.0
    %5705 = vmatpush1.msra.mxu0 %v1452
    %5706 = vmatprep.subr.mxu0 0.0
    %5707 = vmatpush1.msra.mxu0 %v1453
    %5708 = vmatprep.subr.mxu0 0.0
    %5709 = vmatpush1.msra.mxu0 %v1454
    %5710 = vmatprep.subr.mxu0 0.0
    %5711 = vmatpush1.msra.mxu0 %v1455
    %5712 = vmatprep.subr.mxu0 0.0
    %5713 = vmatpush1.msra.mxu0 %v1456
    %5714 = vmatprep.subr.mxu0 0.0
    %5715 = vmatpush1.msra.mxu0 %v1457
    %5716 = vmatprep.subr.mxu0 0.0
    %5717 = vmatpush1.msra.mxu0 %v1458
    %5718 = vmatprep.subr.mxu0 0.0
    %5719 = vmatpush1.msra.mxu0 %v1459
    %5720 = vmatprep.subr.mxu0 0.0
    %5721 = vmatpush1.msra.mxu0 %v1460
    %5722 = vmatprep.subr.mxu0 0.0
    %5723 = vmatpush1.msra.mxu0 %v1461
    %5724 = vmatprep.subr.mxu0 0.0
    %5725 = vmatpush1.msra.mxu0 %v1462
    %5726 = vmatprep.subr.mxu0 0.0
    %5727 = vmatpush1.msra.mxu0 %v1463
    %5728 = vmatprep.mubr.f32.mxu0 %v5654
    %5729 = vmatmul.mubr.f32.gmra.mrb[0].mxu0 %v5653
    %v5730 = vpop.f32.mrb[0].mxu0
    %v5731 = vadd.f32 0.0, %v5730
    %v5732 = vpop.f32.mrb[0].mxu0
    %5733 = vdwg.mxu0
    %5734 = vmatprep.subr.mxu0 0.0
    %5735 = vmatpush1.msra.mxu0 %v1464
    %5736 = vmatprep.subr.mxu0 0.0
    %5737 = vmatpush1.msra.mxu0 %v1465
    %5738 = vmatprep.subr.mxu0 0.0
    %5739 = vmatpush1.msra.mxu0 %v1466
    %5740 = vmatprep.subr.mxu0 0.0
    %5741 = vmatpush1.msra.mxu0 %v1467
    %5742 = vmatprep.subr.mxu0 0.0
    %5743 = vmatpush1.msra.mxu0 %v1468
    %5744 = vmatprep.subr.mxu0 0.0
    %5745 = vmatpush1.msra.mxu0 %v1469
    %5746 = vmatprep.subr.mxu0 0.0
    %5747 = vmatpush1.msra.mxu0 %v1470
    %5748 = vmatprep.subr.mxu0 0.0
    %5749 = vmatpush1.msra.mxu0 %v1471
    %5750 = vmatprep.subr.mxu0 0.0
    %5751 = vmatpush1.msra.mxu0 %v1472
    %5752 = vmatprep.subr.mxu0 0.0
    %5753 = vmatpush1.msra.mxu0 %v1473
    %5754 = vmatprep.subr.mxu0 0.0
    %5755 = vmatpush1.msra.mxu0 %v1474
    %5756 = vmatprep.subr.mxu0 0.0
    %5757 = vmatpush1.msra.mxu0 %v1475
    %5758 = vmatprep.subr.mxu0 0.0
    %5759 = vmatpush1.msra.mxu0 %v1476
    %5760 = vmatprep.subr.mxu0 0.0
    %5761 = vmatpush1.msra.mxu0 %v1477
    %5762 = vmatprep.subr.mxu0 0.0
    %5763 = vmatpush1.msra.mxu0 %v1478
    %5764 = vmatprep.subr.mxu0 0.0
    %5765 = vmatpush1.msra.mxu0 %v1479
    %5766 = vmatprep.subr.mxu0 0.0
    %5767 = vmatpush1.msra.mxu0 %v1480
    %5768 = vmatprep.subr.mxu0 0.0
    %5769 = vmatpush1.msra.mxu0 %v1481
    %5770 = vmatprep.subr.mxu0 0.0
    %5771 = vmatpush1.msra.mxu0 %v1482
    %5772 = vmatprep.subr.mxu0 0.0
    %5773 = vmatpush1.msra.mxu0 %v1483
    %5774 = vmatprep.subr.mxu0 0.0
    %5775 = vmatpush1.msra.mxu0 0.0
    %5776 = vmatprep.subr.mxu0 0.0
    %5777 = vmatpush1.msra.mxu0 0.0
    %5778 = vmatprep.subr.mxu0 0.0
    %5779 = vmatpush1.msra.mxu0 0.0
    %5780 = vmatprep.subr.mxu0 0.0
    %5781 = vmatpush1.msra.mxu0 0.0
    %5782 = vmatprep.subr.mxu0 0.0
    %5783 = vmatpush1.msra.mxu0 0.0
    %5784 = vmatprep.subr.mxu0 0.0
    %5785 = vmatpush1.msra.mxu0 0.0
    %5786 = vmatprep.subr.mxu0 0.0
    %5787 = vmatpush1.msra.mxu0 0.0
    %5788 = vmatprep.subr.mxu0 0.0
    %5789 = vmatpush1.msra.mxu0 0.0
    %5790 = vmatprep.subr.mxu0 0.0
    %5791 = vmatpush1.msra.mxu0 0.0
    %5792 = vmatprep.subr.mxu0 0.0
    %5793 = vmatpush1.msra.mxu0 0.0
    %5794 = vmatprep.subr.mxu0 0.0
    %5795 = vmatpush1.msra.mxu0 0.0
    %5796 = vmatprep.subr.mxu0 0.0
    %5797 = vmatpush1.msra.mxu0 0.0
    %5798 = vmatprep.mubr.f32.mxu0 %v5662
    %5799 = vmatmul.mubr.f32.gmra.mrb[0].mxu0 %v5655
    %v5800 = vpop.f32.mrb[0].mxu0
    %v5801 = vadd.f32 %v5731, %v5800
    %v5802 = vpop.f32.mrb[0].mxu0
    %5803 = vdwg.mxu0
    %v5804 = vmul.f32 %v5801, 0.00295858
    %v5806 = vsel %vm1501, %v5660, 0
    %5808 = vmatprep.subr.mxu0 0.0
    %5809 = vmatpush1.msra.mxu0 %v1432
    %5810 = vmatprep.subr.mxu0 0.0
    %5811 = vmatpush1.msra.mxu0 %v1433
    %5812 = vmatprep.subr.mxu0 0.0
    %5813 = vmatpush1.msra.mxu0 %v1434
    %5814 = vmatprep.subr.mxu0 0.0
    %5815 = vmatpush1.msra.mxu0 %v1435
    %5816 = vmatprep.subr.mxu0 0.0
    %5817 = vmatpush1.msra.mxu0 %v1436
    %5818 = vmatprep.subr.mxu0 0.0
    %5819 = vmatpush1.msra.mxu0 %v1437
    %5820 = vmatprep.subr.mxu0 0.0
    %5821 = vmatpush1.msra.mxu0 %v1438
    %5822 = vmatprep.subr.mxu0 0.0
    %5823 = vmatpush1.msra.mxu0 %v1439
    %5824 = vmatprep.subr.mxu0 0.0
    %5825 = vmatpush1.msra.mxu0 %v1440
    %5826 = vmatprep.subr.mxu0 0.0
    %5827 = vmatpush1.msra.mxu0 %v1441
    %5828 = vmatprep.subr.mxu0 0.0
    %5829 = vmatpush1.msra.mxu0 %v1442
    %5830 = vmatprep.subr.mxu0 0.0
    %5831 = vmatpush1.msra.mxu0 %v1443
    %5832 = vmatprep.subr.mxu0 0.0
    %5833 = vmatpush1.msra.mxu0 %v1444
    %5834 = vmatprep.subr.mxu0 0.0
    %5835 = vmatpush1.msra.mxu0 %v1445
    %5836 = vmatprep.subr.mxu0 0.0
    %5837 = vmatpush1.msra.mxu0 %v1446
    %5838 = vmatprep.subr.mxu0 0.0
    %5839 = vmatpush1.msra.mxu0 %v1447
    %5840 = vmatprep.subr.mxu0 0.0
    %5841 = vmatpush1.msra.mxu0 %v1448
    %5842 = vmatprep.subr.mxu0 0.0
    %5843 = vmatpush1.msra.mxu0 %v1449
    %5844 = vmatprep.subr.mxu0 0.0
    %5845 = vmatpush1.msra.mxu0 %v1450
    %5846 = vmatprep.subr.mxu0 0.0
    %5847 = vmatpush1.msra.mxu0 %v1451
    %5848 = vmatprep.subr.mxu0 0.0
    %5849 = vmatpush1.msra.mxu0 %v1452
    %5850 = vmatprep.subr.mxu0 0.0
    %5851 = vmatpush1.msra.mxu0 %v1453
    %5852 = vmatprep.subr.mxu0 0.0
    %5853 = vmatpush1.msra.mxu0 %v1454
    %5854 = vmatprep.subr.mxu0 0.0
    %5855 = vmatpush1.msra.mxu0 %v1455
    %5856 = vmatprep.subr.mxu0 0.0
    %5857 = vmatpush1.msra.mxu0 %v1456
    %5858 = vmatprep.subr.mxu0 0.0
    %5859 = vmatpush1.msra.mxu0 %v1457
    %5860 = vmatprep.subr.mxu0 0.0
    %5861 = vmatpush1.msra.mxu0 %v1458
    %5862 = vmatprep.subr.mxu0 0.0
    %5863 = vmatpush1.msra.mxu0 %v1459
    %5864 = vmatprep.subr.mxu0 0.0
    %5865 = vmatpush1.msra.mxu0 %v1460
    %5866 = vmatprep.subr.mxu0 0.0
    %5867 = vmatpush1.msra.mxu0 %v1461
    %5868 = vmatprep.subr.mxu0 0.0
    %5869 = vmatpush1.msra.mxu0 %v1462
    %5870 = vmatprep.subr.mxu0 0.0
    %5871 = vmatpush1.msra.mxu0 %v1463
    %5872 = vmatprep.mubr.f32.mxu0 %v5658
    %5873 = vmatmul.mubr.f32.gmra.mrb[0].mxu0 %v5657
    %v5874 = vpop.f32.mrb[0].mxu0
    %v5875 = vadd.f32 0.0, %v5874
    %v5876 = vpop.f32.mrb[0].mxu0
    %5877 = vdwg.mxu0
    %5878 = vmatprep.subr.mxu0 0.0
    %5879 = vmatpush1.msra.mxu0 %v1464
    %5880 = vmatprep.subr.mxu0 0.0
    %5881 = vmatpush1.msra.mxu0 %v1465
    %5882 = vmatprep.subr.mxu0 0.0
    %5883 = vmatpush1.msra.mxu0 %v1466
    %5884 = vmatprep.subr.mxu0 0.0
    %5885 = vmatpush1.msra.mxu0 %v1467
    %5886 = vmatprep.subr.mxu0 0.0
    %5887 = vmatpush1.msra.mxu0 %v1468
    %5888 = vmatprep.subr.mxu0 0.0
    %5889 = vmatpush1.msra.mxu0 %v1469
    %5890 = vmatprep.subr.mxu0 0.0
    %5891 = vmatpush1.msra.mxu0 %v1470
    %5892 = vmatprep.subr.mxu0 0.0
    %5893 = vmatpush1.msra.mxu0 %v1471
    %5894 = vmatprep.subr.mxu0 0.0
    %5895 = vmatpush1.msra.mxu0 %v1472
    %5896 = vmatprep.subr.mxu0 0.0
    %5897 = vmatpush1.msra.mxu0 %v1473
    %5898 = vmatprep.subr.mxu0 0.0
    %5899 = vmatpush1.msra.mxu0 %v1474
    %5900 = vmatprep.subr.mxu0 0.0
    %5901 = vmatpush1.msra.mxu0 %v1475
    %5902 = vmatprep.subr.mxu0 0.0
    %5903 = vmatpush1.msra.mxu0 %v1476
    %5904 = vmatprep.subr.mxu0 0.0
    %5905 = vmatpush1.msra.mxu0 %v1477
    %5906 = vmatprep.subr.mxu0 0.0
    %5907 = vmatpush1.msra.mxu0 %v1478
    %5908 = vmatprep.subr.mxu0 0.0
    %5909 = vmatpush1.msra.mxu0 %v1479
    %5910 = vmatprep.subr.mxu0 0.0
    %5911 = vmatpush1.msra.mxu0 %v1480
    %5912 = vmatprep.subr.mxu0 0.0
    %5913 = vmatpush1.msra.mxu0 %v1481
    %5914 = vmatprep.subr.mxu0 0.0
    %5915 = vmatpush1.msra.mxu0 %v1482
    %5916 = vmatprep.subr.mxu0 0.0
    %5917 = vmatpush1.msra.mxu0 %v1483
    %5918 = vmatprep.subr.mxu0 0.0
    %5919 = vmatpush1.msra.mxu0 0.0
    %5920 = vmatprep.subr.mxu0 0.0
    %5921 = vmatpush1.msra.mxu0 0.0
    %5922 = vmatprep.subr.mxu0 0.0
    %5923 = vmatpush1.msra.mxu0 0.0
    %5924 = vmatprep.subr.mxu0 0.0
    %5925 = vmatpush1.msra.mxu0 0.0
    %5926 = vmatprep.subr.mxu0 0.0
    %5927 = vmatpush1.msra.mxu0 0.0
    %5928 = vmatprep.subr.mxu0 0.0
    %5929 = vmatpush1.msra.mxu0 0.0
    %5930 = vmatprep.subr.mxu0 0.0
    %5931 = vmatpush1.msra.mxu0 0.0
    %5932 = vmatprep.subr.mxu0 0.0
    %5933 = vmatpush1.msra.mxu0 0.0
    %5934 = vmatprep.subr.mxu0 0.0
    %5935 = vmatpush1.msra.mxu0 0.0
    %5936 = vmatprep.subr.mxu0 0.0
    %5937 = vmatpush1.msra.mxu0 0.0
    %5938 = vmatprep.subr.mxu0 0.0
    %5939 = vmatpush1.msra.mxu0 0.0
    %5940 = vmatprep.subr.mxu0 0.0
    %5941 = vmatpush1.msra.mxu0 0.0
    %5942 = vmatprep.mubr.f32.mxu0 %v5806
    %5943 = vmatmul.mubr.f32.gmra.mrb[0].mxu0 %v5659
    %v5944 = vpop.f32.mrb[0].mxu0
    %v5945 = vadd.f32 %v5875, %v5944
    %v5946 = vpop.f32.mrb[0].mxu0
    %5947 = vdwg.mxu0
    %v5948 = vmul.f32 %v5945, 0.00295858
    %v5949 = vmul.f32 %v5804, %v5804
    %v5950 = vsub.f32 %v5948, %v5949
    %v5951 = vmax.f32 %v5950, 0.0
    %v5952 = vld [vmem:[%s10 + $0x1] sm:$0x1]
    %v5953 = vadd.f32 %v5951, 1e-05
    %v5954 = vrsqrt.pop %v5953
    %v5955 = vmul.f32 %v5952, %v5954
    %v5956 = vld [vmem:[%s10 + $0x2] sm:$0x1]
    %v5957 = vmul.f32 %v5804, %v5955
    %v5958 = vsub.f32 %v5956, %v5957
    %v5960 = vsel %vm1501, %v5955, 0
    %5962 = vmatprep.subr.mxu0 %v1485
    %5963 = vmatpush1.msra.mxu0 %v1484
    %5964 = vmatprep.subr.mxu0 %v1489
    %5965 = vmatpush1.msra.mxu0 %v1488
    %5966 = vmatprep.subr.mxu0 %v1493
    %5967 = vmatpush1.msra.mxu0 %v1492
    %5968 = vmatprep.subr.mxu0 %v1497
    %5969 = vmatpush1.msra.mxu0 %v1496
    %5970 = vmatprep.subr.mxu0 0.0
    %5971 = vmatpush1.msra.mxu0 0.0
    %5972 = vmatprep.subr.mxu0 0.0
    %5973 = vmatpush1.msra.mxu0 0.0
    %5974 = vmatprep.subr.mxu0 0.0
    %5975 = vmatpush1.msra.mxu0 0.0
    %5976 = vmatprep.subr.mxu0 0.0
    %5977 = vmatpush1.msra.mxu0 0.0
    %5978 = vmatprep.subr.mxu0 0.0
    %5979 = vmatpush1.msra.mxu0 0.0
    %5980 = vmatprep.subr.mxu0 0.0
    %5981 = vmatpush1.msra.mxu0 0.0
    %5982 = vmatprep.subr.mxu0 0.0
    %5983 = vmatpush1.msra.mxu0 0.0
    %5984 = vmatprep.subr.mxu0 0.0
    %5985 = vmatpush1.msra.mxu0 0.0
    %5986 = vmatprep.subr.mxu0 0.0
    %5987 = vmatpush1.msra.mxu0 0.0
    %5988 = vmatprep.subr.mxu0 0.0
    %5989 = vmatpush1.msra.mxu0 0.0
    %5990 = vmatprep.subr.mxu0 0.0
    %5991 = vmatpush1.msra.mxu0 0.0
    %5992 = vmatprep.subr.mxu0 0.0
    %5993 = vmatpush1.msra.mxu0 0.0
    %5994 = vmatprep.subr.mxu0 0.0
    %5995 = vmatpush1.msra.mxu0 0.0
    %5996 = vmatprep.subr.mxu0 0.0
    %5997 = vmatpush1.msra.mxu0 0.0
    %5998 = vmatprep.subr.mxu0 0.0
    %5999 = vmatpush1.msra.mxu0 0.0
    %6000 = vmatprep.subr.mxu0 0.0
    %6001 = vmatpush1.msra.mxu0 0.0
    %6002 = vmatprep.subr.mxu0 0.0
    %6003 = vmatpush1.msra.mxu0 0.0
    %6004 = vmatprep.subr.mxu0 0.0
    %6005 = vmatpush1.msra.mxu0 0.0
    %6006 = vmatprep.subr.mxu0 0.0
    %6007 = vmatpush1.msra.mxu0 0.0
    %6008 = vmatprep.subr.mxu0 0.0
    %6009 = vmatpush1.msra.mxu0 0.0
    %6010 = vmatprep.subr.mxu0 0.0
    %6011 = vmatpush1.msra.mxu0 0.0
    %6012 = vmatprep.subr.mxu0 0.0
    %6013 = vmatpush1.msra.mxu0 0.0
    %6014 = vmatprep.subr.mxu0 0.0
    %6015 = vmatpush1.msra.mxu0 0.0
    %6016 = vmatprep.subr.mxu0 0.0
    %6017 = vmatpush1.msra.mxu0 0.0
    %6018 = vmatprep.subr.mxu0 0.0
    %6019 = vmatpush1.msra.mxu0 0.0
    %6020 = vmatprep.subr.mxu0 0.0
    %6021 = vmatpush1.msra.mxu0 0.0
    %6022 = vmatprep.subr.mxu0 0.0
    %6023 = vmatpush1.msra.mxu0 0.0
    %6024 = vmatprep.subr.mxu0 0.0
    %6025 = vmatpush1.msra.mxu0 0.0
    %6026 = vmatprep.mubr.f32.mxu0 0.0
    %6027 = vmatmul.mubr.f32.gmra.mrb[0].mxu0 %v5960
    %v6028 = vpop.f32.mrb[0].mxu0
    %v6029 = vadd.f32 0.0, %v6028
    %v6030 = vpop.f32.mrb[0].mxu0
    %v6031 = vadd.f32 0.0, %v6030
    %6032 = vdwg.mxu0
    %6033 = vmatprep.subr.mxu0 %v1487
    %6034 = vmatpush1.msra.mxu0 %v1486
    %6035 = vmatprep.subr.mxu0 %v1491
    %6036 = vmatpush1.msra.mxu0 %v1490
    %6037 = vmatprep.subr.mxu0 %v1495
    %6038 = vmatpush1.msra.mxu0 %v1494
    %6039 = vmatprep.subr.mxu0 %v1499
    %6040 = vmatpush1.msra.mxu0 %v1498
    %6041 = vmatprep.subr.mxu0 0.0
    %6042 = vmatpush1.msra.mxu0 0.0
    %6043 = vmatprep.subr.mxu0 0.0
    %6044 = vmatpush1.msra.mxu0 0.0
    %6045 = vmatprep.subr.mxu0 0.0
    %6046 = vmatpush1.msra.mxu0 0.0
    %6047 = vmatprep.subr.mxu0 0.0
    %6048 = vmatpush1.msra.mxu0 0.0
    %6049 = vmatprep.subr.mxu0 0.0
    %6050 = vmatpush1.msra.mxu0 0.0
    %6051 = vmatprep.subr.mxu0 0.0
    %6052 = vmatpush1.msra.mxu0 0.0
    %6053 = vmatprep.subr.mxu0 0.0
    %6054 = vmatpush1.msra.mxu0 0.0
    %6055 = vmatprep.subr.mxu0 0.0
    %6056 = vmatpush1.msra.mxu0 0.0
    %6057 = vmatprep.subr.mxu0 0.0
    %6058 = vmatpush1.msra.mxu0 0.0
    %6059 = vmatprep.subr.mxu0 0.0
    %6060 = vmatpush1.msra.mxu0 0.0
    %6061 = vmatprep.subr.mxu0 0.0
    %6062 = vmatpush1.msra.mxu0 0.0
    %6063 = vmatprep.subr.mxu0 0.0
    %6064 = vmatpush1.msra.mxu0 0.0
    %6065 = vmatprep.subr.mxu0 0.0
    %6066 = vmatpush1.msra.mxu0 0.0
    %6067 = vmatprep.subr.mxu0 0.0
    %6068 = vmatpush1.msra.mxu0 0.0
    %6069 = vmatprep.subr.mxu0 0.0
    %6070 = vmatpush1.msra.mxu0 0.0
    %6071 = vmatprep.subr.mxu0 0.0
    %6072 = vmatpush1.msra.mxu0 0.0
    %6073 = vmatprep.subr.mxu0 0.0
    %6074 = vmatpush1.msra.mxu0 0.0
    %6075 = vmatprep.subr.mxu0 0.0
    %6076 = vmatpush1.msra.mxu0 0.0
    %6077 = vmatprep.subr.mxu0 0.0
    %6078 = vmatpush1.msra.mxu0 0.0
    %6079 = vmatprep.subr.mxu0 0.0
    %6080 = vmatpush1.msra.mxu0 0.0
    %6081 = vmatprep.subr.mxu0 0.0
    %6082 = vmatpush1.msra.mxu0 0.0
    %6083 = vmatprep.subr.mxu0 0.0
    %6084 = vmatpush1.msra.mxu0 0.0
    %6085 = vmatprep.subr.mxu0 0.0
    %6086 = vmatpush1.msra.mxu0 0.0
    %6087 = vmatprep.subr.mxu0 0.0
    %6088 = vmatpush1.msra.mxu0 0.0
    %6089 = vmatprep.subr.mxu0 0.0
    %6090 = vmatpush1.msra.mxu0 0.0
    %6091 = vmatprep.subr.mxu0 0.0
    %6092 = vmatpush1.msra.mxu0 0.0
    %6093 = vmatprep.subr.mxu0 0.0
    %6094 = vmatpush1.msra.mxu0 0.0
    %6095 = vmatprep.subr.mxu0 0.0
    %6096 = vmatpush1.msra.mxu0 0.0
    %6097 = vmatprep.mubr.f32.mxu0 0.0
    %6098 = vmatmul.mubr.f32.gmra.mrb[0].mxu0 %v5960
    %v6099 = vpop.f32.mrb[0].mxu0
    %v6100 = vadd.f32 0.0, %v6099
    %v6101 = vpop.f32.mrb[0].mxu0
    %v6102 = vadd.f32 0.0, %v6101
    %6103 = vdwg.mxu0
    %v6105 = vsel %vm1501, %v5958, 0
    %6107 = vmatprep.subr.mxu0 %v1485
    %6108 = vmatpush1.msra.mxu0 %v1484
    %6109 = vmatprep.subr.mxu0 %v1489
    %6110 = vmatpush1.msra.mxu0 %v1488
    %6111 = vmatprep.subr.mxu0 %v1493
    %6112 = vmatpush1.msra.mxu0 %v1492
    %6113 = vmatprep.subr.mxu0 %v1497
    %6114 = vmatpush1.msra.mxu0 %v1496
    %6115 = vmatprep.subr.mxu0 0.0
    %6116 = vmatpush1.msra.mxu0 0.0
    %6117 = vmatprep.subr.mxu0 0.0
    %6118 = vmatpush1.msra.mxu0 0.0
    %6119 = vmatprep.subr.mxu0 0.0
    %6120 = vmatpush1.msra.mxu0 0.0
    %6121 = vmatprep.subr.mxu0 0.0
    %6122 = vmatpush1.msra.mxu0 0.0
    %6123 = vmatprep.subr.mxu0 0.0
    %6124 = vmatpush1.msra.mxu0 0.0
    %6125 = vmatprep.subr.mxu0 0.0
    %6126 = vmatpush1.msra.mxu0 0.0
    %6127 = vmatprep.subr.mxu0 0.0
    %6128 = vmatpush1.msra.mxu0 0.0
    %6129 = vmatprep.subr.mxu0 0.0
    %6130 = vmatpush1.msra.mxu0 0.0
    %6131 = vmatprep.subr.mxu0 0.0
    %6132 = vmatpush1.msra.mxu0 0.0
    %6133 = vmatprep.subr.mxu0 0.0
    %6134 = vmatpush1.msra.mxu0 0.0
    %6135 = vmatprep.subr.mxu0 0.0
    %6136 = vmatpush1.msra.mxu0 0.0
    %6137 = vmatprep.subr.mxu0 0.0
    %6138 = vmatpush1.msra.mxu0 0.0
    %6139 = vmatprep.subr.mxu0 0.0
    %6140 = vmatpush1.msra.mxu0 0.0
    %6141 = vmatprep.subr.mxu0 0.0
    %6142 = vmatpush1.msra.mxu0 0.0
    %6143 = vmatprep.subr.mxu0 0.0
    %6144 = vmatpush1.msra.mxu0 0.0
    %6145 = vmatprep.subr.mxu0 0.0
    %6146 = vmatpush1.msra.mxu0 0.0
    %6147 = vmatprep.subr.mxu0 0.0
    %6148 = vmatpush1.msra.mxu0 0.0
    %6149 = vmatprep.subr.mxu0 0.0
    %6150 = vmatpush1.msra.mxu0 0.0
    %6151 = vmatprep.subr.mxu0 0.0
    %6152 = vmatpush1.msra.mxu0 0.0
    %6153 = vmatprep.subr.mxu0 0.0
    %6154 = vmatpush1.msra.mxu0 0.0
    %6155 = vmatprep.subr.mxu0 0.0
    %6156 = vmatpush1.msra.mxu0 0.0
    %6157 = vmatprep.subr.mxu0 0.0
    %6158 = vmatpush1.msra.mxu0 0.0
    %6159 = vmatprep.subr.mxu0 0.0
    %6160 = vmatpush1.msra.mxu0 0.0
    %6161 = vmatprep.subr.mxu0 0.0
    %6162 = vmatpush1.msra.mxu0 0.0
    %6163 = vmatprep.subr.mxu0 0.0
    %6164 = vmatpush1.msra.mxu0 0.0
    %6165 = vmatprep.subr.mxu0 0.0
    %6166 = vmatpush1.msra.mxu0 0.0
    %6167 = vmatprep.subr.mxu0 0.0
    %6168 = vmatpush1.msra.mxu0 0.0
    %6169 = vmatprep.subr.mxu0 0.0
    %6170 = vmatpush1.msra.mxu0 0.0
    %6171 = vmatprep.mubr.f32.mxu0 0.0
    %6172 = vmatmul.mubr.f32.gmra.mrb[0].mxu0 %v6105
    %v6173 = vpop.f32.mrb[0].mxu0
    %v6174 = vadd.f32 0.0, %v6173
    %v6175 = vpop.f32.mrb[0].mxu0
    %v6176 = vadd.f32 0.0, %v6175
    %6177 = vdwg.mxu0
    %6178 = vmatprep.subr.mxu0 %v1487
    %6179 = vmatpush1.msra.mxu0 %v1486
    %6180 = vmatprep.subr.mxu0 %v1491
    %6181 = vmatpush1.msra.mxu0 %v1490
    %6182 = vmatprep.subr.mxu0 %v1495
    %6183 = vmatpush1.msra.mxu0 %v1494
    %6184 = vmatprep.subr.mxu0 %v1499
    %6185 = vmatpush1.msra.mxu0 %v1498
    %6186 = vmatprep.subr.mxu0 0.0
    %6187 = vmatpush1.msra.mxu0 0.0
    %6188 = vmatprep.subr.mxu0 0.0
    %6189 = vmatpush1.msra.mxu0 0.0
    %6190 = vmatprep.subr.mxu0 0.0
    %6191 = vmatpush1.msra.mxu0 0.0
    %6192 = vmatprep.subr.mxu0 0.0
    %6193 = vmatpush1.msra.mxu0 0.0
    %6194 = vmatprep.subr.mxu0 0.0
    %6195 = vmatpush1.msra.mxu0 0.0
    %6196 = vmatprep.subr.mxu0 0.0
    %6197 = vmatpush1.msra.mxu0 0.0
    %6198 = vmatprep.subr.mxu0 0.0
    %6199 = vmatpush1.msra.mxu0 0.0
    %6200 = vmatprep.subr.mxu0 0.0
    %6201 = vmatpush1.msra.mxu0 0.0
    %6202 = vmatprep.subr.mxu0 0.0
    %6203 = vmatpush1.msra.mxu0 0.0
    %6204 = vmatprep.subr.mxu0 0.0
    %6205 = vmatpush1.msra.mxu0 0.0
    %6206 = vmatprep.subr.mxu0 0.0
    %6207 = vmatpush1.msra.mxu0 0.0
    %6208 = vmatprep.subr.mxu0 0.0
    %6209 = vmatpush1.msra.mxu0 0.0
    %6210 = vmatprep.subr.mxu0 0.0
    %6211 = vmatpush1.msra.mxu0 0.0
    %6212 = vmatprep.subr.mxu0 0.0
    %6213 = vmatpush1.msra.mxu0 0.0
    %6214 = vmatprep.subr.mxu0 0.0
    %6215 = vmatpush1.msra.mxu0 0.0
    %6216 = vmatprep.subr.mxu0 0.0
    %6217 = vmatpush1.msra.mxu0 0.0
    %6218 = vmatprep.subr.mxu0 0.0
    %6219 = vmatpush1.msra.mxu0 0.0
    %6220 = vmatprep.subr.mxu0 0.0
    %6221 = vmatpush1.msra.mxu0 0.0
    %6222 = vmatprep.subr.mxu0 0.0
    %6223 = vmatpush1.msra.mxu0 0.0
    %6224 = vmatprep.subr.mxu0 0.0
    %6225 = vmatpush1.msra.mxu0 0.0
    %6226 = vmatprep.subr.mxu0 0.0
    %6227 = vmatpush1.msra.mxu0 0.0
    %6228 = vmatprep.subr.mxu0 0.0
    %6229 = vmatpush1.msra.mxu0 0.0
    %6230 = vmatprep.subr.mxu0 0.0
    %6231 = vmatpush1.msra.mxu0 0.0
    %6232 = vmatprep.subr.mxu0 0.0
    %6233 = vmatpush1.msra.mxu0 0.0
    %6234 = vmatprep.subr.mxu0 0.0
    %6235 = vmatpush1.msra.mxu0 0.0
    %6236 = vmatprep.subr.mxu0 0.0
    %6237 = vmatpush1.msra.mxu0 0.0
    %6238 = vmatprep.subr.mxu0 0.0
    %6239 = vmatpush1.msra.mxu0 0.0
    %6240 = vmatprep.subr.mxu0 0.0
    %6241 = vmatpush1.msra.mxu0 0.0
    %6242 = vmatprep.mubr.f32.mxu0 0.0
    %6243 = vmatmul.mubr.f32.gmra.mrb[0].mxu0 %v6105
    %v6244 = vpop.f32.mrb[0].mxu0
    %v6245 = vadd.f32 0.0, %v6244
    %v6246 = vpop.f32.mrb[0].mxu0
    %v6247 = vadd.f32 0.0, %v6246
    %6248 = vdwg.mxu0
    %v6249 = vlaneseq
    %v6250 = vshrl.u32 %v6249, 7
    %v6251 = vsub.s32 0, %v6250
    %v6252 = vrot.slane %v6029, %v6251
    %v6253 = vlaneseq
    %v6254 = vshrl.u32 %v6253, 7
    %v6255 = vsub.s32 0, %v6254
    %v6256 = vrot.slane %v6031, %v6255
    %v6257 = vlaneseq
    %v6258 = vshrl.u32 %v6257, 7
    %v6259 = vsub.s32 0, %v6258
    %v6260 = vrot.slane %v6100, %v6259
    %v6261 = vlaneseq
    %v6262 = vshrl.u32 %v6261, 7
    %v6263 = vsub.s32 0, %v6262
    %v6264 = vrot.slane %v6102, %v6263
    %v6265 = vmul.f32 %v5489, %v6252
    %v6266 = vmul.f32 %v5490, %v6256
    %v6267 = vmul.f32 %v5491, %v6260
    %v6268 = vmul.f32 %v5492, %v6264
    %v6269 = vmul.f32 %v5493, %v6252
    %v6270 = vmul.f32 %v5494, %v6256
    %v6271 = vmul.f32 %v5495, %v6260
    %v6272 = vmul.f32 %v5496, %v6264
    %v6273 = vlaneseq
    %v6274 = vshrl.u32 %v6273, 7
    %v6275 = vsub.s32 0, %v6274
    %v6276 = vrot.slane %v6174, %v6275
    %v6277 = vlaneseq
    %v6278 = vshrl.u32 %v6277, 7
    %v6279 = vsub.s32 0, %v6278
    %v6280 = vrot.slane %v6176, %v6279
    %v6281 = vlaneseq
    %v6282 = vshrl.u32 %v6281, 7
    %v6283 = vsub.s32 0, %v6282
    %v6284 = vrot.slane %v6245, %v6283
    %v6285 = vlaneseq
    %v6286 = vshrl.u32 %v6285, 7
    %v6287 = vsub.s32 0, %v6286
    %v6288 = vrot.slane %v6247, %v6287
    %v6289 = vadd.f32 %v6265, %v6276
    %v6290 = vadd.f32 %v6266, %v6280
    %v6291 = vadd.f32 %v6267, %v6284
    %v6292 = vadd.f32 %v6268, %v6288
    %v6293 = vadd.f32 %v6269, %v6276
    %v6294 = vadd.f32 %v6270, %v6280
    %v6295 = vadd.f32 %v6271, %v6284
    %v6296 = vadd.f32 %v6272, %v6288
    %vm6297 = vcmp.gt.f32.partialorder %v6289, 0.0
    %vm6298 = vcmp.gt.f32.partialorder %v6290, 0.0
    %vm6299 = vcmp.gt.f32.partialorder %v6291, 0.0
    %vm6300 = vcmp.gt.f32.partialorder %v6292, 0.0
    %vm6301 = vcmp.gt.f32.partialorder %v6293, 0.0
    %vm6302 = vcmp.gt.f32.partialorder %v6294, 0.0
    %vm6303 = vcmp.gt.f32.partialorder %v6295, 0.0
    %vm6304 = vcmp.gt.f32.partialorder %v6296, 0.0
    %v6305 = vmul.f32 %v6289, 1.442695
    %v6306 = vpow.pop %v6305
    %v6307 = vmul.f32 %v6290, 1.442695
    %v6308 = vpow.pop %v6307
    %v6309 = vmul.f32 %v6291, 1.442695
    %v6310 = vpow.pop %v6309
    %v6311 = vmul.f32 %v6292, 1.442695
    %v6312 = vpow.pop %v6311
    %v6313 = vmul.f32 %v6293, 1.442695
    %v6314 = vpow.pop %v6313
    %v6315 = vmul.f32 %v6294, 1.442695
    %v6316 = vpow.pop %v6315
    %v6317 = vmul.f32 %v6295, 1.442695
    %v6318 = vpow.pop %v6317
    %v6319 = vmul.f32 %v6296, 1.442695
    %v6320 = vpow.pop %v6319
    %v6321 = vsub.f32 %v6306, 1.0
    %v6322 = vsub.f32 %v6308, 1.0
    %v6323 = vsub.f32 %v6310, 1.0
    %v6324 = vsub.f32 %v6312, 1.0
    %v6325 = vsub.f32 %v6314, 1.0
    %v6326 = vsub.f32 %v6316, 1.0
    %v6327 = vsub.f32 %v6318, 1.0
    %v6328 = vsub.f32 %v6320, 1.0
    %v6329 = vmul.f32 %v6321, 1.6732632
    %v6330 = vmul.f32 %v6322, 1.6732632
    %v6331 = vmul.f32 %v6323, 1.6732632
    %v6332 = vmul.f32 %v6324, 1.6732632
    %v6333 = vmul.f32 %v6325, 1.6732632
    %v6334 = vmul.f32 %v6326, 1.6732632
    %v6335 = vmul.f32 %v6327, 1.6732632
    %v6336 = vmul.f32 %v6328, 1.6732632
    %v6337 = vsel %vm6297, %v6289, %v6329
    %v6338 = vsel %vm6298, %v6290, %v6330
    %v6339 = vsel %vm6299, %v6291, %v6331
    %v6340 = vsel %vm6300, %v6292, %v6332
    %v6341 = vsel %vm6301, %v6293, %v6333
    %v6342 = vsel %vm6302, %v6294, %v6334
    %v6343 = vsel %vm6303, %v6295, %v6335
    %v6344 = vsel %vm6304, %v6296, %v6336
    %v6345 = vmul.f32 %v6337, 1.050701
    %v6346 = vmul.f32 %v6338, 1.050701
    %v6347 = vmul.f32 %v6339, 1.050701
    %v6348 = vmul.f32 %v6340, 1.050701
    %v6349 = vmul.f32 %v6341, 1.050701
    %v6350 = vmul.f32 %v6342, 1.050701
    %v6351 = vmul.f32 %v6343, 1.050701
    %v6352 = vmul.f32 %v6344, 1.050701
    %v6353 = vmul.f32 %v5497, %v6252
    %v6354 = vmul.f32 %v5498, %v6256
    %v6355 = vmul.f32 %v5499, %v6260
    %v6356 = vmul.f32 %v5500, %v6264
    %v6357 = vmul.f32 %v5501, %v6252
    %v6358 = vmul.f32 %v5502, %v6256
    %v6359 = vmul.f32 %v5503, %v6260
    %v6360 = vmul.f32 %v5504, %v6264
    %v6361 = vadd.f32 %v6353, %v6276
    %v6362 = vadd.f32 %v6354, %v6280
    %v6363 = vadd.f32 %v6355, %v6284
    %v6364 = vadd.f32 %v6356, %v6288
    %v6365 = vadd.f32 %v6357, %v6276
    %v6366 = vadd.f32 %v6358, %v6280
    %v6367 = vadd.f32 %v6359, %v6284
    %v6368 = vadd.f32 %v6360, %v6288
    %vm6369 = vcmp.gt.f32.partialorder %v6361, 0.0
    %vm6370 = vcmp.gt.f32.partialorder %v6362, 0.0
    %vm6371 = vcmp.gt.f32.partialorder %v6363, 0.0
    %vm6372 = vcmp.gt.f32.partialorder %v6364, 0.0
    %vm6373 = vcmp.gt.f32.partialorder %v6365, 0.0
    %vm6374 = vcmp.gt.f32.partialorder %v6366, 0.0
    %vm6375 = vcmp.gt.f32.partialorder %v6367, 0.0
    %vm6376 = vcmp.gt.f32.partialorder %v6368, 0.0
    %v6377 = vmul.f32 %v6361, 1.442695
    %v6378 = vpow.pop %v6377
    %v6379 = vmul.f32 %v6362, 1.442695
    %v6380 = vpow.pop %v6379
    %v6381 = vmul.f32 %v6363, 1.442695
    %v6382 = vpow.pop %v6381
    %v6383 = vmul.f32 %v6364, 1.442695
    %v6384 = vpow.pop %v6383
    %v6385 = vmul.f32 %v6365, 1.442695
    %v6386 = vpow.pop %v6385
    %v6387 = vmul.f32 %v6366, 1.442695
    %v6388 = vpow.pop %v6387
    %v6389 = vmul.f32 %v6367, 1.442695
    %v6390 = vpow.pop %v6389
    %v6391 = vmul.f32 %v6368, 1.442695
    %v6392 = vpow.pop %v6391
    %v6393 = vsub.f32 %v6378, 1.0
    %v6394 = vsub.f32 %v6380, 1.0
    %v6395 = vsub.f32 %v6382, 1.0
    %v6396 = vsub.f32 %v6384, 1.0
    %v6397 = vsub.f32 %v6386, 1.0
    %v6398 = vsub.f32 %v6388, 1.0
    %v6399 = vsub.f32 %v6390, 1.0
    %v6400 = vsub.f32 %v6392, 1.0
    %v6401 = vmul.f32 %v6393, 1.6732632
    %v6402 = vmul.f32 %v6394, 1.6732632
    %v6403 = vmul.f32 %v6395, 1.6732632
    %v6404 = vmul.f32 %v6396, 1.6732632
    %v6405 = vmul.f32 %v6397, 1.6732632
    %v6406 = vmul.f32 %v6398, 1.6732632
    %v6407 = vmul.f32 %v6399, 1.6732632
    %v6408 = vmul.f32 %v6400, 1.6732632
    %v6409 = vsel %vm6369, %v6361, %v6401
    %v6410 = vsel %vm6370, %v6362, %v6402
    %v6411 = vsel %vm6371, %v6363, %v6403
    %v6412 = vsel %vm6372, %v6364, %v6404
    %v6413 = vsel %vm6373, %v6365, %v6405
    %v6414 = vsel %vm6374, %v6366, %v6406
    %v6415 = vsel %vm6375, %v6367, %v6407
    %v6416 = vsel %vm6376, %v6368, %v6408
    %v6417 = vmul.f32 %v6409, 1.050701
    %v6418 = vmul.f32 %v6410, 1.050701
    %v6419 = vmul.f32 %v6411, 1.050701
    %v6420 = vmul.f32 %v6412, 1.050701
    %v6421 = vmul.f32 %v6413, 1.050701
    %v6422 = vmul.f32 %v6414, 1.050701
    %v6423 = vmul.f32 %v6415, 1.050701
    %v6424 = vmul.f32 %v6416, 1.050701
    %v6425 = vld [vmem:[%s14] sm:$0xff]
    %v6426 = vld [vmem:[%s14 + $0x8] sm:$0xff]
    %v6427 = vld [vmem:[%s14 + $0x10] sm:$0x7]
    %vm6428 = vcmask 105472
    %v6430 = vsel %vm6428, %v6425, 0
    %v6433 = vsel %vm6428, %v6426, 0
    %v6436 = vsel %vm6428, %v6427, 0
    %v6439 = vsel %vm603, %v6349, 0
    %v6442 = vsel %vm603, %v6350, 0
    %v6445 = vsel %vm603, %v6351, 0
    %v6448 = vsel %vm603, %v6352, 0
    %6450 = vmatprep.subr.mxu0 %v6346
    %6451 = vmatpush1.msra.mxu0 %v6345
    %6452 = vmatprep.subr.mxu0 %v6442
    %6453 = vmatpush1.msra.mxu0 %v6439
    %6454 = vmatprep.subr.mxu0 0.0
    %6455 = vmatpush1.msra.mxu0 0.0
    %6456 = vmatprep.subr.mxu0 0.0
    %6457 = vmatpush1.msra.mxu0 0.0
    %6458 = vmatprep.subr.mxu0 0.0
    %6459 = vmatpush1.msra.mxu0 0.0
    %6460 = vmatprep.subr.mxu0 0.0
    %6461 = vmatpush1.msra.mxu0 0.0
    %6462 = vmatprep.subr.mxu0 0.0
    %6463 = vmatpush1.msra.mxu0 0.0
    %6464 = vmatprep.subr.mxu0 0.0
    %6465 = vmatpush1.msra.mxu0 0.0
    %6466 = vmatprep.subr.mxu0 0.0
    %6467 = vmatpush1.msra.mxu0 0.0
    %6468 = vmatprep.subr.mxu0 0.0
    %6469 = vmatpush1.msra.mxu0 0.0
    %6470 = vmatprep.subr.mxu0 0.0
    %6471 = vmatpush1.msra.mxu0 0.0
    %6472 = vmatprep.subr.mxu0 0.0
    %6473 = vmatpush1.msra.mxu0 0.0
    %6474 = vmatprep.subr.mxu0 0.0
    %6475 = vmatpush1.msra.mxu0 0.0
    %6476 = vmatprep.subr.mxu0 0.0
    %6477 = vmatpush1.msra.mxu0 0.0
    %6478 = vmatprep.subr.mxu0 0.0
    %6479 = vmatpush1.msra.mxu0 0.0
    %6480 = vmatprep.subr.mxu0 0.0
    %6481 = vmatpush1.msra.mxu0 0.0
    %6482 = vmatprep.subr.mxu0 0.0
    %6483 = vmatpush1.msra.mxu0 0.0
    %6484 = vmatprep.subr.mxu0 0.0
    %6485 = vmatpush1.msra.mxu0 0.0
    %6486 = vmatprep.subr.mxu0 0.0
    %6487 = vmatpush1.msra.mxu0 0.0
    %6488 = vmatprep.subr.mxu0 0.0
    %6489 = vmatpush1.msra.mxu0 0.0
    %6490 = vmatprep.subr.mxu0 0.0
    %6491 = vmatpush1.msra.mxu0 0.0
    %6492 = vmatprep.subr.mxu0 0.0
    %6493 = vmatpush1.msra.mxu0 0.0
    %6494 = vmatprep.subr.mxu0 0.0
    %6495 = vmatpush1.msra.mxu0 0.0
    %6496 = vmatprep.subr.mxu0 0.0
    %6497 = vmatpush1.msra.mxu0 0.0
    %6498 = vmatprep.subr.mxu0 0.0
    %6499 = vmatpush1.msra.mxu0 0.0
    %6500 = vmatprep.subr.mxu0 0.0
    %6501 = vmatpush1.msra.mxu0 0.0
    %6502 = vmatprep.subr.mxu0 0.0
    %6503 = vmatpush1.msra.mxu0 0.0
    %6504 = vmatprep.subr.mxu0 0.0
    %6505 = vmatpush1.msra.mxu0 0.0
    %6506 = vmatprep.subr.mxu0 0.0
    %6507 = vmatpush1.msra.mxu0 0.0
    %6508 = vmatprep.subr.mxu0 0.0
    %6509 = vmatpush1.msra.mxu0 0.0
    %6510 = vmatprep.subr.mxu0 0.0
    %6511 = vmatpush1.msra.mxu0 0.0
    %6512 = vmatprep.subr.mxu0 0.0
    %6513 = vmatpush1.msra.mxu0 0.0
    %6514 = vmatprep.mubr.f32.mxu0 0.0
    %6515 = vmatmul.mubr.f32.gmra.mrb[0].mxu0 %v6430
    %v6516 = vpop.f32.mrb[0].mxu0
    %v6517 = vadd.f32 0.0, %v6516
    %v6518 = vpop.f32.mrb[0].mxu0
    %v6519 = vadd.f32 0.0, %v6518
    %6520 = vmatprep.mubr.f32.mxu0 0.0
    %6521 = vmatmul.mubr.f32.gmra.mrb[0].mxu0 %v6433
    %v6522 = vpop.f32.mrb[0].mxu0
    %v6523 = vadd.f32 0.0, %v6522
    %v6524 = vpop.f32.mrb[0].mxu0
    %v6525 = vadd.f32 0.0, %v6524
    %6526 = vmatprep.mubr.f32.mxu0 0.0
    %6527 = vmatmul.mubr.f32.gmra.mrb[0].mxu0 %v6436
    %v6528 = vpop.f32.mrb[0].mxu0
    %v6529 = vadd.f32 0.0, %v6528
    %v6530 = vpop.f32.mrb[0].mxu0
    %v6531 = vadd.f32 0.0, %v6530
    %6532 = vdwg.mxu0
    %6533 = vmatprep.subr.mxu0 %v6348
    %6534 = vmatpush1.msra.mxu0 %v6347
    %6535 = vmatprep.subr.mxu0 %v6448
    %6536 = vmatpush1.msra.mxu0 %v6445
    %6537 = vmatprep.subr.mxu0 0.0
    %6538 = vmatpush1.msra.mxu0 0.0
    %6539 = vmatprep.subr.mxu0 0.0
    %6540 = vmatpush1.msra.mxu0 0.0
    %6541 = vmatprep.subr.mxu0 0.0
    %6542 = vmatpush1.msra.mxu0 0.0
    %6543 = vmatprep.subr.mxu0 0.0
    %6544 = vmatpush1.msra.mxu0 0.0
    %6545 = vmatprep.subr.mxu0 0.0
    %6546 = vmatpush1.msra.mxu0 0.0
    %6547 = vmatprep.subr.mxu0 0.0
    %6548 = vmatpush1.msra.mxu0 0.0
    %6549 = vmatprep.subr.mxu0 0.0
    %6550 = vmatpush1.msra.mxu0 0.0
    %6551 = vmatprep.subr.mxu0 0.0
    %6552 = vmatpush1.msra.mxu0 0.0
    %6553 = vmatprep.subr.mxu0 0.0
    %6554 = vmatpush1.msra.mxu0 0.0
    %6555 = vmatprep.subr.mxu0 0.0
    %6556 = vmatpush1.msra.mxu0 0.0
    %6557 = vmatprep.subr.mxu0 0.0
    %6558 = vmatpush1.msra.mxu0 0.0
    %6559 = vmatprep.subr.mxu0 0.0
    %6560 = vmatpush1.msra.mxu0 0.0
    %6561 = vmatprep.subr.mxu0 0.0
    %6562 = vmatpush1.msra.mxu0 0.0
    %6563 = vmatprep.subr.mxu0 0.0
    %6564 = vmatpush1.msra.mxu0 0.0
    %6565 = vmatprep.subr.mxu0 0.0
    %6566 = vmatpush1.msra.mxu0 0.0
    %6567 = vmatprep.subr.mxu0 0.0
    %6568 = vmatpush1.msra.mxu0 0.0
    %6569 = vmatprep.subr.mxu0 0.0
    %6570 = vmatpush1.msra.mxu0 0.0
    %6571 = vmatprep.subr.mxu0 0.0
    %6572 = vmatpush1.msra.mxu0 0.0
    %6573 = vmatprep.subr.mxu0 0.0
    %6574 = vmatpush1.msra.mxu0 0.0
    %6575 = vmatprep.subr.mxu0 0.0
    %6576 = vmatpush1.msra.mxu0 0.0
    %6577 = vmatprep.subr.mxu0 0.0
    %6578 = vmatpush1.msra.mxu0 0.0
    %6579 = vmatprep.subr.mxu0 0.0
    %6580 = vmatpush1.msra.mxu0 0.0
    %6581 = vmatprep.subr.mxu0 0.0
    %6582 = vmatpush1.msra.mxu0 0.0
    %6583 = vmatprep.subr.mxu0 0.0
    %6584 = vmatpush1.msra.mxu0 0.0
    %6585 = vmatprep.subr.mxu0 0.0
    %6586 = vmatpush1.msra.mxu0 0.0
    %6587 = vmatprep.subr.mxu0 0.0
    %6588 = vmatpush1.msra.mxu0 0.0
    %6589 = vmatprep.subr.mxu0 0.0
    %6590 = vmatpush1.msra.mxu0 0.0
    %6591 = vmatprep.subr.mxu0 0.0
    %6592 = vmatpush1.msra.mxu0 0.0
    %6593 = vmatprep.subr.mxu0 0.0
    %6594 = vmatpush1.msra.mxu0 0.0
    %6595 = vmatprep.subr.mxu0 0.0
    %6596 = vmatpush1.msra.mxu0 0.0
    %6597 = vmatprep.mubr.f32.mxu0 0.0
    %6598 = vmatmul.mubr.f32.gmra.mrb[0].mxu0 %v6430
    %v6599 = vpop.f32.mrb[0].mxu0
    %v6600 = vadd.f32 0.0, %v6599
    %v6601 = vpop.f32.mrb[0].mxu0
    %v6602 = vadd.f32 0.0, %v6601
    %6603 = vmatprep.mubr.f32.mxu0 0.0
    %6604 = vmatmul.mubr.f32.gmra.mrb[0].mxu0 %v6433
    %v6605 = vpop.f32.mrb[0].mxu0
    %v6606 = vadd.f32 0.0, %v6605
    %v6607 = vpop.f32.mrb[0].mxu0
    %v6608 = vadd.f32 0.0, %v6607
    %6609 = vmatprep.mubr.f32.mxu0 0.0
    %6610 = vmatmul.mubr.f32.gmra.mrb[0].mxu0 %v6436
    %v6611 = vpop.f32.mrb[0].mxu0
    %v6612 = vadd.f32 0.0, %v6611
    %v6613 = vpop.f32.mrb[0].mxu0
    %v6614 = vadd.f32 0.0, %v6613
    %6615 = vdwg.mxu0
    %v6617 = vsel %vm603, %v6421, 0
    %v6620 = vsel %vm603, %v6422, 0
    %v6623 = vsel %vm603, %v6423, 0
    %v6626 = vsel %vm603, %v6424, 0
    %6628 = vmatprep.subr.mxu0 %v6418
    %6629 = vmatpush1.msra.mxu0 %v6417
    %6630 = vmatprep.subr.mxu0 %v6620
    %6631 = vmatpush1.msra.mxu0 %v6617
    %6632 = vmatprep.subr.mxu0 0.0
    %6633 = vmatpush1.msra.mxu0 0.0
    %6634 = vmatprep.subr.mxu0 0.0
    %6635 = vmatpush1.msra.mxu0 0.0
    %6636 = vmatprep.subr.mxu0 0.0
    %6637 = vmatpush1.msra.mxu0 0.0
    %6638 = vmatprep.subr.mxu0 0.0
    %6639 = vmatpush1.msra.mxu0 0.0
    %6640 = vmatprep.subr.mxu0 0.0
    %6641 = vmatpush1.msra.mxu0 0.0
    %6642 = vmatprep.subr.mxu0 0.0
    %6643 = vmatpush1.msra.mxu0 0.0
    %6644 = vmatprep.subr.mxu0 0.0
    %6645 = vmatpush1.msra.mxu0 0.0
    %6646 = vmatprep.subr.mxu0 0.0
    %6647 = vmatpush1.msra.mxu0 0.0
    %6648 = vmatprep.subr.mxu0 0.0
    %6649 = vmatpush1.msra.mxu0 0.0
    %6650 = vmatprep.subr.mxu0 0.0
    %6651 = vmatpush1.msra.mxu0 0.0
    %6652 = vmatprep.subr.mxu0 0.0
    %6653 = vmatpush1.msra.mxu0 0.0
    %6654 = vmatprep.subr.mxu0 0.0
    %6655 = vmatpush1.msra.mxu0 0.0
    %6656 = vmatprep.subr.mxu0 0.0
    %6657 = vmatpush1.msra.mxu0 0.0
    %6658 = vmatprep.subr.mxu0 0.0
    %6659 = vmatpush1.msra.mxu0 0.0
    %6660 = vmatprep.subr.mxu0 0.0
    %6661 = vmatpush1.msra.mxu0 0.0
    %6662 = vmatprep.subr.mxu0 0.0
    %6663 = vmatpush1.msra.mxu0 0.0
    %6664 = vmatprep.subr.mxu0 0.0
    %6665 = vmatpush1.msra.mxu0 0.0
    %6666 = vmatprep.subr.mxu0 0.0
    %6667 = vmatpush1.msra.mxu0 0.0
    %6668 = vmatprep.subr.mxu0 0.0
    %6669 = vmatpush1.msra.mxu0 0.0
    %6670 = vmatprep.subr.mxu0 0.0
    %6671 = vmatpush1.msra.mxu0 0.0
    %6672 = vmatprep.subr.mxu0 0.0
    %6673 = vmatpush1.msra.mxu0 0.0
    %6674 = vmatprep.subr.mxu0 0.0
    %6675 = vmatpush1.msra.mxu0 0.0
    %6676 = vmatprep.subr.mxu0 0.0
    %6677 = vmatpush1.msra.mxu0 0.0
    %6678 = vmatprep.subr.mxu0 0.0
    %6679 = vmatpush1.msra.mxu0 0.0
    %6680 = vmatprep.subr.mxu0 0.0
    %6681 = vmatpush1.msra.mxu0 0.0
    %6682 = vmatprep.subr.mxu0 0.0
    %6683 = vmatpush1.msra.mxu0 0.0
    %6684 = vmatprep.subr.mxu0 0.0
    %6685 = vmatpush1.msra.mxu0 0.0
    %6686 = vmatprep.subr.mxu0 0.0
    %6687 = vmatpush1.msra.mxu0 0.0
    %6688 = vmatprep.subr.mxu0 0.0
    %6689 = vmatpush1.msra.mxu0 0.0
    %6690 = vmatprep.subr.mxu0 0.0
    %6691 = vmatpush1.msra.mxu0 0.0
    %6692 = vmatprep.mubr.f32.mxu0 0.0
    %6693 = vmatmul.mubr.f32.gmra.mrb[0].mxu0 %v6430
    %v6694 = vpop.f32.mrb[0].mxu0
    %v6695 = vadd.f32 0.0, %v6694
    %v6696 = vpop.f32.mrb[0].mxu0
    %v6697 = vadd.f32 0.0, %v6696
    %6698 = vmatprep.mubr.f32.mxu0 0.0
    %6699 = vmatmul.mubr.f32.gmra.mrb[0].mxu0 %v6433
    %v6700 = vpop.f32.mrb[0].mxu0
    %v6701 = vadd.f32 0.0, %v6700
    %v6702 = vpop.f32.mrb[0].mxu0
    %v6703 = vadd.f32 0.0, %v6702
    %6704 = vmatprep.mubr.f32.mxu0 0.0
    %6705 = vmatmul.mubr.f32.gmra.mrb[0].mxu0 %v6436
    %v6706 = vpop.f32.mrb[0].mxu0
    %v6707 = vadd.f32 0.0, %v6706
    %v6708 = vpop.f32.mrb[0].mxu0
    %v6709 = vadd.f32 0.0, %v6708
    %6710 = vdwg.mxu0
    %6711 = vmatprep.subr.mxu0 %v6420
    %6712 = vmatpush1.msra.mxu0 %v6419
    %6713 = vmatprep.subr.mxu0 %v6626
    %6714 = vmatpush1.msra.mxu0 %v6623
    %6715 = vmatprep.subr.mxu0 0.0
    %6716 = vmatpush1.msra.mxu0 0.0
    %6717 = vmatprep.subr.mxu0 0.0
    %6718 = vmatpush1.msra.mxu0 0.0
    %6719 = vmatprep.subr.mxu0 0.0
    %6720 = vmatpush1.msra.mxu0 0.0
    %6721 = vmatprep.subr.mxu0 0.0
    %6722 = vmatpush1.msra.mxu0 0.0
    %6723 = vmatprep.subr.mxu0 0.0
    %6724 = vmatpush1.msra.mxu0 0.0
    %6725 = vmatprep.subr.mxu0 0.0
    %6726 = vmatpush1.msra.mxu0 0.0
    %6727 = vmatprep.subr.mxu0 0.0
    %6728 = vmatpush1.msra.mxu0 0.0
    %6729 = vmatprep.subr.mxu0 0.0
    %6730 = vmatpush1.msra.mxu0 0.0
    %6731 = vmatprep.subr.mxu0 0.0
    %6732 = vmatpush1.msra.mxu0 0.0
    %6733 = vmatprep.subr.mxu0 0.0
    %6734 = vmatpush1.msra.mxu0 0.0
    %6735 = vmatprep.subr.mxu0 0.0
    %6736 = vmatpush1.msra.mxu0 0.0
    %6737 = vmatprep.subr.mxu0 0.0
    %6738 = vmatpush1.msra.mxu0 0.0
    %6739 = vmatprep.subr.mxu0 0.0
    %6740 = vmatpush1.msra.mxu0 0.0
    %6741 = vmatprep.subr.mxu0 0.0
    %6742 = vmatpush1.msra.mxu0 0.0
    %6743 = vmatprep.subr.mxu0 0.0
    %6744 = vmatpush1.msra.mxu0 0.0
    %6745 = vmatprep.subr.mxu0 0.0
    %6746 = vmatpush1.msra.mxu0 0.0
    %6747 = vmatprep.subr.mxu0 0.0
    %6748 = vmatpush1.msra.mxu0 0.0
    %6749 = vmatprep.subr.mxu0 0.0
    %6750 = vmatpush1.msra.mxu0 0.0
    %6751 = vmatprep.subr.mxu0 0.0
    %6752 = vmatpush1.msra.mxu0 0.0
    %6753 = vmatprep.subr.mxu0 0.0
    %6754 = vmatpush1.msra.mxu0 0.0
    %6755 = vmatprep.subr.mxu0 0.0
    %6756 = vmatpush1.msra.mxu0 0.0
    %6757 = vmatprep.subr.mxu0 0.0
    %6758 = vmatpush1.msra.mxu0 0.0
    %6759 = vmatprep.subr.mxu0 0.0
    %6760 = vmatpush1.msra.mxu0 0.0
    %6761 = vmatprep.subr.mxu0 0.0
    %6762 = vmatpush1.msra.mxu0 0.0
    %6763 = vmatprep.subr.mxu0 0.0
    %6764 = vmatpush1.msra.mxu0 0.0
    %6765 = vmatprep.subr.mxu0 0.0
    %6766 = vmatpush1.msra.mxu0 0.0
    %6767 = vmatprep.subr.mxu0 0.0
    %6768 = vmatpush1.msra.mxu0 0.0
    %6769 = vmatprep.subr.mxu0 0.0
    %6770 = vmatpush1.msra.mxu0 0.0
    %6771 = vmatprep.subr.mxu0 0.0
    %6772 = vmatpush1.msra.mxu0 0.0
    %6773 = vmatprep.subr.mxu0 0.0
    %6774 = vmatpush1.msra.mxu0 0.0
    %6775 = vmatprep.mubr.f32.mxu0 0.0
    %6776 = vmatmul.mubr.f32.gmra.mrb[0].mxu0 %v6430
    %v6777 = vpop.f32.mrb[0].mxu0
    %v6778 = vadd.f32 0.0, %v6777
    %v6779 = vpop.f32.mrb[0].mxu0
    %v6780 = vadd.f32 0.0, %v6779
    %6781 = vmatprep.mubr.f32.mxu0 0.0
    %6782 = vmatmul.mubr.f32.gmra.mrb[0].mxu0 %v6433
    %v6783 = vpop.f32.mrb[0].mxu0
    %v6784 = vadd.f32 0.0, %v6783
    %v6785 = vpop.f32.mrb[0].mxu0
    %v6786 = vadd.f32 0.0, %v6785
    %6787 = vmatprep.mubr.f32.mxu0 0.0
    %6788 = vmatmul.mubr.f32.gmra.mrb[0].mxu0 %v6436
    %v6789 = vpop.f32.mrb[0].mxu0
    %v6790 = vadd.f32 0.0, %v6789
    %v6791 = vpop.f32.mrb[0].mxu0
    %v6792 = vadd.f32 0.0, %v6791
    %6793 = vdwg.mxu0
    %v6794 = vld [vmem:[%s12] sm:$0xff]
    %v6795 = vld [vmem:[%s12 + $0x8] sm:$0xff]
    %v6796 = vld [vmem:[%s12 + $0x10] sm:$0xff]
    %v6797 = vld [vmem:[%s12 + $0x18] sm:$0xff]
    %v6798 = vld [vmem:[%s12 + $0x20] sm:$0xff]
    %v6799 = vld [vmem:[%s12 + $0x28] sm:$0xff]
    %v6800 = vld [vmem:[%s12 + $0x30] sm:$0xff]
    %v6801 = vld [vmem:[%s12 + $0x38] sm:$0xff]
    %v6802 = vld [vmem:[%s12 + $0x40] sm:$0xff]
    %v6803 = vld [vmem:[%s12 + $0x48] sm:$0xff]
    %v6804 = vld [vmem:[%s12 + $0x50] sm:$0xff]
    %v6805 = vld [vmem:[%s12 + $0x58] sm:$0xff]
    %v6806 = vld [vmem:[%s12 + $0x60] sm:$0xff]
    %v6807 = vld [vmem:[%s12 + $0x68] sm:$0xff]
    %v6808 = vld [vmem:[%s12 + $0x70] sm:$0xff]
    %v6809 = vld [vmem:[%s12 + $0x78] sm:$0xff]
    %v6810 = vld [vmem:[%s12 + $0x80] sm:$0xff]
    %v6811 = vld [vmem:[%s12 + $0x88] sm:$0xff]
    %v6812 = vld [vmem:[%s12 + $0x90] sm:$0xff]
    %v6813 = vld [vmem:[%s12 + $0x98] sm:$0xff]
    %v6814 = vld [vmem:[%s12 + $0xa0] sm:$0xff]
    %v6815 = vld [vmem:[%s12 + $0xa8] sm:$0xff]
    %v6816 = vld [vmem:[%s12 + $0xb0] sm:$0xff]
    %v6817 = vld [vmem:[%s12 + $0xb8] sm:$0xff]
    %v6818 = vld [vmem:[%s12 + $0xc0] sm:$0xff]
    %v6819 = vld [vmem:[%s12 + $0xc8] sm:$0xff]
    %v6820 = vld [vmem:[%s12 + $0xd0] sm:$0xff]
    %v6821 = vld [vmem:[%s12 + $0xd8] sm:$0xff]
    %v6822 = vld [vmem:[%s12 + $0xe0] sm:$0xff]
    %v6823 = vld [vmem:[%s12 + $0xe8] sm:$0xff]
    %v6824 = vld [vmem:[%s12 + $0xf0] sm:$0xff]
    %v6825 = vld [vmem:[%s12 + $0xf8] sm:$0xff]
    %v6826 = vld [vmem:[%s12 + $0x100] sm:$0xff]
    %v6827 = vld [vmem:[%s12 + $0x108] sm:$0xff]
    %v6828 = vld [vmem:[%s12 + $0x110] sm:$0xff]
    %v6829 = vld [vmem:[%s12 + $0x118] sm:$0xff]
    %v6830 = vld [vmem:[%s12 + $0x120] sm:$0xff]
    %v6831 = vld [vmem:[%s12 + $0x128] sm:$0xff]
    %v6832 = vld [vmem:[%s12 + $0x130] sm:$0xff]
    %v6833 = vld [vmem:[%s12 + $0x138] sm:$0xff]
    %v6834 = vld [vmem:[%s12 + $0x140] sm:$0xff]
    %v6835 = vld [vmem:[%s12 + $0x148] sm:$0xff]
    %v6836 = vld [vmem:[%s12 + $0x150] sm:$0xff]
    %v6837 = vld [vmem:[%s12 + $0x158] sm:$0xff]
    %v6838 = vld [vmem:[%s12 + $0x160] sm:$0xff]
    %v6839 = vld [vmem:[%s12 + $0x168] sm:$0xff]
    %v6840 = vld [vmem:[%s12 + $0x170] sm:$0xff]
    %v6841 = vld [vmem:[%s12 + $0x178] sm:$0xff]
    %v6842 = vld [vmem:[%s12 + $0x180] sm:$0xff]
    %v6843 = vld [vmem:[%s12 + $0x188] sm:$0xff]
    %v6844 = vld [vmem:[%s12 + $0x190] sm:$0xff]
    %v6845 = vld [vmem:[%s12 + $0x198] sm:$0xff]
    %s6846 = scalar_lea.vmem %s12, 416
    %v6847 = vld [vmem:[%s6846] sm:$0xff]
    %v6848 = vld [vmem:[%s6846 + $0x8] sm:$0xff]
    %v6849 = vld [vmem:[%s6846 + $0x10] sm:$0xff]
    %v6850 = vld [vmem:[%s6846 + $0x18] sm:$0xff]
    %v6851 = vld [vmem:[%s6846 + $0x20] sm:$0xff]
    %v6852 = vld [vmem:[%s6846 + $0x28] sm:$0xff]
    %v6853 = vld [vmem:[%s6846 + $0x30] sm:$0xff]
    %v6854 = vld [vmem:[%s6846 + $0x38] sm:$0xff]
    %v6855 = vld [vmem:[%s6846 + $0x40] sm:$0xff]
    %v6856 = vld [vmem:[%s6846 + $0x48] sm:$0xff]
    %v6857 = vld [vmem:[%s6846 + $0x50] sm:$0xff]
    %v6858 = vld [vmem:[%s6846 + $0x58] sm:$0xff]
    %v6859 = vld [vmem:[%s6846 + $0x60] sm:$0xff]
    %v6860 = vld [vmem:[%s6846 + $0x68] sm:$0xff]
    %v6861 = vld [vmem:[%s6846 + $0x70] sm:$0xff]
    %v6862 = vld [vmem:[%s6846 + $0x78] sm:$0xff]
    %v6863 = vld [vmem:[%s6846 + $0x80] sm:$0xff]
    %v6864 = vld [vmem:[%s6846 + $0x88] sm:$0xff]
    %v6865 = vld [vmem:[%s6846 + $0x90] sm:$0xff]
    %v6866 = vld [vmem:[%s6846 + $0x98] sm:$0xff]
    %v6867 = vld [vmem:[%s6846 + $0xa0] sm:$0xff]
    %v6868 = vld [vmem:[%s6846 + $0xa8] sm:$0xff]
    %v6869 = vld [vmem:[%s6846 + $0xb0] sm:$0xff]
    %v6870 = vld [vmem:[%s6846 + $0xb8] sm:$0xff]
    %v6871 = vld [vmem:[%s6846 + $0xc0] sm:$0xff]
    %v6872 = vld [vmem:[%s6846 + $0xc8] sm:$0xff]
    %v6873 = vld [vmem:[%s6846 + $0xd0] sm:$0xff]
    %v6874 = vld [vmem:[%s6846 + $0xd8] sm:$0xff]
    %v6875 = vld [vmem:[%s6846 + $0xe0] sm:$0xff]
    %v6876 = vld [vmem:[%s6846 + $0xe8] sm:$0xff]
    %v6877 = vld [vmem:[%s6846 + $0xf0] sm:$0xff]
    %v6878 = vld [vmem:[%s6846 + $0xf8] sm:$0xff]
    %v6879 = vld [vmem:[%s6846 + $0x100] sm:$0xff]
    %v6880 = vld [vmem:[%s6846 + $0x108] sm:$0xff]
    %v6881 = vld [vmem:[%s6846 + $0x110] sm:$0xff]
    %v6882 = vld [vmem:[%s6846 + $0x118] sm:$0xff]
    %v6883 = vld [vmem:[%s6846 + $0x120] sm:$0xff]
    %v6884 = vld [vmem:[%s6846 + $0x128] sm:$0xff]
    %v6885 = vld [vmem:[%s6846 + $0x130] sm:$0xff]
    %v6886 = vld [vmem:[%s6846 + $0x138] sm:$0xff]
    %v6887 = vld [vmem:[%s6846 + $0x140] sm:$0xff]
    %v6888 = vld [vmem:[%s6846 + $0x148] sm:$0xff]
    %v6889 = vld [vmem:[%s6846 + $0x150] sm:$0xff]
    %v6890 = vld [vmem:[%s6846 + $0x158] sm:$0xff]
    %v6891 = vld [vmem:[%s6846 + $0x160] sm:$0xff]
    %v6892 = vld [vmem:[%s6846 + $0x168] sm:$0xff]
    %v6893 = vld [vmem:[%s6846 + $0x170] sm:$0xff]
    %v6894 = vld [vmem:[%s6846 + $0x178] sm:$0xff]
    %v6895 = vld [vmem:[%s6846 + $0x180] sm:$0xff]
    %v6896 = vld [vmem:[%s6846 + $0x188] sm:$0xff]
    %v6897 = vld [vmem:[%s6846 + $0x190] sm:$0xff]
    %v6898 = vld [vmem:[%s6846 + $0x198] sm:$0xff]
    %v6911 = vrot.slane %v6517, 1
    %v6912 = vrot.slane %v6523, 1
    %v6913 = vsel %vm94, %v6911, %v6912
    %v6914 = vrot.slane %v6519, 1
    %v6915 = vrot.slane %v6525, 1
    %v6916 = vsel %vm94, %v6914, %v6915
    %v6917 = vrot.slane %v6600, 1
    %v6918 = vrot.slane %v6606, 1
    %v6919 = vsel %vm94, %v6917, %v6918
    %v6920 = vrot.slane %v6602, 1
    %v6921 = vrot.slane %v6608, 1
    %v6922 = vsel %vm94, %v6920, %v6921
    %v6923 = vrot.slane %v6529, 1
    %v6924 = vsel %vm94, %v6912, %v6923
    %v6925 = vrot.slane %v6531, 1
    %v6926 = vsel %vm94, %v6915, %v6925
    %v6927 = vrot.slane %v6612, 1
    %v6928 = vsel %vm94, %v6918, %v6927
    %v6929 = vrot.slane %v6614, 1
    %v6930 = vsel %vm94, %v6921, %v6929
    %v6937 = vsel %vm1501, %v6922, 0
    %v6939 = vsel %vm1501, %v6930, 0
    %6941 = vmatprep.subr.mxu0 0.0
    %6942 = vmatpush1.msra.mxu0 %v6847
    %6943 = vmatprep.subr.mxu0 0.0
    %6944 = vmatpush1.msra.mxu0 %v6848
    %6945 = vmatprep.subr.mxu0 0.0
    %6946 = vmatpush1.msra.mxu0 %v6849
    %6947 = vmatprep.subr.mxu0 0.0
    %6948 = vmatpush1.msra.mxu0 %v6850
    %6949 = vmatprep.subr.mxu0 0.0
    %6950 = vmatpush1.msra.mxu0 %v6851
    %6951 = vmatprep.subr.mxu0 0.0
    %6952 = vmatpush1.msra.mxu0 %v6852
    %6953 = vmatprep.subr.mxu0 0.0
    %6954 = vmatpush1.msra.mxu0 %v6853
    %6955 = vmatprep.subr.mxu0 0.0
    %6956 = vmatpush1.msra.mxu0 %v6854
    %6957 = vmatprep.subr.mxu0 0.0
    %6958 = vmatpush1.msra.mxu0 %v6855
    %6959 = vmatprep.subr.mxu0 0.0
    %6960 = vmatpush1.msra.mxu0 %v6856
    %6961 = vmatprep.subr.mxu0 0.0
    %6962 = vmatpush1.msra.mxu0 %v6857
    %6963 = vmatprep.subr.mxu0 0.0
    %6964 = vmatpush1.msra.mxu0 %v6858
    %6965 = vmatprep.subr.mxu0 0.0
    %6966 = vmatpush1.msra.mxu0 %v6859
    %6967 = vmatprep.subr.mxu0 0.0
    %6968 = vmatpush1.msra.mxu0 %v6860
    %6969 = vmatprep.subr.mxu0 0.0
    %6970 = vmatpush1.msra.mxu0 %v6861
    %6971 = vmatprep.subr.mxu0 0.0
    %6972 = vmatpush1.msra.mxu0 %v6862
    %6973 = vmatprep.subr.mxu0 0.0
    %6974 = vmatpush1.msra.mxu0 %v6863
    %6975 = vmatprep.subr.mxu0 0.0
    %6976 = vmatpush1.msra.mxu0 %v6864
    %6977 = vmatprep.subr.mxu0 0.0
    %6978 = vmatpush1.msra.mxu0 %v6865
    %6979 = vmatprep.subr.mxu0 0.0
    %6980 = vmatpush1.msra.mxu0 %v6866
    %6981 = vmatprep.subr.mxu0 0.0
    %6982 = vmatpush1.msra.mxu0 %v6867
    %6983 = vmatprep.subr.mxu0 0.0
    %6984 = vmatpush1.msra.mxu0 %v6868
    %6985 = vmatprep.subr.mxu0 0.0
    %6986 = vmatpush1.msra.mxu0 %v6869
    %6987 = vmatprep.subr.mxu0 0.0
    %6988 = vmatpush1.msra.mxu0 %v6870
    %6989 = vmatprep.subr.mxu0 0.0
    %6990 = vmatpush1.msra.mxu0 %v6871
    %6991 = vmatprep.subr.mxu0 0.0
    %6992 = vmatpush1.msra.mxu0 %v6872
    %6993 = vmatprep.subr.mxu0 0.0
    %6994 = vmatpush1.msra.mxu0 %v6873
    %6995 = vmatprep.subr.mxu0 0.0
    %6996 = vmatpush1.msra.mxu0 %v6874
    %6997 = vmatprep.subr.mxu0 0.0
    %6998 = vmatpush1.msra.mxu0 %v6875
    %6999 = vmatprep.subr.mxu0 0.0
    %7000 = vmatpush1.msra.mxu0 %v6876
    %7001 = vmatprep.subr.mxu0 0.0
    %7002 = vmatpush1.msra.mxu0 %v6877
    %7003 = vmatprep.subr.mxu0 0.0
    %7004 = vmatpush1.msra.mxu0 %v6878
    %7005 = vmatprep.mubr.f32.mxu0 %v6916
    %7006 = vmatmul.mubr.f32.gmra.mrb[0].mxu0 %v6913
    %v7007 = vpop.f32.mrb[0].mxu0
    %v7008 = vadd.f32 0.0, %v7007
    %v7009 = vpop.f32.mrb[0].mxu0
    %7010 = vmatprep.mubr.f32.mxu0 %v6926
    %7011 = vmatmul.mubr.f32.gmra.mrb[0].mxu0 %v6924
    %v7012 = vpop.f32.mrb[0].mxu0
    %v7013 = vadd.f32 0.0, %v7012
    %v7014 = vpop.f32.mrb[0].mxu0
    %7015 = vdwg.mxu0
    %7016 = vmatprep.subr.mxu0 0.0
    %7017 = vmatpush1.msra.mxu0 %v6879
    %7018 = vmatprep.subr.mxu0 0.0
    %7019 = vmatpush1.msra.mxu0 %v6880
    %7020 = vmatprep.subr.mxu0 0.0
    %7021 = vmatpush1.msra.mxu0 %v6881
    %7022 = vmatprep.subr.mxu0 0.0
    %7023 = vmatpush1.msra.mxu0 %v6882
    %7024 = vmatprep.subr.mxu0 0.0
    %7025 = vmatpush1.msra.mxu0 %v6883
    %7026 = vmatprep.subr.mxu0 0.0
    %7027 = vmatpush1.msra.mxu0 %v6884
    %7028 = vmatprep.subr.mxu0 0.0
    %7029 = vmatpush1.msra.mxu0 %v6885
    %7030 = vmatprep.subr.mxu0 0.0
    %7031 = vmatpush1.msra.mxu0 %v6886
    %7032 = vmatprep.subr.mxu0 0.0
    %7033 = vmatpush1.msra.mxu0 %v6887
    %7034 = vmatprep.subr.mxu0 0.0
    %7035 = vmatpush1.msra.mxu0 %v6888
    %7036 = vmatprep.subr.mxu0 0.0
    %7037 = vmatpush1.msra.mxu0 %v6889
    %7038 = vmatprep.subr.mxu0 0.0
    %7039 = vmatpush1.msra.mxu0 %v6890
    %7040 = vmatprep.subr.mxu0 0.0
    %7041 = vmatpush1.msra.mxu0 %v6891
    %7042 = vmatprep.subr.mxu0 0.0
    %7043 = vmatpush1.msra.mxu0 %v6892
    %7044 = vmatprep.subr.mxu0 0.0
    %7045 = vmatpush1.msra.mxu0 %v6893
    %7046 = vmatprep.subr.mxu0 0.0
    %7047 = vmatpush1.msra.mxu0 %v6894
    %7048 = vmatprep.subr.mxu0 0.0
    %7049 = vmatpush1.msra.mxu0 %v6895
    %7050 = vmatprep.subr.mxu0 0.0
    %7051 = vmatpush1.msra.mxu0 %v6896
    %7052 = vmatprep.subr.mxu0 0.0
    %7053 = vmatpush1.msra.mxu0 %v6897
    %7054 = vmatprep.subr.mxu0 0.0
    %7055 = vmatpush1.msra.mxu0 %v6898
    %7056 = vmatprep.subr.mxu0 0.0
    %7057 = vmatpush1.msra.mxu0 0.0
    %7058 = vmatprep.subr.mxu0 0.0
    %7059 = vmatpush1.msra.mxu0 0.0
    %7060 = vmatprep.subr.mxu0 0.0
    %7061 = vmatpush1.msra.mxu0 0.0
    %7062 = vmatprep.subr.mxu0 0.0
    %7063 = vmatpush1.msra.mxu0 0.0
    %7064 = vmatprep.subr.mxu0 0.0
    %7065 = vmatpush1.msra.mxu0 0.0
    %7066 = vmatprep.subr.mxu0 0.0
    %7067 = vmatpush1.msra.mxu0 0.0
    %7068 = vmatprep.subr.mxu0 0.0
    %7069 = vmatpush1.msra.mxu0 0.0
    %7070 = vmatprep.subr.mxu0 0.0
    %7071 = vmatpush1.msra.mxu0 0.0
    %7072 = vmatprep.subr.mxu0 0.0
    %7073 = vmatpush1.msra.mxu0 0.0
    %7074 = vmatprep.subr.mxu0 0.0
    %7075 = vmatpush1.msra.mxu0 0.0
    %7076 = vmatprep.subr.mxu0 0.0
    %7077 = vmatpush1.msra.mxu0 0.0
    %7078 = vmatprep.subr.mxu0 0.0
    %7079 = vmatpush1.msra.mxu0 0.0
    %7080 = vmatprep.mubr.f32.mxu0 %v6937
    %7081 = vmatmul.mubr.f32.gmra.mrb[0].mxu0 %v6919
    %v7082 = vpop.f32.mrb[0].mxu0
    %v7083 = vadd.f32 %v7008, %v7082
    %v7084 = vpop.f32.mrb[0].mxu0
    %7085 = vmatprep.mubr.f32.mxu0 %v6939
    %7086 = vmatmul.mubr.f32.gmra.mrb[0].mxu0 %v6928
    %v7087 = vpop.f32.mrb[0].mxu0
    %v7088 = vadd.f32 %v7013, %v7087
    %v7089 = vpop.f32.mrb[0].mxu0
    %7090 = vdwg.mxu0
    %v7091 = vsel %vm1501, %v6602, 0
    %v7093 = vsel %vm1501, %v6608, 0
    %7095 = vmatprep.subr.mxu0 0.0
    %7096 = vmatpush1.msra.mxu0 %v6794
    %7097 = vmatprep.subr.mxu0 0.0
    %7098 = vmatpush1.msra.mxu0 %v6795
    %7099 = vmatprep.subr.mxu0 0.0
    %7100 = vmatpush1.msra.mxu0 %v6796
    %7101 = vmatprep.subr.mxu0 0.0
    %7102 = vmatpush1.msra.mxu0 %v6797
    %7103 = vmatprep.subr.mxu0 0.0
    %7104 = vmatpush1.msra.mxu0 %v6798
    %7105 = vmatprep.subr.mxu0 0.0
    %7106 = vmatpush1.msra.mxu0 %v6799
    %7107 = vmatprep.subr.mxu0 0.0
    %7108 = vmatpush1.msra.mxu0 %v6800
    %7109 = vmatprep.subr.mxu0 0.0
    %7110 = vmatpush1.msra.mxu0 %v6801
    %7111 = vmatprep.subr.mxu0 0.0
    %7112 = vmatpush1.msra.mxu0 %v6802
    %7113 = vmatprep.subr.mxu0 0.0
    %7114 = vmatpush1.msra.mxu0 %v6803
    %7115 = vmatprep.subr.mxu0 0.0
    %7116 = vmatpush1.msra.mxu0 %v6804
    %7117 = vmatprep.subr.mxu0 0.0
    %7118 = vmatpush1.msra.mxu0 %v6805
    %7119 = vmatprep.subr.mxu0 0.0
    %7120 = vmatpush1.msra.mxu0 %v6806
    %7121 = vmatprep.subr.mxu0 0.0
    %7122 = vmatpush1.msra.mxu0 %v6807
    %7123 = vmatprep.subr.mxu0 0.0
    %7124 = vmatpush1.msra.mxu0 %v6808
    %7125 = vmatprep.subr.mxu0 0.0
    %7126 = vmatpush1.msra.mxu0 %v6809
    %7127 = vmatprep.subr.mxu0 0.0
    %7128 = vmatpush1.msra.mxu0 %v6810
    %7129 = vmatprep.subr.mxu0 0.0
    %7130 = vmatpush1.msra.mxu0 %v6811
    %7131 = vmatprep.subr.mxu0 0.0
    %7132 = vmatpush1.msra.mxu0 %v6812
    %7133 = vmatprep.subr.mxu0 0.0
    %7134 = vmatpush1.msra.mxu0 %v6813
    %7135 = vmatprep.subr.mxu0 0.0
    %7136 = vmatpush1.msra.mxu0 %v6814
    %7137 = vmatprep.subr.mxu0 0.0
    %7138 = vmatpush1.msra.mxu0 %v6815
    %7139 = vmatprep.subr.mxu0 0.0
    %7140 = vmatpush1.msra.mxu0 %v6816
    %7141 = vmatprep.subr.mxu0 0.0
    %7142 = vmatpush1.msra.mxu0 %v6817
    %7143 = vmatprep.subr.mxu0 0.0
    %7144 = vmatpush1.msra.mxu0 %v6818
    %7145 = vmatprep.subr.mxu0 0.0
    %7146 = vmatpush1.msra.mxu0 %v6819
    %7147 = vmatprep.subr.mxu0 0.0
    %7148 = vmatpush1.msra.mxu0 %v6820
    %7149 = vmatprep.subr.mxu0 0.0
    %7150 = vmatpush1.msra.mxu0 %v6821
    %7151 = vmatprep.subr.mxu0 0.0
    %7152 = vmatpush1.msra.mxu0 %v6822
    %7153 = vmatprep.subr.mxu0 0.0
    %7154 = vmatpush1.msra.mxu0 %v6823
    %7155 = vmatprep.subr.mxu0 0.0
    %7156 = vmatpush1.msra.mxu0 %v6824
    %7157 = vmatprep.subr.mxu0 0.0
    %7158 = vmatpush1.msra.mxu0 %v6825
    %7159 = vmatprep.mubr.f32.mxu0 %v6519
    %7160 = vmatmul.mubr.f32.gmra.mrb[0].mxu0 %v6517
    %v7161 = vpop.f32.mrb[0].mxu0
    %v7162 = vadd.f32 %v7083, %v7161
    %v7163 = vpop.f32.mrb[0].mxu0
    %7164 = vmatprep.mubr.f32.mxu0 %v6525
    %7165 = vmatmul.mubr.f32.gmra.mrb[0].mxu0 %v6523
    %v7166 = vpop.f32.mrb[0].mxu0
    %v7167 = vadd.f32 %v7088, %v7166
    %v7168 = vpop.f32.mrb[0].mxu0
    %7169 = vdwg.mxu0
    %7170 = vmatprep.subr.mxu0 0.0
    %7171 = vmatpush1.msra.mxu0 %v6826
    %7172 = vmatprep.subr.mxu0 0.0
    %7173 = vmatpush1.msra.mxu0 %v6827
    %7174 = vmatprep.subr.mxu0 0.0
    %7175 = vmatpush1.msra.mxu0 %v6828
    %7176 = vmatprep.subr.mxu0 0.0
    %7177 = vmatpush1.msra.mxu0 %v6829
    %7178 = vmatprep.subr.mxu0 0.0
    %7179 = vmatpush1.msra.mxu0 %v6830
    %7180 = vmatprep.subr.mxu0 0.0
    %7181 = vmatpush1.msra.mxu0 %v6831
    %7182 = vmatprep.subr.mxu0 0.0
    %7183 = vmatpush1.msra.mxu0 %v6832
    %7184 = vmatprep.subr.mxu0 0.0
    %7185 = vmatpush1.msra.mxu0 %v6833
    %7186 = vmatprep.subr.mxu0 0.0
    %7187 = vmatpush1.msra.mxu0 %v6834
    %7188 = vmatprep.subr.mxu0 0.0
    %7189 = vmatpush1.msra.mxu0 %v6835
    %7190 = vmatprep.subr.mxu0 0.0
    %7191 = vmatpush1.msra.mxu0 %v6836
    %7192 = vmatprep.subr.mxu0 0.0
    %7193 = vmatpush1.msra.mxu0 %v6837
    %7194 = vmatprep.subr.mxu0 0.0
    %7195 = vmatpush1.msra.mxu0 %v6838
    %7196 = vmatprep.subr.mxu0 0.0
    %7197 = vmatpush1.msra.mxu0 %v6839
    %7198 = vmatprep.subr.mxu0 0.0
    %7199 = vmatpush1.msra.mxu0 %v6840
    %7200 = vmatprep.subr.mxu0 0.0
    %7201 = vmatpush1.msra.mxu0 %v6841
    %7202 = vmatprep.subr.mxu0 0.0
    %7203 = vmatpush1.msra.mxu0 %v6842
    %7204 = vmatprep.subr.mxu0 0.0
    %7205 = vmatpush1.msra.mxu0 %v6843
    %7206 = vmatprep.subr.mxu0 0.0
    %7207 = vmatpush1.msra.mxu0 %v6844
    %7208 = vmatprep.subr.mxu0 0.0
    %7209 = vmatpush1.msra.mxu0 %v6845
    %7210 = vmatprep.subr.mxu0 0.0
    %7211 = vmatpush1.msra.mxu0 0.0
    %7212 = vmatprep.subr.mxu0 0.0
    %7213 = vmatpush1.msra.mxu0 0.0
    %7214 = vmatprep.subr.mxu0 0.0
    %7215 = vmatpush1.msra.mxu0 0.0
    %7216 = vmatprep.subr.mxu0 0.0
    %7217 = vmatpush1.msra.mxu0 0.0
    %7218 = vmatprep.subr.mxu0 0.0
    %7219 = vmatpush1.msra.mxu0 0.0
    %7220 = vmatprep.subr.mxu0 0.0
    %7221 = vmatpush1.msra.mxu0 0.0
    %7222 = vmatprep.subr.mxu0 0.0
    %7223 = vmatpush1.msra.mxu0 0.0
    %7224 = vmatprep.subr.mxu0 0.0
    %7225 = vmatpush1.msra.mxu0 0.0
    %7226 = vmatprep.subr.mxu0 0.0
    %7227 = vmatpush1.msra.mxu0 0.0
    %7228 = vmatprep.subr.mxu0 0.0
    %7229 = vmatpush1.msra.mxu0 0.0
    %7230 = vmatprep.subr.mxu0 0.0
    %7231 = vmatpush1.msra.mxu0 0.0
    %7232 = vmatprep.subr.mxu0 0.0
    %7233 = vmatpush1.msra.mxu0 0.0
    %7234 = vmatprep.mubr.f32.mxu0 %v7091
    %7235 = vmatmul.mubr.f32.gmra.mrb[0].mxu0 %v6600
    %v7236 = vpop.f32.mrb[0].mxu0
    %v7237 = vadd.f32 %v7162, %v7236
    %v7238 = vpop.f32.mrb[0].mxu0
    %7239 = vmatprep.mubr.f32.mxu0 %v7093
    %7240 = vmatmul.mubr.f32.gmra.mrb[0].mxu0 %v6606
    %v7241 = vpop.f32.mrb[0].mxu0
    %v7242 = vadd.f32 %v7167, %v7241
    %v7243 = vpop.f32.mrb[0].mxu0
    %7244 = vdwg.mxu0
    %s7245 = scalar_lea.vmem %s12, 832
    %v7246 = vld [vmem:[%s7245] sm:$0xff]
    %v7247 = vld [vmem:[%s7245 + $0x8] sm:$0xff]
    %v7248 = vld [vmem:[%s7245 + $0x10] sm:$0xff]
    %v7249 = vld [vmem:[%s7245 + $0x18] sm:$0xff]
    %v7250 = vld [vmem:[%s7245 + $0x20] sm:$0xff]
    %v7251 = vld [vmem:[%s7245 + $0x28] sm:$0xff]
    %v7252 = vld [vmem:[%s7245 + $0x30] sm:$0xff]
    %v7253 = vld [vmem:[%s7245 + $0x38] sm:$0xff]
    %v7254 = vld [vmem:[%s7245 + $0x40] sm:$0xff]
    %v7255 = vld [vmem:[%s7245 + $0x48] sm:$0xff]
    %v7256 = vld [vmem:[%s7245 + $0x50] sm:$0xff]
    %v7257 = vld [vmem:[%s7245 + $0x58] sm:$0xff]
    %v7258 = vld [vmem:[%s7245 + $0x60] sm:$0xff]
    %v7259 = vld [vmem:[%s7245 + $0x68] sm:$0xff]
    %v7260 = vld [vmem:[%s7245 + $0x70] sm:$0xff]
    %v7261 = vld [vmem:[%s7245 + $0x78] sm:$0xff]
    %v7262 = vld [vmem:[%s7245 + $0x80] sm:$0xff]
    %v7263 = vld [vmem:[%s7245 + $0x88] sm:$0xff]
    %v7264 = vld [vmem:[%s7245 + $0x90] sm:$0xff]
    %v7265 = vld [vmem:[%s7245 + $0x98] sm:$0xff]
    %v7266 = vld [vmem:[%s7245 + $0xa0] sm:$0xff]
    %v7267 = vld [vmem:[%s7245 + $0xa8] sm:$0xff]
    %v7268 = vld [vmem:[%s7245 + $0xb0] sm:$0xff]
    %v7269 = vld [vmem:[%s7245 + $0xb8] sm:$0xff]
    %v7270 = vld [vmem:[%s7245 + $0xc0] sm:$0xff]
    %v7271 = vld [vmem:[%s7245 + $0xc8] sm:$0xff]
    %v7272 = vld [vmem:[%s7245 + $0xd0] sm:$0xff]
    %v7273 = vld [vmem:[%s7245 + $0xd8] sm:$0xff]
    %v7274 = vld [vmem:[%s7245 + $0xe0] sm:$0xff]
    %v7275 = vld [vmem:[%s7245 + $0xe8] sm:$0xff]
    %v7276 = vld [vmem:[%s7245 + $0xf0] sm:$0xff]
    %v7277 = vld [vmem:[%s7245 + $0xf8] sm:$0xff]
    %v7278 = vld [vmem:[%s7245 + $0x100] sm:$0xff]
    %v7279 = vld [vmem:[%s7245 + $0x108] sm:$0xff]
    %v7280 = vld [vmem:[%s7245 + $0x110] sm:$0xff]
    %v7281 = vld [vmem:[%s7245 + $0x118] sm:$0xff]
    %v7282 = vld [vmem:[%s7245 + $0x120] sm:$0xff]
    %v7283 = vld [vmem:[%s7245 + $0x128] sm:$0xff]
    %v7284 = vld [vmem:[%s7245 + $0x130] sm:$0xff]
    %v7285 = vld [vmem:[%s7245 + $0x138] sm:$0xff]
    %v7286 = vld [vmem:[%s7245 + $0x140] sm:$0xff]
    %v7287 = vld [vmem:[%s7245 + $0x148] sm:$0xff]
    %v7288 = vld [vmem:[%s7245 + $0x150] sm:$0xff]
    %v7289 = vld [vmem:[%s7245 + $0x158] sm:$0xff]
    %v7290 = vld [vmem:[%s7245 + $0x160] sm:$0xff]
    %v7291 = vld [vmem:[%s7245 + $0x168] sm:$0xff]
    %v7292 = vld [vmem:[%s7245 + $0x170] sm:$0xff]
    %v7293 = vld [vmem:[%s7245 + $0x178] sm:$0xff]
    %v7294 = vld [vmem:[%s7245 + $0x180] sm:$0xff]
    %v7295 = vld [vmem:[%s7245 + $0x188] sm:$0xff]
    %v7296 = vld [vmem:[%s7245 + $0x190] sm:$0xff]
    %v7297 = vld [vmem:[%s7245 + $0x198] sm:$0xff]
    %v7298 = vrot.slane %v6517, 2
    %v7299 = vrot.slane %v6523, 2
    %v7300 = vsel %vm424, %v7298, %v7299
    %v7301 = vrot.slane %v6519, 2
    %v7302 = vrot.slane %v6525, 2
    %v7303 = vsel %vm424, %v7301, %v7302
    %v7304 = vrot.slane %v6600, 2
    %v7305 = vrot.slane %v6606, 2
    %v7306 = vsel %vm424, %v7304, %v7305
    %v7307 = vrot.slane %v6602, 2
    %v7308 = vrot.slane %v6608, 2
    %v7309 = vsel %vm424, %v7307, %v7308
    %v7310 = vrot.slane %v6529, 2
    %v7311 = vsel %vm424, %v7299, %v7310
    %v7312 = vrot.slane %v6531, 2
    %v7313 = vsel %vm424, %v7302, %v7312
    %v7314 = vrot.slane %v6612, 2
    %v7315 = vsel %vm424, %v7305, %v7314
    %v7316 = vrot.slane %v6614, 2
    %v7317 = vsel %vm424, %v7308, %v7316
    %v7324 = vsel %vm1501, %v7309, 0
    %v7326 = vsel %vm1501, %v7317, 0
    %7328 = vmatprep.subr.mxu0 0.0
    %7329 = vmatpush1.msra.mxu0 %v7246
    %7330 = vmatprep.subr.mxu0 0.0
    %7331 = vmatpush1.msra.mxu0 %v7247
    %7332 = vmatprep.subr.mxu0 0.0
    %7333 = vmatpush1.msra.mxu0 %v7248
    %7334 = vmatprep.subr.mxu0 0.0
    %7335 = vmatpush1.msra.mxu0 %v7249
    %7336 = vmatprep.subr.mxu0 0.0
    %7337 = vmatpush1.msra.mxu0 %v7250
    %7338 = vmatprep.subr.mxu0 0.0
    %7339 = vmatpush1.msra.mxu0 %v7251
    %7340 = vmatprep.subr.mxu0 0.0
    %7341 = vmatpush1.msra.mxu0 %v7252
    %7342 = vmatprep.subr.mxu0 0.0
    %7343 = vmatpush1.msra.mxu0 %v7253
    %7344 = vmatprep.subr.mxu0 0.0
    %7345 = vmatpush1.msra.mxu0 %v7254
    %7346 = vmatprep.subr.mxu0 0.0
    %7347 = vmatpush1.msra.mxu0 %v7255
    %7348 = vmatprep.subr.mxu0 0.0
    %7349 = vmatpush1.msra.mxu0 %v7256
    %7350 = vmatprep.subr.mxu0 0.0
    %7351 = vmatpush1.msra.mxu0 %v7257
    %7352 = vmatprep.subr.mxu0 0.0
    %7353 = vmatpush1.msra.mxu0 %v7258
    %7354 = vmatprep.subr.mxu0 0.0
    %7355 = vmatpush1.msra.mxu0 %v7259
    %7356 = vmatprep.subr.mxu0 0.0
    %7357 = vmatpush1.msra.mxu0 %v7260
    %7358 = vmatprep.subr.mxu0 0.0
    %7359 = vmatpush1.msra.mxu0 %v7261
    %7360 = vmatprep.subr.mxu0 0.0
    %7361 = vmatpush1.msra.mxu0 %v7262
    %7362 = vmatprep.subr.mxu0 0.0
    %7363 = vmatpush1.msra.mxu0 %v7263
    %7364 = vmatprep.subr.mxu0 0.0
    %7365 = vmatpush1.msra.mxu0 %v7264
    %7366 = vmatprep.subr.mxu0 0.0
    %7367 = vmatpush1.msra.mxu0 %v7265
    %7368 = vmatprep.subr.mxu0 0.0
    %7369 = vmatpush1.msra.mxu0 %v7266
    %7370 = vmatprep.subr.mxu0 0.0
    %7371 = vmatpush1.msra.mxu0 %v7267
    %7372 = vmatprep.subr.mxu0 0.0
    %7373 = vmatpush1.msra.mxu0 %v7268
    %7374 = vmatprep.subr.mxu0 0.0
    %7375 = vmatpush1.msra.mxu0 %v7269
    %7376 = vmatprep.subr.mxu0 0.0
    %7377 = vmatpush1.msra.mxu0 %v7270
    %7378 = vmatprep.subr.mxu0 0.0
    %7379 = vmatpush1.msra.mxu0 %v7271
    %7380 = vmatprep.subr.mxu0 0.0
    %7381 = vmatpush1.msra.mxu0 %v7272
    %7382 = vmatprep.subr.mxu0 0.0
    %7383 = vmatpush1.msra.mxu0 %v7273
    %7384 = vmatprep.subr.mxu0 0.0
    %7385 = vmatpush1.msra.mxu0 %v7274
    %7386 = vmatprep.subr.mxu0 0.0
    %7387 = vmatpush1.msra.mxu0 %v7275
    %7388 = vmatprep.subr.mxu0 0.0
    %7389 = vmatpush1.msra.mxu0 %v7276
    %7390 = vmatprep.subr.mxu0 0.0
    %7391 = vmatpush1.msra.mxu0 %v7277
    %7392 = vmatprep.mubr.f32.mxu0 %v7303
    %7393 = vmatmul.mubr.f32.gmra.mrb[0].mxu0 %v7300
    %v7394 = vpop.f32.mrb[0].mxu0
    %v7395 = vadd.f32 0.0, %v7394
    %v7396 = vpop.f32.mrb[0].mxu0
    %7397 = vmatprep.mubr.f32.mxu0 %v7313
    %7398 = vmatmul.mubr.f32.gmra.mrb[0].mxu0 %v7311
    %v7399 = vpop.f32.mrb[0].mxu0
    %v7400 = vadd.f32 0.0, %v7399
    %v7401 = vpop.f32.mrb[0].mxu0
    %7402 = vdwg.mxu0
    %7403 = vmatprep.subr.mxu0 0.0
    %7404 = vmatpush1.msra.mxu0 %v7278
    %7405 = vmatprep.subr.mxu0 0.0
    %7406 = vmatpush1.msra.mxu0 %v7279
    %7407 = vmatprep.subr.mxu0 0.0
    %7408 = vmatpush1.msra.mxu0 %v7280
    %7409 = vmatprep.subr.mxu0 0.0
    %7410 = vmatpush1.msra.mxu0 %v7281
    %7411 = vmatprep.subr.mxu0 0.0
    %7412 = vmatpush1.msra.mxu0 %v7282
    %7413 = vmatprep.subr.mxu0 0.0
    %7414 = vmatpush1.msra.mxu0 %v7283
    %7415 = vmatprep.subr.mxu0 0.0
    %7416 = vmatpush1.msra.mxu0 %v7284
    %7417 = vmatprep.subr.mxu0 0.0
    %7418 = vmatpush1.msra.mxu0 %v7285
    %7419 = vmatprep.subr.mxu0 0.0
    %7420 = vmatpush1.msra.mxu0 %v7286
    %7421 = vmatprep.subr.mxu0 0.0
    %7422 = vmatpush1.msra.mxu0 %v7287
    %7423 = vmatprep.subr.mxu0 0.0
    %7424 = vmatpush1.msra.mxu0 %v7288
    %7425 = vmatprep.subr.mxu0 0.0
    %7426 = vmatpush1.msra.mxu0 %v7289
    %7427 = vmatprep.subr.mxu0 0.0
    %7428 = vmatpush1.msra.mxu0 %v7290
    %7429 = vmatprep.subr.mxu0 0.0
    %7430 = vmatpush1.msra.mxu0 %v7291
    %7431 = vmatprep.subr.mxu0 0.0
    %7432 = vmatpush1.msra.mxu0 %v7292
    %7433 = vmatprep.subr.mxu0 0.0
    %7434 = vmatpush1.msra.mxu0 %v7293
    %7435 = vmatprep.subr.mxu0 0.0
    %7436 = vmatpush1.msra.mxu0 %v7294
    %7437 = vmatprep.subr.mxu0 0.0
    %7438 = vmatpush1.msra.mxu0 %v7295
    %7439 = vmatprep.subr.mxu0 0.0
    %7440 = vmatpush1.msra.mxu0 %v7296
    %7441 = vmatprep.subr.mxu0 0.0
    %7442 = vmatpush1.msra.mxu0 %v7297
    %7443 = vmatprep.subr.mxu0 0.0
    %7444 = vmatpush1.msra.mxu0 0.0
    %7445 = vmatprep.subr.mxu0 0.0
    %7446 = vmatpush1.msra.mxu0 0.0
    %7447 = vmatprep.subr.mxu0 0.0
    %7448 = vmatpush1.msra.mxu0 0.0
    %7449 = vmatprep.subr.mxu0 0.0
    %7450 = vmatpush1.msra.mxu0 0.0
    %7451 = vmatprep.subr.mxu0 0.0
    %7452 = vmatpush1.msra.mxu0 0.0
    %7453 = vmatprep.subr.mxu0 0.0
    %7454 = vmatpush1.msra.mxu0 0.0
    %7455 = vmatprep.subr.mxu0 0.0
    %7456 = vmatpush1.msra.mxu0 0.0
    %7457 = vmatprep.subr.mxu0 0.0
    %7458 = vmatpush1.msra.mxu0 0.0
    %7459 = vmatprep.subr.mxu0 0.0
    %7460 = vmatpush1.msra.mxu0 0.0
    %7461 = vmatprep.subr.mxu0 0.0
    %7462 = vmatpush1.msra.mxu0 0.0
    %7463 = vmatprep.subr.mxu0 0.0
    %7464 = vmatpush1.msra.mxu0 0.0
    %7465 = vmatprep.subr.mxu0 0.0
    %7466 = vmatpush1.msra.mxu0 0.0
    %7467 = vmatprep.mubr.f32.mxu0 %v7324
    %7468 = vmatmul.mubr.f32.gmra.mrb[0].mxu0 %v7306
    %v7469 = vpop.f32.mrb[0].mxu0
    %v7470 = vadd.f32 %v7395, %v7469
    %v7471 = vpop.f32.mrb[0].mxu0
    %7472 = vmatprep.mubr.f32.mxu0 %v7326
    %7473 = vmatmul.mubr.f32.gmra.mrb[0].mxu0 %v7315
    %v7474 = vpop.f32.mrb[0].mxu0
    %v7475 = vadd.f32 %v7400, %v7474
    %v7476 = vpop.f32.mrb[0].mxu0
    %7477 = vdwg.mxu0
    %v7478 = vadd.f32 %v7237, %v7470
    %v7479 = vadd.f32 %v7242, %v7475
    %s7480 = scalar_lea.vmem %s12, 1248
    %v7481 = vld [vmem:[%s7480] sm:$0xff]
    %v7482 = vld [vmem:[%s7480 + $0x8] sm:$0xff]
    %v7483 = vld [vmem:[%s7480 + $0x10] sm:$0xff]
    %v7484 = vld [vmem:[%s7480 + $0x18] sm:$0xff]
    %v7485 = vld [vmem:[%s7480 + $0x20] sm:$0xff]
    %v7486 = vld [vmem:[%s7480 + $0x28] sm:$0xff]
    %v7487 = vld [vmem:[%s7480 + $0x30] sm:$0xff]
    %v7488 = vld [vmem:[%s7480 + $0x38] sm:$0xff]
    %v7489 = vld [vmem:[%s7480 + $0x40] sm:$0xff]
    %v7490 = vld [vmem:[%s7480 + $0x48] sm:$0xff]
    %v7491 = vld [vmem:[%s7480 + $0x50] sm:$0xff]
    %v7492 = vld [vmem:[%s7480 + $0x58] sm:$0xff]
    %v7493 = vld [vmem:[%s7480 + $0x60] sm:$0xff]
    %v7494 = vld [vmem:[%s7480 + $0x68] sm:$0xff]
    %v7495 = vld [vmem:[%s7480 + $0x70] sm:$0xff]
    %v7496 = vld [vmem:[%s7480 + $0x78] sm:$0xff]
    %v7497 = vld [vmem:[%s7480 + $0x80] sm:$0xff]
    %v7498 = vld [vmem:[%s7480 + $0x88] sm:$0xff]
    %v7499 = vld [vmem:[%s7480 + $0x90] sm:$0xff]
    %v7500 = vld [vmem:[%s7480 + $0x98] sm:$0xff]
    %v7501 = vld [vmem:[%s7480 + $0xa0] sm:$0xff]
    %v7502 = vld [vmem:[%s7480 + $0xa8] sm:$0xff]
    %v7503 = vld [vmem:[%s7480 + $0xb0] sm:$0xff]
    %v7504 = vld [vmem:[%s7480 + $0xb8] sm:$0xff]
    %v7505 = vld [vmem:[%s7480 + $0xc0] sm:$0xff]
    %v7506 = vld [vmem:[%s7480 + $0xc8] sm:$0xff]
    %v7507 = vld [vmem:[%s7480 + $0xd0] sm:$0xff]
    %v7508 = vld [vmem:[%s7480 + $0xd8] sm:$0xff]
    %v7509 = vld [vmem:[%s7480 + $0xe0] sm:$0xff]
    %v7510 = vld [vmem:[%s7480 + $0xe8] sm:$0xff]
    %v7511 = vld [vmem:[%s7480 + $0xf0] sm:$0xff]
    %v7512 = vld [vmem:[%s7480 + $0xf8] sm:$0xff]
    %v7513 = vld [vmem:[%s7480 + $0x100] sm:$0xff]
    %v7514 = vld [vmem:[%s7480 + $0x108] sm:$0xff]
    %v7515 = vld [vmem:[%s7480 + $0x110] sm:$0xff]
    %v7516 = vld [vmem:[%s7480 + $0x118] sm:$0xff]
    %v7517 = vld [vmem:[%s7480 + $0x120] sm:$0xff]
    %v7518 = vld [vmem:[%s7480 + $0x128] sm:$0xff]
    %v7519 = vld [vmem:[%s7480 + $0x130] sm:$0xff]
    %v7520 = vld [vmem:[%s7480 + $0x138] sm:$0xff]
    %v7521 = vld [vmem:[%s7480 + $0x140] sm:$0xff]
    %v7522 = vld [vmem:[%s7480 + $0x148] sm:$0xff]
    %v7523 = vld [vmem:[%s7480 + $0x150] sm:$0xff]
    %v7524 = vld [vmem:[%s7480 + $0x158] sm:$0xff]
    %v7525 = vld [vmem:[%s7480 + $0x160] sm:$0xff]
    %v7526 = vld [vmem:[%s7480 + $0x168] sm:$0xff]
    %v7527 = vld [vmem:[%s7480 + $0x170] sm:$0xff]
    %v7528 = vld [vmem:[%s7480 + $0x178] sm:$0xff]
    %v7529 = vld [vmem:[%s7480 + $0x180] sm:$0xff]
    %v7530 = vld [vmem:[%s7480 + $0x188] sm:$0xff]
    %v7531 = vld [vmem:[%s7480 + $0x190] sm:$0xff]
    %v7532 = vld [vmem:[%s7480 + $0x198] sm:$0xff]
    %v7533 = vrot.slane %v6517, 3
    %v7534 = vrot.slane %v6523, 3
    %v7535 = vsel %vm603, %v7533, %v7534
    %v7536 = vrot.slane %v6519, 3
    %v7537 = vrot.slane %v6525, 3
    %v7538 = vsel %vm603, %v7536, %v7537
    %v7539 = vrot.slane %v6600, 3
    %v7540 = vrot.slane %v6606, 3
    %v7541 = vsel %vm603, %v7539, %v7540
    %v7542 = vrot.slane %v6602, 3
    %v7543 = vrot.slane %v6608, 3
    %v7544 = vsel %vm603, %v7542, %v7543
    %v7545 = vrot.slane %v6529, 3
    %v7546 = vsel %vm603, %v7534, %v7545
    %v7547 = vrot.slane %v6531, 3
    %v7548 = vsel %vm603, %v7537, %v7547
    %v7549 = vrot.slane %v6612, 3
    %v7550 = vsel %vm603, %v7540, %v7549
    %v7551 = vrot.slane %v6614, 3
    %v7552 = vsel %vm603, %v7543, %v7551
    %v7559 = vsel %vm1501, %v7544, 0
    %v7561 = vsel %vm1501, %v7552, 0
    %7563 = vmatprep.subr.mxu0 0.0
    %7564 = vmatpush1.msra.mxu0 %v7481
    %7565 = vmatprep.subr.mxu0 0.0
    %7566 = vmatpush1.msra.mxu0 %v7482
    %7567 = vmatprep.subr.mxu0 0.0
    %7568 = vmatpush1.msra.mxu0 %v7483
    %7569 = vmatprep.subr.mxu0 0.0
    %7570 = vmatpush1.msra.mxu0 %v7484
    %7571 = vmatprep.subr.mxu0 0.0
    %7572 = vmatpush1.msra.mxu0 %v7485
    %7573 = vmatprep.subr.mxu0 0.0
    %7574 = vmatpush1.msra.mxu0 %v7486
    %7575 = vmatprep.subr.mxu0 0.0
    %7576 = vmatpush1.msra.mxu0 %v7487
    %7577 = vmatprep.subr.mxu0 0.0
    %7578 = vmatpush1.msra.mxu0 %v7488
    %7579 = vmatprep.subr.mxu0 0.0
    %7580 = vmatpush1.msra.mxu0 %v7489
    %7581 = vmatprep.subr.mxu0 0.0
    %7582 = vmatpush1.msra.mxu0 %v7490
    %7583 = vmatprep.subr.mxu0 0.0
    %7584 = vmatpush1.msra.mxu0 %v7491
    %7585 = vmatprep.subr.mxu0 0.0
    %7586 = vmatpush1.msra.mxu0 %v7492
    %7587 = vmatprep.subr.mxu0 0.0
    %7588 = vmatpush1.msra.mxu0 %v7493
    %7589 = vmatprep.subr.mxu0 0.0
    %7590 = vmatpush1.msra.mxu0 %v7494
    %7591 = vmatprep.subr.mxu0 0.0
    %7592 = vmatpush1.msra.mxu0 %v7495
    %7593 = vmatprep.subr.mxu0 0.0
    %7594 = vmatpush1.msra.mxu0 %v7496
    %7595 = vmatprep.subr.mxu0 0.0
    %7596 = vmatpush1.msra.mxu0 %v7497
    %7597 = vmatprep.subr.mxu0 0.0
    %7598 = vmatpush1.msra.mxu0 %v7498
    %7599 = vmatprep.subr.mxu0 0.0
    %7600 = vmatpush1.msra.mxu0 %v7499
    %7601 = vmatprep.subr.mxu0 0.0
    %7602 = vmatpush1.msra.mxu0 %v7500
    %7603 = vmatprep.subr.mxu0 0.0
    %7604 = vmatpush1.msra.mxu0 %v7501
    %7605 = vmatprep.subr.mxu0 0.0
    %7606 = vmatpush1.msra.mxu0 %v7502
    %7607 = vmatprep.subr.mxu0 0.0
    %7608 = vmatpush1.msra.mxu0 %v7503
    %7609 = vmatprep.subr.mxu0 0.0
    %7610 = vmatpush1.msra.mxu0 %v7504
    %7611 = vmatprep.subr.mxu0 0.0
    %7612 = vmatpush1.msra.mxu0 %v7505
    %7613 = vmatprep.subr.mxu0 0.0
    %7614 = vmatpush1.msra.mxu0 %v7506
    %7615 = vmatprep.subr.mxu0 0.0
    %7616 = vmatpush1.msra.mxu0 %v7507
    %7617 = vmatprep.subr.mxu0 0.0
    %7618 = vmatpush1.msra.mxu0 %v7508
    %7619 = vmatprep.subr.mxu0 0.0
    %7620 = vmatpush1.msra.mxu0 %v7509
    %7621 = vmatprep.subr.mxu0 0.0
    %7622 = vmatpush1.msra.mxu0 %v7510
    %7623 = vmatprep.subr.mxu0 0.0
    %7624 = vmatpush1.msra.mxu0 %v7511
    %7625 = vmatprep.subr.mxu0 0.0
    %7626 = vmatpush1.msra.mxu0 %v7512
    %7627 = vmatprep.mubr.f32.mxu0 %v7538
    %7628 = vmatmul.mubr.f32.gmra.mrb[0].mxu0 %v7535
    %v7629 = vpop.f32.mrb[0].mxu0
    %v7630 = vadd.f32 0.0, %v7629
    %v7631 = vpop.f32.mrb[0].mxu0
    %7632 = vmatprep.mubr.f32.mxu0 %v7548
    %7633 = vmatmul.mubr.f32.gmra.mrb[0].mxu0 %v7546
    %v7634 = vpop.f32.mrb[0].mxu0
    %v7635 = vadd.f32 0.0, %v7634
    %v7636 = vpop.f32.mrb[0].mxu0
    %7637 = vdwg.mxu0
    %7638 = vmatprep.subr.mxu0 0.0
    %7639 = vmatpush1.msra.mxu0 %v7513
    %7640 = vmatprep.subr.mxu0 0.0
    %7641 = vmatpush1.msra.mxu0 %v7514
    %7642 = vmatprep.subr.mxu0 0.0
    %7643 = vmatpush1.msra.mxu0 %v7515
    %7644 = vmatprep.subr.mxu0 0.0
    %7645 = vmatpush1.msra.mxu0 %v7516
    %7646 = vmatprep.subr.mxu0 0.0
    %7647 = vmatpush1.msra.mxu0 %v7517
    %7648 = vmatprep.subr.mxu0 0.0
    %7649 = vmatpush1.msra.mxu0 %v7518
    %7650 = vmatprep.subr.mxu0 0.0
    %7651 = vmatpush1.msra.mxu0 %v7519
    %7652 = vmatprep.subr.mxu0 0.0
    %7653 = vmatpush1.msra.mxu0 %v7520
    %7654 = vmatprep.subr.mxu0 0.0
    %7655 = vmatpush1.msra.mxu0 %v7521
    %7656 = vmatprep.subr.mxu0 0.0
    %7657 = vmatpush1.msra.mxu0 %v7522
    %7658 = vmatprep.subr.mxu0 0.0
    %7659 = vmatpush1.msra.mxu0 %v7523
    %7660 = vmatprep.subr.mxu0 0.0
    %7661 = vmatpush1.msra.mxu0 %v7524
    %7662 = vmatprep.subr.mxu0 0.0
    %7663 = vmatpush1.msra.mxu0 %v7525
    %7664 = vmatprep.subr.mxu0 0.0
    %7665 = vmatpush1.msra.mxu0 %v7526
    %7666 = vmatprep.subr.mxu0 0.0
    %7667 = vmatpush1.msra.mxu0 %v7527
    %7668 = vmatprep.subr.mxu0 0.0
    %7669 = vmatpush1.msra.mxu0 %v7528
    %7670 = vmatprep.subr.mxu0 0.0
    %7671 = vmatpush1.msra.mxu0 %v7529
    %7672 = vmatprep.subr.mxu0 0.0
    %7673 = vmatpush1.msra.mxu0 %v7530
    %7674 = vmatprep.subr.mxu0 0.0
    %7675 = vmatpush1.msra.mxu0 %v7531
    %7676 = vmatprep.subr.mxu0 0.0
    %7677 = vmatpush1.msra.mxu0 %v7532
    %7678 = vmatprep.subr.mxu0 0.0
    %7679 = vmatpush1.msra.mxu0 0.0
    %7680 = vmatprep.subr.mxu0 0.0
    %7681 = vmatpush1.msra.mxu0 0.0
    %7682 = vmatprep.subr.mxu0 0.0
    %7683 = vmatpush1.msra.mxu0 0.0
    %7684 = vmatprep.subr.mxu0 0.0
    %7685 = vmatpush1.msra.mxu0 0.0
    %7686 = vmatprep.subr.mxu0 0.0
    %7687 = vmatpush1.msra.mxu0 0.0
    %7688 = vmatprep.subr.mxu0 0.0
    %7689 = vmatpush1.msra.mxu0 0.0
    %7690 = vmatprep.subr.mxu0 0.0
    %7691 = vmatpush1.msra.mxu0 0.0
    %7692 = vmatprep.subr.mxu0 0.0
    %7693 = vmatpush1.msra.mxu0 0.0
    %7694 = vmatprep.subr.mxu0 0.0
    %7695 = vmatpush1.msra.mxu0 0.0
    %7696 = vmatprep.subr.mxu0 0.0
    %7697 = vmatpush1.msra.mxu0 0.0
    %7698 = vmatprep.subr.mxu0 0.0
    %7699 = vmatpush1.msra.mxu0 0.0
    %7700 = vmatprep.subr.mxu0 0.0
    %7701 = vmatpush1.msra.mxu0 0.0
    %7702 = vmatprep.mubr.f32.mxu0 %v7559
    %7703 = vmatmul.mubr.f32.gmra.mrb[0].mxu0 %v7541
    %v7704 = vpop.f32.mrb[0].mxu0
    %v7705 = vadd.f32 %v7630, %v7704
    %v7706 = vpop.f32.mrb[0].mxu0
    %7707 = vmatprep.mubr.f32.mxu0 %v7561
    %7708 = vmatmul.mubr.f32.gmra.mrb[0].mxu0 %v7550
    %v7709 = vpop.f32.mrb[0].mxu0
    %v7710 = vadd.f32 %v7635, %v7709
    %v7711 = vpop.f32.mrb[0].mxu0
    %7712 = vdwg.mxu0
    %v7713 = vadd.f32 %v7478, %v7705
    %v7714 = vadd.f32 %v7479, %v7710
    %v7727 = vrot.slane %v6695, 1
    %v7728 = vrot.slane %v6701, 1
    %v7729 = vsel %vm94, %v7727, %v7728
    %v7730 = vrot.slane %v6697, 1
    %v7731 = vrot.slane %v6703, 1
    %v7732 = vsel %vm94, %v7730, %v7731
    %v7733 = vrot.slane %v6778, 1
    %v7734 = vrot.slane %v6784, 1
    %v7735 = vsel %vm94, %v7733, %v7734
    %v7736 = vrot.slane %v6780, 1
    %v7737 = vrot.slane %v6786, 1
    %v7738 = vsel %vm94, %v7736, %v7737
    %v7739 = vrot.slane %v6707, 1
    %v7740 = vsel %vm94, %v7728, %v7739
    %v7741 = vrot.slane %v6709, 1
    %v7742 = vsel %vm94, %v7731, %v7741
    %v7743 = vrot.slane %v6790, 1
    %v7744 = vsel %vm94, %v7734, %v7743
    %v7745 = vrot.slane %v6792, 1
    %v7746 = vsel %vm94, %v7737, %v7745
    %v7753 = vsel %vm1501, %v7738, 0
    %v7755 = vsel %vm1501, %v7746, 0
    %7757 = vmatprep.subr.mxu0 0.0
    %7758 = vmatpush1.msra.mxu0 %v6847
    %7759 = vmatprep.subr.mxu0 0.0
    %7760 = vmatpush1.msra.mxu0 %v6848
    %7761 = vmatprep.subr.mxu0 0.0
    %7762 = vmatpush1.msra.mxu0 %v6849
    %7763 = vmatprep.subr.mxu0 0.0
    %7764 = vmatpush1.msra.mxu0 %v6850
    %7765 = vmatprep.subr.mxu0 0.0
    %7766 = vmatpush1.msra.mxu0 %v6851
    %7767 = vmatprep.subr.mxu0 0.0
    %7768 = vmatpush1.msra.mxu0 %v6852
    %7769 = vmatprep.subr.mxu0 0.0
    %7770 = vmatpush1.msra.mxu0 %v6853
    %7771 = vmatprep.subr.mxu0 0.0
    %7772 = vmatpush1.msra.mxu0 %v6854
    %7773 = vmatprep.subr.mxu0 0.0
    %7774 = vmatpush1.msra.mxu0 %v6855
    %7775 = vmatprep.subr.mxu0 0.0
    %7776 = vmatpush1.msra.mxu0 %v6856
    %7777 = vmatprep.subr.mxu0 0.0
    %7778 = vmatpush1.msra.mxu0 %v6857
    %7779 = vmatprep.subr.mxu0 0.0
    %7780 = vmatpush1.msra.mxu0 %v6858
    %7781 = vmatprep.subr.mxu0 0.0
    %7782 = vmatpush1.msra.mxu0 %v6859
    %7783 = vmatprep.subr.mxu0 0.0
    %7784 = vmatpush1.msra.mxu0 %v6860
    %7785 = vmatprep.subr.mxu0 0.0
    %7786 = vmatpush1.msra.mxu0 %v6861
    %7787 = vmatprep.subr.mxu0 0.0
    %7788 = vmatpush1.msra.mxu0 %v6862
    %7789 = vmatprep.subr.mxu0 0.0
    %7790 = vmatpush1.msra.mxu0 %v6863
    %7791 = vmatprep.subr.mxu0 0.0
    %7792 = vmatpush1.msra.mxu0 %v6864
    %7793 = vmatprep.subr.mxu0 0.0
    %7794 = vmatpush1.msra.mxu0 %v6865
    %7795 = vmatprep.subr.mxu0 0.0
    %7796 = vmatpush1.msra.mxu0 %v6866
    %7797 = vmatprep.subr.mxu0 0.0
    %7798 = vmatpush1.msra.mxu0 %v6867
    %7799 = vmatprep.subr.mxu0 0.0
    %7800 = vmatpush1.msra.mxu0 %v6868
    %7801 = vmatprep.subr.mxu0 0.0
    %7802 = vmatpush1.msra.mxu0 %v6869
    %7803 = vmatprep.subr.mxu0 0.0
    %7804 = vmatpush1.msra.mxu0 %v6870
    %7805 = vmatprep.subr.mxu0 0.0
    %7806 = vmatpush1.msra.mxu0 %v6871
    %7807 = vmatprep.subr.mxu0 0.0
    %7808 = vmatpush1.msra.mxu0 %v6872
    %7809 = vmatprep.subr.mxu0 0.0
    %7810 = vmatpush1.msra.mxu0 %v6873
    %7811 = vmatprep.subr.mxu0 0.0
    %7812 = vmatpush1.msra.mxu0 %v6874
    %7813 = vmatprep.subr.mxu0 0.0
    %7814 = vmatpush1.msra.mxu0 %v6875
    %7815 = vmatprep.subr.mxu0 0.0
    %7816 = vmatpush1.msra.mxu0 %v6876
    %7817 = vmatprep.subr.mxu0 0.0
    %7818 = vmatpush1.msra.mxu0 %v6877
    %7819 = vmatprep.subr.mxu0 0.0
    %7820 = vmatpush1.msra.mxu0 %v6878
    %7821 = vmatprep.mubr.f32.mxu0 %v7732
    %7822 = vmatmul.mubr.f32.gmra.mrb[0].mxu0 %v7729
    %v7823 = vpop.f32.mrb[0].mxu0
    %v7824 = vadd.f32 0.0, %v7823
    %v7825 = vpop.f32.mrb[0].mxu0
    %7826 = vmatprep.mubr.f32.mxu0 %v7742
    %7827 = vmatmul.mubr.f32.gmra.mrb[0].mxu0 %v7740
    %v7828 = vpop.f32.mrb[0].mxu0
    %v7829 = vadd.f32 0.0, %v7828
    %v7830 = vpop.f32.mrb[0].mxu0
    %7831 = vdwg.mxu0
    %7832 = vmatprep.subr.mxu0 0.0
    %7833 = vmatpush1.msra.mxu0 %v6879
    %7834 = vmatprep.subr.mxu0 0.0
    %7835 = vmatpush1.msra.mxu0 %v6880
    %7836 = vmatprep.subr.mxu0 0.0
    %7837 = vmatpush1.msra.mxu0 %v6881
    %7838 = vmatprep.subr.mxu0 0.0
    %7839 = vmatpush1.msra.mxu0 %v6882
    %7840 = vmatprep.subr.mxu0 0.0
    %7841 = vmatpush1.msra.mxu0 %v6883
    %7842 = vmatprep.subr.mxu0 0.0
    %7843 = vmatpush1.msra.mxu0 %v6884
    %7844 = vmatprep.subr.mxu0 0.0
    %7845 = vmatpush1.msra.mxu0 %v6885
    %7846 = vmatprep.subr.mxu0 0.0
    %7847 = vmatpush1.msra.mxu0 %v6886
    %7848 = vmatprep.subr.mxu0 0.0
    %7849 = vmatpush1.msra.mxu0 %v6887
    %7850 = vmatprep.subr.mxu0 0.0
    %7851 = vmatpush1.msra.mxu0 %v6888
    %7852 = vmatprep.subr.mxu0 0.0
    %7853 = vmatpush1.msra.mxu0 %v6889
    %7854 = vmatprep.subr.mxu0 0.0
    %7855 = vmatpush1.msra.mxu0 %v6890
    %7856 = vmatprep.subr.mxu0 0.0
    %7857 = vmatpush1.msra.mxu0 %v6891
    %7858 = vmatprep.subr.mxu0 0.0
    %7859 = vmatpush1.msra.mxu0 %v6892
    %7860 = vmatprep.subr.mxu0 0.0
    %7861 = vmatpush1.msra.mxu0 %v6893
    %7862 = vmatprep.subr.mxu0 0.0
    %7863 = vmatpush1.msra.mxu0 %v6894
    %7864 = vmatprep.subr.mxu0 0.0
    %7865 = vmatpush1.msra.mxu0 %v6895
    %7866 = vmatprep.subr.mxu0 0.0
    %7867 = vmatpush1.msra.mxu0 %v6896
    %7868 = vmatprep.subr.mxu0 0.0
    %7869 = vmatpush1.msra.mxu0 %v6897
    %7870 = vmatprep.subr.mxu0 0.0
    %7871 = vmatpush1.msra.mxu0 %v6898
    %7872 = vmatprep.subr.mxu0 0.0
    %7873 = vmatpush1.msra.mxu0 0.0
    %7874 = vmatprep.subr.mxu0 0.0
    %7875 = vmatpush1.msra.mxu0 0.0
    %7876 = vmatprep.subr.mxu0 0.0
    %7877 = vmatpush1.msra.mxu0 0.0
    %7878 = vmatprep.subr.mxu0 0.0
    %7879 = vmatpush1.msra.mxu0 0.0
    %7880 = vmatprep.subr.mxu0 0.0
    %7881 = vmatpush1.msra.mxu0 0.0
    %7882 = vmatprep.subr.mxu0 0.0
    %7883 = vmatpush1.msra.mxu0 0.0
    %7884 = vmatprep.subr.mxu0 0.0
    %7885 = vmatpush1.msra.mxu0 0.0
    %7886 = vmatprep.subr.mxu0 0.0
    %7887 = vmatpush1.msra.mxu0 0.0
    %7888 = vmatprep.subr.mxu0 0.0
    %7889 = vmatpush1.msra.mxu0 0.0
    %7890 = vmatprep.subr.mxu0 0.0
    %7891 = vmatpush1.msra.mxu0 0.0
    %7892 = vmatprep.subr.mxu0 0.0
    %7893 = vmatpush1.msra.mxu0 0.0
    %7894 = vmatprep.subr.mxu0 0.0
    %7895 = vmatpush1.msra.mxu0 0.0
    %7896 = vmatprep.mubr.f32.mxu0 %v7753
    %7897 = vmatmul.mubr.f32.gmra.mrb[0].mxu0 %v7735
    %v7898 = vpop.f32.mrb[0].mxu0
    %v7899 = vadd.f32 %v7824, %v7898
    %v7900 = vpop.f32.mrb[0].mxu0
    %7901 = vmatprep.mubr.f32.mxu0 %v7755
    %7902 = vmatmul.mubr.f32.gmra.mrb[0].mxu0 %v7744
    %v7903 = vpop.f32.mrb[0].mxu0
    %v7904 = vadd.f32 %v7829, %v7903
    %v7905 = vpop.f32.mrb[0].mxu0
    %7906 = vdwg.mxu0
    %v7907 = vsel %vm1501, %v6780, 0
    %v7909 = vsel %vm1501, %v6786, 0
    %7911 = vmatprep.subr.mxu0 0.0
    %7912 = vmatpush1.msra.mxu0 %v6794
    %7913 = vmatprep.subr.mxu0 0.0
    %7914 = vmatpush1.msra.mxu0 %v6795
    %7915 = vmatprep.subr.mxu0 0.0
    %7916 = vmatpush1.msra.mxu0 %v6796
    %7917 = vmatprep.subr.mxu0 0.0
    %7918 = vmatpush1.msra.mxu0 %v6797
    %7919 = vmatprep.subr.mxu0 0.0
    %7920 = vmatpush1.msra.mxu0 %v6798
    %7921 = vmatprep.subr.mxu0 0.0
    %7922 = vmatpush1.msra.mxu0 %v6799
    %7923 = vmatprep.subr.mxu0 0.0
    %7924 = vmatpush1.msra.mxu0 %v6800
    %7925 = vmatprep.subr.mxu0 0.0
    %7926 = vmatpush1.msra.mxu0 %v6801
    %7927 = vmatprep.subr.mxu0 0.0
    %7928 = vmatpush1.msra.mxu0 %v6802
    %7929 = vmatprep.subr.mxu0 0.0
    %7930 = vmatpush1.msra.mxu0 %v6803
    %7931 = vmatprep.subr.mxu0 0.0
    %7932 = vmatpush1.msra.mxu0 %v6804
    %7933 = vmatprep.subr.mxu0 0.0
    %7934 = vmatpush1.msra.mxu0 %v6805
    %7935 = vmatprep.subr.mxu0 0.0
    %7936 = vmatpush1.msra.mxu0 %v6806
    %7937 = vmatprep.subr.mxu0 0.0
    %7938 = vmatpush1.msra.mxu0 %v6807
    %7939 = vmatprep.subr.mxu0 0.0
    %7940 = vmatpush1.msra.mxu0 %v6808
    %7941 = vmatprep.subr.mxu0 0.0
    %7942 = vmatpush1.msra.mxu0 %v6809
    %7943 = vmatprep.subr.mxu0 0.0
    %7944 = vmatpush1.msra.mxu0 %v6810
    %7945 = vmatprep.subr.mxu0 0.0
    %7946 = vmatpush1.msra.mxu0 %v6811
    %7947 = vmatprep.subr.mxu0 0.0
    %7948 = vmatpush1.msra.mxu0 %v6812
    %7949 = vmatprep.subr.mxu0 0.0
    %7950 = vmatpush1.msra.mxu0 %v6813
    %7951 = vmatprep.subr.mxu0 0.0
    %7952 = vmatpush1.msra.mxu0 %v6814
    %7953 = vmatprep.subr.mxu0 0.0
    %7954 = vmatpush1.msra.mxu0 %v6815
    %7955 = vmatprep.subr.mxu0 0.0
    %7956 = vmatpush1.msra.mxu0 %v6816
    %7957 = vmatprep.subr.mxu0 0.0
    %7958 = vmatpush1.msra.mxu0 %v6817
    %7959 = vmatprep.subr.mxu0 0.0
    %7960 = vmatpush1.msra.mxu0 %v6818
    %7961 = vmatprep.subr.mxu0 0.0
    %7962 = vmatpush1.msra.mxu0 %v6819
    %7963 = vmatprep.subr.mxu0 0.0
    %7964 = vmatpush1.msra.mxu0 %v6820
    %7965 = vmatprep.subr.mxu0 0.0
    %7966 = vmatpush1.msra.mxu0 %v6821
    %7967 = vmatprep.subr.mxu0 0.0
    %7968 = vmatpush1.msra.mxu0 %v6822
    %7969 = vmatprep.subr.mxu0 0.0
    %7970 = vmatpush1.msra.mxu0 %v6823
    %7971 = vmatprep.subr.mxu0 0.0
    %7972 = vmatpush1.msra.mxu0 %v6824
    %7973 = vmatprep.subr.mxu0 0.0
    %7974 = vmatpush1.msra.mxu0 %v6825
    %7975 = vmatprep.mubr.f32.mxu0 %v6697
    %7976 = vmatmul.mubr.f32.gmra.mrb[0].mxu0 %v6695
    %v7977 = vpop.f32.mrb[0].mxu0
    %v7978 = vadd.f32 %v7899, %v7977
    %v7979 = vpop.f32.mrb[0].mxu0
    %7980 = vmatprep.mubr.f32.mxu0 %v6703
    %7981 = vmatmul.mubr.f32.gmra.mrb[0].mxu0 %v6701
    %v7982 = vpop.f32.mrb[0].mxu0
    %v7983 = vadd.f32 %v7904, %v7982
    %v7984 = vpop.f32.mrb[0].mxu0
    %7985 = vdwg.mxu0
    %7986 = vmatprep.subr.mxu0 0.0
    %7987 = vmatpush1.msra.mxu0 %v6826
    %7988 = vmatprep.subr.mxu0 0.0
    %7989 = vmatpush1.msra.mxu0 %v6827
    %7990 = vmatprep.subr.mxu0 0.0
    %7991 = vmatpush1.msra.mxu0 %v6828
    %7992 = vmatprep.subr.mxu0 0.0
    %7993 = vmatpush1.msra.mxu0 %v6829
    %7994 = vmatprep.subr.mxu0 0.0
    %7995 = vmatpush1.msra.mxu0 %v6830
    %7996 = vmatprep.subr.mxu0 0.0
    %7997 = vmatpush1.msra.mxu0 %v6831
    %7998 = vmatprep.subr.mxu0 0.0
    %7999 = vmatpush1.msra.mxu0 %v6832
    %8000 = vmatprep.subr.mxu0 0.0
    %8001 = vmatpush1.msra.mxu0 %v6833
    %8002 = vmatprep.subr.mxu0 0.0
    %8003 = vmatpush1.msra.mxu0 %v6834
    %8004 = vmatprep.subr.mxu0 0.0
    %8005 = vmatpush1.msra.mxu0 %v6835
    %8006 = vmatprep.subr.mxu0 0.0
    %8007 = vmatpush1.msra.mxu0 %v6836
    %8008 = vmatprep.subr.mxu0 0.0
    %8009 = vmatpush1.msra.mxu0 %v6837
    %8010 = vmatprep.subr.mxu0 0.0
    %8011 = vmatpush1.msra.mxu0 %v6838
    %8012 = vmatprep.subr.mxu0 0.0
    %8013 = vmatpush1.msra.mxu0 %v6839
    %8014 = vmatprep.subr.mxu0 0.0
    %8015 = vmatpush1.msra.mxu0 %v6840
    %8016 = vmatprep.subr.mxu0 0.0
    %8017 = vmatpush1.msra.mxu0 %v6841
    %8018 = vmatprep.subr.mxu0 0.0
    %8019 = vmatpush1.msra.mxu0 %v6842
    %8020 = vmatprep.subr.mxu0 0.0
    %8021 = vmatpush1.msra.mxu0 %v6843
    %8022 = vmatprep.subr.mxu0 0.0
    %8023 = vmatpush1.msra.mxu0 %v6844
    %8024 = vmatprep.subr.mxu0 0.0
    %8025 = vmatpush1.msra.mxu0 %v6845
    %8026 = vmatprep.subr.mxu0 0.0
    %8027 = vmatpush1.msra.mxu0 0.0
    %8028 = vmatprep.subr.mxu0 0.0
    %8029 = vmatpush1.msra.mxu0 0.0
    %8030 = vmatprep.subr.mxu0 0.0
    %8031 = vmatpush1.msra.mxu0 0.0
    %8032 = vmatprep.subr.mxu0 0.0
    %8033 = vmatpush1.msra.mxu0 0.0
    %8034 = vmatprep.subr.mxu0 0.0
    %8035 = vmatpush1.msra.mxu0 0.0
    %8036 = vmatprep.subr.mxu0 0.0
    %8037 = vmatpush1.msra.mxu0 0.0
    %8038 = vmatprep.subr.mxu0 0.0
    %8039 = vmatpush1.msra.mxu0 0.0
    %8040 = vmatprep.subr.mxu0 0.0
    %8041 = vmatpush1.msra.mxu0 0.0
    %8042 = vmatprep.subr.mxu0 0.0
    %8043 = vmatpush1.msra.mxu0 0.0
    %8044 = vmatprep.subr.mxu0 0.0
    %8045 = vmatpush1.msra.mxu0 0.0
    %8046 = vmatprep.subr.mxu0 0.0
    %8047 = vmatpush1.msra.mxu0 0.0
    %8048 = vmatprep.subr.mxu0 0.0
    %8049 = vmatpush1.msra.mxu0 0.0
    %8050 = vmatprep.mubr.f32.mxu0 %v7907
    %8051 = vmatmul.mubr.f32.gmra.mrb[0].mxu0 %v6778
    %v8052 = vpop.f32.mrb[0].mxu0
    %v8053 = vadd.f32 %v7978, %v8052
    %v8054 = vpop.f32.mrb[0].mxu0
    %8055 = vmatprep.mubr.f32.mxu0 %v7909
    %8056 = vmatmul.mubr.f32.gmra.mrb[0].mxu0 %v6784
    %v8057 = vpop.f32.mrb[0].mxu0
    %v8058 = vadd.f32 %v7983, %v8057
    %v8059 = vpop.f32.mrb[0].mxu0
    %8060 = vdwg.mxu0
    %v8061 = vrot.slane %v6695, 2
    %v8062 = vrot.slane %v6701, 2
    %v8063 = vsel %vm424, %v8061, %v8062
    %v8064 = vrot.slane %v6697, 2
    %v8065 = vrot.slane %v6703, 2
    %v8066 = vsel %vm424, %v8064, %v8065
    %v8067 = vrot.slane %v6778, 2
    %v8068 = vrot.slane %v6784, 2
    %v8069 = vsel %vm424, %v8067, %v8068
    %v8070 = vrot.slane %v6780, 2
    %v8071 = vrot.slane %v6786, 2
    %v8072 = vsel %vm424, %v8070, %v8071
    %v8073 = vrot.slane %v6707, 2
    %v8074 = vsel %vm424, %v8062, %v8073
    %v8075 = vrot.slane %v6709, 2
    %v8076 = vsel %vm424, %v8065, %v8075
    %v8077 = vrot.slane %v6790, 2
    %v8078 = vsel %vm424, %v8068, %v8077
    %v8079 = vrot.slane %v6792, 2
    %v8080 = vsel %vm424, %v8071, %v8079
    %v8087 = vsel %vm1501, %v8072, 0
    %v8089 = vsel %vm1501, %v8080, 0
    %8091 = vmatprep.subr.mxu0 0.0
    %8092 = vmatpush1.msra.mxu0 %v7246
    %8093 = vmatprep.subr.mxu0 0.0
    %8094 = vmatpush1.msra.mxu0 %v7247
    %8095 = vmatprep.subr.mxu0 0.0
    %8096 = vmatpush1.msra.mxu0 %v7248
    %8097 = vmatprep.subr.mxu0 0.0
    %8098 = vmatpush1.msra.mxu0 %v7249
    %8099 = vmatprep.subr.mxu0 0.0
    %8100 = vmatpush1.msra.mxu0 %v7250
    %8101 = vmatprep.subr.mxu0 0.0
    %8102 = vmatpush1.msra.mxu0 %v7251
    %8103 = vmatprep.subr.mxu0 0.0
    %8104 = vmatpush1.msra.mxu0 %v7252
    %8105 = vmatprep.subr.mxu0 0.0
    %8106 = vmatpush1.msra.mxu0 %v7253
    %8107 = vmatprep.subr.mxu0 0.0
    %8108 = vmatpush1.msra.mxu0 %v7254
    %8109 = vmatprep.subr.mxu0 0.0
    %8110 = vmatpush1.msra.mxu0 %v7255
    %8111 = vmatprep.subr.mxu0 0.0
    %8112 = vmatpush1.msra.mxu0 %v7256
    %8113 = vmatprep.subr.mxu0 0.0
    %8114 = vmatpush1.msra.mxu0 %v7257
    %8115 = vmatprep.subr.mxu0 0.0
    %8116 = vmatpush1.msra.mxu0 %v7258
    %8117 = vmatprep.subr.mxu0 0.0
    %8118 = vmatpush1.msra.mxu0 %v7259
    %8119 = vmatprep.subr.mxu0 0.0
    %8120 = vmatpush1.msra.mxu0 %v7260
    %8121 = vmatprep.subr.mxu0 0.0
    %8122 = vmatpush1.msra.mxu0 %v7261
    %8123 = vmatprep.subr.mxu0 0.0
    %8124 = vmatpush1.msra.mxu0 %v7262
    %8125 = vmatprep.subr.mxu0 0.0
    %8126 = vmatpush1.msra.mxu0 %v7263
    %8127 = vmatprep.subr.mxu0 0.0
    %8128 = vmatpush1.msra.mxu0 %v7264
    %8129 = vmatprep.subr.mxu0 0.0
    %8130 = vmatpush1.msra.mxu0 %v7265
    %8131 = vmatprep.subr.mxu0 0.0
    %8132 = vmatpush1.msra.mxu0 %v7266
    %8133 = vmatprep.subr.mxu0 0.0
    %8134 = vmatpush1.msra.mxu0 %v7267
    %8135 = vmatprep.subr.mxu0 0.0
    %8136 = vmatpush1.msra.mxu0 %v7268
    %8137 = vmatprep.subr.mxu0 0.0
    %8138 = vmatpush1.msra.mxu0 %v7269
    %8139 = vmatprep.subr.mxu0 0.0
    %8140 = vmatpush1.msra.mxu0 %v7270
    %8141 = vmatprep.subr.mxu0 0.0
    %8142 = vmatpush1.msra.mxu0 %v7271
    %8143 = vmatprep.subr.mxu0 0.0
    %8144 = vmatpush1.msra.mxu0 %v7272
    %8145 = vmatprep.subr.mxu0 0.0
    %8146 = vmatpush1.msra.mxu0 %v7273
    %8147 = vmatprep.subr.mxu0 0.0
    %8148 = vmatpush1.msra.mxu0 %v7274
    %8149 = vmatprep.subr.mxu0 0.0
    %8150 = vmatpush1.msra.mxu0 %v7275
    %8151 = vmatprep.subr.mxu0 0.0
    %8152 = vmatpush1.msra.mxu0 %v7276
    %8153 = vmatprep.subr.mxu0 0.0
    %8154 = vmatpush1.msra.mxu0 %v7277
    %8155 = vmatprep.mubr.f32.mxu0 %v8066
    %8156 = vmatmul.mubr.f32.gmra.mrb[0].mxu0 %v8063
    %v8157 = vpop.f32.mrb[0].mxu0
    %v8158 = vadd.f32 0.0, %v8157
    %v8159 = vpop.f32.mrb[0].mxu0
    %8160 = vmatprep.mubr.f32.mxu0 %v8076
    %8161 = vmatmul.mubr.f32.gmra.mrb[0].mxu0 %v8074
    %v8162 = vpop.f32.mrb[0].mxu0
    %v8163 = vadd.f32 0.0, %v8162
    %v8164 = vpop.f32.mrb[0].mxu0
    %8165 = vdwg.mxu0
    %8166 = vmatprep.subr.mxu0 0.0
    %8167 = vmatpush1.msra.mxu0 %v7278
    %8168 = vmatprep.subr.mxu0 0.0
    %8169 = vmatpush1.msra.mxu0 %v7279
    %8170 = vmatprep.subr.mxu0 0.0
    %8171 = vmatpush1.msra.mxu0 %v7280
    %8172 = vmatprep.subr.mxu0 0.0
    %8173 = vmatpush1.msra.mxu0 %v7281
    %8174 = vmatprep.subr.mxu0 0.0
    %8175 = vmatpush1.msra.mxu0 %v7282
    %8176 = vmatprep.subr.mxu0 0.0
    %8177 = vmatpush1.msra.mxu0 %v7283
    %8178 = vmatprep.subr.mxu0 0.0
    %8179 = vmatpush1.msra.mxu0 %v7284
    %8180 = vmatprep.subr.mxu0 0.0
    %8181 = vmatpush1.msra.mxu0 %v7285
    %8182 = vmatprep.subr.mxu0 0.0
    %8183 = vmatpush1.msra.mxu0 %v7286
    %8184 = vmatprep.subr.mxu0 0.0
    %8185 = vmatpush1.msra.mxu0 %v7287
    %8186 = vmatprep.subr.mxu0 0.0
    %8187 = vmatpush1.msra.mxu0 %v7288
    %8188 = vmatprep.subr.mxu0 0.0
    %8189 = vmatpush1.msra.mxu0 %v7289
    %8190 = vmatprep.subr.mxu0 0.0
    %8191 = vmatpush1.msra.mxu0 %v7290
    %8192 = vmatprep.subr.mxu0 0.0
    %8193 = vmatpush1.msra.mxu0 %v7291
    %8194 = vmatprep.subr.mxu0 0.0
    %8195 = vmatpush1.msra.mxu0 %v7292
    %8196 = vmatprep.subr.mxu0 0.0
    %8197 = vmatpush1.msra.mxu0 %v7293
    %8198 = vmatprep.subr.mxu0 0.0
    %8199 = vmatpush1.msra.mxu0 %v7294
    %8200 = vmatprep.subr.mxu0 0.0
    %8201 = vmatpush1.msra.mxu0 %v7295
    %8202 = vmatprep.subr.mxu0 0.0
    %8203 = vmatpush1.msra.mxu0 %v7296
    %8204 = vmatprep.subr.mxu0 0.0
    %8205 = vmatpush1.msra.mxu0 %v7297
    %8206 = vmatprep.subr.mxu0 0.0
    %8207 = vmatpush1.msra.mxu0 0.0
    %8208 = vmatprep.subr.mxu0 0.0
    %8209 = vmatpush1.msra.mxu0 0.0
    %8210 = vmatprep.subr.mxu0 0.0
    %8211 = vmatpush1.msra.mxu0 0.0
    %8212 = vmatprep.subr.mxu0 0.0
    %8213 = vmatpush1.msra.mxu0 0.0
    %8214 = vmatprep.subr.mxu0 0.0
    %8215 = vmatpush1.msra.mxu0 0.0
    %8216 = vmatprep.subr.mxu0 0.0
    %8217 = vmatpush1.msra.mxu0 0.0
    %8218 = vmatprep.subr.mxu0 0.0
    %8219 = vmatpush1.msra.mxu0 0.0
    %8220 = vmatprep.subr.mxu0 0.0
    %8221 = vmatpush1.msra.mxu0 0.0
    %8222 = vmatprep.subr.mxu0 0.0
    %8223 = vmatpush1.msra.mxu0 0.0
    %8224 = vmatprep.subr.mxu0 0.0
    %8225 = vmatpush1.msra.mxu0 0.0
    %8226 = vmatprep.subr.mxu0 0.0
    %8227 = vmatpush1.msra.mxu0 0.0
    %8228 = vmatprep.subr.mxu0 0.0
    %8229 = vmatpush1.msra.mxu0 0.0
    %8230 = vmatprep.mubr.f32.mxu0 %v8087
    %8231 = vmatmul.mubr.f32.gmra.mrb[0].mxu0 %v8069
    %v8232 = vpop.f32.mrb[0].mxu0
    %v8233 = vadd.f32 %v8158, %v8232
    %v8234 = vpop.f32.mrb[0].mxu0
    %8235 = vmatprep.mubr.f32.mxu0 %v8089
    %8236 = vmatmul.mubr.f32.gmra.mrb[0].mxu0 %v8078
    %v8237 = vpop.f32.mrb[0].mxu0
    %v8238 = vadd.f32 %v8163, %v8237
    %v8239 = vpop.f32.mrb[0].mxu0
    %8240 = vdwg.mxu0
    %v8241 = vadd.f32 %v8053, %v8233
    %v8242 = vadd.f32 %v8058, %v8238
    %v8243 = vrot.slane %v6695, 3
    %v8244 = vrot.slane %v6701, 3
    %v8245 = vsel %vm603, %v8243, %v8244
    %v8246 = vrot.slane %v6697, 3
    %v8247 = vrot.slane %v6703, 3
    %v8248 = vsel %vm603, %v8246, %v8247
    %v8249 = vrot.slane %v6778, 3
    %v8250 = vrot.slane %v6784, 3
    %v8251 = vsel %vm603, %v8249, %v8250
    %v8252 = vrot.slane %v6780, 3
    %v8253 = vrot.slane %v6786, 3
    %v8254 = vsel %vm603, %v8252, %v8253
    %v8255 = vrot.slane %v6707, 3
    %v8256 = vsel %vm603, %v8244, %v8255
    %v8257 = vrot.slane %v6709, 3
    %v8258 = vsel %vm603, %v8247, %v8257
    %v8259 = vrot.slane %v6790, 3
    %v8260 = vsel %vm603, %v8250, %v8259
    %v8261 = vrot.slane %v6792, 3
    %v8262 = vsel %vm603, %v8253, %v8261
    %v8269 = vsel %vm1501, %v8254, 0
    %v8271 = vsel %vm1501, %v8262, 0
    %8273 = vmatprep.subr.mxu0 0.0
    %8274 = vmatpush1.msra.mxu0 %v7481
    %8275 = vmatprep.subr.mxu0 0.0
    %8276 = vmatpush1.msra.mxu0 %v7482
    %8277 = vmatprep.subr.mxu0 0.0
    %8278 = vmatpush1.msra.mxu0 %v7483
    %8279 = vmatprep.subr.mxu0 0.0
    %8280 = vmatpush1.msra.mxu0 %v7484
    %8281 = vmatprep.subr.mxu0 0.0
    %8282 = vmatpush1.msra.mxu0 %v7485
    %8283 = vmatprep.subr.mxu0 0.0
    %8284 = vmatpush1.msra.mxu0 %v7486
    %8285 = vmatprep.subr.mxu0 0.0
    %8286 = vmatpush1.msra.mxu0 %v7487
    %8287 = vmatprep.subr.mxu0 0.0
    %8288 = vmatpush1.msra.mxu0 %v7488
    %8289 = vmatprep.subr.mxu0 0.0
    %8290 = vmatpush1.msra.mxu0 %v7489
    %8291 = vmatprep.subr.mxu0 0.0
    %8292 = vmatpush1.msra.mxu0 %v7490
    %8293 = vmatprep.subr.mxu0 0.0
    %8294 = vmatpush1.msra.mxu0 %v7491
    %8295 = vmatprep.subr.mxu0 0.0
    %8296 = vmatpush1.msra.mxu0 %v7492
    %8297 = vmatprep.subr.mxu0 0.0
    %8298 = vmatpush1.msra.mxu0 %v7493
    %8299 = vmatprep.subr.mxu0 0.0
    %8300 = vmatpush1.msra.mxu0 %v7494
    %8301 = vmatprep.subr.mxu0 0.0
    %8302 = vmatpush1.msra.mxu0 %v7495
    %8303 = vmatprep.subr.mxu0 0.0
    %8304 = vmatpush1.msra.mxu0 %v7496
    %8305 = vmatprep.subr.mxu0 0.0
    %8306 = vmatpush1.msra.mxu0 %v7497
    %8307 = vmatprep.subr.mxu0 0.0
    %8308 = vmatpush1.msra.mxu0 %v7498
    %8309 = vmatprep.subr.mxu0 0.0
    %8310 = vmatpush1.msra.mxu0 %v7499
    %8311 = vmatprep.subr.mxu0 0.0
    %8312 = vmatpush1.msra.mxu0 %v7500
    %8313 = vmatprep.subr.mxu0 0.0
    %8314 = vmatpush1.msra.mxu0 %v7501
    %8315 = vmatprep.subr.mxu0 0.0
    %8316 = vmatpush1.msra.mxu0 %v7502
    %8317 = vmatprep.subr.mxu0 0.0
    %8318 = vmatpush1.msra.mxu0 %v7503
    %8319 = vmatprep.subr.mxu0 0.0
    %8320 = vmatpush1.msra.mxu0 %v7504
    %8321 = vmatprep.subr.mxu0 0.0
    %8322 = vmatpush1.msra.mxu0 %v7505
    %8323 = vmatprep.subr.mxu0 0.0
    %8324 = vmatpush1.msra.mxu0 %v7506
    %8325 = vmatprep.subr.mxu0 0.0
    %8326 = vmatpush1.msra.mxu0 %v7507
    %8327 = vmatprep.subr.mxu0 0.0
    %8328 = vmatpush1.msra.mxu0 %v7508
    %8329 = vmatprep.subr.mxu0 0.0
    %8330 = vmatpush1.msra.mxu0 %v7509
    %8331 = vmatprep.subr.mxu0 0.0
    %8332 = vmatpush1.msra.mxu0 %v7510
    %8333 = vmatprep.subr.mxu0 0.0
    %8334 = vmatpush1.msra.mxu0 %v7511
    %8335 = vmatprep.subr.mxu0 0.0
    %8336 = vmatpush1.msra.mxu0 %v7512
    %8337 = vmatprep.mubr.f32.mxu0 %v8248
    %8338 = vmatmul.mubr.f32.gmra.mrb[0].mxu0 %v8245
    %v8339 = vpop.f32.mrb[0].mxu0
    %v8340 = vadd.f32 0.0, %v8339
    %v8341 = vpop.f32.mrb[0].mxu0
    %8342 = vmatprep.mubr.f32.mxu0 %v8258
    %8343 = vmatmul.mubr.f32.gmra.mrb[0].mxu0 %v8256
    %v8344 = vpop.f32.mrb[0].mxu0
    %v8345 = vadd.f32 0.0, %v8344
    %v8346 = vpop.f32.mrb[0].mxu0
    %8347 = vdwg.mxu0
    %8348 = vmatprep.subr.mxu0 0.0
    %8349 = vmatpush1.msra.mxu0 %v7513
    %8350 = vmatprep.subr.mxu0 0.0
    %8351 = vmatpush1.msra.mxu0 %v7514
    %8352 = vmatprep.subr.mxu0 0.0
    %8353 = vmatpush1.msra.mxu0 %v7515
    %8354 = vmatprep.subr.mxu0 0.0
    %8355 = vmatpush1.msra.mxu0 %v7516
    %8356 = vmatprep.subr.mxu0 0.0
    %8357 = vmatpush1.msra.mxu0 %v7517
    %8358 = vmatprep.subr.mxu0 0.0
    %8359 = vmatpush1.msra.mxu0 %v7518
    %8360 = vmatprep.subr.mxu0 0.0
    %8361 = vmatpush1.msra.mxu0 %v7519
    %8362 = vmatprep.subr.mxu0 0.0
    %8363 = vmatpush1.msra.mxu0 %v7520
    %8364 = vmatprep.subr.mxu0 0.0
    %8365 = vmatpush1.msra.mxu0 %v7521
    %8366 = vmatprep.subr.mxu0 0.0
    %8367 = vmatpush1.msra.mxu0 %v7522
    %8368 = vmatprep.subr.mxu0 0.0
    %8369 = vmatpush1.msra.mxu0 %v7523
    %8370 = vmatprep.subr.mxu0 0.0
    %8371 = vmatpush1.msra.mxu0 %v7524
    %8372 = vmatprep.subr.mxu0 0.0
    %8373 = vmatpush1.msra.mxu0 %v7525
    %8374 = vmatprep.subr.mxu0 0.0
    %8375 = vmatpush1.msra.mxu0 %v7526
    %8376 = vmatprep.subr.mxu0 0.0
    %8377 = vmatpush1.msra.mxu0 %v7527
    %8378 = vmatprep.subr.mxu0 0.0
    %8379 = vmatpush1.msra.mxu0 %v7528
    %8380 = vmatprep.subr.mxu0 0.0
    %8381 = vmatpush1.msra.mxu0 %v7529
    %8382 = vmatprep.subr.mxu0 0.0
    %8383 = vmatpush1.msra.mxu0 %v7530
    %8384 = vmatprep.subr.mxu0 0.0
    %8385 = vmatpush1.msra.mxu0 %v7531
    %8386 = vmatprep.subr.mxu0 0.0
    %8387 = vmatpush1.msra.mxu0 %v7532
    %8388 = vmatprep.subr.mxu0 0.0
    %8389 = vmatpush1.msra.mxu0 0.0
    %8390 = vmatprep.subr.mxu0 0.0
    %8391 = vmatpush1.msra.mxu0 0.0
    %8392 = vmatprep.subr.mxu0 0.0
    %8393 = vmatpush1.msra.mxu0 0.0
    %8394 = vmatprep.subr.mxu0 0.0
    %8395 = vmatpush1.msra.mxu0 0.0
    %8396 = vmatprep.subr.mxu0 0.0
    %8397 = vmatpush1.msra.mxu0 0.0
    %8398 = vmatprep.subr.mxu0 0.0
    %8399 = vmatpush1.msra.mxu0 0.0
    %8400 = vmatprep.subr.mxu0 0.0
    %8401 = vmatpush1.msra.mxu0 0.0
    %8402 = vmatprep.subr.mxu0 0.0
    %8403 = vmatpush1.msra.mxu0 0.0
    %8404 = vmatprep.subr.mxu0 0.0
    %8405 = vmatpush1.msra.mxu0 0.0
    %8406 = vmatprep.subr.mxu0 0.0
    %8407 = vmatpush1.msra.mxu0 0.0
    %8408 = vmatprep.subr.mxu0 0.0
    %8409 = vmatpush1.msra.mxu0 0.0
    %8410 = vmatprep.subr.mxu0 0.0
    %8411 = vmatpush1.msra.mxu0 0.0
    %8412 = vmatprep.mubr.f32.mxu0 %v8269
    %8413 = vmatmul.mubr.f32.gmra.mrb[0].mxu0 %v8251
    %v8414 = vpop.f32.mrb[0].mxu0
    %v8415 = vadd.f32 %v8340, %v8414
    %v8416 = vpop.f32.mrb[0].mxu0
    %8417 = vmatprep.mubr.f32.mxu0 %v8271
    %8418 = vmatmul.mubr.f32.gmra.mrb[0].mxu0 %v8260
    %v8419 = vpop.f32.mrb[0].mxu0
    %v8420 = vadd.f32 %v8345, %v8419
    %v8421 = vpop.f32.mrb[0].mxu0
    %8422 = vdwg.mxu0
    %v8423 = vadd.f32 %v8241, %v8415
    %v8424 = vadd.f32 %v8242, %v8420
    %s8425 = sld [smem:[#allocation2]]
    %s8426 = sld [smem:[#allocation2 + $0x1]]
    %s8427 = sld [smem:[#allocation2 + $0x2]]
    %v8428 = vstv %s8425
    %v8429 = vadd.f32 %v7713, %v8428
    %v8430 = vadd.f32 %v7714, %v8428
    %v8431 = vadd.f32 %v8423, %v8428
    %v8432 = vadd.f32 %v8424, %v8428
    %v8433 = vsel %vm98, %v8429, 0.0
    %8434 = vadd.xlane.f32.xlu0 %v8433
    %v8435 = vpop.xlane.xlu0 %8434
    %v8436 = vsel %vm98, %v8430, 0.0
    %8437 = vadd.xlane.f32.xlu0 %v8436
    %v8438 = vpop.xlane.xlu0 %8437
    %v8439 = vadd.f32 %v8435, %v8438
    %v8440 = vrot.slane %v8439, 4
    %v8441 = vadd.f32 %v8439, %v8440
    %v8442 = vrot.slane %v8441, 2
    %v8443 = vadd.f32 %v8441, %v8442
    %v8444 = vrot.slane %v8443, 1
    %v8445 = vadd.f32 %v8443, %v8444
    %v8446 = vmul.f32 %v8429, %v8429
    %v8447 = vmul.f32 %v8430, %v8430
    %v8448 = vsel %vm98, %v8446, 0.0
    %8449 = vadd.xlane.f32.xlu0 %v8448
    %v8450 = vpop.xlane.xlu0 %8449
    %v8451 = vsel %vm98, %v8447, 0.0
    %8452 = vadd.xlane.f32.xlu0 %v8451
    %v8453 = vpop.xlane.xlu0 %8452
    %v8454 = vadd.f32 %v8450, %v8453
    %v8455 = vrot.slane %v8454, 4
    %v8456 = vadd.f32 %v8454, %v8455
    %v8457 = vrot.slane %v8456, 2
    %v8458 = vadd.f32 %v8456, %v8457
    %v8459 = vrot.slane %v8458, 1
    %v8460 = vadd.f32 %v8458, %v8459
    %v8461 = vsel %vm98, %v8431, 0.0
    %8462 = vadd.xlane.f32.xlu0 %v8461
    %v8463 = vpop.xlane.xlu0 %8462
    %v8464 = vsel %vm98, %v8432, 0.0
    %8465 = vadd.xlane.f32.xlu0 %v8464
    %v8466 = vpop.xlane.xlu0 %8465
    %v8467 = vadd.f32 %v8463, %v8466
    %v8468 = vrot.slane %v8467, 4
    %v8469 = vadd.f32 %v8467, %v8468
    %v8470 = vrot.slane %v8469, 2
    %v8471 = vadd.f32 %v8469, %v8470
    %v8472 = vrot.slane %v8471, 1
    %v8473 = vadd.f32 %v8471, %v8472
    %v8474 = vmul.f32 %v8431, %v8431
    %v8475 = vmul.f32 %v8432, %v8432
    %v8476 = vsel %vm98, %v8474, 0.0
    %8477 = vadd.xlane.f32.xlu0 %v8476
    %v8478 = vpop.xlane.xlu0 %8477
    %v8479 = vsel %vm98, %v8475, 0.0
    %8480 = vadd.xlane.f32.xlu0 %v8479
    %v8481 = vpop.xlane.xlu0 %8480
    %v8482 = vadd.f32 %v8478, %v8481
    %v8483 = vrot.slane %v8482, 4
    %v8484 = vadd.f32 %v8482, %v8483
    %v8485 = vrot.slane %v8484, 2
    %v8486 = vadd.f32 %v8484, %v8485
    %v8487 = vrot.slane %v8486, 1
    %v8488 = vadd.f32 %v8486, %v8487
    %v8489 = vadd.f32 %v8445, %v8473
    %v8490 = vadd.f32 %v8460, %v8488
    %v8491 = vmul.f32 %v8489, 0.001953125
    %v8492 = vmul.f32 %v8490, 0.001953125
    %v8493 = vmul.f32 %v8491, %v8491
    %v8494 = vsub.f32 %v8492, %v8493
    %v8495 = vmax.f32 %v8494, 0.0
    %v8496 = vadd.f32 %v8495, 1e-05
    %v8497 = vrsqrt.pop %v8496
    %v8498 = vstv %s8426
    %v8499 = vmul.f32 %v8498, %v8497
    %v8500 = vmul.f32 %v8491, %v8499
    %v8501 = vstv %s8427
    %v8502 = vsub.f32 %v8501, %v8500
    %v8503 = vmul.f32 %v8429, %v8499
    %v8504 = vmul.f32 %v8430, %v8499
    %v8505 = vadd.f32 %v8503, %v8502
    %v8506 = vadd.f32 %v8504, %v8502
    %v8507 = vsub.f32 0.0, %v8505
    %v8508 = vsub.f32 0.0, %v8506
    %v8509 = vmul.f32 %v8507, 1.442695
    %v8510 = vpow.pop %v8509
    %v8511 = vmul.f32 %v8508, 1.442695
    %v8512 = vpow.pop %v8511
    %v8513 = vadd.f32 %v8510, 1.0
    %v8514 = vadd.f32 %v8512, 1.0
    %v8515 = vrcp.pop %v8513
    %v8516 = vrcp.pop %v8514
    %8517 = vst.msk [vmem:[#allocation5] sm:$0xff] %vm98, %v8515
    %8518 = vst.msk [vmem:[#allocation5 + $0x8] sm:$0xff] %vm98, %v8516
    %v8519 = vmul.f32 %v8431, %v8499
    %v8520 = vmul.f32 %v8432, %v8499
    %v8521 = vadd.f32 %v8519, %v8502
    %v8522 = vadd.f32 %v8520, %v8502
    %v8523 = vsub.f32 0.0, %v8521
    %v8524 = vsub.f32 0.0, %v8522
    %v8525 = vmul.f32 %v8523, 1.442695
    %v8526 = vpow.pop %v8525
    %v8527 = vmul.f32 %v8524, 1.442695
    %v8528 = vpow.pop %v8527
    %v8529 = vadd.f32 %v8526, 1.0
    %v8530 = vadd.f32 %v8528, 1.0
    %v8531 = vrcp.pop %v8529
    %v8532 = vrcp.pop %v8530
    %s8533 = scalar_lea.vmem [#allocation5], 16
    %8534 = vst.msk [vmem:[%s8533] sm:$0xff] %vm98, %v8531
    %8535 = vst.msk [vmem:[%s8533 + $0x8] sm:$0xff] %vm98, %v8532
    // Predicated region
    $region74: #{conv_autoencoder_forward.1} parent=1 // pred_check
      _
    $region75: #{conv_autoencoder_forward.1} parent=1 // pred_check_branch
      %8537 = sbr.rel (0) target = $region77
    $region76: #{conv_autoencoder_forward.1} parent=1 // pred_region
      %s8539 = ssub.s32 512, 512
      %8540 = vsyncadd [#allocation3], %s8539
      %s8541 = sshll.u32 [#allocation5], 4
      %s8542 = int_to_ptr.vmem [resolvable:$true] %s8541
      %8547 = dma.vmem_to_hbm [thread:$0]  %s8542, 512, %s17, [#allocation3], 128, 128, 8
    $region77: #{conv_autoencoder_forward.1} parent=1 // pred_fallthru
      _
    // Predicated region
    $region78: #{conv_autoencoder_forward.1} parent=1 // pred_check
      _
    $region79: #{conv_autoencoder_forward.1} parent=1 // pred_check_branch
      %8549 = sbr.rel (0) target = $region81
    $region80: #{conv_autoencoder_forward.1} parent=1 // pred_region
      %8550 = dma.done [#allocation3], 512
    $region81: #{conv_autoencoder_forward.1} parent=1 // pred_fallthru
      _
    %8551 = vsyncpa [#allocation3], 1
    %8552 = vsyncpa [#allocation4], 1

</llo_original>
